<compile_context>
chip_gen: v7x
topology: tpu7x:2x2x1
jax: 0.10.0
libtpu: 0.0.40
codegen_flags: <defaults>
</compile_context>

<pallas_src>
import math

import numpy as np
import jax
import jax.numpy as jnp
from jax.experimental import pallas as pl
from jax.experimental.pallas import tpu as pltpu

NEG_SLOPE = 0.01   # LeakyReLU(0.01)
BN_EPS = 1e-5


def _round_up(x, m):
    return (x + m - 1) // m * m


# ------------------------------------------------------------ fused kernel --

def _fused_forward_kernel(x_ref, m9_ref, m3_ref, w0_ref, s1_ref, s2_ref,
                          wsp_ref, w1_ref, bias_ref, wfc_ref, bfc_ref,
                          o_ref, g_ref):
    f32 = jnp.float32
    R9 = x_ref.shape[0]              # padded rows at 9x9 spatial
    R3 = s1_ref.shape[0] // 9        # padded rows at 3x3 spatial
    R1 = s2_ref.shape[0] // 9        # padded rows at 1x1 spatial

    def lrelu(v):
        return jnp.where(v > 0, v, NEG_SLOPE * v)

    biases = bias_ref[...]           # (32, 32): bias / BN-affine rows
    fcb = bfc_ref[...]               # (8, 128): fc1/fc2/fc3 biases

    def brow(i):                     # (1, 32) bias row (static slice of a value)
        return biases[i:i + 1, :]

    # Row-shift deltas of a stride-1 3x3 conv (pad=1) on a row-major
    # (B*H*W, C) slab; tap t = kh*3 + kw reads input row r + delta[t].
    def deltas(width):
        return [(kh - 1) * width + (kw - 1) for kh in range(3) for kw in range(3)]

    def shifted(v, delta, nrows):
        # out[r] = v[r + delta]  (wrap-around rows are killed by the 0/1 mask)
        s = (-delta) % nrows
        return pltpu.roll(v, shift=s, axis=0) if s else v

    # ---- stem: Conv2d(1, 32, 3, s=1, p=1); per-tap shift + mask, VPU only ---
    xb = jnp.broadcast_to(x_ref[...], (R9, 32))          # 1 channel -> 32 lanes
    w0 = w0_ref[...]                                     # (16, 32); rows 0..8 = taps
    m9 = m9_ref[...]                                     # (R9, 16) tap masks
    a = jnp.zeros((R9, 32), f32)
    for t, d in enumerate(deltas(9)):
        g = shifted(xb, d, R9) * m9[:, t:t + 1]
        a = a + g * w0[t:t + 1, :]
    a = a + brow(0)

    # ---- stride-1 conv1 of a spatial block: shift+mask taps (XLU/VPU), then
    #      one stacked (rows, 288) @ (288, 32) MXU matmul; bn folded in W -----
    def conv_s1(x, m, width, nrows, w_base, bias_idx):
        pieces = []
        for t, d in enumerate(deltas(width)):
            pieces.append(shifted(x, d, nrows) * m[:, t:t + 1])
        gcat = jnp.concatenate(pieces, axis=1)                       # (nrows, 288)
        y = jnp.dot(gcat, wsp_ref[w_base:w_base + 288, :],
                    preferred_element_type=f32)
        return lrelu(y + brow(bias_idx))

    # ---- fused stride-3 conv2(h) + conv11(x): one 0/1 gather matmul into a
    #      VMEM scratch, then 9 per-tap (r_out, 64) @ (64, 32) weight matmuls -
    def conv_s3(h, x, s_ref, r_out, w_base, bias_idx):
        ha = jnp.concatenate([h, x], axis=1)                         # (r_in, 64)
        nrows = 9 * r_out
        g_ref[0:nrows, :] = jnp.dot(s_ref[...], ha, preferred_element_type=f32)
        acc = jnp.zeros((r_out, 32), f32)
        for t in range(9):
            acc = acc + jnp.dot(
                g_ref[t * r_out:(t + 1) * r_out, :],
                wsp_ref[w_base + t * 64:w_base + (t + 1) * 64, :],
                preferred_element_type=f32)
        return acc + brow(bias_idx) + brow(bias_idx + 1)             # b2 + b11

    # ---- block1 (9x9 -> 3x3) ------------------------------------------------
    h = conv_s1(a, m9, 9, R9, 0, 1)
    a = conv_s3(h, a, s1_ref, R3, 288, 2)

    # ---- block2 (3x3 -> 1x1) ------------------------------------------------
    m3 = m3_ref[...]
    h = conv_s1(a, m3, 3, R3, 864, 4)
    a = conv_s3(h, a, s2_ref, R1, 1152, 5)

    # ---- blocks 3..9 at 1x1 spatial: every conv reduces to its centre tap;
    #      conv1+conv11 fused into one (32, 64) matmul; MaxPool(3,3,1) = id ---
    for blk in range(7):
        base, bb = blk * 64, 7 + 3 * blk
        z = jnp.dot(a, w1_ref[base:base + 32, :], preferred_element_type=f32)  # (R1,64)
        hh = lrelu(z[:, 0:32] + brow(bb))           # conv1 (bn folded) + lrelu
        prev = z[:, 32:64] + brow(bb + 2)           # conv11 shortcut
        a = (jnp.dot(hh, w1_ref[base + 32:base + 64, 0:32],
                     preferred_element_type=f32) + brow(bb + 1) + prev)

    # ---- final BatchNorm (eval affine) + LeakyReLU; trailing MaxPool = id ---
    a = lrelu(a * brow(28) + brow(29))

    # ---- classifier head: fc1+lrelu, fc2+lrelu, fc3 (dropout = identity) ----
    h1 = lrelu(jnp.dot(a, wfc_ref[0:32, :], preferred_element_type=f32)
               + fcb[0:1, :])
    h2 = lrelu(jnp.dot(h1, wfc_ref[32:160, :], preferred_element_type=f32)
               + fcb[1:2, :])
    logits = (jnp.dot(h2, wfc_ref[160:288, :], preferred_element_type=f32)
              + fcb[2:3, :])

    o_ref[...] = logits.astype(o_ref.dtype)


# ----------------------------------------------------------------- wrapper --

def model_forward(x, packed):
    """x: (B, 9, 9) float32 -> logits (B, 2).  One fused Pallas kernel."""
    B, H, W = x.shape
    assert H == 9 and W == 9, "constants are specialised to 9x9 inputs"
    n = B * H * W
    R9 = packed["mask9"].shape[0]
    assert R9 == _round_up(n, 8), "constants built for a different batch size"

    # only wrapper-side work: flatten the raw input and pad rows to R9
    xcol = jnp.pad(x.reshape(n, 1).astype(jnp.float32), ((0, R9 - n), (0, 0)))

    args = (xcol, packed["mask9"], packed["mask3"], packed["w0"],
            packed["s_b1c2"], packed["s_b2c2"], packed["w_sp"],
            packed["w_1x1"], packed["bias"], packed["w_fc"], packed["b_fc"])
    R1 = packed["s_b2c2"].shape[0] // 9       # padded row count at 1x1 stage
    g_rows = packed["s_b1c2"].shape[0]        # scratch rows for the gather

    out = pl.pallas_call(
        _fused_forward_kernel,
        out_shape=jax.ShapeDtypeStruct((R1, 128), jnp.float32),
        grid=(1,),
        in_specs=[pl.BlockSpec(arr.shape, lambda i: (0, 0)) for arr in args],
        out_specs=pl.BlockSpec((R1, 128), lambda i: (0, 0)),
        scratch_shapes=[pltpu.VMEM((g_rows, 64), jnp.float32)],
        compiler_params=pltpu.CompilerParams(
            dimension_semantics=("arbitrary",),
            vmem_limit_bytes=32 * 1024 * 1024,
        ),
    )(*args)
    return out[:B, :2]


# -------------------------------------------------------- params / packing --

def _conv_w(key, cin, cout):
    std = 1.0 / math.sqrt(3 * 3 * cin)
    return jax.random.normal(key, (3, 3, cin, cout), jnp.float32) * std


def _fc_w(key, cin, cout):
    std = 1.0 / math.sqrt(cin)
    return jax.random.normal(key, (cin, cout), jnp.float32) * std


def _bn_params(c):
    # fresh BatchNorm: gamma=1, beta=0, running_mean=0, running_var=1
    return dict(gamma=jnp.ones((c,), jnp.float32), beta=jnp.zeros((c,), jnp.float32),
                mean=jnp.zeros((c,), jnp.float32), var=jnp.ones((c,), jnp.float32))


def _bn_fold(bn):
    scale = bn["gamma"] / jnp.sqrt(bn["var"] + BN_EPS)
    shift = bn["beta"] - bn["mean"] * scale
    return scale, shift


def _init_block(key, cin, depth):
    k1, k2, k3 = jax.random.split(key, 3)
    return dict(
        conv1_w=_conv_w(k1, cin, depth), conv1_b=jnp.zeros((depth,), jnp.float32),
        conv2_w=_conv_w(k2, depth, depth), conv2_b=jnp.zeros((depth,), jnp.float32),
        conv11_w=_conv_w(k3, cin, depth), conv11_b=jnp.zeros((depth,), jnp.float32),
        bn1=_bn_params(depth),
    )


def init_params(key):
    keys = jax.random.split(key, 14)
    params = dict(
        conv1_w=_conv_w(keys[0], 1, 32), conv1_b=jnp.zeros((32,), jnp.float32),
        fc1_w=_fc_w(keys[10], 32, 64), fc1_b=jnp.zeros((64,), jnp.float32),
        fc2_w=_fc_w(keys[11], 64, 128), fc2_b=jnp.zeros((128,), jnp.float32),
        fc3_w=_fc_w(keys[12], 128, 2), fc3_b=jnp.zeros((2,), jnp.float32),
        bn=_bn_params(32),
    )
    for i in range(1, 10):
        params[f"block{i}"] = _init_block(keys[i], 32, 32)
    return params


def _make_selection(batch, hw_in, stride, pad=1, k=3):
    """Stacked 0/1 gather matrices S_t (t = kh*3+kw) for a strided 3x3 conv.
    S_t[r_out, r_in] = 1 iff output row r_out reads input row r_in at tap t.
    Out-of-bounds taps and row padding are all-zero -> pad rows never leak."""
    ho = (hw_in + 2 * pad - k) // stride + 1
    r_in_p = _round_up(batch * hw_in * hw_in, 8)
    r_out_p = _round_up(batch * ho * ho, 8)
    s = np.zeros((k * k * r_out_p, r_in_p), np.float32)
    for kh in range(k):
        for kw in range(k):
            t = kh * k + kw
            for b in range(batch):
                for oh in range(ho):
                    for ow in range(ho):
                        hi = oh * stride - pad + kh
                        wi = ow * stride - pad + kw
                        if 0 <= hi < hw_in and 0 <= wi < hw_in:
                            s[t * r_out_p + (b * ho + oh) * ho + ow,
                              (b * hw_in + hi) * hw_in + wi] = 1.0
    return jnp.asarray(s)


def _make_tap_mask(batch, hw):
    """(rows, 16) 0/1 mask: column t==kh*3+kw is 1 where a stride-1 3x3 tap is
    in-bounds for that output row (pad=1).  Pad rows are all-zero."""
    rows = _round_up(batch * hw * hw, 8)
    m = np.zeros((rows, 16), np.float32)
    for b in range(batch):
        for h in range(hw):
            for w in range(hw):
                r = (b * hw + h) * hw + w
                for kh in range(3):
                    for kw in range(3):
                        if 0 <= h + kh - 1 < hw and 0 <= w + kw - 1 < hw:
                            m[r, kh * 3 + kw] = 1.0
    return jnp.asarray(m)


def _tap_stack(w, scale=None):
    # (3,3,cin,cout) -> (9*cin, cout), tap-major (t = kh*3+kw)
    cin, cout = w.shape[2], w.shape[3]
    ws = w.reshape(9, cin, cout)
    if scale is not None:
        ws = ws * scale[None, None, :]
    return ws.reshape(9 * cin, cout)


def _pack_spatial_block(p):
    scale, shift = _bn_fold(p["bn1"])
    w1 = _tap_stack(p["conv1_w"], scale)                        # (288, 32) bn folded
    w2 = p["conv2_w"].reshape(9, 32, 32)
    w11 = p["conv11_w"].reshape(9, 32, 32)
    wc = jnp.concatenate([w2, w11], axis=1).reshape(9 * 64, 32)  # (576, 32) fused
    b1f = p["conv1_b"] * scale + shift
    return jnp.concatenate([w1, wc], axis=0), [b1f, p["conv2_b"], p["conv11_b"]]


def _pack_1x1_block(p):
    scale, shift = _bn_fold(p["bn1"])
    w1f = p["conv1_w"][1, 1] * scale[None, :]                    # centre tap, bn folded
    wa = jnp.concatenate([w1f, p["conv11_w"][1, 1]], axis=1)     # (32, 64) conv1|conv11
    wb = jnp.concatenate([p["conv2_w"][1, 1],
                          jnp.zeros((32, 32), jnp.float32)], axis=1)  # (32, 64)
    b1f = p["conv1_b"] * scale + shift
    return jnp.concatenate([wa, wb], axis=0), [b1f, p["conv2_b"], p["conv11_b"]]


def pack_params(params, batch, hw):
    """Fold BN, stack/fuse conv taps, build shift masks + stride-3 gathers.
    Everything returned is constant under jit (padded & folded once)."""
    assert hw == 9, "specialised to 9x9 inputs (spatial is 1x1 from block3 on)"

    mask9 = _make_tap_mask(batch, 9)               # stem & block1.conv1
    mask3 = _make_tap_mask(batch, 3)               # block2.conv1
    s_b1c2 = _make_selection(batch, 9, stride=3)   # block1 conv2/conv11 (9x9 -> 3x3)
    s_b2c2 = _make_selection(batch, 3, stride=3)   # block2 conv2/conv11 (3x3 -> 1x1)

    # stem conv weight, tap-major rows, padded to 16 rows
    w0 = jnp.zeros((16, 32), jnp.float32).at[:9, :].set(
        params["conv1_w"].reshape(9, 32))

    bias_rows = [params["conv1_b"]]                              # row 0

    wsp_parts = []
    for i in (1, 2):                                             # spatial blocks
        w_blk, b_blk = _pack_spatial_block(params[f"block{i}"])
        wsp_parts.append(w_blk)
        bias_rows.extend(b_blk)                                  # rows 1..6
    w_sp = jnp.concatenate(wsp_parts, axis=0)                    # (1728, 32)

    w1_parts = []
    for i in range(3, 10):                                       # 1x1 blocks
        w_blk, b_blk = _pack_1x1_block(params[f"block{i}"])
        w1_parts.append(w_blk)
        bias_rows.extend(b_blk)                                  # rows 7..27
    w_1x1 = jnp.concatenate(w1_parts, axis=0)                    # (448, 64)

    bn_scale, bn_shift = _bn_fold(params["bn"])
    bias_rows.append(bn_scale)                                   # row 28
    bias_rows.append(bn_shift)                                   # row 29
    bias = jnp.zeros((32, 32), jnp.float32).at[:len(bias_rows), :].set(
        jnp.stack(bias_rows, axis=0))

    # FC weights packed into one lane-dense slab; zero padding keeps the chain
    # exact (padded cols/rows are zero and lrelu(0) == 0).
    w_fc = (jnp.zeros((288, 128), jnp.float32)
            .at[0:32, 0:64].set(params["fc1_w"])
            .at[32:96, :].set(params["fc2_w"])
            .at[160:288, 0:2].set(params["fc3_w"]))
    b_fc = (jnp.zeros((8, 128), jnp.float32)
            .at[0, 0:64].set(params["fc1_b"])
            .at[1, :].set(params["fc2_b"])
            .at[2, 0:2].set(params["fc3_b"]))

    return dict(mask9=mask9, mask3=mask3, w0=w0, s_b1c2=s_b1c2, s_b2c2=s_b2c2,
                w_sp=w_sp, w_1x1=w_1x1, bias=bias, w_fc=w_fc, b_fc=b_fc)


# --------------------------------------------------------------------- main --

if __name__ == "__main__":
    key = jax.random.PRNGKey(0)
    k_params, k_x = jax.random.split(key)
    params = init_params(k_params)

    # 9x9 input -> 1x1 spatial before the flatten, as the reference classifier
    # (fc1: 32 -> 64) requires.
    B, HW = 2, 9
    packed = pack_params(params, B, HW)
    x = jax.random.normal(k_x, (B, HW, HW), jnp.float32)

    fwd = jax.jit(model_forward)
    out = fwd(x, packed)
    jax.block_until_ready(out)
    assert out.shape == (B, 2) and out.dtype == jnp.float32
    print("KERNEL_OK")
</pallas_src>

<mosaic_0001>
module attributes {stable_mosaic.version = 11 : i64} {
  func.func @_fused_forward_kernel(%arg0: i32, %arg1: memref<168x1xf32, #tpu.memory_space<vmem>>, %arg2: memref<168x16xf32, #tpu.memory_space<vmem>>, %arg3: memref<24x16xf32, #tpu.memory_space<vmem>>, %arg4: memref<16x32xf32, #tpu.memory_space<vmem>>, %arg5: memref<216x168xf32, #tpu.memory_space<vmem>>, %arg6: memref<72x24xf32, #tpu.memory_space<vmem>>, %arg7: memref<1728x32xf32, #tpu.memory_space<vmem>>, %arg8: memref<448x64xf32, #tpu.memory_space<vmem>>, %arg9: memref<32x32xf32, #tpu.memory_space<vmem>>, %arg10: memref<288x128xf32, #tpu.memory_space<vmem>>, %arg11: memref<8x128xf32, #tpu.memory_space<vmem>>, %arg12: memref<8x128xf32, #tpu.memory_space<vmem>>, %arg13: memref<216x64xf32, #tpu.memory_space<vmem>>) attributes {dimension_semantics = [#tpu.dimension_semantics<arbitrary>], iteration_bounds = array<i64: 1>, scalar_prefetch = 0 : i64, scratch_operands = 1 : i64, tpu.core_type = #tpu.core_type<tc>, window_params = [{pipeline_mode = #tpu.pipeline_mode<synchronous>, transform_indices = @transform_0, window_bounds = array<i64: 168, 1>}, {pipeline_mode = #tpu.pipeline_mode<synchronous>, transform_indices = @transform_1, window_bounds = array<i64: 168, 16>}, {pipeline_mode = #tpu.pipeline_mode<synchronous>, transform_indices = @transform_2, window_bounds = array<i64: 24, 16>}, {pipeline_mode = #tpu.pipeline_mode<synchronous>, transform_indices = @transform_3, window_bounds = array<i64: 16, 32>}, {pipeline_mode = #tpu.pipeline_mode<synchronous>, transform_indices = @transform_4, window_bounds = array<i64: 216, 168>}, {pipeline_mode = #tpu.pipeline_mode<synchronous>, transform_indices = @transform_5, window_bounds = array<i64: 72, 24>}, {pipeline_mode = #tpu.pipeline_mode<synchronous>, transform_indices = @transform_6, window_bounds = array<i64: 1728, 32>}, {pipeline_mode = #tpu.pipeline_mode<synchronous>, transform_indices = @transform_7, window_bounds = array<i64: 448, 64>}, {pipeline_mode = #tpu.pipeline_mode<synchronous>, transform_indices = @transform_8, window_bounds = array<i64: 32, 32>}, {pipeline_mode = #tpu.pipeline_mode<synchronous>, transform_indices = @transform_9, window_bounds = array<i64: 288, 128>}, {pipeline_mode = #tpu.pipeline_mode<synchronous>, transform_indices = @transform_10, window_bounds = array<i64: 8, 128>}, {pipeline_mode = #tpu.pipeline_mode<synchronous>, transform_indices = @transform_11, window_bounds = array<i64: 8, 128>}]} {
    %c0 = arith.constant 0 : index
    %c0_0 = arith.constant 0 : index
    %0 = vector.load %arg9[%c0, %c0_0] : memref<32x32xf32, #tpu.memory_space<vmem>>, vector<32x32xf32>
    %c0_1 = arith.constant 0 : index
    %c0_2 = arith.constant 0 : index
    %1 = vector.load %arg11[%c0_1, %c0_2] : memref<8x128xf32, #tpu.memory_space<vmem>>, vector<8x128xf32>
    %c0_3 = arith.constant 0 : index
    %c0_4 = arith.constant 0 : index
    %2 = vector.load %arg1[%c0_3, %c0_4] : memref<168x1xf32, #tpu.memory_space<vmem>>, vector<168x1xf32>
    %3 = vector.shape_cast %2 : vector<168x1xf32> to vector<168x1xf32>
    %4 = vector.broadcast %3 : vector<168x1xf32> to vector<168x32xf32>
    %c0_5 = arith.constant 0 : index
    %c0_6 = arith.constant 0 : index
    %5 = vector.load %arg4[%c0_5, %c0_6] : memref<16x32xf32, #tpu.memory_space<vmem>>, vector<16x32xf32>
    %c0_7 = arith.constant 0 : index
    %c0_8 = arith.constant 0 : index
    %6 = vector.load %arg2[%c0_7, %c0_8] : memref<168x16xf32, #tpu.memory_space<vmem>>, vector<168x16xf32>
    %cst = arith.constant 0.000000e+00 : f32
    %7 = vector.broadcast %cst : f32 to vector<168x32xf32>
    %c10_i32 = arith.constant 10 : i32
    %8 = tpu.dynamic_rotate %4 by %c10_i32 dim 0 : vector<168x32xf32>, i32 -> vector<168x32xf32>
    %9 = vector.extract_strided_slice %6 {offsets = [0, 0], sizes = [168, 1], strides = [1, 1]} : vector<168x16xf32> to vector<168x1xf32>
    %10 = vector.broadcast %9 : vector<168x1xf32> to vector<168x32xf32>
    %11 = arith.mulf %8, %10 : vector<168x32xf32>
    %12 = vector.extract_strided_slice %5 {offsets = [0, 0], sizes = [1, 32], strides = [1, 1]} : vector<16x32xf32> to vector<1x32xf32>
    %13 = vector.broadcast %12 : vector<1x32xf32> to vector<168x32xf32>
    %14 = arith.mulf %11, %13 : vector<168x32xf32>
    %15 = arith.addf %7, %14 : vector<168x32xf32>
    %c9_i32 = arith.constant 9 : i32
    %16 = tpu.dynamic_rotate %4 by %c9_i32 dim 0 : vector<168x32xf32>, i32 -> vector<168x32xf32>
    %17 = vector.extract_strided_slice %6 {offsets = [0, 1], sizes = [168, 1], strides = [1, 1]} : vector<168x16xf32> to vector<168x1xf32>
    %18 = vector.broadcast %17 : vector<168x1xf32> to vector<168x32xf32>
    %19 = arith.mulf %16, %18 : vector<168x32xf32>
    %20 = vector.extract_strided_slice %5 {offsets = [1, 0], sizes = [1, 32], strides = [1, 1]} : vector<16x32xf32> to vector<1x32xf32>
    %21 = vector.broadcast %20 : vector<1x32xf32> to vector<168x32xf32>
    %22 = arith.mulf %19, %21 : vector<168x32xf32>
    %23 = arith.addf %15, %22 : vector<168x32xf32>
    %c8_i32 = arith.constant 8 : i32
    %24 = tpu.dynamic_rotate %4 by %c8_i32 dim 0 : vector<168x32xf32>, i32 -> vector<168x32xf32>
    %25 = vector.extract_strided_slice %6 {offsets = [0, 2], sizes = [168, 1], strides = [1, 1]} : vector<168x16xf32> to vector<168x1xf32>
    %26 = vector.broadcast %25 : vector<168x1xf32> to vector<168x32xf32>
    %27 = arith.mulf %24, %26 : vector<168x32xf32>
    %28 = vector.extract_strided_slice %5 {offsets = [2, 0], sizes = [1, 32], strides = [1, 1]} : vector<16x32xf32> to vector<1x32xf32>
    %29 = vector.broadcast %28 : vector<1x32xf32> to vector<168x32xf32>
    %30 = arith.mulf %27, %29 : vector<168x32xf32>
    %31 = arith.addf %23, %30 : vector<168x32xf32>
    %c1_i32 = arith.constant 1 : i32
    %32 = tpu.dynamic_rotate %4 by %c1_i32 dim 0 : vector<168x32xf32>, i32 -> vector<168x32xf32>
    %33 = vector.extract_strided_slice %6 {offsets = [0, 3], sizes = [168, 1], strides = [1, 1]} : vector<168x16xf32> to vector<168x1xf32>
    %34 = vector.broadcast %33 : vector<168x1xf32> to vector<168x32xf32>
    %35 = arith.mulf %32, %34 : vector<168x32xf32>
    %36 = vector.extract_strided_slice %5 {offsets = [3, 0], sizes = [1, 32], strides = [1, 1]} : vector<16x32xf32> to vector<1x32xf32>
    %37 = vector.broadcast %36 : vector<1x32xf32> to vector<168x32xf32>
    %38 = arith.mulf %35, %37 : vector<168x32xf32>
    %39 = arith.addf %31, %38 : vector<168x32xf32>
    %40 = vector.extract_strided_slice %6 {offsets = [0, 4], sizes = [168, 1], strides = [1, 1]} : vector<168x16xf32> to vector<168x1xf32>
    %41 = vector.broadcast %40 : vector<168x1xf32> to vector<168x32xf32>
    %42 = arith.mulf %4, %41 : vector<168x32xf32>
    %43 = vector.extract_strided_slice %5 {offsets = [4, 0], sizes = [1, 32], strides = [1, 1]} : vector<16x32xf32> to vector<1x32xf32>
    %44 = vector.broadcast %43 : vector<1x32xf32> to vector<168x32xf32>
    %45 = arith.mulf %42, %44 : vector<168x32xf32>
    %46 = arith.addf %39, %45 : vector<168x32xf32>
    %c167_i32 = arith.constant 167 : i32
    %47 = tpu.dynamic_rotate %4 by %c167_i32 dim 0 : vector<168x32xf32>, i32 -> vector<168x32xf32>
    %48 = vector.extract_strided_slice %6 {offsets = [0, 5], sizes = [168, 1], strides = [1, 1]} : vector<168x16xf32> to vector<168x1xf32>
    %49 = vector.broadcast %48 : vector<168x1xf32> to vector<168x32xf32>
    %50 = arith.mulf %47, %49 : vector<168x32xf32>
    %51 = vector.extract_strided_slice %5 {offsets = [5, 0], sizes = [1, 32], strides = [1, 1]} : vector<16x32xf32> to vector<1x32xf32>
    %52 = vector.broadcast %51 : vector<1x32xf32> to vector<168x32xf32>
    %53 = arith.mulf %50, %52 : vector<168x32xf32>
    %54 = arith.addf %46, %53 : vector<168x32xf32>
    %c160_i32 = arith.constant 160 : i32
    %55 = tpu.dynamic_rotate %4 by %c160_i32 dim 0 : vector<168x32xf32>, i32 -> vector<168x32xf32>
    %56 = vector.extract_strided_slice %6 {offsets = [0, 6], sizes = [168, 1], strides = [1, 1]} : vector<168x16xf32> to vector<168x1xf32>
    %57 = vector.broadcast %56 : vector<168x1xf32> to vector<168x32xf32>
    %58 = arith.mulf %55, %57 : vector<168x32xf32>
    %59 = vector.extract_strided_slice %5 {offsets = [6, 0], sizes = [1, 32], strides = [1, 1]} : vector<16x32xf32> to vector<1x32xf32>
    %60 = vector.broadcast %59 : vector<1x32xf32> to vector<168x32xf32>
    %61 = arith.mulf %58, %60 : vector<168x32xf32>
    %62 = arith.addf %54, %61 : vector<168x32xf32>
    %c159_i32 = arith.constant 159 : i32
    %63 = tpu.dynamic_rotate %4 by %c159_i32 dim 0 : vector<168x32xf32>, i32 -> vector<168x32xf32>
    %64 = vector.extract_strided_slice %6 {offsets = [0, 7], sizes = [168, 1], strides = [1, 1]} : vector<168x16xf32> to vector<168x1xf32>
    %65 = vector.broadcast %64 : vector<168x1xf32> to vector<168x32xf32>
    %66 = arith.mulf %63, %65 : vector<168x32xf32>
    %67 = vector.extract_strided_slice %5 {offsets = [7, 0], sizes = [1, 32], strides = [1, 1]} : vector<16x32xf32> to vector<1x32xf32>
    %68 = vector.broadcast %67 : vector<1x32xf32> to vector<168x32xf32>
    %69 = arith.mulf %66, %68 : vector<168x32xf32>
    %70 = arith.addf %62, %69 : vector<168x32xf32>
    %c158_i32 = arith.constant 158 : i32
    %71 = tpu.dynamic_rotate %4 by %c158_i32 dim 0 : vector<168x32xf32>, i32 -> vector<168x32xf32>
    %72 = vector.extract_strided_slice %6 {offsets = [0, 8], sizes = [168, 1], strides = [1, 1]} : vector<168x16xf32> to vector<168x1xf32>
    %73 = vector.broadcast %72 : vector<168x1xf32> to vector<168x32xf32>
    %74 = arith.mulf %71, %73 : vector<168x32xf32>
    %75 = vector.extract_strided_slice %5 {offsets = [8, 0], sizes = [1, 32], strides = [1, 1]} : vector<16x32xf32> to vector<1x32xf32>
    %76 = vector.broadcast %75 : vector<1x32xf32> to vector<168x32xf32>
    %77 = arith.mulf %74, %76 : vector<168x32xf32>
    %78 = arith.addf %70, %77 : vector<168x32xf32>
    %79 = vector.extract_strided_slice %0 {offsets = [0, 0], sizes = [1, 32], strides = [1, 1]} : vector<32x32xf32> to vector<1x32xf32>
    %80 = vector.broadcast %79 : vector<1x32xf32> to vector<168x32xf32>
    %81 = arith.addf %78, %80 : vector<168x32xf32>
    %c10_i32_9 = arith.constant 10 : i32
    %82 = tpu.dynamic_rotate %81 by %c10_i32_9 dim 0 : vector<168x32xf32>, i32 -> vector<168x32xf32>
    %83 = vector.extract_strided_slice %6 {offsets = [0, 0], sizes = [168, 1], strides = [1, 1]} : vector<168x16xf32> to vector<168x1xf32>
    %84 = vector.broadcast %83 : vector<168x1xf32> to vector<168x32xf32>
    %85 = arith.mulf %82, %84 : vector<168x32xf32>
    %c9_i32_10 = arith.constant 9 : i32
    %86 = tpu.dynamic_rotate %81 by %c9_i32_10 dim 0 : vector<168x32xf32>, i32 -> vector<168x32xf32>
    %87 = vector.extract_strided_slice %6 {offsets = [0, 1], sizes = [168, 1], strides = [1, 1]} : vector<168x16xf32> to vector<168x1xf32>
    %88 = vector.broadcast %87 : vector<168x1xf32> to vector<168x32xf32>
    %89 = arith.mulf %86, %88 : vector<168x32xf32>
    %c8_i32_11 = arith.constant 8 : i32
    %90 = tpu.dynamic_rotate %81 by %c8_i32_11 dim 0 : vector<168x32xf32>, i32 -> vector<168x32xf32>
    %91 = vector.extract_strided_slice %6 {offsets = [0, 2], sizes = [168, 1], strides = [1, 1]} : vector<168x16xf32> to vector<168x1xf32>
    %92 = vector.broadcast %91 : vector<168x1xf32> to vector<168x32xf32>
    %93 = arith.mulf %90, %92 : vector<168x32xf32>
    %c1_i32_12 = arith.constant 1 : i32
    %94 = tpu.dynamic_rotate %81 by %c1_i32_12 dim 0 : vector<168x32xf32>, i32 -> vector<168x32xf32>
    %95 = vector.extract_strided_slice %6 {offsets = [0, 3], sizes = [168, 1], strides = [1, 1]} : vector<168x16xf32> to vector<168x1xf32>
    %96 = vector.broadcast %95 : vector<168x1xf32> to vector<168x32xf32>
    %97 = arith.mulf %94, %96 : vector<168x32xf32>
    %98 = vector.extract_strided_slice %6 {offsets = [0, 4], sizes = [168, 1], strides = [1, 1]} : vector<168x16xf32> to vector<168x1xf32>
    %99 = vector.broadcast %98 : vector<168x1xf32> to vector<168x32xf32>
    %100 = arith.mulf %81, %99 : vector<168x32xf32>
    %c167_i32_13 = arith.constant 167 : i32
    %101 = tpu.dynamic_rotate %81 by %c167_i32_13 dim 0 : vector<168x32xf32>, i32 -> vector<168x32xf32>
    %102 = vector.extract_strided_slice %6 {offsets = [0, 5], sizes = [168, 1], strides = [1, 1]} : vector<168x16xf32> to vector<168x1xf32>
    %103 = vector.broadcast %102 : vector<168x1xf32> to vector<168x32xf32>
    %104 = arith.mulf %101, %103 : vector<168x32xf32>
    %c160_i32_14 = arith.constant 160 : i32
    %105 = tpu.dynamic_rotate %81 by %c160_i32_14 dim 0 : vector<168x32xf32>, i32 -> vector<168x32xf32>
    %106 = vector.extract_strided_slice %6 {offsets = [0, 6], sizes = [168, 1], strides = [1, 1]} : vector<168x16xf32> to vector<168x1xf32>
    %107 = vector.broadcast %106 : vector<168x1xf32> to vector<168x32xf32>
    %108 = arith.mulf %105, %107 : vector<168x32xf32>
    %c159_i32_15 = arith.constant 159 : i32
    %109 = tpu.dynamic_rotate %81 by %c159_i32_15 dim 0 : vector<168x32xf32>, i32 -> vector<168x32xf32>
    %110 = vector.extract_strided_slice %6 {offsets = [0, 7], sizes = [168, 1], strides = [1, 1]} : vector<168x16xf32> to vector<168x1xf32>
    %111 = vector.broadcast %110 : vector<168x1xf32> to vector<168x32xf32>
    %112 = arith.mulf %109, %111 : vector<168x32xf32>
    %c158_i32_16 = arith.constant 158 : i32
    %113 = tpu.dynamic_rotate %81 by %c158_i32_16 dim 0 : vector<168x32xf32>, i32 -> vector<168x32xf32>
    %114 = vector.extract_strided_slice %6 {offsets = [0, 8], sizes = [168, 1], strides = [1, 1]} : vector<168x16xf32> to vector<168x1xf32>
    %115 = vector.broadcast %114 : vector<168x1xf32> to vector<168x32xf32>
    %116 = arith.mulf %113, %115 : vector<168x32xf32>
    %117 = tpu.concatenate %85, %89, %93, %97, %100, %104, %108, %112, %116 in 1 : vector<168x32xf32>, vector<168x32xf32>, vector<168x32xf32>, vector<168x32xf32>, vector<168x32xf32>, vector<168x32xf32>, vector<168x32xf32>, vector<168x32xf32>, vector<168x32xf32> -> vector<168x288xf32>
    %c0_17 = arith.constant 0 : index
    %c0_18 = arith.constant 0 : index
    %118 = vector.load %arg7[%c0_17, %c0_18] : memref<1728x32xf32, #tpu.memory_space<vmem>>, vector<288x32xf32>
    %cst_19 = arith.constant dense<0.000000e+00> : vector<168x32xf32>
    %119 = tpu.matmul %117, %118, %cst_19 {dimension_numbers = #tpu.dot_dimension_numbers<[1], [0], [0], [1], [0, 0, 1, 1], [], []>} : vector<168x288xf32>, vector<288x32xf32>, vector<168x32xf32> -> vector<168x32xf32>
    %120 = vector.extract_strided_slice %0 {offsets = [1, 0], sizes = [1, 32], strides = [1, 1]} : vector<32x32xf32> to vector<1x32xf32>
    %121 = vector.broadcast %120 : vector<1x32xf32> to vector<168x32xf32>
    %122 = arith.addf %119, %121 : vector<168x32xf32>
    %cst_20 = arith.constant 0.000000e+00 : f32
    %123 = vector.broadcast %cst_20 : f32 to vector<168x32xf32>
    %124 = arith.cmpf ogt, %122, %123 : vector<168x32xf32>
    %cst_21 = arith.constant 0.00999999977 : f32
    %125 = vector.broadcast %cst_21 : f32 to vector<168x32xf32>
    %126 = arith.mulf %125, %122 : vector<168x32xf32>
    %127 = arith.select %124, %122, %126 : vector<168x32xi1>, vector<168x32xf32>
    %128 = tpu.concatenate %127, %81 in 1 : vector<168x32xf32>, vector<168x32xf32> -> vector<168x64xf32>
    %c0_22 = arith.constant 0 : index
    %c0_23 = arith.constant 0 : index
    %129 = vector.load %arg5[%c0_22, %c0_23] : memref<216x168xf32, #tpu.memory_space<vmem>>, vector<216x168xf32>
    %cst_24 = arith.constant dense<0.000000e+00> : vector<216x64xf32>
    %130 = tpu.matmul %129, %128, %cst_24 {dimension_numbers = #tpu.dot_dimension_numbers<[1], [0], [0], [1], [0, 0, 1, 1], [], []>} : vector<216x168xf32>, vector<168x64xf32>, vector<216x64xf32> -> vector<216x64xf32>
    %c0_25 = arith.constant 0 : index
    %c0_26 = arith.constant 0 : index
    %131 = vector.load %arg13[%c0_25, %c0_26] : memref<216x64xf32, #tpu.memory_space<vmem>>, vector<216x64xf32>
    tpu.vector_store %arg13[%c0_25, %c0_26], %130 {strides = array<i32>} : memref<216x64xf32, #tpu.memory_space<vmem>>, vector<216x64xf32>,
    %cst_27 = arith.constant 0.000000e+00 : f32
    %132 = vector.broadcast %cst_27 : f32 to vector<24x32xf32>
    %c0_28 = arith.constant 0 : index
    %c0_29 = arith.constant 0 : index
    %133 = vector.load %arg13[%c0_28, %c0_29] : memref<216x64xf32, #tpu.memory_space<vmem>>, vector<24x64xf32>
    %c288 = arith.constant 288 : index
    %c0_30 = arith.constant 0 : index
    %134 = vector.load %arg7[%c288, %c0_30] : memref<1728x32xf32, #tpu.memory_space<vmem>>, vector<64x32xf32>
    %cst_31 = arith.constant dense<0.000000e+00> : vector<24x32xf32>
    %135 = tpu.matmul %133, %134, %cst_31 {dimension_numbers = #tpu.dot_dimension_numbers<[1], [0], [0], [1], [0, 0, 1, 1], [], []>} : vector<24x64xf32>, vector<64x32xf32>, vector<24x32xf32> -> vector<24x32xf32>
    %136 = arith.addf %132, %135 : vector<24x32xf32>
    %c24 = arith.constant 24 : index
    %c0_32 = arith.constant 0 : index
    %137 = vector.load %arg13[%c24, %c0_32] : memref<216x64xf32, #tpu.memory_space<vmem>>, vector<24x64xf32>
    %c352 = arith.constant 352 : index
    %c0_33 = arith.constant 0 : index
    %138 = vector.load %arg7[%c352, %c0_33] : memref<1728x32xf32, #tpu.memory_space<vmem>>, vector<64x32xf32>
    %cst_34 = arith.constant dense<0.000000e+00> : vector<24x32xf32>
    %139 = tpu.matmul %137, %138, %cst_34 {dimension_numbers = #tpu.dot_dimension_numbers<[1], [0], [0], [1], [0, 0, 1, 1], [], []>} : vector<24x64xf32>, vector<64x32xf32>, vector<24x32xf32> -> vector<24x32xf32>
    %140 = arith.addf %136, %139 : vector<24x32xf32>
    %c48 = arith.constant 48 : index
    %c0_35 = arith.constant 0 : index
    %141 = vector.load %arg13[%c48, %c0_35] : memref<216x64xf32, #tpu.memory_space<vmem>>, vector<24x64xf32>
    %c416 = arith.constant 416 : index
    %c0_36 = arith.constant 0 : index
    %142 = vector.load %arg7[%c416, %c0_36] : memref<1728x32xf32, #tpu.memory_space<vmem>>, vector<64x32xf32>
    %cst_37 = arith.constant dense<0.000000e+00> : vector<24x32xf32>
    %143 = tpu.matmul %141, %142, %cst_37 {dimension_numbers = #tpu.dot_dimension_numbers<[1], [0], [0], [1], [0, 0, 1, 1], [], []>} : vector<24x64xf32>, vector<64x32xf32>, vector<24x32xf32> -> vector<24x32xf32>
    %144 = arith.addf %140, %143 : vector<24x32xf32>
    %c72 = arith.constant 72 : index
    %c0_38 = arith.constant 0 : index
    %145 = vector.load %arg13[%c72, %c0_38] : memref<216x64xf32, #tpu.memory_space<vmem>>, vector<24x64xf32>
    %c480 = arith.constant 480 : index
    %c0_39 = arith.constant 0 : index
    %146 = vector.load %arg7[%c480, %c0_39] : memref<1728x32xf32, #tpu.memory_space<vmem>>, vector<64x32xf32>
    %cst_40 = arith.constant dense<0.000000e+00> : vector<24x32xf32>
    %147 = tpu.matmul %145, %146, %cst_40 {dimension_numbers = #tpu.dot_dimension_numbers<[1], [0], [0], [1], [0, 0, 1, 1], [], []>} : vector<24x64xf32>, vector<64x32xf32>, vector<24x32xf32> -> vector<24x32xf32>
    %148 = arith.addf %144, %147 : vector<24x32xf32>
    %c96 = arith.constant 96 : index
    %c0_41 = arith.constant 0 : index
    %149 = vector.load %arg13[%c96, %c0_41] : memref<216x64xf32, #tpu.memory_space<vmem>>, vector<24x64xf32>
    %c544 = arith.constant 544 : index
    %c0_42 = arith.constant 0 : index
    %150 = vector.load %arg7[%c544, %c0_42] : memref<1728x32xf32, #tpu.memory_space<vmem>>, vector<64x32xf32>
    %cst_43 = arith.constant dense<0.000000e+00> : vector<24x32xf32>
    %151 = tpu.matmul %149, %150, %cst_43 {dimension_numbers = #tpu.dot_dimension_numbers<[1], [0], [0], [1], [0, 0, 1, 1], [], []>} : vector<24x64xf32>, vector<64x32xf32>, vector<24x32xf32> -> vector<24x32xf32>
    %152 = arith.addf %148, %151 : vector<24x32xf32>
    %c120 = arith.constant 120 : index
    %c0_44 = arith.constant 0 : index
    %153 = vector.load %arg13[%c120, %c0_44] : memref<216x64xf32, #tpu.memory_space<vmem>>, vector<24x64xf32>
    %c608 = arith.constant 608 : index
    %c0_45 = arith.constant 0 : index
    %154 = vector.load %arg7[%c608, %c0_45] : memref<1728x32xf32, #tpu.memory_space<vmem>>, vector<64x32xf32>
    %cst_46 = arith.constant dense<0.000000e+00> : vector<24x32xf32>
    %155 = tpu.matmul %153, %154, %cst_46 {dimension_numbers = #tpu.dot_dimension_numbers<[1], [0], [0], [1], [0, 0, 1, 1], [], []>} : vector<24x64xf32>, vector<64x32xf32>, vector<24x32xf32> -> vector<24x32xf32>
    %156 = arith.addf %152, %155 : vector<24x32xf32>
    %c144 = arith.constant 144 : index
    %c0_47 = arith.constant 0 : index
    %157 = vector.load %arg13[%c144, %c0_47] : memref<216x64xf32, #tpu.memory_space<vmem>>, vector<24x64xf32>
    %c672 = arith.constant 672 : index
    %c0_48 = arith.constant 0 : index
    %158 = vector.load %arg7[%c672, %c0_48] : memref<1728x32xf32, #tpu.memory_space<vmem>>, vector<64x32xf32>
    %cst_49 = arith.constant dense<0.000000e+00> : vector<24x32xf32>
    %159 = tpu.matmul %157, %158, %cst_49 {dimension_numbers = #tpu.dot_dimension_numbers<[1], [0], [0], [1], [0, 0, 1, 1], [], []>} : vector<24x64xf32>, vector<64x32xf32>, vector<24x32xf32> -> vector<24x32xf32>
    %160 = arith.addf %156, %159 : vector<24x32xf32>
    %c168 = arith.constant 168 : index
    %c0_50 = arith.constant 0 : index
    %161 = vector.load %arg13[%c168, %c0_50] : memref<216x64xf32, #tpu.memory_space<vmem>>, vector<24x64xf32>
    %c736 = arith.constant 736 : index
    %c0_51 = arith.constant 0 : index
    %162 = vector.load %arg7[%c736, %c0_51] : memref<1728x32xf32, #tpu.memory_space<vmem>>, vector<64x32xf32>
    %cst_52 = arith.constant dense<0.000000e+00> : vector<24x32xf32>
    %163 = tpu.matmul %161, %162, %cst_52 {dimension_numbers = #tpu.dot_dimension_numbers<[1], [0], [0], [1], [0, 0, 1, 1], [], []>} : vector<24x64xf32>, vector<64x32xf32>, vector<24x32xf32> -> vector<24x32xf32>
    %164 = arith.addf %160, %163 : vector<24x32xf32>
    %c192 = arith.constant 192 : index
    %c0_53 = arith.constant 0 : index
    %165 = vector.load %arg13[%c192, %c0_53] : memref<216x64xf32, #tpu.memory_space<vmem>>, vector<24x64xf32>
    %c800 = arith.constant 800 : index
    %c0_54 = arith.constant 0 : index
    %166 = vector.load %arg7[%c800, %c0_54] : memref<1728x32xf32, #tpu.memory_space<vmem>>, vector<64x32xf32>
    %cst_55 = arith.constant dense<0.000000e+00> : vector<24x32xf32>
    %167 = tpu.matmul %165, %166, %cst_55 {dimension_numbers = #tpu.dot_dimension_numbers<[1], [0], [0], [1], [0, 0, 1, 1], [], []>} : vector<24x64xf32>, vector<64x32xf32>, vector<24x32xf32> -> vector<24x32xf32>
    %168 = arith.addf %164, %167 : vector<24x32xf32>
    %169 = vector.extract_strided_slice %0 {offsets = [2, 0], sizes = [1, 32], strides = [1, 1]} : vector<32x32xf32> to vector<1x32xf32>
    %170 = vector.broadcast %169 : vector<1x32xf32> to vector<24x32xf32>
    %171 = arith.addf %168, %170 : vector<24x32xf32>
    %172 = vector.extract_strided_slice %0 {offsets = [3, 0], sizes = [1, 32], strides = [1, 1]} : vector<32x32xf32> to vector<1x32xf32>
    %173 = vector.broadcast %172 : vector<1x32xf32> to vector<24x32xf32>
    %174 = arith.addf %171, %173 : vector<24x32xf32>
    %c0_56 = arith.constant 0 : index
    %c0_57 = arith.constant 0 : index
    %175 = vector.load %arg3[%c0_56, %c0_57] : memref<24x16xf32, #tpu.memory_space<vmem>>, vector<24x16xf32>
    %c4_i32 = arith.constant 4 : i32
    %176 = tpu.dynamic_rotate %174 by %c4_i32 dim 0 : vector<24x32xf32>, i32 -> vector<24x32xf32>
    %177 = vector.extract_strided_slice %175 {offsets = [0, 0], sizes = [24, 1], strides = [1, 1]} : vector<24x16xf32> to vector<24x1xf32>
    %178 = vector.broadcast %177 : vector<24x1xf32> to vector<24x32xf32>
    %179 = arith.mulf %176, %178 : vector<24x32xf32>
    %c3_i32 = arith.constant 3 : i32
    %180 = tpu.dynamic_rotate %174 by %c3_i32 dim 0 : vector<24x32xf32>, i32 -> vector<24x32xf32>
    %181 = vector.extract_strided_slice %175 {offsets = [0, 1], sizes = [24, 1], strides = [1, 1]} : vector<24x16xf32> to vector<24x1xf32>
    %182 = vector.broadcast %181 : vector<24x1xf32> to vector<24x32xf32>
    %183 = arith.mulf %180, %182 : vector<24x32xf32>
    %c2_i32 = arith.constant 2 : i32
    %184 = tpu.dynamic_rotate %174 by %c2_i32 dim 0 : vector<24x32xf32>, i32 -> vector<24x32xf32>
    %185 = vector.extract_strided_slice %175 {offsets = [0, 2], sizes = [24, 1], strides = [1, 1]} : vector<24x16xf32> to vector<24x1xf32>
    %186 = vector.broadcast %185 : vector<24x1xf32> to vector<24x32xf32>
    %187 = arith.mulf %184, %186 : vector<24x32xf32>
    %c1_i32_58 = arith.constant 1 : i32
    %188 = tpu.dynamic_rotate %174 by %c1_i32_58 dim 0 : vector<24x32xf32>, i32 -> vector<24x32xf32>
    %189 = vector.extract_strided_slice %175 {offsets = [0, 3], sizes = [24, 1], strides = [1, 1]} : vector<24x16xf32> to vector<24x1xf32>
    %190 = vector.broadcast %189 : vector<24x1xf32> to vector<24x32xf32>
    %191 = arith.mulf %188, %190 : vector<24x32xf32>
    %192 = vector.extract_strided_slice %175 {offsets = [0, 4], sizes = [24, 1], strides = [1, 1]} : vector<24x16xf32> to vector<24x1xf32>
    %193 = vector.broadcast %192 : vector<24x1xf32> to vector<24x32xf32>
    %194 = arith.mulf %174, %193 : vector<24x32xf32>
    %c23_i32 = arith.constant 23 : i32
    %195 = tpu.dynamic_rotate %174 by %c23_i32 dim 0 : vector<24x32xf32>, i32 -> vector<24x32xf32>
    %196 = vector.extract_strided_slice %175 {offsets = [0, 5], sizes = [24, 1], strides = [1, 1]} : vector<24x16xf32> to vector<24x1xf32>
    %197 = vector.broadcast %196 : vector<24x1xf32> to vector<24x32xf32>
    %198 = arith.mulf %195, %197 : vector<24x32xf32>
    %c22_i32 = arith.constant 22 : i32
    %199 = tpu.dynamic_rotate %174 by %c22_i32 dim 0 : vector<24x32xf32>, i32 -> vector<24x32xf32>
    %200 = vector.extract_strided_slice %175 {offsets = [0, 6], sizes = [24, 1], strides = [1, 1]} : vector<24x16xf32> to vector<24x1xf32>
    %201 = vector.broadcast %200 : vector<24x1xf32> to vector<24x32xf32>
    %202 = arith.mulf %199, %201 : vector<24x32xf32>
    %c21_i32 = arith.constant 21 : i32
    %203 = tpu.dynamic_rotate %174 by %c21_i32 dim 0 : vector<24x32xf32>, i32 -> vector<24x32xf32>
    %204 = vector.extract_strided_slice %175 {offsets = [0, 7], sizes = [24, 1], strides = [1, 1]} : vector<24x16xf32> to vector<24x1xf32>
    %205 = vector.broadcast %204 : vector<24x1xf32> to vector<24x32xf32>
    %206 = arith.mulf %203, %205 : vector<24x32xf32>
    %c20_i32 = arith.constant 20 : i32
    %207 = tpu.dynamic_rotate %174 by %c20_i32 dim 0 : vector<24x32xf32>, i32 -> vector<24x32xf32>
    %208 = vector.extract_strided_slice %175 {offsets = [0, 8], sizes = [24, 1], strides = [1, 1]} : vector<24x16xf32> to vector<24x1xf32>
    %209 = vector.broadcast %208 : vector<24x1xf32> to vector<24x32xf32>
    %210 = arith.mulf %207, %209 : vector<24x32xf32>
    %211 = tpu.concatenate %179, %183, %187, %191, %194, %198, %202, %206, %210 in 1 : vector<24x32xf32>, vector<24x32xf32>, vector<24x32xf32>, vector<24x32xf32>, vector<24x32xf32>, vector<24x32xf32>, vector<24x32xf32>, vector<24x32xf32>, vector<24x32xf32> -> vector<24x288xf32>
    %c864 = arith.constant 864 : index
    %c0_59 = arith.constant 0 : index
    %212 = vector.load %arg7[%c864, %c0_59] : memref<1728x32xf32, #tpu.memory_space<vmem>>, vector<288x32xf32>
    %cst_60 = arith.constant dense<0.000000e+00> : vector<24x32xf32>
    %213 = tpu.matmul %211, %212, %cst_60 {dimension_numbers = #tpu.dot_dimension_numbers<[1], [0], [0], [1], [0, 0, 1, 1], [], []>} : vector<24x288xf32>, vector<288x32xf32>, vector<24x32xf32> -> vector<24x32xf32>
    %214 = vector.extract_strided_slice %0 {offsets = [4, 0], sizes = [1, 32], strides = [1, 1]} : vector<32x32xf32> to vector<1x32xf32>
    %215 = vector.broadcast %214 : vector<1x32xf32> to vector<24x32xf32>
    %216 = arith.addf %213, %215 : vector<24x32xf32>
    %cst_61 = arith.constant 0.000000e+00 : f32
    %217 = vector.broadcast %cst_61 : f32 to vector<24x32xf32>
    %218 = arith.cmpf ogt, %216, %217 : vector<24x32xf32>
    %cst_62 = arith.constant 0.00999999977 : f32
    %219 = vector.broadcast %cst_62 : f32 to vector<24x32xf32>
    %220 = arith.mulf %219, %216 : vector<24x32xf32>
    %221 = arith.select %218, %216, %220 : vector<24x32xi1>, vector<24x32xf32>
    %222 = tpu.concatenate %221, %174 in 1 : vector<24x32xf32>, vector<24x32xf32> -> vector<24x64xf32>
    %c0_63 = arith.constant 0 : index
    %c0_64 = arith.constant 0 : index
    %223 = vector.load %arg6[%c0_63, %c0_64] : memref<72x24xf32, #tpu.memory_space<vmem>>, vector<72x24xf32>
    %cst_65 = arith.constant dense<0.000000e+00> : vector<72x64xf32>
    %224 = tpu.matmul %223, %222, %cst_65 {dimension_numbers = #tpu.dot_dimension_numbers<[1], [0], [0], [1], [0, 0, 1, 1], [], []>} : vector<72x24xf32>, vector<24x64xf32>, vector<72x64xf32> -> vector<72x64xf32>
    %c0_66 = arith.constant 0 : index
    %c0_67 = arith.constant 0 : index
    %225 = vector.load %arg13[%c0_66, %c0_67] : memref<216x64xf32, #tpu.memory_space<vmem>>, vector<72x64xf32>
    tpu.vector_store %arg13[%c0_66, %c0_67], %224 {strides = array<i32>} : memref<216x64xf32, #tpu.memory_space<vmem>>, vector<72x64xf32>,
    %cst_68 = arith.constant 0.000000e+00 : f32
    %226 = vector.broadcast %cst_68 : f32 to vector<8x32xf32>
    %c0_69 = arith.constant 0 : index
    %c0_70 = arith.constant 0 : index
    %227 = vector.load %arg13[%c0_69, %c0_70] : memref<216x64xf32, #tpu.memory_space<vmem>>, vector<8x64xf32>
    %c1152 = arith.constant 1152 : index
    %c0_71 = arith.constant 0 : index
    %228 = vector.load %arg7[%c1152, %c0_71] : memref<1728x32xf32, #tpu.memory_space<vmem>>, vector<64x32xf32>
    %cst_72 = arith.constant dense<0.000000e+00> : vector<8x32xf32>
    %229 = tpu.matmul %227, %228, %cst_72 {dimension_numbers = #tpu.dot_dimension_numbers<[1], [0], [0], [1], [0, 0, 1, 1], [], []>} : vector<8x64xf32>, vector<64x32xf32>, vector<8x32xf32> -> vector<8x32xf32>
    %230 = arith.addf %226, %229 : vector<8x32xf32>
    %c8 = arith.constant 8 : index
    %c0_73 = arith.constant 0 : index
    %231 = vector.load %arg13[%c8, %c0_73] : memref<216x64xf32, #tpu.memory_space<vmem>>, vector<8x64xf32>
    %c1216 = arith.constant 1216 : index
    %c0_74 = arith.constant 0 : index
    %232 = vector.load %arg7[%c1216, %c0_74] : memref<1728x32xf32, #tpu.memory_space<vmem>>, vector<64x32xf32>
    %cst_75 = arith.constant dense<0.000000e+00> : vector<8x32xf32>
    %233 = tpu.matmul %231, %232, %cst_75 {dimension_numbers = #tpu.dot_dimension_numbers<[1], [0], [0], [1], [0, 0, 1, 1], [], []>} : vector<8x64xf32>, vector<64x32xf32>, vector<8x32xf32> -> vector<8x32xf32>
    %234 = arith.addf %230, %233 : vector<8x32xf32>
    %c16 = arith.constant 16 : index
    %c0_76 = arith.constant 0 : index
    %235 = vector.load %arg13[%c16, %c0_76] : memref<216x64xf32, #tpu.memory_space<vmem>>, vector<8x64xf32>
    %c1280 = arith.constant 1280 : index
    %c0_77 = arith.constant 0 : index
    %236 = vector.load %arg7[%c1280, %c0_77] : memref<1728x32xf32, #tpu.memory_space<vmem>>, vector<64x32xf32>
    %cst_78 = arith.constant dense<0.000000e+00> : vector<8x32xf32>
    %237 = tpu.matmul %235, %236, %cst_78 {dimension_numbers = #tpu.dot_dimension_numbers<[1], [0], [0], [1], [0, 0, 1, 1], [], []>} : vector<8x64xf32>, vector<64x32xf32>, vector<8x32xf32> -> vector<8x32xf32>
    %238 = arith.addf %234, %237 : vector<8x32xf32>
    %c24_79 = arith.constant 24 : index
    %c0_80 = arith.constant 0 : index
    %239 = vector.load %arg13[%c24_79, %c0_80] : memref<216x64xf32, #tpu.memory_space<vmem>>, vector<8x64xf32>
    %c1344 = arith.constant 1344 : index
    %c0_81 = arith.constant 0 : index
    %240 = vector.load %arg7[%c1344, %c0_81] : memref<1728x32xf32, #tpu.memory_space<vmem>>, vector<64x32xf32>
    %cst_82 = arith.constant dense<0.000000e+00> : vector<8x32xf32>
    %241 = tpu.matmul %239, %240, %cst_82 {dimension_numbers = #tpu.dot_dimension_numbers<[1], [0], [0], [1], [0, 0, 1, 1], [], []>} : vector<8x64xf32>, vector<64x32xf32>, vector<8x32xf32> -> vector<8x32xf32>
    %242 = arith.addf %238, %241 : vector<8x32xf32>
    %c32 = arith.constant 32 : index
    %c0_83 = arith.constant 0 : index
    %243 = vector.load %arg13[%c32, %c0_83] : memref<216x64xf32, #tpu.memory_space<vmem>>, vector<8x64xf32>
    %c1408 = arith.constant 1408 : index
    %c0_84 = arith.constant 0 : index
    %244 = vector.load %arg7[%c1408, %c0_84] : memref<1728x32xf32, #tpu.memory_space<vmem>>, vector<64x32xf32>
    %cst_85 = arith.constant dense<0.000000e+00> : vector<8x32xf32>
    %245 = tpu.matmul %243, %244, %cst_85 {dimension_numbers = #tpu.dot_dimension_numbers<[1], [0], [0], [1], [0, 0, 1, 1], [], []>} : vector<8x64xf32>, vector<64x32xf32>, vector<8x32xf32> -> vector<8x32xf32>
    %246 = arith.addf %242, %245 : vector<8x32xf32>
    %c40 = arith.constant 40 : index
    %c0_86 = arith.constant 0 : index
    %247 = vector.load %arg13[%c40, %c0_86] : memref<216x64xf32, #tpu.memory_space<vmem>>, vector<8x64xf32>
    %c1472 = arith.constant 1472 : index
    %c0_87 = arith.constant 0 : index
    %248 = vector.load %arg7[%c1472, %c0_87] : memref<1728x32xf32, #tpu.memory_space<vmem>>, vector<64x32xf32>
    %cst_88 = arith.constant dense<0.000000e+00> : vector<8x32xf32>
    %249 = tpu.matmul %247, %248, %cst_88 {dimension_numbers = #tpu.dot_dimension_numbers<[1], [0], [0], [1], [0, 0, 1, 1], [], []>} : vector<8x64xf32>, vector<64x32xf32>, vector<8x32xf32> -> vector<8x32xf32>
    %250 = arith.addf %246, %249 : vector<8x32xf32>
    %c48_89 = arith.constant 48 : index
    %c0_90 = arith.constant 0 : index
    %251 = vector.load %arg13[%c48_89, %c0_90] : memref<216x64xf32, #tpu.memory_space<vmem>>, vector<8x64xf32>
    %c1536 = arith.constant 1536 : index
    %c0_91 = arith.constant 0 : index
    %252 = vector.load %arg7[%c1536, %c0_91] : memref<1728x32xf32, #tpu.memory_space<vmem>>, vector<64x32xf32>
    %cst_92 = arith.constant dense<0.000000e+00> : vector<8x32xf32>
    %253 = tpu.matmul %251, %252, %cst_92 {dimension_numbers = #tpu.dot_dimension_numbers<[1], [0], [0], [1], [0, 0, 1, 1], [], []>} : vector<8x64xf32>, vector<64x32xf32>, vector<8x32xf32> -> vector<8x32xf32>
    %254 = arith.addf %250, %253 : vector<8x32xf32>
    %c56 = arith.constant 56 : index
    %c0_93 = arith.constant 0 : index
    %255 = vector.load %arg13[%c56, %c0_93] : memref<216x64xf32, #tpu.memory_space<vmem>>, vector<8x64xf32>
    %c1600 = arith.constant 1600 : index
    %c0_94 = arith.constant 0 : index
    %256 = vector.load %arg7[%c1600, %c0_94] : memref<1728x32xf32, #tpu.memory_space<vmem>>, vector<64x32xf32>
    %cst_95 = arith.constant dense<0.000000e+00> : vector<8x32xf32>
    %257 = tpu.matmul %255, %256, %cst_95 {dimension_numbers = #tpu.dot_dimension_numbers<[1], [0], [0], [1], [0, 0, 1, 1], [], []>} : vector<8x64xf32>, vector<64x32xf32>, vector<8x32xf32> -> vector<8x32xf32>
    %258 = arith.addf %254, %257 : vector<8x32xf32>
    %c64 = arith.constant 64 : index
    %c0_96 = arith.constant 0 : index
    %259 = vector.load %arg13[%c64, %c0_96] : memref<216x64xf32, #tpu.memory_space<vmem>>, vector<8x64xf32>
    %c1664 = arith.constant 1664 : index
    %c0_97 = arith.constant 0 : index
    %260 = vector.load %arg7[%c1664, %c0_97] : memref<1728x32xf32, #tpu.memory_space<vmem>>, vector<64x32xf32>
    %cst_98 = arith.constant dense<0.000000e+00> : vector<8x32xf32>
    %261 = tpu.matmul %259, %260, %cst_98 {dimension_numbers = #tpu.dot_dimension_numbers<[1], [0], [0], [1], [0, 0, 1, 1], [], []>} : vector<8x64xf32>, vector<64x32xf32>, vector<8x32xf32> -> vector<8x32xf32>
    %262 = arith.addf %258, %261 : vector<8x32xf32>
    %263 = vector.extract_strided_slice %0 {offsets = [5, 0], sizes = [1, 32], strides = [1, 1]} : vector<32x32xf32> to vector<1x32xf32>
    %264 = vector.broadcast %263 : vector<1x32xf32> to vector<8x32xf32>
    %265 = arith.addf %262, %264 : vector<8x32xf32>
    %266 = vector.extract_strided_slice %0 {offsets = [6, 0], sizes = [1, 32], strides = [1, 1]} : vector<32x32xf32> to vector<1x32xf32>
    %267 = vector.broadcast %266 : vector<1x32xf32> to vector<8x32xf32>
    %268 = arith.addf %265, %267 : vector<8x32xf32>
    %c0_99 = arith.constant 0 : index
    %c0_100 = arith.constant 0 : index
    %269 = vector.load %arg8[%c0_99, %c0_100] : memref<448x64xf32, #tpu.memory_space<vmem>>, vector<32x64xf32>
    %cst_101 = arith.constant dense<0.000000e+00> : vector<8x64xf32>
    %270 = tpu.matmul %268, %269, %cst_101 {dimension_numbers = #tpu.dot_dimension_numbers<[1], [0], [0], [1], [0, 0, 1, 1], [], []>} : vector<8x32xf32>, vector<32x64xf32>, vector<8x64xf32> -> vector<8x64xf32>
    %271 = vector.extract_strided_slice %270 {offsets = [0, 0], sizes = [8, 32], strides = [1, 1]} : vector<8x64xf32> to vector<8x32xf32>
    %272 = vector.extract_strided_slice %0 {offsets = [7, 0], sizes = [1, 32], strides = [1, 1]} : vector<32x32xf32> to vector<1x32xf32>
    %273 = vector.broadcast %272 : vector<1x32xf32> to vector<8x32xf32>
    %274 = arith.addf %271, %273 : vector<8x32xf32>
    %cst_102 = arith.constant 0.000000e+00 : f32
    %275 = vector.broadcast %cst_102 : f32 to vector<8x32xf32>
    %276 = arith.cmpf ogt, %274, %275 : vector<8x32xf32>
    %cst_103 = arith.constant 0.00999999977 : f32
    %277 = vector.broadcast %cst_103 : f32 to vector<8x32xf32>
    %278 = arith.mulf %277, %274 : vector<8x32xf32>
    %279 = arith.select %276, %274, %278 : vector<8x32xi1>, vector<8x32xf32>
    %280 = vector.extract_strided_slice %270 {offsets = [0, 32], sizes = [8, 32], strides = [1, 1]} : vector<8x64xf32> to vector<8x32xf32>
    %281 = vector.extract_strided_slice %0 {offsets = [9, 0], sizes = [1, 32], strides = [1, 1]} : vector<32x32xf32> to vector<1x32xf32>
    %282 = vector.broadcast %281 : vector<1x32xf32> to vector<8x32xf32>
    %283 = arith.addf %280, %282 : vector<8x32xf32>
    %c32_104 = arith.constant 32 : index
    %c0_105 = arith.constant 0 : index
    %284 = vector.load %arg8[%c32_104, %c0_105] : memref<448x64xf32, #tpu.memory_space<vmem>>, vector<32x32xf32>
    %cst_106 = arith.constant dense<0.000000e+00> : vector<8x32xf32>
    %285 = tpu.matmul %279, %284, %cst_106 {dimension_numbers = #tpu.dot_dimension_numbers<[1], [0], [0], [1], [0, 0, 1, 1], [], []>} : vector<8x32xf32>, vector<32x32xf32>, vector<8x32xf32> -> vector<8x32xf32>
    %286 = vector.extract_strided_slice %0 {offsets = [8, 0], sizes = [1, 32], strides = [1, 1]} : vector<32x32xf32> to vector<1x32xf32>
    %287 = vector.broadcast %286 : vector<1x32xf32> to vector<8x32xf32>
    %288 = arith.addf %285, %287 : vector<8x32xf32>
    %289 = arith.addf %288, %283 : vector<8x32xf32>
    %c64_107 = arith.constant 64 : index
    %c0_108 = arith.constant 0 : index
    %290 = vector.load %arg8[%c64_107, %c0_108] : memref<448x64xf32, #tpu.memory_space<vmem>>, vector<32x64xf32>
    %cst_109 = arith.constant dense<0.000000e+00> : vector<8x64xf32>
    %291 = tpu.matmul %289, %290, %cst_109 {dimension_numbers = #tpu.dot_dimension_numbers<[1], [0], [0], [1], [0, 0, 1, 1], [], []>} : vector<8x32xf32>, vector<32x64xf32>, vector<8x64xf32> -> vector<8x64xf32>
    %292 = vector.extract_strided_slice %291 {offsets = [0, 0], sizes = [8, 32], strides = [1, 1]} : vector<8x64xf32> to vector<8x32xf32>
    %293 = vector.extract_strided_slice %0 {offsets = [10, 0], sizes = [1, 32], strides = [1, 1]} : vector<32x32xf32> to vector<1x32xf32>
    %294 = vector.broadcast %293 : vector<1x32xf32> to vector<8x32xf32>
    %295 = arith.addf %292, %294 : vector<8x32xf32>
    %cst_110 = arith.constant 0.000000e+00 : f32
    %296 = vector.broadcast %cst_110 : f32 to vector<8x32xf32>
    %297 = arith.cmpf ogt, %295, %296 : vector<8x32xf32>
    %cst_111 = arith.constant 0.00999999977 : f32
    %298 = vector.broadcast %cst_111 : f32 to vector<8x32xf32>
    %299 = arith.mulf %298, %295 : vector<8x32xf32>
    %300 = arith.select %297, %295, %299 : vector<8x32xi1>, vector<8x32xf32>
    %301 = vector.extract_strided_slice %291 {offsets = [0, 32], sizes = [8, 32], strides = [1, 1]} : vector<8x64xf32> to vector<8x32xf32>
    %302 = vector.extract_strided_slice %0 {offsets = [12, 0], sizes = [1, 32], strides = [1, 1]} : vector<32x32xf32> to vector<1x32xf32>
    %303 = vector.broadcast %302 : vector<1x32xf32> to vector<8x32xf32>
    %304 = arith.addf %301, %303 : vector<8x32xf32>
    %c96_112 = arith.constant 96 : index
    %c0_113 = arith.constant 0 : index
    %305 = vector.load %arg8[%c96_112, %c0_113] : memref<448x64xf32, #tpu.memory_space<vmem>>, vector<32x32xf32>
    %cst_114 = arith.constant dense<0.000000e+00> : vector<8x32xf32>
    %306 = tpu.matmul %300, %305, %cst_114 {dimension_numbers = #tpu.dot_dimension_numbers<[1], [0], [0], [1], [0, 0, 1, 1], [], []>} : vector<8x32xf32>, vector<32x32xf32>, vector<8x32xf32> -> vector<8x32xf32>
    %307 = vector.extract_strided_slice %0 {offsets = [11, 0], sizes = [1, 32], strides = [1, 1]} : vector<32x32xf32> to vector<1x32xf32>
    %308 = vector.broadcast %307 : vector<1x32xf32> to vector<8x32xf32>
    %309 = arith.addf %306, %308 : vector<8x32xf32>
    %310 = arith.addf %309, %304 : vector<8x32xf32>
    %c128 = arith.constant 128 : index
    %c0_115 = arith.constant 0 : index
    %311 = vector.load %arg8[%c128, %c0_115] : memref<448x64xf32, #tpu.memory_space<vmem>>, vector<32x64xf32>
    %cst_116 = arith.constant dense<0.000000e+00> : vector<8x64xf32>
    %312 = tpu.matmul %310, %311, %cst_116 {dimension_numbers = #tpu.dot_dimension_numbers<[1], [0], [0], [1], [0, 0, 1, 1], [], []>} : vector<8x32xf32>, vector<32x64xf32>, vector<8x64xf32> -> vector<8x64xf32>
    %313 = vector.extract_strided_slice %312 {offsets = [0, 0], sizes = [8, 32], strides = [1, 1]} : vector<8x64xf32> to vector<8x32xf32>
    %314 = vector.extract_strided_slice %0 {offsets = [13, 0], sizes = [1, 32], strides = [1, 1]} : vector<32x32xf32> to vector<1x32xf32>
    %315 = vector.broadcast %314 : vector<1x32xf32> to vector<8x32xf32>
    %316 = arith.addf %313, %315 : vector<8x32xf32>
    %cst_117 = arith.constant 0.000000e+00 : f32
    %317 = vector.broadcast %cst_117 : f32 to vector<8x32xf32>
    %318 = arith.cmpf ogt, %316, %317 : vector<8x32xf32>
    %cst_118 = arith.constant 0.00999999977 : f32
    %319 = vector.broadcast %cst_118 : f32 to vector<8x32xf32>
    %320 = arith.mulf %319, %316 : vector<8x32xf32>
    %321 = arith.select %318, %316, %320 : vector<8x32xi1>, vector<8x32xf32>
    %322 = vector.extract_strided_slice %312 {offsets = [0, 32], sizes = [8, 32], strides = [1, 1]} : vector<8x64xf32> to vector<8x32xf32>
    %323 = vector.extract_strided_slice %0 {offsets = [15, 0], sizes = [1, 32], strides = [1, 1]} : vector<32x32xf32> to vector<1x32xf32>
    %324 = vector.broadcast %323 : vector<1x32xf32> to vector<8x32xf32>
    %325 = arith.addf %322, %324 : vector<8x32xf32>
    %c160 = arith.constant 160 : index
    %c0_119 = arith.constant 0 : index
    %326 = vector.load %arg8[%c160, %c0_119] : memref<448x64xf32, #tpu.memory_space<vmem>>, vector<32x32xf32>
    %cst_120 = arith.constant dense<0.000000e+00> : vector<8x32xf32>
    %327 = tpu.matmul %321, %326, %cst_120 {dimension_numbers = #tpu.dot_dimension_numbers<[1], [0], [0], [1], [0, 0, 1, 1], [], []>} : vector<8x32xf32>, vector<32x32xf32>, vector<8x32xf32> -> vector<8x32xf32>
    %328 = vector.extract_strided_slice %0 {offsets = [14, 0], sizes = [1, 32], strides = [1, 1]} : vector<32x32xf32> to vector<1x32xf32>
    %329 = vector.broadcast %328 : vector<1x32xf32> to vector<8x32xf32>
    %330 = arith.addf %327, %329 : vector<8x32xf32>
    %331 = arith.addf %330, %325 : vector<8x32xf32>
    %c192_121 = arith.constant 192 : index
    %c0_122 = arith.constant 0 : index
    %332 = vector.load %arg8[%c192_121, %c0_122] : memref<448x64xf32, #tpu.memory_space<vmem>>, vector<32x64xf32>
    %cst_123 = arith.constant dense<0.000000e+00> : vector<8x64xf32>
    %333 = tpu.matmul %331, %332, %cst_123 {dimension_numbers = #tpu.dot_dimension_numbers<[1], [0], [0], [1], [0, 0, 1, 1], [], []>} : vector<8x32xf32>, vector<32x64xf32>, vector<8x64xf32> -> vector<8x64xf32>
    %334 = vector.extract_strided_slice %333 {offsets = [0, 0], sizes = [8, 32], strides = [1, 1]} : vector<8x64xf32> to vector<8x32xf32>
    %335 = vector.extract_strided_slice %0 {offsets = [16, 0], sizes = [1, 32], strides = [1, 1]} : vector<32x32xf32> to vector<1x32xf32>
    %336 = vector.broadcast %335 : vector<1x32xf32> to vector<8x32xf32>
    %337 = arith.addf %334, %336 : vector<8x32xf32>
    %cst_124 = arith.constant 0.000000e+00 : f32
    %338 = vector.broadcast %cst_124 : f32 to vector<8x32xf32>
    %339 = arith.cmpf ogt, %337, %338 : vector<8x32xf32>
    %cst_125 = arith.constant 0.00999999977 : f32
    %340 = vector.broadcast %cst_125 : f32 to vector<8x32xf32>
    %341 = arith.mulf %340, %337 : vector<8x32xf32>
    %342 = arith.select %339, %337, %341 : vector<8x32xi1>, vector<8x32xf32>
    %343 = vector.extract_strided_slice %333 {offsets = [0, 32], sizes = [8, 32], strides = [1, 1]} : vector<8x64xf32> to vector<8x32xf32>
    %344 = vector.extract_strided_slice %0 {offsets = [18, 0], sizes = [1, 32], strides = [1, 1]} : vector<32x32xf32> to vector<1x32xf32>
    %345 = vector.broadcast %344 : vector<1x32xf32> to vector<8x32xf32>
    %346 = arith.addf %343, %345 : vector<8x32xf32>
    %c224 = arith.constant 224 : index
    %c0_126 = arith.constant 0 : index
    %347 = vector.load %arg8[%c224, %c0_126] : memref<448x64xf32, #tpu.memory_space<vmem>>, vector<32x32xf32>
    %cst_127 = arith.constant dense<0.000000e+00> : vector<8x32xf32>
    %348 = tpu.matmul %342, %347, %cst_127 {dimension_numbers = #tpu.dot_dimension_numbers<[1], [0], [0], [1], [0, 0, 1, 1], [], []>} : vector<8x32xf32>, vector<32x32xf32>, vector<8x32xf32> -> vector<8x32xf32>
    %349 = vector.extract_strided_slice %0 {offsets = [17, 0], sizes = [1, 32], strides = [1, 1]} : vector<32x32xf32> to vector<1x32xf32>
    %350 = vector.broadcast %349 : vector<1x32xf32> to vector<8x32xf32>
    %351 = arith.addf %348, %350 : vector<8x32xf32>
    %352 = arith.addf %351, %346 : vector<8x32xf32>
    %c256 = arith.constant 256 : index
    %c0_128 = arith.constant 0 : index
    %353 = vector.load %arg8[%c256, %c0_128] : memref<448x64xf32, #tpu.memory_space<vmem>>, vector<32x64xf32>
    %cst_129 = arith.constant dense<0.000000e+00> : vector<8x64xf32>
    %354 = tpu.matmul %352, %353, %cst_129 {dimension_numbers = #tpu.dot_dimension_numbers<[1], [0], [0], [1], [0, 0, 1, 1], [], []>} : vector<8x32xf32>, vector<32x64xf32>, vector<8x64xf32> -> vector<8x64xf32>
    %355 = vector.extract_strided_slice %354 {offsets = [0, 0], sizes = [8, 32], strides = [1, 1]} : vector<8x64xf32> to vector<8x32xf32>
    %356 = vector.extract_strided_slice %0 {offsets = [19, 0], sizes = [1, 32], strides = [1, 1]} : vector<32x32xf32> to vector<1x32xf32>
    %357 = vector.broadcast %356 : vector<1x32xf32> to vector<8x32xf32>
    %358 = arith.addf %355, %357 : vector<8x32xf32>
    %cst_130 = arith.constant 0.000000e+00 : f32
    %359 = vector.broadcast %cst_130 : f32 to vector<8x32xf32>
    %360 = arith.cmpf ogt, %358, %359 : vector<8x32xf32>
    %cst_131 = arith.constant 0.00999999977 : f32
    %361 = vector.broadcast %cst_131 : f32 to vector<8x32xf32>
    %362 = arith.mulf %361, %358 : vector<8x32xf32>
    %363 = arith.select %360, %358, %362 : vector<8x32xi1>, vector<8x32xf32>
    %364 = vector.extract_strided_slice %354 {offsets = [0, 32], sizes = [8, 32], strides = [1, 1]} : vector<8x64xf32> to vector<8x32xf32>
    %365 = vector.extract_strided_slice %0 {offsets = [21, 0], sizes = [1, 32], strides = [1, 1]} : vector<32x32xf32> to vector<1x32xf32>
    %366 = vector.broadcast %365 : vector<1x32xf32> to vector<8x32xf32>
    %367 = arith.addf %364, %366 : vector<8x32xf32>
    %c288_132 = arith.constant 288 : index
    %c0_133 = arith.constant 0 : index
    %368 = vector.load %arg8[%c288_132, %c0_133] : memref<448x64xf32, #tpu.memory_space<vmem>>, vector<32x32xf32>
    %cst_134 = arith.constant dense<0.000000e+00> : vector<8x32xf32>
    %369 = tpu.matmul %363, %368, %cst_134 {dimension_numbers = #tpu.dot_dimension_numbers<[1], [0], [0], [1], [0, 0, 1, 1], [], []>} : vector<8x32xf32>, vector<32x32xf32>, vector<8x32xf32> -> vector<8x32xf32>
    %370 = vector.extract_strided_slice %0 {offsets = [20, 0], sizes = [1, 32], strides = [1, 1]} : vector<32x32xf32> to vector<1x32xf32>
    %371 = vector.broadcast %370 : vector<1x32xf32> to vector<8x32xf32>
    %372 = arith.addf %369, %371 : vector<8x32xf32>
    %373 = arith.addf %372, %367 : vector<8x32xf32>
    %c320 = arith.constant 320 : index
    %c0_135 = arith.constant 0 : index
    %374 = vector.load %arg8[%c320, %c0_135] : memref<448x64xf32, #tpu.memory_space<vmem>>, vector<32x64xf32>
    %cst_136 = arith.constant dense<0.000000e+00> : vector<8x64xf32>
    %375 = tpu.matmul %373, %374, %cst_136 {dimension_numbers = #tpu.dot_dimension_numbers<[1], [0], [0], [1], [0, 0, 1, 1], [], []>} : vector<8x32xf32>, vector<32x64xf32>, vector<8x64xf32> -> vector<8x64xf32>
    %376 = vector.extract_strided_slice %375 {offsets = [0, 0], sizes = [8, 32], strides = [1, 1]} : vector<8x64xf32> to vector<8x32xf32>
    %377 = vector.extract_strided_slice %0 {offsets = [22, 0], sizes = [1, 32], strides = [1, 1]} : vector<32x32xf32> to vector<1x32xf32>
    %378 = vector.broadcast %377 : vector<1x32xf32> to vector<8x32xf32>
    %379 = arith.addf %376, %378 : vector<8x32xf32>
    %cst_137 = arith.constant 0.000000e+00 : f32
    %380 = vector.broadcast %cst_137 : f32 to vector<8x32xf32>
    %381 = arith.cmpf ogt, %379, %380 : vector<8x32xf32>
    %cst_138 = arith.constant 0.00999999977 : f32
    %382 = vector.broadcast %cst_138 : f32 to vector<8x32xf32>
    %383 = arith.mulf %382, %379 : vector<8x32xf32>
    %384 = arith.select %381, %379, %383 : vector<8x32xi1>, vector<8x32xf32>
    %385 = vector.extract_strided_slice %375 {offsets = [0, 32], sizes = [8, 32], strides = [1, 1]} : vector<8x64xf32> to vector<8x32xf32>
    %386 = vector.extract_strided_slice %0 {offsets = [24, 0], sizes = [1, 32], strides = [1, 1]} : vector<32x32xf32> to vector<1x32xf32>
    %387 = vector.broadcast %386 : vector<1x32xf32> to vector<8x32xf32>
    %388 = arith.addf %385, %387 : vector<8x32xf32>
    %c352_139 = arith.constant 352 : index
    %c0_140 = arith.constant 0 : index
    %389 = vector.load %arg8[%c352_139, %c0_140] : memref<448x64xf32, #tpu.memory_space<vmem>>, vector<32x32xf32>
    %cst_141 = arith.constant dense<0.000000e+00> : vector<8x32xf32>
    %390 = tpu.matmul %384, %389, %cst_141 {dimension_numbers = #tpu.dot_dimension_numbers<[1], [0], [0], [1], [0, 0, 1, 1], [], []>} : vector<8x32xf32>, vector<32x32xf32>, vector<8x32xf32> -> vector<8x32xf32>
    %391 = vector.extract_strided_slice %0 {offsets = [23, 0], sizes = [1, 32], strides = [1, 1]} : vector<32x32xf32> to vector<1x32xf32>
    %392 = vector.broadcast %391 : vector<1x32xf32> to vector<8x32xf32>
    %393 = arith.addf %390, %392 : vector<8x32xf32>
    %394 = arith.addf %393, %388 : vector<8x32xf32>
    %c384 = arith.constant 384 : index
    %c0_142 = arith.constant 0 : index
    %395 = vector.load %arg8[%c384, %c0_142] : memref<448x64xf32, #tpu.memory_space<vmem>>, vector<32x64xf32>
    %cst_143 = arith.constant dense<0.000000e+00> : vector<8x64xf32>
    %396 = tpu.matmul %394, %395, %cst_143 {dimension_numbers = #tpu.dot_dimension_numbers<[1], [0], [0], [1], [0, 0, 1, 1], [], []>} : vector<8x32xf32>, vector<32x64xf32>, vector<8x64xf32> -> vector<8x64xf32>
    %397 = vector.extract_strided_slice %396 {offsets = [0, 0], sizes = [8, 32], strides = [1, 1]} : vector<8x64xf32> to vector<8x32xf32>
    %398 = vector.extract_strided_slice %0 {offsets = [25, 0], sizes = [1, 32], strides = [1, 1]} : vector<32x32xf32> to vector<1x32xf32>
    %399 = vector.broadcast %398 : vector<1x32xf32> to vector<8x32xf32>
    %400 = arith.addf %397, %399 : vector<8x32xf32>
    %cst_144 = arith.constant 0.000000e+00 : f32
    %401 = vector.broadcast %cst_144 : f32 to vector<8x32xf32>
    %402 = arith.cmpf ogt, %400, %401 : vector<8x32xf32>
    %cst_145 = arith.constant 0.00999999977 : f32
    %403 = vector.broadcast %cst_145 : f32 to vector<8x32xf32>
    %404 = arith.mulf %403, %400 : vector<8x32xf32>
    %405 = arith.select %402, %400, %404 : vector<8x32xi1>, vector<8x32xf32>
    %406 = vector.extract_strided_slice %396 {offsets = [0, 32], sizes = [8, 32], strides = [1, 1]} : vector<8x64xf32> to vector<8x32xf32>
    %407 = vector.extract_strided_slice %0 {offsets = [27, 0], sizes = [1, 32], strides = [1, 1]} : vector<32x32xf32> to vector<1x32xf32>
    %408 = vector.broadcast %407 : vector<1x32xf32> to vector<8x32xf32>
    %409 = arith.addf %406, %408 : vector<8x32xf32>
    %c416_146 = arith.constant 416 : index
    %c0_147 = arith.constant 0 : index
    %410 = vector.load %arg8[%c416_146, %c0_147] : memref<448x64xf32, #tpu.memory_space<vmem>>, vector<32x32xf32>
    %cst_148 = arith.constant dense<0.000000e+00> : vector<8x32xf32>
    %411 = tpu.matmul %405, %410, %cst_148 {dimension_numbers = #tpu.dot_dimension_numbers<[1], [0], [0], [1], [0, 0, 1, 1], [], []>} : vector<8x32xf32>, vector<32x32xf32>, vector<8x32xf32> -> vector<8x32xf32>
    %412 = vector.extract_strided_slice %0 {offsets = [26, 0], sizes = [1, 32], strides = [1, 1]} : vector<32x32xf32> to vector<1x32xf32>
    %413 = vector.broadcast %412 : vector<1x32xf32> to vector<8x32xf32>
    %414 = arith.addf %411, %413 : vector<8x32xf32>
    %415 = arith.addf %414, %409 : vector<8x32xf32>
    %416 = vector.extract_strided_slice %0 {offsets = [28, 0], sizes = [1, 32], strides = [1, 1]} : vector<32x32xf32> to vector<1x32xf32>
    %417 = vector.broadcast %416 : vector<1x32xf32> to vector<8x32xf32>
    %418 = arith.mulf %415, %417 : vector<8x32xf32>
    %419 = vector.extract_strided_slice %0 {offsets = [29, 0], sizes = [1, 32], strides = [1, 1]} : vector<32x32xf32> to vector<1x32xf32>
    %420 = vector.broadcast %419 : vector<1x32xf32> to vector<8x32xf32>
    %421 = arith.addf %418, %420 : vector<8x32xf32>
    %cst_149 = arith.constant 0.000000e+00 : f32
    %422 = vector.broadcast %cst_149 : f32 to vector<8x32xf32>
    %423 = arith.cmpf ogt, %421, %422 : vector<8x32xf32>
    %cst_150 = arith.constant 0.00999999977 : f32
    %424 = vector.broadcast %cst_150 : f32 to vector<8x32xf32>
    %425 = arith.mulf %424, %421 : vector<8x32xf32>
    %426 = arith.select %423, %421, %425 : vector<8x32xi1>, vector<8x32xf32>
    %c0_151 = arith.constant 0 : index
    %c0_152 = arith.constant 0 : index
    %427 = vector.load %arg10[%c0_151, %c0_152] : memref<288x128xf32, #tpu.memory_space<vmem>>, vector<32x128xf32>
    %cst_153 = arith.constant dense<0.000000e+00> : vector<8x128xf32>
    %428 = tpu.matmul %426, %427, %cst_153 {dimension_numbers = #tpu.dot_dimension_numbers<[1], [0], [0], [1], [0, 0, 1, 1], [], []>} : vector<8x32xf32>, vector<32x128xf32>, vector<8x128xf32> -> vector<8x128xf32>
    %429 = vector.extract_strided_slice %1 {offsets = [0, 0], sizes = [1, 128], strides = [1, 1]} : vector<8x128xf32> to vector<1x128xf32>
    %430 = vector.broadcast %429 : vector<1x128xf32> to vector<8x128xf32>
    %431 = arith.addf %428, %430 : vector<8x128xf32>
    %cst_154 = arith.constant 0.000000e+00 : f32
    %432 = vector.broadcast %cst_154 : f32 to vector<8x128xf32>
    %433 = arith.cmpf ogt, %431, %432 : vector<8x128xf32>
    %cst_155 = arith.constant 0.00999999977 : f32
    %434 = vector.broadcast %cst_155 : f32 to vector<8x128xf32>
    %435 = arith.mulf %434, %431 : vector<8x128xf32>
    %436 = arith.select %433, %431, %435 : vector<8x128xi1>, vector<8x128xf32>
    %c32_156 = arith.constant 32 : index
    %c0_157 = arith.constant 0 : index
    %437 = vector.load %arg10[%c32_156, %c0_157] : memref<288x128xf32, #tpu.memory_space<vmem>>, vector<128x128xf32>
    %cst_158 = arith.constant dense<0.000000e+00> : vector<8x128xf32>
    %438 = tpu.matmul %436, %437, %cst_158 {dimension_numbers = #tpu.dot_dimension_numbers<[1], [0], [0], [1], [0, 0, 1, 1], [], []>} : vector<8x128xf32>, vector<128x128xf32>, vector<8x128xf32> -> vector<8x128xf32>
    %439 = vector.extract_strided_slice %1 {offsets = [1, 0], sizes = [1, 128], strides = [1, 1]} : vector<8x128xf32> to vector<1x128xf32>
    %440 = vector.broadcast %439 : vector<1x128xf32> to vector<8x128xf32>
    %441 = arith.addf %438, %440 : vector<8x128xf32>
    %cst_159 = arith.constant 0.000000e+00 : f32
    %442 = vector.broadcast %cst_159 : f32 to vector<8x128xf32>
    %443 = arith.cmpf ogt, %441, %442 : vector<8x128xf32>
    %cst_160 = arith.constant 0.00999999977 : f32
    %444 = vector.broadcast %cst_160 : f32 to vector<8x128xf32>
    %445 = arith.mulf %444, %441 : vector<8x128xf32>
    %446 = arith.select %443, %441, %445 : vector<8x128xi1>, vector<8x128xf32>
    %c160_161 = arith.constant 160 : index
    %c0_162 = arith.constant 0 : index
    %447 = vector.load %arg10[%c160_161, %c0_162] : memref<288x128xf32, #tpu.memory_space<vmem>>, vector<128x128xf32>
    %cst_163 = arith.constant dense<0.000000e+00> : vector<8x128xf32>
    %448 = tpu.matmul %446, %447, %cst_163 {dimension_numbers = #tpu.dot_dimension_numbers<[1], [0], [0], [1], [0, 0, 1, 1], [], []>} : vector<8x128xf32>, vector<128x128xf32>, vector<8x128xf32> -> vector<8x128xf32>
    %449 = vector.extract_strided_slice %1 {offsets = [2, 0], sizes = [1, 128], strides = [1, 1]} : vector<8x128xf32> to vector<1x128xf32>
    %450 = vector.broadcast %449 : vector<1x128xf32> to vector<8x128xf32>
    %451 = arith.addf %448, %450 : vector<8x128xf32>
    %c0_164 = arith.constant 0 : index
    %c0_165 = arith.constant 0 : index
    %452 = vector.load %arg12[%c0_164, %c0_165] : memref<8x128xf32, #tpu.memory_space<vmem>>, vector<8x128xf32>
    tpu.vector_store %arg12[%c0_164, %c0_165], %451 {strides = array<i32>} : memref<8x128xf32, #tpu.memory_space<vmem>>, vector<8x128xf32>,
    return
  }
  func.func @transform_0(%arg0: i32) -> (i32, i32) {
    %c0_i32 = arith.constant 0 : i32
    %c0_i32_0 = arith.constant 0 : i32
    %c0_i32_1 = arith.constant 0 : i32
    return %c0_i32, %c0_i32_0 : i32, i32
  }
  func.func @transform_1(%arg0: i32) -> (i32, i32) {
    %c0_i32 = arith.constant 0 : i32
    %c0_i32_0 = arith.constant 0 : i32
    %c0_i32_1 = arith.constant 0 : i32
    return %c0_i32, %c0_i32_0 : i32, i32
  }
  func.func @transform_2(%arg0: i32) -> (i32, i32) {
    %c0_i32 = arith.constant 0 : i32
    %c0_i32_0 = arith.constant 0 : i32
    %c0_i32_1 = arith.constant 0 : i32
    return %c0_i32, %c0_i32_0 : i32, i32
  }
  func.func @transform_3(%arg0: i32) -> (i32, i32) {
    %c0_i32 = arith.constant 0 : i32
    %c0_i32_0 = arith.constant 0 : i32
    %c0_i32_1 = arith.constant 0 : i32
    return %c0_i32, %c0_i32_0 : i32, i32
  }
  func.func @transform_4(%arg0: i32) -> (i32, i32) {
    %c0_i32 = arith.constant 0 : i32
    %c0_i32_0 = arith.constant 0 : i32
    %c0_i32_1 = arith.constant 0 : i32
    return %c0_i32, %c0_i32_0 : i32, i32
  }
  func.func @transform_5(%arg0: i32) -> (i32, i32) {
    %c0_i32 = arith.constant 0 : i32
    %c0_i32_0 = arith.constant 0 : i32
    %c0_i32_1 = arith.constant 0 : i32
    return %c0_i32, %c0_i32_0 : i32, i32
  }
  func.func @transform_6(%arg0: i32) -> (i32, i32) {
    %c0_i32 = arith.constant 0 : i32
    %c0_i32_0 = arith.constant 0 : i32
    %c0_i32_1 = arith.constant 0 : i32
    return %c0_i32, %c0_i32_0 : i32, i32
  }
  func.func @transform_7(%arg0: i32) -> (i32, i32) {
    %c0_i32 = arith.constant 0 : i32
    %c0_i32_0 = arith.constant 0 : i32
    %c0_i32_1 = arith.constant 0 : i32
    return %c0_i32, %c0_i32_0 : i32, i32
  }
  func.func @transform_8(%arg0: i32) -> (i32, i32) {
    %c0_i32 = arith.constant 0 : i32
    %c0_i32_0 = arith.constant 0 : i32
    %c0_i32_1 = arith.constant 0 : i32
    return %c0_i32, %c0_i32_0 : i32, i32
  }
  func.func @transform_9(%arg0: i32) -> (i32, i32) {
    %c0_i32 = arith.constant 0 : i32
    %c0_i32_0 = arith.constant 0 : i32
    %c0_i32_1 = arith.constant 0 : i32
    return %c0_i32, %c0_i32_0 : i32, i32
  }
  func.func @transform_10(%arg0: i32) -> (i32, i32) {
    %c0_i32 = arith.constant 0 : i32
    %c0_i32_0 = arith.constant 0 : i32
    %c0_i32_1 = arith.constant 0 : i32
    return %c0_i32, %c0_i32_0 : i32, i32
  }
  func.func @transform_11(%arg0: i32) -> (i32, i32) {
    %c0_i32 = arith.constant 0 : i32
    %c0_i32_0 = arith.constant 0 : i32
    %c0_i32_1 = arith.constant 0 : i32
    return %c0_i32, %c0_i32_0 : i32, i32
  }
}

</mosaic_0001>

<llo_original>
// kernel: model_forward.1
$region0: #{model_forward.1}
  #allocation0 [shape = 'u32[]', space=smem, size = 0x4, offset = 0x4, fixed_abs, tag = 'smem constant byte address 0x4 - core index']
  #allocation1 [shape = 'u32[144,128]{1,0:T(1,128)}', space=vmem, size = 0x12000, scoped, tag = 'internal scratch']
  #allocation2 [shape = 'f32[216,64]{1,0:T(8,128)}', space=vmem, size = 0x1b000, scoped, tag = 'scratch operand']
  %s0 = inlined_call_operand.vmem [shape: f32[168,1], index: 0, kind: input, shape index: {}]
  %s1 = inlined_call_operand.vmem [shape: f32[168,16], index: 1, kind: input, shape index: {}]
  %s2 = inlined_call_operand.vmem [shape: f32[24,16], index: 2, kind: input, shape index: {}]
  %s3 = inlined_call_operand.vmem [shape: f32[16,32], index: 3, kind: input, shape index: {}]
  %s4 = inlined_call_operand.vmem [shape: f32[216,168], index: 4, kind: input, shape index: {}]
  %s5 = inlined_call_operand.vmem [shape: f32[72,24], index: 5, kind: input, shape index: {}]
  %s6 = inlined_call_operand.vmem [shape: f32[1728,32], index: 6, kind: input, shape index: {}]
  %s7 = inlined_call_operand.vmem [shape: f32[448,64], index: 7, kind: input, shape index: {}]
  %s8 = inlined_call_operand.vmem [shape: f32[32,32], index: 8, kind: input, shape index: {}]
  %s9 = inlined_call_operand.vmem [shape: f32[288,128], index: 9, kind: input, shape index: {}]
  %s10 = inlined_call_operand.vmem [shape: f32[8,128], index: 10, kind: input, shape index: {}]
  %s11 = inlined_call_operand.vmem [shape: f32[8,128], index: 11, kind: output, shape index: {}]
  %s12 = sld [smem:[#allocation0]]
  $region54: #{model_forward.1} parent=0
    _
  %s14 = ssub.s32 1, %s12
  %s15 = scalar_select 0, %s14, %s12
  // Predicated region
  $region2: #{model_forward.1} parent=0 // pred_check
    _
  $region3: #{model_forward.1} parent=0 // pred_check_branch
    %17 = sbr.rel (0) target = $region5
  $region4: #{model_forward.1} parent=0 // pred_region
    _
  $region5: #{model_forward.1} parent=0 // pred_fallthru
    _
  // Predicated region
  $region6: #{model_forward.1} parent=0 // pred_check
    _
  $region7: #{model_forward.1} parent=0 // pred_check_branch
    %19 = sbr.rel (0) target = $region9
  $region8: #{model_forward.1} parent=0 // pred_region
    _
  $region9: #{model_forward.1} parent=0 // pred_fallthru
    _
  // Predicated region
  $region10: #{model_forward.1} parent=0 // pred_check
    _
  $region11: #{model_forward.1} parent=0 // pred_check_branch
    %21 = sbr.rel (0) target = $region13
  $region12: #{model_forward.1} parent=0 // pred_region
    _
  $region13: #{model_forward.1} parent=0 // pred_fallthru
    _
  // Predicated region
  $region14: #{model_forward.1} parent=0 // pred_check
    _
  $region15: #{model_forward.1} parent=0 // pred_check_branch
    %23 = sbr.rel (0) target = $region17
  $region16: #{model_forward.1} parent=0 // pred_region
    _
  $region17: #{model_forward.1} parent=0 // pred_fallthru
    _
  // Predicated region
  $region18: #{model_forward.1} parent=0 // pred_check
    _
  $region19: #{model_forward.1} parent=0 // pred_check_branch
    %25 = sbr.rel (0) target = $region21
  $region20: #{model_forward.1} parent=0 // pred_region
    _
  $region21: #{model_forward.1} parent=0 // pred_fallthru
    _
  // Predicated region
  $region22: #{model_forward.1} parent=0 // pred_check
    _
  $region23: #{model_forward.1} parent=0 // pred_check_branch
    %27 = sbr.rel (0) target = $region25
  $region24: #{model_forward.1} parent=0 // pred_region
    _
  $region25: #{model_forward.1} parent=0 // pred_fallthru
    _
  // Predicated region
  $region26: #{model_forward.1} parent=0 // pred_check
    _
  $region27: #{model_forward.1} parent=0 // pred_check_branch
    %29 = sbr.rel (0) target = $region29
  $region28: #{model_forward.1} parent=0 // pred_region
    _
  $region29: #{model_forward.1} parent=0 // pred_fallthru
    _
  // Predicated region
  $region30: #{model_forward.1} parent=0 // pred_check
    _
  $region31: #{model_forward.1} parent=0 // pred_check_branch
    %31 = sbr.rel (0) target = $region33
  $region32: #{model_forward.1} parent=0 // pred_region
    _
  $region33: #{model_forward.1} parent=0 // pred_fallthru
    _
  // Predicated region
  $region34: #{model_forward.1} parent=0 // pred_check
    _
  $region35: #{model_forward.1} parent=0 // pred_check_branch
    %33 = sbr.rel (0) target = $region37
  $region36: #{model_forward.1} parent=0 // pred_region
    _
  $region37: #{model_forward.1} parent=0 // pred_fallthru
    _
  // Predicated region
  $region38: #{model_forward.1} parent=0 // pred_check
    _
  $region39: #{model_forward.1} parent=0 // pred_check_branch
    %35 = sbr.rel (0) target = $region41
  $region40: #{model_forward.1} parent=0 // pred_region
    _
  $region41: #{model_forward.1} parent=0 // pred_fallthru
    _
  // Predicated region
  $region42: #{model_forward.1} parent=0 // pred_check
    _
  $region43: #{model_forward.1} parent=0 // pred_check_branch
    %37 = sbr.rel (0) target = $region45
  $region44: #{model_forward.1} parent=0 // pred_region
    _
  $region45: #{model_forward.1} parent=0 // pred_fallthru
    _
  %v38 = vld [vmem:[%s8] sm:$0xff]
  %v39 = vld [vmem:[%s8 + $0x8] sm:$0xff]
  %v40 = vld [vmem:[%s8 + $0x10] sm:$0xff]
  %v41 = vld [vmem:[%s8 + $0x18] sm:$0xff]
  %v42 = vld [vmem:[%s10] sm:$0xff]
  %v43 = vld [vmem:[%s0] sm:$0xff]
  %v44 = vld [vmem:[%s0 + $0x8] sm:$0xff]
  %v45 = vld [vmem:[%s0 + $0x10] sm:$0xff]
  %v46 = vld [vmem:[%s0 + $0x18] sm:$0xff]
  %v47 = vld [vmem:[%s0 + $0x20] sm:$0xff]
  %v48 = vld [vmem:[%s0 + $0x28] sm:$0xff]
  %v49 = vld [vmem:[%s0 + $0x30] sm:$0xff]
  %v50 = vld [vmem:[%s0 + $0x38] sm:$0xff]
  %v51 = vld [vmem:[%s0 + $0x40] sm:$0xff]
  %v52 = vld [vmem:[%s0 + $0x48] sm:$0xff]
  %v53 = vld [vmem:[%s0 + $0x50] sm:$0xff]
  %v54 = vld [vmem:[%s0 + $0x58] sm:$0xff]
  %v55 = vld [vmem:[%s0 + $0x60] sm:$0xff]
  %v56 = vld [vmem:[%s0 + $0x68] sm:$0xff]
  %v57 = vld [vmem:[%s0 + $0x70] sm:$0xff]
  %v58 = vld [vmem:[%s0 + $0x78] sm:$0xff]
  %v59 = vld [vmem:[%s0 + $0x80] sm:$0xff]
  %v60 = vld [vmem:[%s0 + $0x88] sm:$0xff]
  %v61 = vld [vmem:[%s0 + $0x90] sm:$0xff]
  %v62 = vld [vmem:[%s0 + $0x98] sm:$0xff]
  %v63 = vld [vmem:[%s0 + $0xa0] sm:$0xff]
  %65 = vset.pattern.permute.xlu0 0
  %66 = vperm.xlu0 %65, %v43
  %v67 = vpop.permute.xlu0 %66
  %70 = vset.pattern.permute.xlu0 0
  %71 = vperm.xlu0 %70, %v44
  %v72 = vpop.permute.xlu0 %71
  %75 = vset.pattern.permute.xlu0 0
  %76 = vperm.xlu0 %75, %v45
  %v77 = vpop.permute.xlu0 %76
  %80 = vset.pattern.permute.xlu0 0
  %81 = vperm.xlu0 %80, %v46
  %v82 = vpop.permute.xlu0 %81
  %85 = vset.pattern.permute.xlu0 0
  %86 = vperm.xlu0 %85, %v47
  %v87 = vpop.permute.xlu0 %86
  %90 = vset.pattern.permute.xlu0 0
  %91 = vperm.xlu0 %90, %v48
  %v92 = vpop.permute.xlu0 %91
  %95 = vset.pattern.permute.xlu0 0
  %96 = vperm.xlu0 %95, %v49
  %v97 = vpop.permute.xlu0 %96
  %100 = vset.pattern.permute.xlu0 0
  %101 = vperm.xlu0 %100, %v50
  %v102 = vpop.permute.xlu0 %101
  %105 = vset.pattern.permute.xlu0 0
  %106 = vperm.xlu0 %105, %v51
  %v107 = vpop.permute.xlu0 %106
  %110 = vset.pattern.permute.xlu0 0
  %111 = vperm.xlu0 %110, %v52
  %v112 = vpop.permute.xlu0 %111
  %115 = vset.pattern.permute.xlu0 0
  %116 = vperm.xlu0 %115, %v53
  %v117 = vpop.permute.xlu0 %116
  %120 = vset.pattern.permute.xlu0 0
  %121 = vperm.xlu0 %120, %v54
  %v122 = vpop.permute.xlu0 %121
  %125 = vset.pattern.permute.xlu0 0
  %126 = vperm.xlu0 %125, %v55
  %v127 = vpop.permute.xlu0 %126
  %130 = vset.pattern.permute.xlu0 0
  %131 = vperm.xlu0 %130, %v56
  %v132 = vpop.permute.xlu0 %131
  %135 = vset.pattern.permute.xlu0 0
  %136 = vperm.xlu0 %135, %v57
  %v137 = vpop.permute.xlu0 %136
  %140 = vset.pattern.permute.xlu0 0
  %141 = vperm.xlu0 %140, %v58
  %v142 = vpop.permute.xlu0 %141
  %145 = vset.pattern.permute.xlu0 0
  %146 = vperm.xlu0 %145, %v59
  %v147 = vpop.permute.xlu0 %146
  %150 = vset.pattern.permute.xlu0 0
  %151 = vperm.xlu0 %150, %v60
  %v152 = vpop.permute.xlu0 %151
  %155 = vset.pattern.permute.xlu0 0
  %156 = vperm.xlu0 %155, %v61
  %v157 = vpop.permute.xlu0 %156
  %160 = vset.pattern.permute.xlu0 0
  %161 = vperm.xlu0 %160, %v62
  %v162 = vpop.permute.xlu0 %161
  %165 = vset.pattern.permute.xlu0 0
  %166 = vperm.xlu0 %165, %v63
  %v167 = vpop.permute.xlu0 %166
  %v169 = vld [vmem:[%s3] sm:$0xff]
  %v170 = vld [vmem:[%s3 + $0x8] sm:$0xff]
  %v171 = vld [vmem:[%s1] sm:$0xff]
  %v172 = vld [vmem:[%s1 + $0x8] sm:$0xff]
  %v173 = vld [vmem:[%s1 + $0x10] sm:$0xff]
  %v174 = vld [vmem:[%s1 + $0x18] sm:$0xff]
  %v175 = vld [vmem:[%s1 + $0x20] sm:$0xff]
  %v176 = vld [vmem:[%s1 + $0x28] sm:$0xff]
  %v177 = vld [vmem:[%s1 + $0x30] sm:$0xff]
  %v178 = vld [vmem:[%s1 + $0x38] sm:$0xff]
  %v179 = vld [vmem:[%s1 + $0x40] sm:$0xff]
  %v180 = vld [vmem:[%s1 + $0x48] sm:$0xff]
  %v181 = vld [vmem:[%s1 + $0x50] sm:$0xff]
  %v182 = vld [vmem:[%s1 + $0x58] sm:$0xff]
  %v183 = vld [vmem:[%s1 + $0x60] sm:$0xff]
  %v184 = vld [vmem:[%s1 + $0x68] sm:$0xff]
  %v185 = vld [vmem:[%s1 + $0x70] sm:$0xff]
  %v186 = vld [vmem:[%s1 + $0x78] sm:$0xff]
  %v187 = vld [vmem:[%s1 + $0x80] sm:$0xff]
  %v188 = vld [vmem:[%s1 + $0x88] sm:$0xff]
  %v189 = vld [vmem:[%s1 + $0x90] sm:$0xff]
  %v190 = vld [vmem:[%s1 + $0x98] sm:$0xff]
  %v191 = vld [vmem:[%s1 + $0xa0] sm:$0xff]
  %v192 = vrot.slane %v67, 6
  %v193 = vrot.slane %v72, 6
  %v194 = vrot.slane %v77, 6
  %v195 = vrot.slane %v82, 6
  %v196 = vrot.slane %v87, 6
  %v197 = vrot.slane %v92, 6
  %v198 = vrot.slane %v97, 6
  %v199 = vrot.slane %v102, 6
  %v200 = vrot.slane %v107, 6
  %v201 = vrot.slane %v112, 6
  %v202 = vrot.slane %v117, 6
  %v203 = vrot.slane %v122, 6
  %v204 = vrot.slane %v127, 6
  %v205 = vrot.slane %v132, 6
  %v206 = vrot.slane %v137, 6
  %v207 = vrot.slane %v142, 6
  %v208 = vrot.slane %v147, 6
  %v209 = vrot.slane %v152, 6
  %v210 = vrot.slane %v157, 6
  %v211 = vrot.slane %v162, 6
  %v212 = vrot.slane %v167, 6
  %v213 = vlaneseq
  %v214 = vshrl.u32 %v213, 7
  %vm215 = vcmp.lt.s32.totalorder %v214, 2
  %v216 = vsel %vm215, %v211, %v212
  %v217 = vsel %vm215, %v210, %v211
  %v218 = vsel %vm215, %v209, %v210
  %v219 = vsel %vm215, %v208, %v209
  %v220 = vsel %vm215, %v207, %v208
  %v221 = vsel %vm215, %v206, %v207
  %v222 = vsel %vm215, %v205, %v206
  %v223 = vsel %vm215, %v204, %v205
  %v224 = vsel %vm215, %v203, %v204
  %v225 = vsel %vm215, %v202, %v203
  %v226 = vsel %vm215, %v201, %v202
  %v227 = vsel %vm215, %v200, %v201
  %v228 = vsel %vm215, %v199, %v200
  %v229 = vsel %vm215, %v198, %v199
  %v230 = vsel %vm215, %v197, %v198
  %v231 = vsel %vm215, %v196, %v197
  %v232 = vsel %vm215, %v195, %v196
  %v233 = vsel %vm215, %v194, %v195
  %v234 = vsel %vm215, %v193, %v194
  %v235 = vsel %vm215, %v192, %v193
  %v236 = vsel %vm215, %v212, %v192
  %238 = vset.pattern.permute.xlu0 0
  %239 = vperm.xlu0 %238, %v171
  %v240 = vpop.permute.xlu0 %239
  %243 = vset.pattern.permute.xlu0 0
  %244 = vperm.xlu0 %243, %v172
  %v245 = vpop.permute.xlu0 %244
  %248 = vset.pattern.permute.xlu0 0
  %249 = vperm.xlu0 %248, %v173
  %v250 = vpop.permute.xlu0 %249
  %253 = vset.pattern.permute.xlu0 0
  %254 = vperm.xlu0 %253, %v174
  %v255 = vpop.permute.xlu0 %254
  %258 = vset.pattern.permute.xlu0 0
  %259 = vperm.xlu0 %258, %v175
  %v260 = vpop.permute.xlu0 %259
  %263 = vset.pattern.permute.xlu0 0
  %264 = vperm.xlu0 %263, %v176
  %v265 = vpop.permute.xlu0 %264
  %268 = vset.pattern.permute.xlu0 0
  %269 = vperm.xlu0 %268, %v177
  %v270 = vpop.permute.xlu0 %269
  %273 = vset.pattern.permute.xlu0 0
  %274 = vperm.xlu0 %273, %v178
  %v275 = vpop.permute.xlu0 %274
  %278 = vset.pattern.permute.xlu0 0
  %279 = vperm.xlu0 %278, %v179
  %v280 = vpop.permute.xlu0 %279
  %283 = vset.pattern.permute.xlu0 0
  %284 = vperm.xlu0 %283, %v180
  %v285 = vpop.permute.xlu0 %284
  %288 = vset.pattern.permute.xlu0 0
  %289 = vperm.xlu0 %288, %v181
  %v290 = vpop.permute.xlu0 %289
  %293 = vset.pattern.permute.xlu0 0
  %294 = vperm.xlu0 %293, %v182
  %v295 = vpop.permute.xlu0 %294
  %298 = vset.pattern.permute.xlu0 0
  %299 = vperm.xlu0 %298, %v183
  %v300 = vpop.permute.xlu0 %299
  %303 = vset.pattern.permute.xlu0 0
  %304 = vperm.xlu0 %303, %v184
  %v305 = vpop.permute.xlu0 %304
  %308 = vset.pattern.permute.xlu0 0
  %309 = vperm.xlu0 %308, %v185
  %v310 = vpop.permute.xlu0 %309
  %313 = vset.pattern.permute.xlu0 0
  %314 = vperm.xlu0 %313, %v186
  %v315 = vpop.permute.xlu0 %314
  %318 = vset.pattern.permute.xlu0 0
  %319 = vperm.xlu0 %318, %v187
  %v320 = vpop.permute.xlu0 %319
  %323 = vset.pattern.permute.xlu0 0
  %324 = vperm.xlu0 %323, %v188
  %v325 = vpop.permute.xlu0 %324
  %328 = vset.pattern.permute.xlu0 0
  %329 = vperm.xlu0 %328, %v189
  %v330 = vpop.permute.xlu0 %329
  %333 = vset.pattern.permute.xlu0 0
  %334 = vperm.xlu0 %333, %v190
  %v335 = vpop.permute.xlu0 %334
  %338 = vset.pattern.permute.xlu0 0
  %339 = vperm.xlu0 %338, %v191
  %v340 = vpop.permute.xlu0 %339
  %v342 = vmul.f32 %v216, %v240
  %v343 = vmul.f32 %v236, %v245
  %v344 = vmul.f32 %v235, %v250
  %v345 = vmul.f32 %v234, %v255
  %v346 = vmul.f32 %v233, %v260
  %v347 = vmul.f32 %v232, %v265
  %v348 = vmul.f32 %v231, %v270
  %v349 = vmul.f32 %v230, %v275
  %v350 = vmul.f32 %v229, %v280
  %v351 = vmul.f32 %v228, %v285
  %v352 = vmul.f32 %v227, %v290
  %v353 = vmul.f32 %v226, %v295
  %v354 = vmul.f32 %v225, %v300
  %v355 = vmul.f32 %v224, %v305
  %v356 = vmul.f32 %v223, %v310
  %v357 = vmul.f32 %v222, %v315
  %v358 = vmul.f32 %v221, %v320
  %v359 = vmul.f32 %v220, %v325
  %v360 = vmul.f32 %v219, %v330
  %v361 = vmul.f32 %v218, %v335
  %v362 = vmul.f32 %v217, %v340
  %v363 = vlaneseq
  %v364 = vshrl.u32 %v363, 7
  %v365 = vsub.s32 0, %v364
  %v366 = vrot.slane %v169, %v365
  %v367 = vmul.f32 %v342, %v366
  %v368 = vmul.f32 %v343, %v366
  %v369 = vmul.f32 %v344, %v366
  %v370 = vmul.f32 %v345, %v366
  %v371 = vmul.f32 %v346, %v366
  %v372 = vmul.f32 %v347, %v366
  %v373 = vmul.f32 %v348, %v366
  %v374 = vmul.f32 %v349, %v366
  %v375 = vmul.f32 %v350, %v366
  %v376 = vmul.f32 %v351, %v366
  %v377 = vmul.f32 %v352, %v366
  %v378 = vmul.f32 %v353, %v366
  %v379 = vmul.f32 %v354, %v366
  %v380 = vmul.f32 %v355, %v366
  %v381 = vmul.f32 %v356, %v366
  %v382 = vmul.f32 %v357, %v366
  %v383 = vmul.f32 %v358, %v366
  %v384 = vmul.f32 %v359, %v366
  %v385 = vmul.f32 %v360, %v366
  %v386 = vmul.f32 %v361, %v366
  %v387 = vmul.f32 %v362, %v366
  %v388 = vadd.f32 %v367, 0.0
  %v389 = vadd.f32 %v368, 0.0
  %v390 = vadd.f32 %v369, 0.0
  %v391 = vadd.f32 %v370, 0.0
  %v392 = vadd.f32 %v371, 0.0
  %v393 = vadd.f32 %v372, 0.0
  %v394 = vadd.f32 %v373, 0.0
  %v395 = vadd.f32 %v374, 0.0
  %v396 = vadd.f32 %v375, 0.0
  %v397 = vadd.f32 %v376, 0.0
  %v398 = vadd.f32 %v377, 0.0
  %v399 = vadd.f32 %v378, 0.0
  %v400 = vadd.f32 %v379, 0.0
  %v401 = vadd.f32 %v380, 0.0
  %v402 = vadd.f32 %v381, 0.0
  %v403 = vadd.f32 %v382, 0.0
  %v404 = vadd.f32 %v383, 0.0
  %v405 = vadd.f32 %v384, 0.0
  %v406 = vadd.f32 %v385, 0.0
  %v407 = vadd.f32 %v386, 0.0
  %v408 = vadd.f32 %v387, 0.0
  %v409 = vrot.slane %v67, 7
  %v410 = vrot.slane %v72, 7
  %v411 = vrot.slane %v77, 7
  %v412 = vrot.slane %v82, 7
  %v413 = vrot.slane %v87, 7
  %v414 = vrot.slane %v92, 7
  %v415 = vrot.slane %v97, 7
  %v416 = vrot.slane %v102, 7
  %v417 = vrot.slane %v107, 7
  %v418 = vrot.slane %v112, 7
  %v419 = vrot.slane %v117, 7
  %v420 = vrot.slane %v122, 7
  %v421 = vrot.slane %v127, 7
  %v422 = vrot.slane %v132, 7
  %v423 = vrot.slane %v137, 7
  %v424 = vrot.slane %v142, 7
  %v425 = vrot.slane %v147, 7
  %v426 = vrot.slane %v152, 7
  %v427 = vrot.slane %v157, 7
  %v428 = vrot.slane %v162, 7
  %v429 = vrot.slane %v167, 7
  %vm430 = vcmp.lt.s32.totalorder %v214, 1
  %v431 = vsel %vm430, %v428, %v429
  %v432 = vsel %vm430, %v427, %v428
  %v433 = vsel %vm430, %v426, %v427
  %v434 = vsel %vm430, %v425, %v426
  %v435 = vsel %vm430, %v424, %v425
  %v436 = vsel %vm430, %v423, %v424
  %v437 = vsel %vm430, %v422, %v423
  %v438 = vsel %vm430, %v421, %v422
  %v439 = vsel %vm430, %v420, %v421
  %v440 = vsel %vm430, %v419, %v420
  %v441 = vsel %vm430, %v418, %v419
  %v442 = vsel %vm430, %v417, %v418
  %v443 = vsel %vm430, %v416, %v417
  %v444 = vsel %vm430, %v415, %v416
  %v445 = vsel %vm430, %v414, %v415
  %v446 = vsel %vm430, %v413, %v414
  %v447 = vsel %vm430, %v412, %v413
  %v448 = vsel %vm430, %v411, %v412
  %v449 = vsel %vm430, %v410, %v411
  %v450 = vsel %vm430, %v409, %v410
  %v451 = vsel %vm430, %v429, %v409
  %452 = vset.pattern.permute.xlu0 1
  %453 = vperm.xlu0 %452, %v171
  %v454 = vpop.permute.xlu0 %453
  %456 = vset.pattern.permute.xlu0 1
  %457 = vperm.xlu0 %456, %v172
  %v458 = vpop.permute.xlu0 %457
  %460 = vset.pattern.permute.xlu0 1
  %461 = vperm.xlu0 %460, %v173
  %v462 = vpop.permute.xlu0 %461
  %464 = vset.pattern.permute.xlu0 1
  %465 = vperm.xlu0 %464, %v174
  %v466 = vpop.permute.xlu0 %465
  %468 = vset.pattern.permute.xlu0 1
  %469 = vperm.xlu0 %468, %v175
  %v470 = vpop.permute.xlu0 %469
  %472 = vset.pattern.permute.xlu0 1
  %473 = vperm.xlu0 %472, %v176
  %v474 = vpop.permute.xlu0 %473
  %476 = vset.pattern.permute.xlu0 1
  %477 = vperm.xlu0 %476, %v177
  %v478 = vpop.permute.xlu0 %477
  %480 = vset.pattern.permute.xlu0 1
  %481 = vperm.xlu0 %480, %v178
  %v482 = vpop.permute.xlu0 %481
  %484 = vset.pattern.permute.xlu0 1
  %485 = vperm.xlu0 %484, %v179
  %v486 = vpop.permute.xlu0 %485
  %488 = vset.pattern.permute.xlu0 1
  %489 = vperm.xlu0 %488, %v180
  %v490 = vpop.permute.xlu0 %489
  %492 = vset.pattern.permute.xlu0 1
  %493 = vperm.xlu0 %492, %v181
  %v494 = vpop.permute.xlu0 %493
  %496 = vset.pattern.permute.xlu0 1
  %497 = vperm.xlu0 %496, %v182
  %v498 = vpop.permute.xlu0 %497
  %500 = vset.pattern.permute.xlu0 1
  %501 = vperm.xlu0 %500, %v183
  %v502 = vpop.permute.xlu0 %501
  %504 = vset.pattern.permute.xlu0 1
  %505 = vperm.xlu0 %504, %v184
  %v506 = vpop.permute.xlu0 %505
  %508 = vset.pattern.permute.xlu0 1
  %509 = vperm.xlu0 %508, %v185
  %v510 = vpop.permute.xlu0 %509
  %512 = vset.pattern.permute.xlu0 1
  %513 = vperm.xlu0 %512, %v186
  %v514 = vpop.permute.xlu0 %513
  %516 = vset.pattern.permute.xlu0 1
  %517 = vperm.xlu0 %516, %v187
  %v518 = vpop.permute.xlu0 %517
  %520 = vset.pattern.permute.xlu0 1
  %521 = vperm.xlu0 %520, %v188
  %v522 = vpop.permute.xlu0 %521
  %524 = vset.pattern.permute.xlu0 1
  %525 = vperm.xlu0 %524, %v189
  %v526 = vpop.permute.xlu0 %525
  %528 = vset.pattern.permute.xlu0 1
  %529 = vperm.xlu0 %528, %v190
  %v530 = vpop.permute.xlu0 %529
  %532 = vset.pattern.permute.xlu0 1
  %533 = vperm.xlu0 %532, %v191
  %v534 = vpop.permute.xlu0 %533
  %v536 = vmul.f32 %v431, %v454
  %v537 = vmul.f32 %v451, %v458
  %v538 = vmul.f32 %v450, %v462
  %v539 = vmul.f32 %v449, %v466
  %v540 = vmul.f32 %v448, %v470
  %v541 = vmul.f32 %v447, %v474
  %v542 = vmul.f32 %v446, %v478
  %v543 = vmul.f32 %v445, %v482
  %v544 = vmul.f32 %v444, %v486
  %v545 = vmul.f32 %v443, %v490
  %v546 = vmul.f32 %v442, %v494
  %v547 = vmul.f32 %v441, %v498
  %v548 = vmul.f32 %v440, %v502
  %v549 = vmul.f32 %v439, %v506
  %v550 = vmul.f32 %v438, %v510
  %v551 = vmul.f32 %v437, %v514
  %v552 = vmul.f32 %v436, %v518
  %v553 = vmul.f32 %v435, %v522
  %v554 = vmul.f32 %v434, %v526
  %v555 = vmul.f32 %v433, %v530
  %v556 = vmul.f32 %v432, %v534
  %v557 = vlaneseq
  %v558 = vshrl.u32 %v557, 7
  %v559 = vsub.s32 1, %v558
  %v560 = vrot.slane %v169, %v559
  %v561 = vmul.f32 %v536, %v560
  %v562 = vmul.f32 %v537, %v560
  %v563 = vmul.f32 %v538, %v560
  %v564 = vmul.f32 %v539, %v560
  %v565 = vmul.f32 %v540, %v560
  %v566 = vmul.f32 %v541, %v560
  %v567 = vmul.f32 %v542, %v560
  %v568 = vmul.f32 %v543, %v560
  %v569 = vmul.f32 %v544, %v560
  %v570 = vmul.f32 %v545, %v560
  %v571 = vmul.f32 %v546, %v560
  %v572 = vmul.f32 %v547, %v560
  %v573 = vmul.f32 %v548, %v560
  %v574 = vmul.f32 %v549, %v560
  %v575 = vmul.f32 %v550, %v560
  %v576 = vmul.f32 %v551, %v560
  %v577 = vmul.f32 %v552, %v560
  %v578 = vmul.f32 %v553, %v560
  %v579 = vmul.f32 %v554, %v560
  %v580 = vmul.f32 %v555, %v560
  %v581 = vmul.f32 %v556, %v560
  %v582 = vadd.f32 %v388, %v561
  %v583 = vadd.f32 %v389, %v562
  %v584 = vadd.f32 %v390, %v563
  %v585 = vadd.f32 %v391, %v564
  %v586 = vadd.f32 %v392, %v565
  %v587 = vadd.f32 %v393, %v566
  %v588 = vadd.f32 %v394, %v567
  %v589 = vadd.f32 %v395, %v568
  %v590 = vadd.f32 %v396, %v569
  %v591 = vadd.f32 %v397, %v570
  %v592 = vadd.f32 %v398, %v571
  %v593 = vadd.f32 %v399, %v572
  %v594 = vadd.f32 %v400, %v573
  %v595 = vadd.f32 %v401, %v574
  %v596 = vadd.f32 %v402, %v575
  %v597 = vadd.f32 %v403, %v576
  %v598 = vadd.f32 %v404, %v577
  %v599 = vadd.f32 %v405, %v578
  %v600 = vadd.f32 %v406, %v579
  %v601 = vadd.f32 %v407, %v580
  %v602 = vadd.f32 %v408, %v581
  %603 = vset.pattern.permute.xlu0 2
  %604 = vperm.xlu0 %603, %v171
  %v605 = vpop.permute.xlu0 %604
  %607 = vset.pattern.permute.xlu0 2
  %608 = vperm.xlu0 %607, %v172
  %v609 = vpop.permute.xlu0 %608
  %611 = vset.pattern.permute.xlu0 2
  %612 = vperm.xlu0 %611, %v173
  %v613 = vpop.permute.xlu0 %612
  %615 = vset.pattern.permute.xlu0 2
  %616 = vperm.xlu0 %615, %v174
  %v617 = vpop.permute.xlu0 %616
  %619 = vset.pattern.permute.xlu0 2
  %620 = vperm.xlu0 %619, %v175
  %v621 = vpop.permute.xlu0 %620
  %623 = vset.pattern.permute.xlu0 2
  %624 = vperm.xlu0 %623, %v176
  %v625 = vpop.permute.xlu0 %624
  %627 = vset.pattern.permute.xlu0 2
  %628 = vperm.xlu0 %627, %v177
  %v629 = vpop.permute.xlu0 %628
  %631 = vset.pattern.permute.xlu0 2
  %632 = vperm.xlu0 %631, %v178
  %v633 = vpop.permute.xlu0 %632
  %635 = vset.pattern.permute.xlu0 2
  %636 = vperm.xlu0 %635, %v179
  %v637 = vpop.permute.xlu0 %636
  %639 = vset.pattern.permute.xlu0 2
  %640 = vperm.xlu0 %639, %v180
  %v641 = vpop.permute.xlu0 %640
  %643 = vset.pattern.permute.xlu0 2
  %644 = vperm.xlu0 %643, %v181
  %v645 = vpop.permute.xlu0 %644
  %647 = vset.pattern.permute.xlu0 2
  %648 = vperm.xlu0 %647, %v182
  %v649 = vpop.permute.xlu0 %648
  %651 = vset.pattern.permute.xlu0 2
  %652 = vperm.xlu0 %651, %v183
  %v653 = vpop.permute.xlu0 %652
  %655 = vset.pattern.permute.xlu0 2
  %656 = vperm.xlu0 %655, %v184
  %v657 = vpop.permute.xlu0 %656
  %659 = vset.pattern.permute.xlu0 2
  %660 = vperm.xlu0 %659, %v185
  %v661 = vpop.permute.xlu0 %660
  %663 = vset.pattern.permute.xlu0 2
  %664 = vperm.xlu0 %663, %v186
  %v665 = vpop.permute.xlu0 %664
  %667 = vset.pattern.permute.xlu0 2
  %668 = vperm.xlu0 %667, %v187
  %v669 = vpop.permute.xlu0 %668
  %671 = vset.pattern.permute.xlu0 2
  %672 = vperm.xlu0 %671, %v188
  %v673 = vpop.permute.xlu0 %672
  %675 = vset.pattern.permute.xlu0 2
  %676 = vperm.xlu0 %675, %v189
  %v677 = vpop.permute.xlu0 %676
  %679 = vset.pattern.permute.xlu0 2
  %680 = vperm.xlu0 %679, %v190
  %v681 = vpop.permute.xlu0 %680
  %683 = vset.pattern.permute.xlu0 2
  %684 = vperm.xlu0 %683, %v191
  %v685 = vpop.permute.xlu0 %684
  %v687 = vmul.f32 %v167, %v605
  %v688 = vmul.f32 %v67, %v609
  %v689 = vmul.f32 %v72, %v613
  %v690 = vmul.f32 %v77, %v617
  %v691 = vmul.f32 %v82, %v621
  %v692 = vmul.f32 %v87, %v625
  %v693 = vmul.f32 %v92, %v629
  %v694 = vmul.f32 %v97, %v633
  %v695 = vmul.f32 %v102, %v637
  %v696 = vmul.f32 %v107, %v641
  %v697 = vmul.f32 %v112, %v645
  %v698 = vmul.f32 %v117, %v649
  %v699 = vmul.f32 %v122, %v653
  %v700 = vmul.f32 %v127, %v657
  %v701 = vmul.f32 %v132, %v661
  %v702 = vmul.f32 %v137, %v665
  %v703 = vmul.f32 %v142, %v669
  %v704 = vmul.f32 %v147, %v673
  %v705 = vmul.f32 %v152, %v677
  %v706 = vmul.f32 %v157, %v681
  %v707 = vmul.f32 %v162, %v685
  %v708 = vlaneseq
  %v709 = vshrl.u32 %v708, 7
  %v710 = vsub.s32 2, %v709
  %v711 = vrot.slane %v169, %v710
  %v712 = vmul.f32 %v687, %v711
  %v713 = vmul.f32 %v688, %v711
  %v714 = vmul.f32 %v689, %v711
  %v715 = vmul.f32 %v690, %v711
  %v716 = vmul.f32 %v691, %v711
  %v717 = vmul.f32 %v692, %v711
  %v718 = vmul.f32 %v693, %v711
  %v719 = vmul.f32 %v694, %v711
  %v720 = vmul.f32 %v695, %v711
  %v721 = vmul.f32 %v696, %v711
  %v722 = vmul.f32 %v697, %v711
  %v723 = vmul.f32 %v698, %v711
  %v724 = vmul.f32 %v699, %v711
  %v725 = vmul.f32 %v700, %v711
  %v726 = vmul.f32 %v701, %v711
  %v727 = vmul.f32 %v702, %v711
  %v728 = vmul.f32 %v703, %v711
  %v729 = vmul.f32 %v704, %v711
  %v730 = vmul.f32 %v705, %v711
  %v731 = vmul.f32 %v706, %v711
  %v732 = vmul.f32 %v707, %v711
  %v733 = vadd.f32 %v582, %v712
  %v734 = vadd.f32 %v583, %v713
  %v735 = vadd.f32 %v584, %v714
  %v736 = vadd.f32 %v585, %v715
  %v737 = vadd.f32 %v586, %v716
  %v738 = vadd.f32 %v587, %v717
  %v739 = vadd.f32 %v588, %v718
  %v740 = vadd.f32 %v589, %v719
  %v741 = vadd.f32 %v590, %v720
  %v742 = vadd.f32 %v591, %v721
  %v743 = vadd.f32 %v592, %v722
  %v744 = vadd.f32 %v593, %v723
  %v745 = vadd.f32 %v594, %v724
  %v746 = vadd.f32 %v595, %v725
  %v747 = vadd.f32 %v596, %v726
  %v748 = vadd.f32 %v597, %v727
  %v749 = vadd.f32 %v598, %v728
  %v750 = vadd.f32 %v599, %v729
  %v751 = vadd.f32 %v600, %v730
  %v752 = vadd.f32 %v601, %v731
  %v753 = vadd.f32 %v602, %v732
  %754 = vset.pattern.permute.xlu0 3
  %755 = vperm.xlu0 %754, %v171
  %v756 = vpop.permute.xlu0 %755
  %758 = vset.pattern.permute.xlu0 3
  %759 = vperm.xlu0 %758, %v172
  %v760 = vpop.permute.xlu0 %759
  %762 = vset.pattern.permute.xlu0 3
  %763 = vperm.xlu0 %762, %v173
  %v764 = vpop.permute.xlu0 %763
  %766 = vset.pattern.permute.xlu0 3
  %767 = vperm.xlu0 %766, %v174
  %v768 = vpop.permute.xlu0 %767
  %770 = vset.pattern.permute.xlu0 3
  %771 = vperm.xlu0 %770, %v175
  %v772 = vpop.permute.xlu0 %771
  %774 = vset.pattern.permute.xlu0 3
  %775 = vperm.xlu0 %774, %v176
  %v776 = vpop.permute.xlu0 %775
  %778 = vset.pattern.permute.xlu0 3
  %779 = vperm.xlu0 %778, %v177
  %v780 = vpop.permute.xlu0 %779
  %782 = vset.pattern.permute.xlu0 3
  %783 = vperm.xlu0 %782, %v178
  %v784 = vpop.permute.xlu0 %783
  %786 = vset.pattern.permute.xlu0 3
  %787 = vperm.xlu0 %786, %v179
  %v788 = vpop.permute.xlu0 %787
  %790 = vset.pattern.permute.xlu0 3
  %791 = vperm.xlu0 %790, %v180
  %v792 = vpop.permute.xlu0 %791
  %794 = vset.pattern.permute.xlu0 3
  %795 = vperm.xlu0 %794, %v181
  %v796 = vpop.permute.xlu0 %795
  %798 = vset.pattern.permute.xlu0 3
  %799 = vperm.xlu0 %798, %v182
  %v800 = vpop.permute.xlu0 %799
  %802 = vset.pattern.permute.xlu0 3
  %803 = vperm.xlu0 %802, %v183
  %v804 = vpop.permute.xlu0 %803
  %806 = vset.pattern.permute.xlu0 3
  %807 = vperm.xlu0 %806, %v184
  %v808 = vpop.permute.xlu0 %807
  %810 = vset.pattern.permute.xlu0 3
  %811 = vperm.xlu0 %810, %v185
  %v812 = vpop.permute.xlu0 %811
  %814 = vset.pattern.permute.xlu0 3
  %815 = vperm.xlu0 %814, %v186
  %v816 = vpop.permute.xlu0 %815
  %818 = vset.pattern.permute.xlu0 3
  %819 = vperm.xlu0 %818, %v187
  %v820 = vpop.permute.xlu0 %819
  %822 = vset.pattern.permute.xlu0 3
  %823 = vperm.xlu0 %822, %v188
  %v824 = vpop.permute.xlu0 %823
  %826 = vset.pattern.permute.xlu0 3
  %827 = vperm.xlu0 %826, %v189
  %v828 = vpop.permute.xlu0 %827
  %830 = vset.pattern.permute.xlu0 3
  %831 = vperm.xlu0 %830, %v190
  %v832 = vpop.permute.xlu0 %831
  %834 = vset.pattern.permute.xlu0 3
  %835 = vperm.xlu0 %834, %v191
  %v836 = vpop.permute.xlu0 %835
  %v838 = vmul.f32 %v451, %v756
  %v839 = vmul.f32 %v450, %v760
  %v840 = vmul.f32 %v449, %v764
  %v841 = vmul.f32 %v448, %v768
  %v842 = vmul.f32 %v447, %v772
  %v843 = vmul.f32 %v446, %v776
  %v844 = vmul.f32 %v445, %v780
  %v845 = vmul.f32 %v444, %v784
  %v846 = vmul.f32 %v443, %v788
  %v847 = vmul.f32 %v442, %v792
  %v848 = vmul.f32 %v441, %v796
  %v849 = vmul.f32 %v440, %v800
  %v850 = vmul.f32 %v439, %v804
  %v851 = vmul.f32 %v438, %v808
  %v852 = vmul.f32 %v437, %v812
  %v853 = vmul.f32 %v436, %v816
  %v854 = vmul.f32 %v435, %v820
  %v855 = vmul.f32 %v434, %v824
  %v856 = vmul.f32 %v433, %v828
  %v857 = vmul.f32 %v432, %v832
  %v858 = vmul.f32 %v431, %v836
  %v859 = vlaneseq
  %v860 = vshrl.u32 %v859, 7
  %v861 = vsub.s32 3, %v860
  %v862 = vrot.slane %v169, %v861
  %v863 = vmul.f32 %v838, %v862
  %v864 = vmul.f32 %v839, %v862
  %v865 = vmul.f32 %v840, %v862
  %v866 = vmul.f32 %v841, %v862
  %v867 = vmul.f32 %v842, %v862
  %v868 = vmul.f32 %v843, %v862
  %v869 = vmul.f32 %v844, %v862
  %v870 = vmul.f32 %v845, %v862
  %v871 = vmul.f32 %v846, %v862
  %v872 = vmul.f32 %v847, %v862
  %v873 = vmul.f32 %v848, %v862
  %v874 = vmul.f32 %v849, %v862
  %v875 = vmul.f32 %v850, %v862
  %v876 = vmul.f32 %v851, %v862
  %v877 = vmul.f32 %v852, %v862
  %v878 = vmul.f32 %v853, %v862
  %v879 = vmul.f32 %v854, %v862
  %v880 = vmul.f32 %v855, %v862
  %v881 = vmul.f32 %v856, %v862
  %v882 = vmul.f32 %v857, %v862
  %v883 = vmul.f32 %v858, %v862
  %v884 = vadd.f32 %v733, %v863
  %v885 = vadd.f32 %v734, %v864
  %v886 = vadd.f32 %v735, %v865
  %v887 = vadd.f32 %v736, %v866
  %v888 = vadd.f32 %v737, %v867
  %v889 = vadd.f32 %v738, %v868
  %v890 = vadd.f32 %v739, %v869
  %v891 = vadd.f32 %v740, %v870
  %v892 = vadd.f32 %v741, %v871
  %v893 = vadd.f32 %v742, %v872
  %v894 = vadd.f32 %v743, %v873
  %v895 = vadd.f32 %v744, %v874
  %v896 = vadd.f32 %v745, %v875
  %v897 = vadd.f32 %v746, %v876
  %v898 = vadd.f32 %v747, %v877
  %v899 = vadd.f32 %v748, %v878
  %v900 = vadd.f32 %v749, %v879
  %v901 = vadd.f32 %v750, %v880
  %v902 = vadd.f32 %v751, %v881
  %v903 = vadd.f32 %v752, %v882
  %v904 = vadd.f32 %v753, %v883
  %905 = vset.pattern.permute.xlu0 4
  %906 = vperm.xlu0 %905, %v171
  %v907 = vpop.permute.xlu0 %906
  %909 = vset.pattern.permute.xlu0 4
  %910 = vperm.xlu0 %909, %v172
  %v911 = vpop.permute.xlu0 %910
  %913 = vset.pattern.permute.xlu0 4
  %914 = vperm.xlu0 %913, %v173
  %v915 = vpop.permute.xlu0 %914
  %917 = vset.pattern.permute.xlu0 4
  %918 = vperm.xlu0 %917, %v174
  %v919 = vpop.permute.xlu0 %918
  %921 = vset.pattern.permute.xlu0 4
  %922 = vperm.xlu0 %921, %v175
  %v923 = vpop.permute.xlu0 %922
  %925 = vset.pattern.permute.xlu0 4
  %926 = vperm.xlu0 %925, %v176
  %v927 = vpop.permute.xlu0 %926
  %929 = vset.pattern.permute.xlu0 4
  %930 = vperm.xlu0 %929, %v177
  %v931 = vpop.permute.xlu0 %930
  %933 = vset.pattern.permute.xlu0 4
  %934 = vperm.xlu0 %933, %v178
  %v935 = vpop.permute.xlu0 %934
  %937 = vset.pattern.permute.xlu0 4
  %938 = vperm.xlu0 %937, %v179
  %v939 = vpop.permute.xlu0 %938
  %941 = vset.pattern.permute.xlu0 4
  %942 = vperm.xlu0 %941, %v180
  %v943 = vpop.permute.xlu0 %942
  %945 = vset.pattern.permute.xlu0 4
  %946 = vperm.xlu0 %945, %v181
  %v947 = vpop.permute.xlu0 %946
  %949 = vset.pattern.permute.xlu0 4
  %950 = vperm.xlu0 %949, %v182
  %v951 = vpop.permute.xlu0 %950
  %953 = vset.pattern.permute.xlu0 4
  %954 = vperm.xlu0 %953, %v183
  %v955 = vpop.permute.xlu0 %954
  %957 = vset.pattern.permute.xlu0 4
  %958 = vperm.xlu0 %957, %v184
  %v959 = vpop.permute.xlu0 %958
  %961 = vset.pattern.permute.xlu0 4
  %962 = vperm.xlu0 %961, %v185
  %v963 = vpop.permute.xlu0 %962
  %965 = vset.pattern.permute.xlu0 4
  %966 = vperm.xlu0 %965, %v186
  %v967 = vpop.permute.xlu0 %966
  %969 = vset.pattern.permute.xlu0 4
  %970 = vperm.xlu0 %969, %v187
  %v971 = vpop.permute.xlu0 %970
  %973 = vset.pattern.permute.xlu0 4
  %974 = vperm.xlu0 %973, %v188
  %v975 = vpop.permute.xlu0 %974
  %977 = vset.pattern.permute.xlu0 4
  %978 = vperm.xlu0 %977, %v189
  %v979 = vpop.permute.xlu0 %978
  %981 = vset.pattern.permute.xlu0 4
  %982 = vperm.xlu0 %981, %v190
  %v983 = vpop.permute.xlu0 %982
  %985 = vset.pattern.permute.xlu0 4
  %986 = vperm.xlu0 %985, %v191
  %v987 = vpop.permute.xlu0 %986
  %v989 = vmul.f32 %v67, %v907
  %v990 = vmul.f32 %v72, %v911
  %v991 = vmul.f32 %v77, %v915
  %v992 = vmul.f32 %v82, %v919
  %v993 = vmul.f32 %v87, %v923
  %v994 = vmul.f32 %v92, %v927
  %v995 = vmul.f32 %v97, %v931
  %v996 = vmul.f32 %v102, %v935
  %v997 = vmul.f32 %v107, %v939
  %v998 = vmul.f32 %v112, %v943
  %v999 = vmul.f32 %v117, %v947
  %v1000 = vmul.f32 %v122, %v951
  %v1001 = vmul.f32 %v127, %v955
  %v1002 = vmul.f32 %v132, %v959
  %v1003 = vmul.f32 %v137, %v963
  %v1004 = vmul.f32 %v142, %v967
  %v1005 = vmul.f32 %v147, %v971
  %v1006 = vmul.f32 %v152, %v975
  %v1007 = vmul.f32 %v157, %v979
  %v1008 = vmul.f32 %v162, %v983
  %v1009 = vmul.f32 %v167, %v987
  %v1010 = vlaneseq
  %v1011 = vshrl.u32 %v1010, 7
  %v1012 = vsub.s32 4, %v1011
  %v1013 = vrot.slane %v169, %v1012
  %v1014 = vmul.f32 %v989, %v1013
  %v1015 = vmul.f32 %v990, %v1013
  %v1016 = vmul.f32 %v991, %v1013
  %v1017 = vmul.f32 %v992, %v1013
  %v1018 = vmul.f32 %v993, %v1013
  %v1019 = vmul.f32 %v994, %v1013
  %v1020 = vmul.f32 %v995, %v1013
  %v1021 = vmul.f32 %v996, %v1013
  %v1022 = vmul.f32 %v997, %v1013
  %v1023 = vmul.f32 %v998, %v1013
  %v1024 = vmul.f32 %v999, %v1013
  %v1025 = vmul.f32 %v1000, %v1013
  %v1026 = vmul.f32 %v1001, %v1013
  %v1027 = vmul.f32 %v1002, %v1013
  %v1028 = vmul.f32 %v1003, %v1013
  %v1029 = vmul.f32 %v1004, %v1013
  %v1030 = vmul.f32 %v1005, %v1013
  %v1031 = vmul.f32 %v1006, %v1013
  %v1032 = vmul.f32 %v1007, %v1013
  %v1033 = vmul.f32 %v1008, %v1013
  %v1034 = vmul.f32 %v1009, %v1013
  %v1035 = vadd.f32 %v884, %v1014
  %v1036 = vadd.f32 %v885, %v1015
  %v1037 = vadd.f32 %v886, %v1016
  %v1038 = vadd.f32 %v887, %v1017
  %v1039 = vadd.f32 %v888, %v1018
  %v1040 = vadd.f32 %v889, %v1019
  %v1041 = vadd.f32 %v890, %v1020
  %v1042 = vadd.f32 %v891, %v1021
  %v1043 = vadd.f32 %v892, %v1022
  %v1044 = vadd.f32 %v893, %v1023
  %v1045 = vadd.f32 %v894, %v1024
  %v1046 = vadd.f32 %v895, %v1025
  %v1047 = vadd.f32 %v896, %v1026
  %v1048 = vadd.f32 %v897, %v1027
  %v1049 = vadd.f32 %v898, %v1028
  %v1050 = vadd.f32 %v899, %v1029
  %v1051 = vadd.f32 %v900, %v1030
  %v1052 = vadd.f32 %v901, %v1031
  %v1053 = vadd.f32 %v902, %v1032
  %v1054 = vadd.f32 %v903, %v1033
  %v1055 = vadd.f32 %v904, %v1034
  %v1056 = vrot.slane %v67, 1
  %v1057 = vrot.slane %v72, 1
  %v1058 = vrot.slane %v77, 1
  %v1059 = vrot.slane %v82, 1
  %v1060 = vrot.slane %v87, 1
  %v1061 = vrot.slane %v92, 1
  %v1062 = vrot.slane %v97, 1
  %v1063 = vrot.slane %v102, 1
  %v1064 = vrot.slane %v107, 1
  %v1065 = vrot.slane %v112, 1
  %v1066 = vrot.slane %v117, 1
  %v1067 = vrot.slane %v122, 1
  %v1068 = vrot.slane %v127, 1
  %v1069 = vrot.slane %v132, 1
  %v1070 = vrot.slane %v137, 1
  %v1071 = vrot.slane %v142, 1
  %v1072 = vrot.slane %v147, 1
  %v1073 = vrot.slane %v152, 1
  %v1074 = vrot.slane %v157, 1
  %v1075 = vrot.slane %v162, 1
  %v1076 = vrot.slane %v167, 1
  %vm1077 = vcmp.lt.s32.totalorder %v214, 7
  %v1078 = vsel %vm1077, %v1075, %v1076
  %v1079 = vsel %vm1077, %v1074, %v1075
  %v1080 = vsel %vm1077, %v1073, %v1074
  %v1081 = vsel %vm1077, %v1072, %v1073
  %v1082 = vsel %vm1077, %v1071, %v1072
  %v1083 = vsel %vm1077, %v1070, %v1071
  %v1084 = vsel %vm1077, %v1069, %v1070
  %v1085 = vsel %vm1077, %v1068, %v1069
  %v1086 = vsel %vm1077, %v1067, %v1068
  %v1087 = vsel %vm1077, %v1066, %v1067
  %v1088 = vsel %vm1077, %v1065, %v1066
  %v1089 = vsel %vm1077, %v1064, %v1065
  %v1090 = vsel %vm1077, %v1063, %v1064
  %v1091 = vsel %vm1077, %v1062, %v1063
  %v1092 = vsel %vm1077, %v1061, %v1062
  %v1093 = vsel %vm1077, %v1060, %v1061
  %v1094 = vsel %vm1077, %v1059, %v1060
  %v1095 = vsel %vm1077, %v1058, %v1059
  %v1096 = vsel %vm1077, %v1057, %v1058
  %v1097 = vsel %vm1077, %v1056, %v1057
  %v1098 = vsel %vm1077, %v1076, %v1056
  %1099 = vset.pattern.permute.xlu0 5
  %1100 = vperm.xlu0 %1099, %v171
  %v1101 = vpop.permute.xlu0 %1100
  %1103 = vset.pattern.permute.xlu0 5
  %1104 = vperm.xlu0 %1103, %v172
  %v1105 = vpop.permute.xlu0 %1104
  %1107 = vset.pattern.permute.xlu0 5
  %1108 = vperm.xlu0 %1107, %v173
  %v1109 = vpop.permute.xlu0 %1108
  %1111 = vset.pattern.permute.xlu0 5
  %1112 = vperm.xlu0 %1111, %v174
  %v1113 = vpop.permute.xlu0 %1112
  %1115 = vset.pattern.permute.xlu0 5
  %1116 = vperm.xlu0 %1115, %v175
  %v1117 = vpop.permute.xlu0 %1116
  %1119 = vset.pattern.permute.xlu0 5
  %1120 = vperm.xlu0 %1119, %v176
  %v1121 = vpop.permute.xlu0 %1120
  %1123 = vset.pattern.permute.xlu0 5
  %1124 = vperm.xlu0 %1123, %v177
  %v1125 = vpop.permute.xlu0 %1124
  %1127 = vset.pattern.permute.xlu0 5
  %1128 = vperm.xlu0 %1127, %v178
  %v1129 = vpop.permute.xlu0 %1128
  %1131 = vset.pattern.permute.xlu0 5
  %1132 = vperm.xlu0 %1131, %v179
  %v1133 = vpop.permute.xlu0 %1132
  %1135 = vset.pattern.permute.xlu0 5
  %1136 = vperm.xlu0 %1135, %v180
  %v1137 = vpop.permute.xlu0 %1136
  %1139 = vset.pattern.permute.xlu0 5
  %1140 = vperm.xlu0 %1139, %v181
  %v1141 = vpop.permute.xlu0 %1140
  %1143 = vset.pattern.permute.xlu0 5
  %1144 = vperm.xlu0 %1143, %v182
  %v1145 = vpop.permute.xlu0 %1144
  %1147 = vset.pattern.permute.xlu0 5
  %1148 = vperm.xlu0 %1147, %v183
  %v1149 = vpop.permute.xlu0 %1148
  %1151 = vset.pattern.permute.xlu0 5
  %1152 = vperm.xlu0 %1151, %v184
  %v1153 = vpop.permute.xlu0 %1152
  %1155 = vset.pattern.permute.xlu0 5
  %1156 = vperm.xlu0 %1155, %v185
  %v1157 = vpop.permute.xlu0 %1156
  %1159 = vset.pattern.permute.xlu0 5
  %1160 = vperm.xlu0 %1159, %v186
  %v1161 = vpop.permute.xlu0 %1160
  %1163 = vset.pattern.permute.xlu0 5
  %1164 = vperm.xlu0 %1163, %v187
  %v1165 = vpop.permute.xlu0 %1164
  %1167 = vset.pattern.permute.xlu0 5
  %1168 = vperm.xlu0 %1167, %v188
  %v1169 = vpop.permute.xlu0 %1168
  %1171 = vset.pattern.permute.xlu0 5
  %1172 = vperm.xlu0 %1171, %v189
  %v1173 = vpop.permute.xlu0 %1172
  %1175 = vset.pattern.permute.xlu0 5
  %1176 = vperm.xlu0 %1175, %v190
  %v1177 = vpop.permute.xlu0 %1176
  %1179 = vset.pattern.permute.xlu0 5
  %1180 = vperm.xlu0 %1179, %v191
  %v1181 = vpop.permute.xlu0 %1180
  %v1183 = vmul.f32 %v1097, %v1101
  %v1184 = vmul.f32 %v1096, %v1105
  %v1185 = vmul.f32 %v1095, %v1109
  %v1186 = vmul.f32 %v1094, %v1113
  %v1187 = vmul.f32 %v1093, %v1117
  %v1188 = vmul.f32 %v1092, %v1121
  %v1189 = vmul.f32 %v1091, %v1125
  %v1190 = vmul.f32 %v1090, %v1129
  %v1191 = vmul.f32 %v1089, %v1133
  %v1192 = vmul.f32 %v1088, %v1137
  %v1193 = vmul.f32 %v1087, %v1141
  %v1194 = vmul.f32 %v1086, %v1145
  %v1195 = vmul.f32 %v1085, %v1149
  %v1196 = vmul.f32 %v1084, %v1153
  %v1197 = vmul.f32 %v1083, %v1157
  %v1198 = vmul.f32 %v1082, %v1161
  %v1199 = vmul.f32 %v1081, %v1165
  %v1200 = vmul.f32 %v1080, %v1169
  %v1201 = vmul.f32 %v1079, %v1173
  %v1202 = vmul.f32 %v1078, %v1177
  %v1203 = vmul.f32 %v1098, %v1181
  %v1204 = vlaneseq
  %v1205 = vshrl.u32 %v1204, 7
  %v1206 = vsub.s32 5, %v1205
  %v1207 = vrot.slane %v169, %v1206
  %v1208 = vmul.f32 %v1183, %v1207
  %v1209 = vmul.f32 %v1184, %v1207
  %v1210 = vmul.f32 %v1185, %v1207
  %v1211 = vmul.f32 %v1186, %v1207
  %v1212 = vmul.f32 %v1187, %v1207
  %v1213 = vmul.f32 %v1188, %v1207
  %v1214 = vmul.f32 %v1189, %v1207
  %v1215 = vmul.f32 %v1190, %v1207
  %v1216 = vmul.f32 %v1191, %v1207
  %v1217 = vmul.f32 %v1192, %v1207
  %v1218 = vmul.f32 %v1193, %v1207
  %v1219 = vmul.f32 %v1194, %v1207
  %v1220 = vmul.f32 %v1195, %v1207
  %v1221 = vmul.f32 %v1196, %v1207
  %v1222 = vmul.f32 %v1197, %v1207
  %v1223 = vmul.f32 %v1198, %v1207
  %v1224 = vmul.f32 %v1199, %v1207
  %v1225 = vmul.f32 %v1200, %v1207
  %v1226 = vmul.f32 %v1201, %v1207
  %v1227 = vmul.f32 %v1202, %v1207
  %v1228 = vmul.f32 %v1203, %v1207
  %v1229 = vadd.f32 %v1035, %v1208
  %v1230 = vadd.f32 %v1036, %v1209
  %v1231 = vadd.f32 %v1037, %v1210
  %v1232 = vadd.f32 %v1038, %v1211
  %v1233 = vadd.f32 %v1039, %v1212
  %v1234 = vadd.f32 %v1040, %v1213
  %v1235 = vadd.f32 %v1041, %v1214
  %v1236 = vadd.f32 %v1042, %v1215
  %v1237 = vadd.f32 %v1043, %v1216
  %v1238 = vadd.f32 %v1044, %v1217
  %v1239 = vadd.f32 %v1045, %v1218
  %v1240 = vadd.f32 %v1046, %v1219
  %v1241 = vadd.f32 %v1047, %v1220
  %v1242 = vadd.f32 %v1048, %v1221
  %v1243 = vadd.f32 %v1049, %v1222
  %v1244 = vadd.f32 %v1050, %v1223
  %v1245 = vadd.f32 %v1051, %v1224
  %v1246 = vadd.f32 %v1052, %v1225
  %v1247 = vadd.f32 %v1053, %v1226
  %v1248 = vadd.f32 %v1054, %v1227
  %v1249 = vadd.f32 %v1055, %v1228
  %1250 = vset.pattern.permute.xlu0 6
  %1251 = vperm.xlu0 %1250, %v171
  %v1252 = vpop.permute.xlu0 %1251
  %1254 = vset.pattern.permute.xlu0 6
  %1255 = vperm.xlu0 %1254, %v172
  %v1256 = vpop.permute.xlu0 %1255
  %1258 = vset.pattern.permute.xlu0 6
  %1259 = vperm.xlu0 %1258, %v173
  %v1260 = vpop.permute.xlu0 %1259
  %1262 = vset.pattern.permute.xlu0 6
  %1263 = vperm.xlu0 %1262, %v174
  %v1264 = vpop.permute.xlu0 %1263
  %1266 = vset.pattern.permute.xlu0 6
  %1267 = vperm.xlu0 %1266, %v175
  %v1268 = vpop.permute.xlu0 %1267
  %1270 = vset.pattern.permute.xlu0 6
  %1271 = vperm.xlu0 %1270, %v176
  %v1272 = vpop.permute.xlu0 %1271
  %1274 = vset.pattern.permute.xlu0 6
  %1275 = vperm.xlu0 %1274, %v177
  %v1276 = vpop.permute.xlu0 %1275
  %1278 = vset.pattern.permute.xlu0 6
  %1279 = vperm.xlu0 %1278, %v178
  %v1280 = vpop.permute.xlu0 %1279
  %1282 = vset.pattern.permute.xlu0 6
  %1283 = vperm.xlu0 %1282, %v179
  %v1284 = vpop.permute.xlu0 %1283
  %1286 = vset.pattern.permute.xlu0 6
  %1287 = vperm.xlu0 %1286, %v180
  %v1288 = vpop.permute.xlu0 %1287
  %1290 = vset.pattern.permute.xlu0 6
  %1291 = vperm.xlu0 %1290, %v181
  %v1292 = vpop.permute.xlu0 %1291
  %1294 = vset.pattern.permute.xlu0 6
  %1295 = vperm.xlu0 %1294, %v182
  %v1296 = vpop.permute.xlu0 %1295
  %1298 = vset.pattern.permute.xlu0 6
  %1299 = vperm.xlu0 %1298, %v183
  %v1300 = vpop.permute.xlu0 %1299
  %1302 = vset.pattern.permute.xlu0 6
  %1303 = vperm.xlu0 %1302, %v184
  %v1304 = vpop.permute.xlu0 %1303
  %1306 = vset.pattern.permute.xlu0 6
  %1307 = vperm.xlu0 %1306, %v185
  %v1308 = vpop.permute.xlu0 %1307
  %1310 = vset.pattern.permute.xlu0 6
  %1311 = vperm.xlu0 %1310, %v186
  %v1312 = vpop.permute.xlu0 %1311
  %1314 = vset.pattern.permute.xlu0 6
  %1315 = vperm.xlu0 %1314, %v187
  %v1316 = vpop.permute.xlu0 %1315
  %1318 = vset.pattern.permute.xlu0 6
  %1319 = vperm.xlu0 %1318, %v188
  %v1320 = vpop.permute.xlu0 %1319
  %1322 = vset.pattern.permute.xlu0 6
  %1323 = vperm.xlu0 %1322, %v189
  %v1324 = vpop.permute.xlu0 %1323
  %1326 = vset.pattern.permute.xlu0 6
  %1327 = vperm.xlu0 %1326, %v190
  %v1328 = vpop.permute.xlu0 %1327
  %1330 = vset.pattern.permute.xlu0 6
  %1331 = vperm.xlu0 %1330, %v191
  %v1332 = vpop.permute.xlu0 %1331
  %v1334 = vmul.f32 %v72, %v1252
  %v1335 = vmul.f32 %v77, %v1256
  %v1336 = vmul.f32 %v82, %v1260
  %v1337 = vmul.f32 %v87, %v1264
  %v1338 = vmul.f32 %v92, %v1268
  %v1339 = vmul.f32 %v97, %v1272
  %v1340 = vmul.f32 %v102, %v1276
  %v1341 = vmul.f32 %v107, %v1280
  %v1342 = vmul.f32 %v112, %v1284
  %v1343 = vmul.f32 %v117, %v1288
  %v1344 = vmul.f32 %v122, %v1292
  %v1345 = vmul.f32 %v127, %v1296
  %v1346 = vmul.f32 %v132, %v1300
  %v1347 = vmul.f32 %v137, %v1304
  %v1348 = vmul.f32 %v142, %v1308
  %v1349 = vmul.f32 %v147, %v1312
  %v1350 = vmul.f32 %v152, %v1316
  %v1351 = vmul.f32 %v157, %v1320
  %v1352 = vmul.f32 %v162, %v1324
  %v1353 = vmul.f32 %v167, %v1328
  %v1354 = vmul.f32 %v67, %v1332
  %v1355 = vlaneseq
  %v1356 = vshrl.u32 %v1355, 7
  %v1357 = vsub.s32 6, %v1356
  %v1358 = vrot.slane %v169, %v1357
  %v1359 = vmul.f32 %v1334, %v1358
  %v1360 = vmul.f32 %v1335, %v1358
  %v1361 = vmul.f32 %v1336, %v1358
  %v1362 = vmul.f32 %v1337, %v1358
  %v1363 = vmul.f32 %v1338, %v1358
  %v1364 = vmul.f32 %v1339, %v1358
  %v1365 = vmul.f32 %v1340, %v1358
  %v1366 = vmul.f32 %v1341, %v1358
  %v1367 = vmul.f32 %v1342, %v1358
  %v1368 = vmul.f32 %v1343, %v1358
  %v1369 = vmul.f32 %v1344, %v1358
  %v1370 = vmul.f32 %v1345, %v1358
  %v1371 = vmul.f32 %v1346, %v1358
  %v1372 = vmul.f32 %v1347, %v1358
  %v1373 = vmul.f32 %v1348, %v1358
  %v1374 = vmul.f32 %v1349, %v1358
  %v1375 = vmul.f32 %v1350, %v1358
  %v1376 = vmul.f32 %v1351, %v1358
  %v1377 = vmul.f32 %v1352, %v1358
  %v1378 = vmul.f32 %v1353, %v1358
  %v1379 = vmul.f32 %v1354, %v1358
  %v1380 = vadd.f32 %v1229, %v1359
  %v1381 = vadd.f32 %v1230, %v1360
  %v1382 = vadd.f32 %v1231, %v1361
  %v1383 = vadd.f32 %v1232, %v1362
  %v1384 = vadd.f32 %v1233, %v1363
  %v1385 = vadd.f32 %v1234, %v1364
  %v1386 = vadd.f32 %v1235, %v1365
  %v1387 = vadd.f32 %v1236, %v1366
  %v1388 = vadd.f32 %v1237, %v1367
  %v1389 = vadd.f32 %v1238, %v1368
  %v1390 = vadd.f32 %v1239, %v1369
  %v1391 = vadd.f32 %v1240, %v1370
  %v1392 = vadd.f32 %v1241, %v1371
  %v1393 = vadd.f32 %v1242, %v1372
  %v1394 = vadd.f32 %v1243, %v1373
  %v1395 = vadd.f32 %v1244, %v1374
  %v1396 = vadd.f32 %v1245, %v1375
  %v1397 = vadd.f32 %v1246, %v1376
  %v1398 = vadd.f32 %v1247, %v1377
  %v1399 = vadd.f32 %v1248, %v1378
  %v1400 = vadd.f32 %v1249, %v1379
  %1401 = vset.pattern.permute.xlu0 7
  %1402 = vperm.xlu0 %1401, %v171
  %v1403 = vpop.permute.xlu0 %1402
  %1405 = vset.pattern.permute.xlu0 7
  %1406 = vperm.xlu0 %1405, %v172
  %v1407 = vpop.permute.xlu0 %1406
  %1409 = vset.pattern.permute.xlu0 7
  %1410 = vperm.xlu0 %1409, %v173
  %v1411 = vpop.permute.xlu0 %1410
  %1413 = vset.pattern.permute.xlu0 7
  %1414 = vperm.xlu0 %1413, %v174
  %v1415 = vpop.permute.xlu0 %1414
  %1417 = vset.pattern.permute.xlu0 7
  %1418 = vperm.xlu0 %1417, %v175
  %v1419 = vpop.permute.xlu0 %1418
  %1421 = vset.pattern.permute.xlu0 7
  %1422 = vperm.xlu0 %1421, %v176
  %v1423 = vpop.permute.xlu0 %1422
  %1425 = vset.pattern.permute.xlu0 7
  %1426 = vperm.xlu0 %1425, %v177
  %v1427 = vpop.permute.xlu0 %1426
  %1429 = vset.pattern.permute.xlu0 7
  %1430 = vperm.xlu0 %1429, %v178
  %v1431 = vpop.permute.xlu0 %1430
  %1433 = vset.pattern.permute.xlu0 7
  %1434 = vperm.xlu0 %1433, %v179
  %v1435 = vpop.permute.xlu0 %1434
  %1437 = vset.pattern.permute.xlu0 7
  %1438 = vperm.xlu0 %1437, %v180
  %v1439 = vpop.permute.xlu0 %1438
  %1441 = vset.pattern.permute.xlu0 7
  %1442 = vperm.xlu0 %1441, %v181
  %v1443 = vpop.permute.xlu0 %1442
  %1445 = vset.pattern.permute.xlu0 7
  %1446 = vperm.xlu0 %1445, %v182
  %v1447 = vpop.permute.xlu0 %1446
  %1449 = vset.pattern.permute.xlu0 7
  %1450 = vperm.xlu0 %1449, %v183
  %v1451 = vpop.permute.xlu0 %1450
  %1453 = vset.pattern.permute.xlu0 7
  %1454 = vperm.xlu0 %1453, %v184
  %v1455 = vpop.permute.xlu0 %1454
  %1457 = vset.pattern.permute.xlu0 7
  %1458 = vperm.xlu0 %1457, %v185
  %v1459 = vpop.permute.xlu0 %1458
  %1461 = vset.pattern.permute.xlu0 7
  %1462 = vperm.xlu0 %1461, %v186
  %v1463 = vpop.permute.xlu0 %1462
  %1465 = vset.pattern.permute.xlu0 7
  %1466 = vperm.xlu0 %1465, %v187
  %v1467 = vpop.permute.xlu0 %1466
  %1469 = vset.pattern.permute.xlu0 7
  %1470 = vperm.xlu0 %1469, %v188
  %v1471 = vpop.permute.xlu0 %1470
  %1473 = vset.pattern.permute.xlu0 7
  %1474 = vperm.xlu0 %1473, %v189
  %v1475 = vpop.permute.xlu0 %1474
  %1477 = vset.pattern.permute.xlu0 7
  %1478 = vperm.xlu0 %1477, %v190
  %v1479 = vpop.permute.xlu0 %1478
  %1481 = vset.pattern.permute.xlu0 7
  %1482 = vperm.xlu0 %1481, %v191
  %v1483 = vpop.permute.xlu0 %1482
  %v1485 = vmul.f32 %v1096, %v1403
  %v1486 = vmul.f32 %v1095, %v1407
  %v1487 = vmul.f32 %v1094, %v1411
  %v1488 = vmul.f32 %v1093, %v1415
  %v1489 = vmul.f32 %v1092, %v1419
  %v1490 = vmul.f32 %v1091, %v1423
  %v1491 = vmul.f32 %v1090, %v1427
  %v1492 = vmul.f32 %v1089, %v1431
  %v1493 = vmul.f32 %v1088, %v1435
  %v1494 = vmul.f32 %v1087, %v1439
  %v1495 = vmul.f32 %v1086, %v1443
  %v1496 = vmul.f32 %v1085, %v1447
  %v1497 = vmul.f32 %v1084, %v1451
  %v1498 = vmul.f32 %v1083, %v1455
  %v1499 = vmul.f32 %v1082, %v1459
  %v1500 = vmul.f32 %v1081, %v1463
  %v1501 = vmul.f32 %v1080, %v1467
  %v1502 = vmul.f32 %v1079, %v1471
  %v1503 = vmul.f32 %v1078, %v1475
  %v1504 = vmul.f32 %v1098, %v1479
  %v1505 = vmul.f32 %v1097, %v1483
  %v1506 = vlaneseq
  %v1507 = vshrl.u32 %v1506, 7
  %v1508 = vsub.s32 7, %v1507
  %v1509 = vrot.slane %v169, %v1508
  %v1510 = vmul.f32 %v1485, %v1509
  %v1511 = vmul.f32 %v1486, %v1509
  %v1512 = vmul.f32 %v1487, %v1509
  %v1513 = vmul.f32 %v1488, %v1509
  %v1514 = vmul.f32 %v1489, %v1509
  %v1515 = vmul.f32 %v1490, %v1509
  %v1516 = vmul.f32 %v1491, %v1509
  %v1517 = vmul.f32 %v1492, %v1509
  %v1518 = vmul.f32 %v1493, %v1509
  %v1519 = vmul.f32 %v1494, %v1509
  %v1520 = vmul.f32 %v1495, %v1509
  %v1521 = vmul.f32 %v1496, %v1509
  %v1522 = vmul.f32 %v1497, %v1509
  %v1523 = vmul.f32 %v1498, %v1509
  %v1524 = vmul.f32 %v1499, %v1509
  %v1525 = vmul.f32 %v1500, %v1509
  %v1526 = vmul.f32 %v1501, %v1509
  %v1527 = vmul.f32 %v1502, %v1509
  %v1528 = vmul.f32 %v1503, %v1509
  %v1529 = vmul.f32 %v1504, %v1509
  %v1530 = vmul.f32 %v1505, %v1509
  %v1531 = vadd.f32 %v1380, %v1510
  %v1532 = vadd.f32 %v1381, %v1511
  %v1533 = vadd.f32 %v1382, %v1512
  %v1534 = vadd.f32 %v1383, %v1513
  %v1535 = vadd.f32 %v1384, %v1514
  %v1536 = vadd.f32 %v1385, %v1515
  %v1537 = vadd.f32 %v1386, %v1516
  %v1538 = vadd.f32 %v1387, %v1517
  %v1539 = vadd.f32 %v1388, %v1518
  %v1540 = vadd.f32 %v1389, %v1519
  %v1541 = vadd.f32 %v1390, %v1520
  %v1542 = vadd.f32 %v1391, %v1521
  %v1543 = vadd.f32 %v1392, %v1522
  %v1544 = vadd.f32 %v1393, %v1523
  %v1545 = vadd.f32 %v1394, %v1524
  %v1546 = vadd.f32 %v1395, %v1525
  %v1547 = vadd.f32 %v1396, %v1526
  %v1548 = vadd.f32 %v1397, %v1527
  %v1549 = vadd.f32 %v1398, %v1528
  %v1550 = vadd.f32 %v1399, %v1529
  %v1551 = vadd.f32 %v1400, %v1530
  %v1552 = vrot.slane %v67, 2
  %v1553 = vrot.slane %v72, 2
  %v1554 = vrot.slane %v77, 2
  %v1555 = vrot.slane %v82, 2
  %v1556 = vrot.slane %v87, 2
  %v1557 = vrot.slane %v92, 2
  %v1558 = vrot.slane %v97, 2
  %v1559 = vrot.slane %v102, 2
  %v1560 = vrot.slane %v107, 2
  %v1561 = vrot.slane %v112, 2
  %v1562 = vrot.slane %v117, 2
  %v1563 = vrot.slane %v122, 2
  %v1564 = vrot.slane %v127, 2
  %v1565 = vrot.slane %v132, 2
  %v1566 = vrot.slane %v137, 2
  %v1567 = vrot.slane %v142, 2
  %v1568 = vrot.slane %v147, 2
  %v1569 = vrot.slane %v152, 2
  %v1570 = vrot.slane %v157, 2
  %v1571 = vrot.slane %v162, 2
  %v1572 = vrot.slane %v167, 2
  %vm1573 = vcmp.lt.s32.totalorder %v214, 6
  %v1574 = vsel %vm1573, %v1571, %v1572
  %v1575 = vsel %vm1573, %v1570, %v1571
  %v1576 = vsel %vm1573, %v1569, %v1570
  %v1577 = vsel %vm1573, %v1568, %v1569
  %v1578 = vsel %vm1573, %v1567, %v1568
  %v1579 = vsel %vm1573, %v1566, %v1567
  %v1580 = vsel %vm1573, %v1565, %v1566
  %v1581 = vsel %vm1573, %v1564, %v1565
  %v1582 = vsel %vm1573, %v1563, %v1564
  %v1583 = vsel %vm1573, %v1562, %v1563
  %v1584 = vsel %vm1573, %v1561, %v1562
  %v1585 = vsel %vm1573, %v1560, %v1561
  %v1586 = vsel %vm1573, %v1559, %v1560
  %v1587 = vsel %vm1573, %v1558, %v1559
  %v1588 = vsel %vm1573, %v1557, %v1558
  %v1589 = vsel %vm1573, %v1556, %v1557
  %v1590 = vsel %vm1573, %v1555, %v1556
  %v1591 = vsel %vm1573, %v1554, %v1555
  %v1592 = vsel %vm1573, %v1553, %v1554
  %v1593 = vsel %vm1573, %v1552, %v1553
  %v1594 = vsel %vm1573, %v1572, %v1552
  %1595 = vset.pattern.permute.xlu0 8
  %1596 = vperm.xlu0 %1595, %v171
  %v1597 = vpop.permute.xlu0 %1596
  %1599 = vset.pattern.permute.xlu0 8
  %1600 = vperm.xlu0 %1599, %v172
  %v1601 = vpop.permute.xlu0 %1600
  %1603 = vset.pattern.permute.xlu0 8
  %1604 = vperm.xlu0 %1603, %v173
  %v1605 = vpop.permute.xlu0 %1604
  %1607 = vset.pattern.permute.xlu0 8
  %1608 = vperm.xlu0 %1607, %v174
  %v1609 = vpop.permute.xlu0 %1608
  %1611 = vset.pattern.permute.xlu0 8
  %1612 = vperm.xlu0 %1611, %v175
  %v1613 = vpop.permute.xlu0 %1612
  %1615 = vset.pattern.permute.xlu0 8
  %1616 = vperm.xlu0 %1615, %v176
  %v1617 = vpop.permute.xlu0 %1616
  %1619 = vset.pattern.permute.xlu0 8
  %1620 = vperm.xlu0 %1619, %v177
  %v1621 = vpop.permute.xlu0 %1620
  %1623 = vset.pattern.permute.xlu0 8
  %1624 = vperm.xlu0 %1623, %v178
  %v1625 = vpop.permute.xlu0 %1624
  %1627 = vset.pattern.permute.xlu0 8
  %1628 = vperm.xlu0 %1627, %v179
  %v1629 = vpop.permute.xlu0 %1628
  %1631 = vset.pattern.permute.xlu0 8
  %1632 = vperm.xlu0 %1631, %v180
  %v1633 = vpop.permute.xlu0 %1632
  %1635 = vset.pattern.permute.xlu0 8
  %1636 = vperm.xlu0 %1635, %v181
  %v1637 = vpop.permute.xlu0 %1636
  %1639 = vset.pattern.permute.xlu0 8
  %1640 = vperm.xlu0 %1639, %v182
  %v1641 = vpop.permute.xlu0 %1640
  %1643 = vset.pattern.permute.xlu0 8
  %1644 = vperm.xlu0 %1643, %v183
  %v1645 = vpop.permute.xlu0 %1644
  %1647 = vset.pattern.permute.xlu0 8
  %1648 = vperm.xlu0 %1647, %v184
  %v1649 = vpop.permute.xlu0 %1648
  %1651 = vset.pattern.permute.xlu0 8
  %1652 = vperm.xlu0 %1651, %v185
  %v1653 = vpop.permute.xlu0 %1652
  %1655 = vset.pattern.permute.xlu0 8
  %1656 = vperm.xlu0 %1655, %v186
  %v1657 = vpop.permute.xlu0 %1656
  %1659 = vset.pattern.permute.xlu0 8
  %1660 = vperm.xlu0 %1659, %v187
  %v1661 = vpop.permute.xlu0 %1660
  %1663 = vset.pattern.permute.xlu0 8
  %1664 = vperm.xlu0 %1663, %v188
  %v1665 = vpop.permute.xlu0 %1664
  %1667 = vset.pattern.permute.xlu0 8
  %1668 = vperm.xlu0 %1667, %v189
  %v1669 = vpop.permute.xlu0 %1668
  %1671 = vset.pattern.permute.xlu0 8
  %1672 = vperm.xlu0 %1671, %v190
  %v1673 = vpop.permute.xlu0 %1672
  %1675 = vset.pattern.permute.xlu0 8
  %1676 = vperm.xlu0 %1675, %v191
  %v1677 = vpop.permute.xlu0 %1676
  %v1679 = vmul.f32 %v1592, %v1597
  %v1680 = vmul.f32 %v1591, %v1601
  %v1681 = vmul.f32 %v1590, %v1605
  %v1682 = vmul.f32 %v1589, %v1609
  %v1683 = vmul.f32 %v1588, %v1613
  %v1684 = vmul.f32 %v1587, %v1617
  %v1685 = vmul.f32 %v1586, %v1621
  %v1686 = vmul.f32 %v1585, %v1625
  %v1687 = vmul.f32 %v1584, %v1629
  %v1688 = vmul.f32 %v1583, %v1633
  %v1689 = vmul.f32 %v1582, %v1637
  %v1690 = vmul.f32 %v1581, %v1641
  %v1691 = vmul.f32 %v1580, %v1645
  %v1692 = vmul.f32 %v1579, %v1649
  %v1693 = vmul.f32 %v1578, %v1653
  %v1694 = vmul.f32 %v1577, %v1657
  %v1695 = vmul.f32 %v1576, %v1661
  %v1696 = vmul.f32 %v1575, %v1665
  %v1697 = vmul.f32 %v1574, %v1669
  %v1698 = vmul.f32 %v1594, %v1673
  %v1699 = vmul.f32 %v1593, %v1677
  %v1700 = vlaneseq
  %v1701 = vshrl.u32 %v1700, 7
  %v1702 = vsub.s32 0, %v1701
  %v1703 = vrot.slane %v170, %v1702
  %v1704 = vmul.f32 %v1679, %v1703
  %v1705 = vmul.f32 %v1680, %v1703
  %v1706 = vmul.f32 %v1681, %v1703
  %v1707 = vmul.f32 %v1682, %v1703
  %v1708 = vmul.f32 %v1683, %v1703
  %v1709 = vmul.f32 %v1684, %v1703
  %v1710 = vmul.f32 %v1685, %v1703
  %v1711 = vmul.f32 %v1686, %v1703
  %v1712 = vmul.f32 %v1687, %v1703
  %v1713 = vmul.f32 %v1688, %v1703
  %v1714 = vmul.f32 %v1689, %v1703
  %v1715 = vmul.f32 %v1690, %v1703
  %v1716 = vmul.f32 %v1691, %v1703
  %v1717 = vmul.f32 %v1692, %v1703
  %v1718 = vmul.f32 %v1693, %v1703
  %v1719 = vmul.f32 %v1694, %v1703
  %v1720 = vmul.f32 %v1695, %v1703
  %v1721 = vmul.f32 %v1696, %v1703
  %v1722 = vmul.f32 %v1697, %v1703
  %v1723 = vmul.f32 %v1698, %v1703
  %v1724 = vmul.f32 %v1699, %v1703
  %v1725 = vadd.f32 %v1531, %v1704
  %v1726 = vadd.f32 %v1532, %v1705
  %v1727 = vadd.f32 %v1533, %v1706
  %v1728 = vadd.f32 %v1534, %v1707
  %v1729 = vadd.f32 %v1535, %v1708
  %v1730 = vadd.f32 %v1536, %v1709
  %v1731 = vadd.f32 %v1537, %v1710
  %v1732 = vadd.f32 %v1538, %v1711
  %v1733 = vadd.f32 %v1539, %v1712
  %v1734 = vadd.f32 %v1540, %v1713
  %v1735 = vadd.f32 %v1541, %v1714
  %v1736 = vadd.f32 %v1542, %v1715
  %v1737 = vadd.f32 %v1543, %v1716
  %v1738 = vadd.f32 %v1544, %v1717
  %v1739 = vadd.f32 %v1545, %v1718
  %v1740 = vadd.f32 %v1546, %v1719
  %v1741 = vadd.f32 %v1547, %v1720
  %v1742 = vadd.f32 %v1548, %v1721
  %v1743 = vadd.f32 %v1549, %v1722
  %v1744 = vadd.f32 %v1550, %v1723
  %v1745 = vadd.f32 %v1551, %v1724
  %v1746 = vlaneseq
  %v1747 = vshrl.u32 %v1746, 7
  %v1748 = vsub.s32 0, %v1747
  %v1749 = vrot.slane %v38, %v1748
  %v1750 = vadd.f32 %v1725, %v1749
  %v1751 = vadd.f32 %v1726, %v1749
  %v1752 = vadd.f32 %v1727, %v1749
  %v1753 = vadd.f32 %v1728, %v1749
  %v1754 = vadd.f32 %v1729, %v1749
  %v1755 = vadd.f32 %v1730, %v1749
  %v1756 = vadd.f32 %v1731, %v1749
  %v1757 = vadd.f32 %v1732, %v1749
  %v1758 = vadd.f32 %v1733, %v1749
  %v1759 = vadd.f32 %v1734, %v1749
  %v1760 = vadd.f32 %v1735, %v1749
  %v1761 = vadd.f32 %v1736, %v1749
  %v1762 = vadd.f32 %v1737, %v1749
  %v1763 = vadd.f32 %v1738, %v1749
  %v1764 = vadd.f32 %v1739, %v1749
  %v1765 = vadd.f32 %v1740, %v1749
  %v1766 = vadd.f32 %v1741, %v1749
  %v1767 = vadd.f32 %v1742, %v1749
  %v1768 = vadd.f32 %v1743, %v1749
  %v1769 = vadd.f32 %v1744, %v1749
  %v1770 = vadd.f32 %v1745, %v1749
  %v1771 = vrot.slane %v1750, 6
  %v1772 = vrot.slane %v1751, 6
  %v1773 = vrot.slane %v1752, 6
  %v1774 = vrot.slane %v1753, 6
  %v1775 = vrot.slane %v1754, 6
  %v1776 = vrot.slane %v1755, 6
  %v1777 = vrot.slane %v1756, 6
  %v1778 = vrot.slane %v1757, 6
  %v1779 = vrot.slane %v1758, 6
  %v1780 = vrot.slane %v1759, 6
  %v1781 = vrot.slane %v1760, 6
  %v1782 = vrot.slane %v1761, 6
  %v1783 = vrot.slane %v1762, 6
  %v1784 = vrot.slane %v1763, 6
  %v1785 = vrot.slane %v1764, 6
  %v1786 = vrot.slane %v1765, 6
  %v1787 = vrot.slane %v1766, 6
  %v1788 = vrot.slane %v1767, 6
  %v1789 = vrot.slane %v1768, 6
  %v1790 = vrot.slane %v1769, 6
  %v1791 = vrot.slane %v1770, 6
  %v1792 = vsel %vm215, %v1790, %v1791
  %v1793 = vsel %vm215, %v1789, %v1790
  %v1794 = vsel %vm215, %v1788, %v1789
  %v1795 = vsel %vm215, %v1787, %v1788
  %v1796 = vsel %vm215, %v1786, %v1787
  %v1797 = vsel %vm215, %v1785, %v1786
  %v1798 = vsel %vm215, %v1784, %v1785
  %v1799 = vsel %vm215, %v1783, %v1784
  %v1800 = vsel %vm215, %v1782, %v1783
  %v1801 = vsel %vm215, %v1781, %v1782
  %v1802 = vsel %vm215, %v1780, %v1781
  %v1803 = vsel %vm215, %v1779, %v1780
  %v1804 = vsel %vm215, %v1778, %v1779
  %v1805 = vsel %vm215, %v1777, %v1778
  %v1806 = vsel %vm215, %v1776, %v1777
  %v1807 = vsel %vm215, %v1775, %v1776
  %v1808 = vsel %vm215, %v1774, %v1775
  %v1809 = vsel %vm215, %v1773, %v1774
  %v1810 = vsel %vm215, %v1772, %v1773
  %v1811 = vsel %vm215, %v1771, %v1772
  %v1812 = vsel %vm215, %v1791, %v1771
  %v1813 = vmul.f32 %v1792, %v240
  %v1814 = vmul.f32 %v1812, %v245
  %v1815 = vmul.f32 %v1811, %v250
  %v1816 = vmul.f32 %v1810, %v255
  %v1817 = vmul.f32 %v1809, %v260
  %v1818 = vmul.f32 %v1808, %v265
  %v1819 = vmul.f32 %v1807, %v270
  %v1820 = vmul.f32 %v1806, %v275
  %v1821 = vmul.f32 %v1805, %v280
  %v1822 = vmul.f32 %v1804, %v285
  %v1823 = vmul.f32 %v1803, %v290
  %v1824 = vmul.f32 %v1802, %v295
  %v1825 = vmul.f32 %v1801, %v300
  %v1826 = vmul.f32 %v1800, %v305
  %v1827 = vmul.f32 %v1799, %v310
  %v1828 = vmul.f32 %v1798, %v315
  %v1829 = vmul.f32 %v1797, %v320
  %v1830 = vmul.f32 %v1796, %v325
  %v1831 = vmul.f32 %v1795, %v330
  %v1832 = vmul.f32 %v1794, %v335
  %v1833 = vmul.f32 %v1793, %v340
  %v1834 = vrot.slane %v1750, 7
  %v1835 = vrot.slane %v1751, 7
  %v1836 = vrot.slane %v1752, 7
  %v1837 = vrot.slane %v1753, 7
  %v1838 = vrot.slane %v1754, 7
  %v1839 = vrot.slane %v1755, 7
  %v1840 = vrot.slane %v1756, 7
  %v1841 = vrot.slane %v1757, 7
  %v1842 = vrot.slane %v1758, 7
  %v1843 = vrot.slane %v1759, 7
  %v1844 = vrot.slane %v1760, 7
  %v1845 = vrot.slane %v1761, 7
  %v1846 = vrot.slane %v1762, 7
  %v1847 = vrot.slane %v1763, 7
  %v1848 = vrot.slane %v1764, 7
  %v1849 = vrot.slane %v1765, 7
  %v1850 = vrot.slane %v1766, 7
  %v1851 = vrot.slane %v1767, 7
  %v1852 = vrot.slane %v1768, 7
  %v1853 = vrot.slane %v1769, 7
  %v1854 = vrot.slane %v1770, 7
  %v1855 = vsel %vm430, %v1853, %v1854
  %v1856 = vsel %vm430, %v1852, %v1853
  %v1857 = vsel %vm430, %v1851, %v1852
  %v1858 = vsel %vm430, %v1850, %v1851
  %v1859 = vsel %vm430, %v1849, %v1850
  %v1860 = vsel %vm430, %v1848, %v1849
  %v1861 = vsel %vm430, %v1847, %v1848
  %v1862 = vsel %vm430, %v1846, %v1847
  %v1863 = vsel %vm430, %v1845, %v1846
  %v1864 = vsel %vm430, %v1844, %v1845
  %v1865 = vsel %vm430, %v1843, %v1844
  %v1866 = vsel %vm430, %v1842, %v1843
  %v1867 = vsel %vm430, %v1841, %v1842
  %v1868 = vsel %vm430, %v1840, %v1841
  %v1869 = vsel %vm430, %v1839, %v1840
  %v1870 = vsel %vm430, %v1838, %v1839
  %v1871 = vsel %vm430, %v1837, %v1838
  %v1872 = vsel %vm430, %v1836, %v1837
  %v1873 = vsel %vm430, %v1835, %v1836
  %v1874 = vsel %vm430, %v1834, %v1835
  %v1875 = vsel %vm430, %v1854, %v1834
  %v1876 = vmul.f32 %v1855, %v454
  %v1877 = vmul.f32 %v1875, %v458
  %v1878 = vmul.f32 %v1874, %v462
  %v1879 = vmul.f32 %v1873, %v466
  %v1880 = vmul.f32 %v1872, %v470
  %v1881 = vmul.f32 %v1871, %v474
  %v1882 = vmul.f32 %v1870, %v478
  %v1883 = vmul.f32 %v1869, %v482
  %v1884 = vmul.f32 %v1868, %v486
  %v1885 = vmul.f32 %v1867, %v490
  %v1886 = vmul.f32 %v1866, %v494
  %v1887 = vmul.f32 %v1865, %v498
  %v1888 = vmul.f32 %v1864, %v502
  %v1889 = vmul.f32 %v1863, %v506
  %v1890 = vmul.f32 %v1862, %v510
  %v1891 = vmul.f32 %v1861, %v514
  %v1892 = vmul.f32 %v1860, %v518
  %v1893 = vmul.f32 %v1859, %v522
  %v1894 = vmul.f32 %v1858, %v526
  %v1895 = vmul.f32 %v1857, %v530
  %v1896 = vmul.f32 %v1856, %v534
  %v1897 = vmul.f32 %v1770, %v605
  %v1898 = vmul.f32 %v1750, %v609
  %v1899 = vmul.f32 %v1751, %v613
  %v1900 = vmul.f32 %v1752, %v617
  %v1901 = vmul.f32 %v1753, %v621
  %v1902 = vmul.f32 %v1754, %v625
  %v1903 = vmul.f32 %v1755, %v629
  %v1904 = vmul.f32 %v1756, %v633
  %v1905 = vmul.f32 %v1757, %v637
  %v1906 = vmul.f32 %v1758, %v641
  %v1907 = vmul.f32 %v1759, %v645
  %v1908 = vmul.f32 %v1760, %v649
  %v1909 = vmul.f32 %v1761, %v653
  %v1910 = vmul.f32 %v1762, %v657
  %v1911 = vmul.f32 %v1763, %v661
  %v1912 = vmul.f32 %v1764, %v665
  %v1913 = vmul.f32 %v1765, %v669
  %v1914 = vmul.f32 %v1766, %v673
  %v1915 = vmul.f32 %v1767, %v677
  %v1916 = vmul.f32 %v1768, %v681
  %v1917 = vmul.f32 %v1769, %v685
  %v1918 = vmul.f32 %v1875, %v756
  %v1919 = vmul.f32 %v1874, %v760
  %v1920 = vmul.f32 %v1873, %v764
  %v1921 = vmul.f32 %v1872, %v768
  %v1922 = vmul.f32 %v1871, %v772
  %v1923 = vmul.f32 %v1870, %v776
  %v1924 = vmul.f32 %v1869, %v780
  %v1925 = vmul.f32 %v1868, %v784
  %v1926 = vmul.f32 %v1867, %v788
  %v1927 = vmul.f32 %v1866, %v792
  %v1928 = vmul.f32 %v1865, %v796
  %v1929 = vmul.f32 %v1864, %v800
  %v1930 = vmul.f32 %v1863, %v804
  %v1931 = vmul.f32 %v1862, %v808
  %v1932 = vmul.f32 %v1861, %v812
  %v1933 = vmul.f32 %v1860, %v816
  %v1934 = vmul.f32 %v1859, %v820
  %v1935 = vmul.f32 %v1858, %v824
  %v1936 = vmul.f32 %v1857, %v828
  %v1937 = vmul.f32 %v1856, %v832
  %v1938 = vmul.f32 %v1855, %v836
  %v1939 = vmul.f32 %v1750, %v907
  %v1940 = vmul.f32 %v1751, %v911
  %v1941 = vmul.f32 %v1752, %v915
  %v1942 = vmul.f32 %v1753, %v919
  %v1943 = vmul.f32 %v1754, %v923
  %v1944 = vmul.f32 %v1755, %v927
  %v1945 = vmul.f32 %v1756, %v931
  %v1946 = vmul.f32 %v1757, %v935
  %v1947 = vmul.f32 %v1758, %v939
  %v1948 = vmul.f32 %v1759, %v943
  %v1949 = vmul.f32 %v1760, %v947
  %v1950 = vmul.f32 %v1761, %v951
  %v1951 = vmul.f32 %v1762, %v955
  %v1952 = vmul.f32 %v1763, %v959
  %v1953 = vmul.f32 %v1764, %v963
  %v1954 = vmul.f32 %v1765, %v967
  %v1955 = vmul.f32 %v1766, %v971
  %v1956 = vmul.f32 %v1767, %v975
  %v1957 = vmul.f32 %v1768, %v979
  %v1958 = vmul.f32 %v1769, %v983
  %v1959 = vmul.f32 %v1770, %v987
  %v1960 = vrot.slane %v1750, 1
  %v1961 = vrot.slane %v1751, 1
  %v1962 = vrot.slane %v1752, 1
  %v1963 = vrot.slane %v1753, 1
  %v1964 = vrot.slane %v1754, 1
  %v1965 = vrot.slane %v1755, 1
  %v1966 = vrot.slane %v1756, 1
  %v1967 = vrot.slane %v1757, 1
  %v1968 = vrot.slane %v1758, 1
  %v1969 = vrot.slane %v1759, 1
  %v1970 = vrot.slane %v1760, 1
  %v1971 = vrot.slane %v1761, 1
  %v1972 = vrot.slane %v1762, 1
  %v1973 = vrot.slane %v1763, 1
  %v1974 = vrot.slane %v1764, 1
  %v1975 = vrot.slane %v1765, 1
  %v1976 = vrot.slane %v1766, 1
  %v1977 = vrot.slane %v1767, 1
  %v1978 = vrot.slane %v1768, 1
  %v1979 = vrot.slane %v1769, 1
  %v1980 = vrot.slane %v1770, 1
  %v1981 = vsel %vm1077, %v1979, %v1980
  %v1982 = vsel %vm1077, %v1978, %v1979
  %v1983 = vsel %vm1077, %v1977, %v1978
  %v1984 = vsel %vm1077, %v1976, %v1977
  %v1985 = vsel %vm1077, %v1975, %v1976
  %v1986 = vsel %vm1077, %v1974, %v1975
  %v1987 = vsel %vm1077, %v1973, %v1974
  %v1988 = vsel %vm1077, %v1972, %v1973
  %v1989 = vsel %vm1077, %v1971, %v1972
  %v1990 = vsel %vm1077, %v1970, %v1971
  %v1991 = vsel %vm1077, %v1969, %v1970
  %v1992 = vsel %vm1077, %v1968, %v1969
  %v1993 = vsel %vm1077, %v1967, %v1968
  %v1994 = vsel %vm1077, %v1966, %v1967
  %v1995 = vsel %vm1077, %v1965, %v1966
  %v1996 = vsel %vm1077, %v1964, %v1965
  %v1997 = vsel %vm1077, %v1963, %v1964
  %v1998 = vsel %vm1077, %v1962, %v1963
  %v1999 = vsel %vm1077, %v1961, %v1962
  %v2000 = vsel %vm1077, %v1960, %v1961
  %v2001 = vsel %vm1077, %v1980, %v1960
  %v2002 = vmul.f32 %v2000, %v1101
  %v2003 = vmul.f32 %v1999, %v1105
  %v2004 = vmul.f32 %v1998, %v1109
  %v2005 = vmul.f32 %v1997, %v1113
  %v2006 = vmul.f32 %v1996, %v1117
  %v2007 = vmul.f32 %v1995, %v1121
  %v2008 = vmul.f32 %v1994, %v1125
  %v2009 = vmul.f32 %v1993, %v1129
  %v2010 = vmul.f32 %v1992, %v1133
  %v2011 = vmul.f32 %v1991, %v1137
  %v2012 = vmul.f32 %v1990, %v1141
  %v2013 = vmul.f32 %v1989, %v1145
  %v2014 = vmul.f32 %v1988, %v1149
  %v2015 = vmul.f32 %v1987, %v1153
  %v2016 = vmul.f32 %v1986, %v1157
  %v2017 = vmul.f32 %v1985, %v1161
  %v2018 = vmul.f32 %v1984, %v1165
  %v2019 = vmul.f32 %v1983, %v1169
  %v2020 = vmul.f32 %v1982, %v1173
  %v2021 = vmul.f32 %v1981, %v1177
  %v2022 = vmul.f32 %v2001, %v1181
  %v2023 = vmul.f32 %v1751, %v1252
  %v2024 = vmul.f32 %v1752, %v1256
  %v2025 = vmul.f32 %v1753, %v1260
  %v2026 = vmul.f32 %v1754, %v1264
  %v2027 = vmul.f32 %v1755, %v1268
  %v2028 = vmul.f32 %v1756, %v1272
  %v2029 = vmul.f32 %v1757, %v1276
  %v2030 = vmul.f32 %v1758, %v1280
  %v2031 = vmul.f32 %v1759, %v1284
  %v2032 = vmul.f32 %v1760, %v1288
  %v2033 = vmul.f32 %v1761, %v1292
  %v2034 = vmul.f32 %v1762, %v1296
  %v2035 = vmul.f32 %v1763, %v1300
  %v2036 = vmul.f32 %v1764, %v1304
  %v2037 = vmul.f32 %v1765, %v1308
  %v2038 = vmul.f32 %v1766, %v1312
  %v2039 = vmul.f32 %v1767, %v1316
  %v2040 = vmul.f32 %v1768, %v1320
  %v2041 = vmul.f32 %v1769, %v1324
  %v2042 = vmul.f32 %v1770, %v1328
  %v2043 = vmul.f32 %v1750, %v1332
  %v2044 = vmul.f32 %v1999, %v1403
  %v2045 = vmul.f32 %v1998, %v1407
  %v2046 = vmul.f32 %v1997, %v1411
  %v2047 = vmul.f32 %v1996, %v1415
  %v2048 = vmul.f32 %v1995, %v1419
  %v2049 = vmul.f32 %v1994, %v1423
  %v2050 = vmul.f32 %v1993, %v1427
  %v2051 = vmul.f32 %v1992, %v1431
  %v2052 = vmul.f32 %v1991, %v1435
  %v2053 = vmul.f32 %v1990, %v1439
  %v2054 = vmul.f32 %v1989, %v1443
  %v2055 = vmul.f32 %v1988, %v1447
  %v2056 = vmul.f32 %v1987, %v1451
  %v2057 = vmul.f32 %v1986, %v1455
  %v2058 = vmul.f32 %v1985, %v1459
  %v2059 = vmul.f32 %v1984, %v1463
  %v2060 = vmul.f32 %v1983, %v1467
  %v2061 = vmul.f32 %v1982, %v1471
  %v2062 = vmul.f32 %v1981, %v1475
  %v2063 = vmul.f32 %v2001, %v1479
  %v2064 = vmul.f32 %v2000, %v1483
  %v2065 = vrot.slane %v1750, 2
  %v2066 = vrot.slane %v1751, 2
  %v2067 = vrot.slane %v1752, 2
  %v2068 = vrot.slane %v1753, 2
  %v2069 = vrot.slane %v1754, 2
  %v2070 = vrot.slane %v1755, 2
  %v2071 = vrot.slane %v1756, 2
  %v2072 = vrot.slane %v1757, 2
  %v2073 = vrot.slane %v1758, 2
  %v2074 = vrot.slane %v1759, 2
  %v2075 = vrot.slane %v1760, 2
  %v2076 = vrot.slane %v1761, 2
  %v2077 = vrot.slane %v1762, 2
  %v2078 = vrot.slane %v1763, 2
  %v2079 = vrot.slane %v1764, 2
  %v2080 = vrot.slane %v1765, 2
  %v2081 = vrot.slane %v1766, 2
  %v2082 = vrot.slane %v1767, 2
  %v2083 = vrot.slane %v1768, 2
  %v2084 = vrot.slane %v1769, 2
  %v2085 = vrot.slane %v1770, 2
  %v2086 = vsel %vm1573, %v2084, %v2085
  %v2087 = vsel %vm1573, %v2083, %v2084
  %v2088 = vsel %vm1573, %v2082, %v2083
  %v2089 = vsel %vm1573, %v2081, %v2082
  %v2090 = vsel %vm1573, %v2080, %v2081
  %v2091 = vsel %vm1573, %v2079, %v2080
  %v2092 = vsel %vm1573, %v2078, %v2079
  %v2093 = vsel %vm1573, %v2077, %v2078
  %v2094 = vsel %vm1573, %v2076, %v2077
  %v2095 = vsel %vm1573, %v2075, %v2076
  %v2096 = vsel %vm1573, %v2074, %v2075
  %v2097 = vsel %vm1573, %v2073, %v2074
  %v2098 = vsel %vm1573, %v2072, %v2073
  %v2099 = vsel %vm1573, %v2071, %v2072
  %v2100 = vsel %vm1573, %v2070, %v2071
  %v2101 = vsel %vm1573, %v2069, %v2070
  %v2102 = vsel %vm1573, %v2068, %v2069
  %v2103 = vsel %vm1573, %v2067, %v2068
  %v2104 = vsel %vm1573, %v2066, %v2067
  %v2105 = vsel %vm1573, %v2065, %v2066
  %v2106 = vsel %vm1573, %v2085, %v2065
  %v2107 = vmul.f32 %v2104, %v1597
  %v2108 = vmul.f32 %v2103, %v1601
  %v2109 = vmul.f32 %v2102, %v1605
  %v2110 = vmul.f32 %v2101, %v1609
  %v2111 = vmul.f32 %v2100, %v1613
  %v2112 = vmul.f32 %v2099, %v1617
  %v2113 = vmul.f32 %v2098, %v1621
  %v2114 = vmul.f32 %v2097, %v1625
  %v2115 = vmul.f32 %v2096, %v1629
  %v2116 = vmul.f32 %v2095, %v1633
  %v2117 = vmul.f32 %v2094, %v1637
  %v2118 = vmul.f32 %v2093, %v1641
  %v2119 = vmul.f32 %v2092, %v1645
  %v2120 = vmul.f32 %v2091, %v1649
  %v2121 = vmul.f32 %v2090, %v1653
  %v2122 = vmul.f32 %v2089, %v1657
  %v2123 = vmul.f32 %v2088, %v1661
  %v2124 = vmul.f32 %v2087, %v1665
  %v2125 = vmul.f32 %v2086, %v1669
  %v2126 = vmul.f32 %v2106, %v1673
  %v2127 = vmul.f32 %v2105, %v1677
  %2149 = vrot.lane.b32.xlu0 %v1876, 32
  %v2150 = vpop.permute.xlu0 %2149
  %2151 = vrot.lane.b32.xlu0 %v1877, 32
  %v2152 = vpop.permute.xlu0 %2151
  %2153 = vrot.lane.b32.xlu0 %v1878, 32
  %v2154 = vpop.permute.xlu0 %2153
  %2155 = vrot.lane.b32.xlu0 %v1879, 32
  %v2156 = vpop.permute.xlu0 %2155
  %2157 = vrot.lane.b32.xlu0 %v1880, 32
  %v2158 = vpop.permute.xlu0 %2157
  %2159 = vrot.lane.b32.xlu0 %v1881, 32
  %v2160 = vpop.permute.xlu0 %2159
  %2161 = vrot.lane.b32.xlu0 %v1882, 32
  %v2162 = vpop.permute.xlu0 %2161
  %2163 = vrot.lane.b32.xlu0 %v1883, 32
  %v2164 = vpop.permute.xlu0 %2163
  %2165 = vrot.lane.b32.xlu0 %v1884, 32
  %v2166 = vpop.permute.xlu0 %2165
  %2167 = vrot.lane.b32.xlu0 %v1885, 32
  %v2168 = vpop.permute.xlu0 %2167
  %2169 = vrot.lane.b32.xlu0 %v1886, 32
  %v2170 = vpop.permute.xlu0 %2169
  %2171 = vrot.lane.b32.xlu0 %v1887, 32
  %v2172 = vpop.permute.xlu0 %2171
  %2173 = vrot.lane.b32.xlu0 %v1888, 32
  %v2174 = vpop.permute.xlu0 %2173
  %2175 = vrot.lane.b32.xlu0 %v1889, 32
  %v2176 = vpop.permute.xlu0 %2175
  %2177 = vrot.lane.b32.xlu0 %v1890, 32
  %v2178 = vpop.permute.xlu0 %2177
  %2179 = vrot.lane.b32.xlu0 %v1891, 32
  %v2180 = vpop.permute.xlu0 %2179
  %2181 = vrot.lane.b32.xlu0 %v1892, 32
  %v2182 = vpop.permute.xlu0 %2181
  %2183 = vrot.lane.b32.xlu0 %v1893, 32
  %v2184 = vpop.permute.xlu0 %2183
  %2185 = vrot.lane.b32.xlu0 %v1894, 32
  %v2186 = vpop.permute.xlu0 %2185
  %2187 = vrot.lane.b32.xlu0 %v1895, 32
  %v2188 = vpop.permute.xlu0 %2187
  %2189 = vrot.lane.b32.xlu0 %v1896, 32
  %v2190 = vpop.permute.xlu0 %2189
  %2233 = vrot.lane.b32.xlu0 %v1897, 64
  %v2234 = vpop.permute.xlu0 %2233
  %2235 = vrot.lane.b32.xlu0 %v1898, 64
  %v2236 = vpop.permute.xlu0 %2235
  %2237 = vrot.lane.b32.xlu0 %v1899, 64
  %v2238 = vpop.permute.xlu0 %2237
  %2239 = vrot.lane.b32.xlu0 %v1900, 64
  %v2240 = vpop.permute.xlu0 %2239
  %2241 = vrot.lane.b32.xlu0 %v1901, 64
  %v2242 = vpop.permute.xlu0 %2241
  %2243 = vrot.lane.b32.xlu0 %v1902, 64
  %v2244 = vpop.permute.xlu0 %2243
  %2245 = vrot.lane.b32.xlu0 %v1903, 64
  %v2246 = vpop.permute.xlu0 %2245
  %2247 = vrot.lane.b32.xlu0 %v1904, 64
  %v2248 = vpop.permute.xlu0 %2247
  %2249 = vrot.lane.b32.xlu0 %v1905, 64
  %v2250 = vpop.permute.xlu0 %2249
  %2251 = vrot.lane.b32.xlu0 %v1906, 64
  %v2252 = vpop.permute.xlu0 %2251
  %2253 = vrot.lane.b32.xlu0 %v1907, 64
  %v2254 = vpop.permute.xlu0 %2253
  %2255 = vrot.lane.b32.xlu0 %v1908, 64
  %v2256 = vpop.permute.xlu0 %2255
  %2257 = vrot.lane.b32.xlu0 %v1909, 64
  %v2258 = vpop.permute.xlu0 %2257
  %2259 = vrot.lane.b32.xlu0 %v1910, 64
  %v2260 = vpop.permute.xlu0 %2259
  %2261 = vrot.lane.b32.xlu0 %v1911, 64
  %v2262 = vpop.permute.xlu0 %2261
  %2263 = vrot.lane.b32.xlu0 %v1912, 64
  %v2264 = vpop.permute.xlu0 %2263
  %2265 = vrot.lane.b32.xlu0 %v1913, 64
  %v2266 = vpop.permute.xlu0 %2265
  %2267 = vrot.lane.b32.xlu0 %v1914, 64
  %v2268 = vpop.permute.xlu0 %2267
  %2269 = vrot.lane.b32.xlu0 %v1915, 64
  %v2270 = vpop.permute.xlu0 %2269
  %2271 = vrot.lane.b32.xlu0 %v1916, 64
  %v2272 = vpop.permute.xlu0 %2271
  %2273 = vrot.lane.b32.xlu0 %v1917, 64
  %v2274 = vpop.permute.xlu0 %2273
  %2317 = vrot.lane.b32.xlu0 %v1918, 96
  %v2318 = vpop.permute.xlu0 %2317
  %2319 = vrot.lane.b32.xlu0 %v1919, 96
  %v2320 = vpop.permute.xlu0 %2319
  %2321 = vrot.lane.b32.xlu0 %v1920, 96
  %v2322 = vpop.permute.xlu0 %2321
  %2323 = vrot.lane.b32.xlu0 %v1921, 96
  %v2324 = vpop.permute.xlu0 %2323
  %2325 = vrot.lane.b32.xlu0 %v1922, 96
  %v2326 = vpop.permute.xlu0 %2325
  %2327 = vrot.lane.b32.xlu0 %v1923, 96
  %v2328 = vpop.permute.xlu0 %2327
  %2329 = vrot.lane.b32.xlu0 %v1924, 96
  %v2330 = vpop.permute.xlu0 %2329
  %2331 = vrot.lane.b32.xlu0 %v1925, 96
  %v2332 = vpop.permute.xlu0 %2331
  %2333 = vrot.lane.b32.xlu0 %v1926, 96
  %v2334 = vpop.permute.xlu0 %2333
  %2335 = vrot.lane.b32.xlu0 %v1927, 96
  %v2336 = vpop.permute.xlu0 %2335
  %2337 = vrot.lane.b32.xlu0 %v1928, 96
  %v2338 = vpop.permute.xlu0 %2337
  %2339 = vrot.lane.b32.xlu0 %v1929, 96
  %v2340 = vpop.permute.xlu0 %2339
  %2341 = vrot.lane.b32.xlu0 %v1930, 96
  %v2342 = vpop.permute.xlu0 %2341
  %2343 = vrot.lane.b32.xlu0 %v1931, 96
  %v2344 = vpop.permute.xlu0 %2343
  %2345 = vrot.lane.b32.xlu0 %v1932, 96
  %v2346 = vpop.permute.xlu0 %2345
  %2347 = vrot.lane.b32.xlu0 %v1933, 96
  %v2348 = vpop.permute.xlu0 %2347
  %2349 = vrot.lane.b32.xlu0 %v1934, 96
  %v2350 = vpop.permute.xlu0 %2349
  %2351 = vrot.lane.b32.xlu0 %v1935, 96
  %v2352 = vpop.permute.xlu0 %2351
  %2353 = vrot.lane.b32.xlu0 %v1936, 96
  %v2354 = vpop.permute.xlu0 %2353
  %2355 = vrot.lane.b32.xlu0 %v1937, 96
  %v2356 = vpop.permute.xlu0 %2355
  %2357 = vrot.lane.b32.xlu0 %v1938, 96
  %v2358 = vpop.permute.xlu0 %2357
  %2401 = vrot.lane.b32.xlu0 %v2002, 32
  %v2402 = vpop.permute.xlu0 %2401
  %2403 = vrot.lane.b32.xlu0 %v2003, 32
  %v2404 = vpop.permute.xlu0 %2403
  %2405 = vrot.lane.b32.xlu0 %v2004, 32
  %v2406 = vpop.permute.xlu0 %2405
  %2407 = vrot.lane.b32.xlu0 %v2005, 32
  %v2408 = vpop.permute.xlu0 %2407
  %2409 = vrot.lane.b32.xlu0 %v2006, 32
  %v2410 = vpop.permute.xlu0 %2409
  %2411 = vrot.lane.b32.xlu0 %v2007, 32
  %v2412 = vpop.permute.xlu0 %2411
  %2413 = vrot.lane.b32.xlu0 %v2008, 32
  %v2414 = vpop.permute.xlu0 %2413
  %2415 = vrot.lane.b32.xlu0 %v2009, 32
  %v2416 = vpop.permute.xlu0 %2415
  %2417 = vrot.lane.b32.xlu0 %v2010, 32
  %v2418 = vpop.permute.xlu0 %2417
  %2419 = vrot.lane.b32.xlu0 %v2011, 32
  %v2420 = vpop.permute.xlu0 %2419
  %2421 = vrot.lane.b32.xlu0 %v2012, 32
  %v2422 = vpop.permute.xlu0 %2421
  %2423 = vrot.lane.b32.xlu0 %v2013, 32
  %v2424 = vpop.permute.xlu0 %2423
  %2425 = vrot.lane.b32.xlu0 %v2014, 32
  %v2426 = vpop.permute.xlu0 %2425
  %2427 = vrot.lane.b32.xlu0 %v2015, 32
  %v2428 = vpop.permute.xlu0 %2427
  %2429 = vrot.lane.b32.xlu0 %v2016, 32
  %v2430 = vpop.permute.xlu0 %2429
  %2431 = vrot.lane.b32.xlu0 %v2017, 32
  %v2432 = vpop.permute.xlu0 %2431
  %2433 = vrot.lane.b32.xlu0 %v2018, 32
  %v2434 = vpop.permute.xlu0 %2433
  %2435 = vrot.lane.b32.xlu0 %v2019, 32
  %v2436 = vpop.permute.xlu0 %2435
  %2437 = vrot.lane.b32.xlu0 %v2020, 32
  %v2438 = vpop.permute.xlu0 %2437
  %2439 = vrot.lane.b32.xlu0 %v2021, 32
  %v2440 = vpop.permute.xlu0 %2439
  %2441 = vrot.lane.b32.xlu0 %v2022, 32
  %v2442 = vpop.permute.xlu0 %2441
  %2485 = vrot.lane.b32.xlu0 %v2023, 64
  %v2486 = vpop.permute.xlu0 %2485
  %2487 = vrot.lane.b32.xlu0 %v2024, 64
  %v2488 = vpop.permute.xlu0 %2487
  %2489 = vrot.lane.b32.xlu0 %v2025, 64
  %v2490 = vpop.permute.xlu0 %2489
  %2491 = vrot.lane.b32.xlu0 %v2026, 64
  %v2492 = vpop.permute.xlu0 %2491
  %2493 = vrot.lane.b32.xlu0 %v2027, 64
  %v2494 = vpop.permute.xlu0 %2493
  %2495 = vrot.lane.b32.xlu0 %v2028, 64
  %v2496 = vpop.permute.xlu0 %2495
  %2497 = vrot.lane.b32.xlu0 %v2029, 64
  %v2498 = vpop.permute.xlu0 %2497
  %2499 = vrot.lane.b32.xlu0 %v2030, 64
  %v2500 = vpop.permute.xlu0 %2499
  %2501 = vrot.lane.b32.xlu0 %v2031, 64
  %v2502 = vpop.permute.xlu0 %2501
  %2503 = vrot.lane.b32.xlu0 %v2032, 64
  %v2504 = vpop.permute.xlu0 %2503
  %2505 = vrot.lane.b32.xlu0 %v2033, 64
  %v2506 = vpop.permute.xlu0 %2505
  %2507 = vrot.lane.b32.xlu0 %v2034, 64
  %v2508 = vpop.permute.xlu0 %2507
  %2509 = vrot.lane.b32.xlu0 %v2035, 64
  %v2510 = vpop.permute.xlu0 %2509
  %2511 = vrot.lane.b32.xlu0 %v2036, 64
  %v2512 = vpop.permute.xlu0 %2511
  %2513 = vrot.lane.b32.xlu0 %v2037, 64
  %v2514 = vpop.permute.xlu0 %2513
  %2515 = vrot.lane.b32.xlu0 %v2038, 64
  %v2516 = vpop.permute.xlu0 %2515
  %2517 = vrot.lane.b32.xlu0 %v2039, 64
  %v2518 = vpop.permute.xlu0 %2517
  %2519 = vrot.lane.b32.xlu0 %v2040, 64
  %v2520 = vpop.permute.xlu0 %2519
  %2521 = vrot.lane.b32.xlu0 %v2041, 64
  %v2522 = vpop.permute.xlu0 %2521
  %2523 = vrot.lane.b32.xlu0 %v2042, 64
  %v2524 = vpop.permute.xlu0 %2523
  %2525 = vrot.lane.b32.xlu0 %v2043, 64
  %v2526 = vpop.permute.xlu0 %2525
  %2569 = vrot.lane.b32.xlu0 %v2044, 96
  %v2570 = vpop.permute.xlu0 %2569
  %2571 = vrot.lane.b32.xlu0 %v2045, 96
  %v2572 = vpop.permute.xlu0 %2571
  %2573 = vrot.lane.b32.xlu0 %v2046, 96
  %v2574 = vpop.permute.xlu0 %2573
  %2575 = vrot.lane.b32.xlu0 %v2047, 96
  %v2576 = vpop.permute.xlu0 %2575
  %2577 = vrot.lane.b32.xlu0 %v2048, 96
  %v2578 = vpop.permute.xlu0 %2577
  %2579 = vrot.lane.b32.xlu0 %v2049, 96
  %v2580 = vpop.permute.xlu0 %2579
  %2581 = vrot.lane.b32.xlu0 %v2050, 96
  %v2582 = vpop.permute.xlu0 %2581
  %2583 = vrot.lane.b32.xlu0 %v2051, 96
  %v2584 = vpop.permute.xlu0 %2583
  %2585 = vrot.lane.b32.xlu0 %v2052, 96
  %v2586 = vpop.permute.xlu0 %2585
  %2587 = vrot.lane.b32.xlu0 %v2053, 96
  %v2588 = vpop.permute.xlu0 %2587
  %2589 = vrot.lane.b32.xlu0 %v2054, 96
  %v2590 = vpop.permute.xlu0 %2589
  %2591 = vrot.lane.b32.xlu0 %v2055, 96
  %v2592 = vpop.permute.xlu0 %2591
  %2593 = vrot.lane.b32.xlu0 %v2056, 96
  %v2594 = vpop.permute.xlu0 %2593
  %2595 = vrot.lane.b32.xlu0 %v2057, 96
  %v2596 = vpop.permute.xlu0 %2595
  %2597 = vrot.lane.b32.xlu0 %v2058, 96
  %v2598 = vpop.permute.xlu0 %2597
  %2599 = vrot.lane.b32.xlu0 %v2059, 96
  %v2600 = vpop.permute.xlu0 %2599
  %2601 = vrot.lane.b32.xlu0 %v2060, 96
  %v2602 = vpop.permute.xlu0 %2601
  %2603 = vrot.lane.b32.xlu0 %v2061, 96
  %v2604 = vpop.permute.xlu0 %2603
  %2605 = vrot.lane.b32.xlu0 %v2062, 96
  %v2606 = vpop.permute.xlu0 %2605
  %2607 = vrot.lane.b32.xlu0 %v2063, 96
  %v2608 = vpop.permute.xlu0 %2607
  %2609 = vrot.lane.b32.xlu0 %v2064, 96
  %v2610 = vpop.permute.xlu0 %2609
  %vm2632 = vcmask 261120
  %v2633 = vsel %vm2632, %v1813, %v2150
  %v2634 = vsel %vm2632, %v1814, %v2152
  %v2635 = vsel %vm2632, %v1815, %v2154
  %v2636 = vsel %vm2632, %v1816, %v2156
  %v2637 = vsel %vm2632, %v1817, %v2158
  %v2638 = vsel %vm2632, %v1818, %v2160
  %v2639 = vsel %vm2632, %v1819, %v2162
  %v2640 = vsel %vm2632, %v1820, %v2164
  %v2641 = vsel %vm2632, %v1821, %v2166
  %v2642 = vsel %vm2632, %v1822, %v2168
  %v2643 = vsel %vm2632, %v1823, %v2170
  %v2644 = vsel %vm2632, %v1824, %v2172
  %v2645 = vsel %vm2632, %v1825, %v2174
  %v2646 = vsel %vm2632, %v1826, %v2176
  %v2647 = vsel %vm2632, %v1827, %v2178
  %v2648 = vsel %vm2632, %v1828, %v2180
  %v2649 = vsel %vm2632, %v1829, %v2182
  %v2650 = vsel %vm2632, %v1830, %v2184
  %v2651 = vsel %vm2632, %v1831, %v2186
  %v2652 = vsel %vm2632, %v1832, %v2188
  %v2653 = vsel %vm2632, %v1833, %v2190
  %vm2654 = vcmask 523264
  %v2655 = vsel %vm2654, %v2633, %v2234
  %v2656 = vsel %vm2654, %v2634, %v2236
  %v2657 = vsel %vm2654, %v2635, %v2238
  %v2658 = vsel %vm2654, %v2636, %v2240
  %v2659 = vsel %vm2654, %v2637, %v2242
  %v2660 = vsel %vm2654, %v2638, %v2244
  %v2661 = vsel %vm2654, %v2639, %v2246
  %v2662 = vsel %vm2654, %v2640, %v2248
  %v2663 = vsel %vm2654, %v2641, %v2250
  %v2664 = vsel %vm2654, %v2642, %v2252
  %v2665 = vsel %vm2654, %v2643, %v2254
  %v2666 = vsel %vm2654, %v2644, %v2256
  %v2667 = vsel %vm2654, %v2645, %v2258
  %v2668 = vsel %vm2654, %v2646, %v2260
  %v2669 = vsel %vm2654, %v2647, %v2262
  %v2670 = vsel %vm2654, %v2648, %v2264
  %v2671 = vsel %vm2654, %v2649, %v2266
  %v2672 = vsel %vm2654, %v2650, %v2268
  %v2673 = vsel %vm2654, %v2651, %v2270
  %v2674 = vsel %vm2654, %v2652, %v2272
  %v2675 = vsel %vm2654, %v2653, %v2274
  %vm2676 = vcmask 785408
  %v2677 = vsel %vm2676, %v2655, %v2318
  %v2678 = vsel %vm2676, %v2656, %v2320
  %v2679 = vsel %vm2676, %v2657, %v2322
  %v2680 = vsel %vm2676, %v2658, %v2324
  %v2681 = vsel %vm2676, %v2659, %v2326
  %v2682 = vsel %vm2676, %v2660, %v2328
  %v2683 = vsel %vm2676, %v2661, %v2330
  %v2684 = vsel %vm2676, %v2662, %v2332
  %v2685 = vsel %vm2676, %v2663, %v2334
  %v2686 = vsel %vm2676, %v2664, %v2336
  %v2687 = vsel %vm2676, %v2665, %v2338
  %v2688 = vsel %vm2676, %v2666, %v2340
  %v2689 = vsel %vm2676, %v2667, %v2342
  %v2690 = vsel %vm2676, %v2668, %v2344
  %v2691 = vsel %vm2676, %v2669, %v2346
  %v2692 = vsel %vm2676, %v2670, %v2348
  %v2693 = vsel %vm2676, %v2671, %v2350
  %v2694 = vsel %vm2676, %v2672, %v2352
  %v2695 = vsel %vm2676, %v2673, %v2354
  %v2696 = vsel %vm2676, %v2674, %v2356
  %v2697 = vsel %vm2676, %v2675, %v2358
  %v2698 = vsel %vm2632, %v1939, %v2402
  %v2699 = vsel %vm2632, %v1940, %v2404
  %v2700 = vsel %vm2632, %v1941, %v2406
  %v2701 = vsel %vm2632, %v1942, %v2408
  %v2702 = vsel %vm2632, %v1943, %v2410
  %v2703 = vsel %vm2632, %v1944, %v2412
  %v2704 = vsel %vm2632, %v1945, %v2414
  %v2705 = vsel %vm2632, %v1946, %v2416
  %v2706 = vsel %vm2632, %v1947, %v2418
  %v2707 = vsel %vm2632, %v1948, %v2420
  %v2708 = vsel %vm2632, %v1949, %v2422
  %v2709 = vsel %vm2632, %v1950, %v2424
  %v2710 = vsel %vm2632, %v1951, %v2426
  %v2711 = vsel %vm2632, %v1952, %v2428
  %v2712 = vsel %vm2632, %v1953, %v2430
  %v2713 = vsel %vm2632, %v1954, %v2432
  %v2714 = vsel %vm2632, %v1955, %v2434
  %v2715 = vsel %vm2632, %v1956, %v2436
  %v2716 = vsel %vm2632, %v1957, %v2438
  %v2717 = vsel %vm2632, %v1958, %v2440
  %v2718 = vsel %vm2632, %v1959, %v2442
  %v2719 = vsel %vm2654, %v2698, %v2486
  %v2720 = vsel %vm2654, %v2699, %v2488
  %v2721 = vsel %vm2654, %v2700, %v2490
  %v2722 = vsel %vm2654, %v2701, %v2492
  %v2723 = vsel %vm2654, %v2702, %v2494
  %v2724 = vsel %vm2654, %v2703, %v2496
  %v2725 = vsel %vm2654, %v2704, %v2498
  %v2726 = vsel %vm2654, %v2705, %v2500
  %v2727 = vsel %vm2654, %v2706, %v2502
  %v2728 = vsel %vm2654, %v2707, %v2504
  %v2729 = vsel %vm2654, %v2708, %v2506
  %v2730 = vsel %vm2654, %v2709, %v2508
  %v2731 = vsel %vm2654, %v2710, %v2510
  %v2732 = vsel %vm2654, %v2711, %v2512
  %v2733 = vsel %vm2654, %v2712, %v2514
  %v2734 = vsel %vm2654, %v2713, %v2516
  %v2735 = vsel %vm2654, %v2714, %v2518
  %v2736 = vsel %vm2654, %v2715, %v2520
  %v2737 = vsel %vm2654, %v2716, %v2522
  %v2738 = vsel %vm2654, %v2717, %v2524
  %v2739 = vsel %vm2654, %v2718, %v2526
  %v2740 = vsel %vm2676, %v2719, %v2570
  %v2741 = vsel %vm2676, %v2720, %v2572
  %v2742 = vsel %vm2676, %v2721, %v2574
  %v2743 = vsel %vm2676, %v2722, %v2576
  %v2744 = vsel %vm2676, %v2723, %v2578
  %v2745 = vsel %vm2676, %v2724, %v2580
  %v2746 = vsel %vm2676, %v2725, %v2582
  %v2747 = vsel %vm2676, %v2726, %v2584
  %v2748 = vsel %vm2676, %v2727, %v2586
  %v2749 = vsel %vm2676, %v2728, %v2588
  %v2750 = vsel %vm2676, %v2729, %v2590
  %v2751 = vsel %vm2676, %v2730, %v2592
  %v2752 = vsel %vm2676, %v2731, %v2594
  %v2753 = vsel %vm2676, %v2732, %v2596
  %v2754 = vsel %vm2676, %v2733, %v2598
  %v2755 = vsel %vm2676, %v2734, %v2600
  %v2756 = vsel %vm2676, %v2735, %v2602
  %v2757 = vsel %vm2676, %v2736, %v2604
  %v2758 = vsel %vm2676, %v2737, %v2606
  %v2759 = vsel %vm2676, %v2738, %v2608
  %v2760 = vsel %vm2676, %v2739, %v2610
  %v2761 = vld [vmem:[%s6] sm:$0xff]
  %v2762 = vld [vmem:[%s6 + $0x8] sm:$0xff]
  %v2763 = vld [vmem:[%s6 + $0x10] sm:$0xff]
  %v2764 = vld [vmem:[%s6 + $0x18] sm:$0xff]
  %v2765 = vld [vmem:[%s6 + $0x20] sm:$0xff]
  %v2766 = vld [vmem:[%s6 + $0x28] sm:$0xff]
  %v2767 = vld [vmem:[%s6 + $0x30] sm:$0xff]
  %v2768 = vld [vmem:[%s6 + $0x38] sm:$0xff]
  %v2769 = vld [vmem:[%s6 + $0x40] sm:$0xff]
  %v2770 = vld [vmem:[%s6 + $0x48] sm:$0xff]
  %v2771 = vld [vmem:[%s6 + $0x50] sm:$0xff]
  %v2772 = vld [vmem:[%s6 + $0x58] sm:$0xff]
  %v2773 = vld [vmem:[%s6 + $0x60] sm:$0xff]
  %v2774 = vld [vmem:[%s6 + $0x68] sm:$0xff]
  %v2775 = vld [vmem:[%s6 + $0x70] sm:$0xff]
  %v2776 = vld [vmem:[%s6 + $0x78] sm:$0xff]
  %v2777 = vld [vmem:[%s6 + $0x80] sm:$0xff]
  %v2778 = vld [vmem:[%s6 + $0x88] sm:$0xff]
  %v2779 = vld [vmem:[%s6 + $0x90] sm:$0xff]
  %v2780 = vld [vmem:[%s6 + $0x98] sm:$0xff]
  %v2781 = vld [vmem:[%s6 + $0xa0] sm:$0xff]
  %v2782 = vld [vmem:[%s6 + $0xa8] sm:$0xff]
  %v2783 = vld [vmem:[%s6 + $0xb0] sm:$0xff]
  %v2784 = vld [vmem:[%s6 + $0xb8] sm:$0xff]
  %v2785 = vld [vmem:[%s6 + $0xc0] sm:$0xff]
  %v2786 = vld [vmem:[%s6 + $0xc8] sm:$0xff]
  %v2787 = vld [vmem:[%s6 + $0xd0] sm:$0xff]
  %v2788 = vld [vmem:[%s6 + $0xd8] sm:$0xff]
  %v2789 = vld [vmem:[%s6 + $0xe0] sm:$0xff]
  %v2790 = vld [vmem:[%s6 + $0xe8] sm:$0xff]
  %v2791 = vld [vmem:[%s6 + $0xf0] sm:$0xff]
  %v2792 = vld [vmem:[%s6 + $0xf8] sm:$0xff]
  %v2793 = vld [vmem:[%s6 + $0x100] sm:$0xff]
  %v2794 = vld [vmem:[%s6 + $0x108] sm:$0xff]
  %v2795 = vld [vmem:[%s6 + $0x110] sm:$0xff]
  %v2796 = vld [vmem:[%s6 + $0x118] sm:$0xff]
  %v2797 = vlaneseq
  %v2798 = vshrl.u32 %v2797, 7
  %v2799 = vsub.s32 1, %v2798
  %v2800 = vrot.slane %v38, %v2799
  %v2802 = vsel %vm2632, %v2107, 0
  %v2805 = vsel %vm2632, %v2108, 0
  %v2808 = vsel %vm2632, %v2109, 0
  %v2811 = vsel %vm2632, %v2110, 0
  %v2814 = vsel %vm2632, %v2111, 0
  %v2817 = vsel %vm2632, %v2112, 0
  %v2820 = vsel %vm2632, %v2113, 0
  %v2823 = vsel %vm2632, %v2114, 0
  %v2826 = vsel %vm2632, %v2115, 0
  %v2829 = vsel %vm2632, %v2116, 0
  %v2832 = vsel %vm2632, %v2117, 0
  %v2835 = vsel %vm2632, %v2118, 0
  %v2838 = vsel %vm2632, %v2119, 0
  %v2841 = vsel %vm2632, %v2120, 0
  %v2844 = vsel %vm2632, %v2121, 0
  %v2847 = vsel %vm2632, %v2122, 0
  %v2850 = vsel %vm2632, %v2123, 0
  %v2853 = vsel %vm2632, %v2124, 0
  %v2856 = vsel %vm2632, %v2125, 0
  %v2859 = vsel %vm2632, %v2126, 0
  %v2862 = vsel %vm2632, %v2127, 0
  %2864 = vmatprep.subr.mxu0 0.0
  %2865 = vmatpush1.msra.mxu0 %v2761
  %2866 = vmatprep.subr.mxu0 0.0
  %2867 = vmatpush1.msra.mxu0 %v2762
  %2868 = vmatprep.subr.mxu0 0.0
  %2869 = vmatpush1.msra.mxu0 %v2763
  %2870 = vmatprep.subr.mxu0 0.0
  %2871 = vmatpush1.msra.mxu0 %v2764
  %2872 = vmatprep.subr.mxu0 0.0
  %2873 = vmatpush1.msra.mxu0 %v2765
  %2874 = vmatprep.subr.mxu0 0.0
  %2875 = vmatpush1.msra.mxu0 %v2766
  %2876 = vmatprep.subr.mxu0 0.0
  %2877 = vmatpush1.msra.mxu0 %v2767
  %2878 = vmatprep.subr.mxu0 0.0
  %2879 = vmatpush1.msra.mxu0 %v2768
  %2880 = vmatprep.subr.mxu0 0.0
  %2881 = vmatpush1.msra.mxu0 %v2769
  %2882 = vmatprep.subr.mxu0 0.0
  %2883 = vmatpush1.msra.mxu0 %v2770
  %2884 = vmatprep.subr.mxu0 0.0
  %2885 = vmatpush1.msra.mxu0 %v2771
  %2886 = vmatprep.subr.mxu0 0.0
  %2887 = vmatpush1.msra.mxu0 %v2772
  %2888 = vmatprep.subr.mxu0 0.0
  %2889 = vmatpush1.msra.mxu0 %v2773
  %2890 = vmatprep.subr.mxu0 0.0
  %2891 = vmatpush1.msra.mxu0 %v2774
  %2892 = vmatprep.subr.mxu0 0.0
  %2893 = vmatpush1.msra.mxu0 %v2775
  %2894 = vmatprep.subr.mxu0 0.0
  %2895 = vmatpush1.msra.mxu0 %v2776
  %2896 = vmatprep.subr.mxu0 0.0
  %2897 = vmatpush1.msra.mxu0 %v2777
  %2898 = vmatprep.subr.mxu0 0.0
  %2899 = vmatpush1.msra.mxu0 %v2778
  %2900 = vmatprep.subr.mxu0 0.0
  %2901 = vmatpush1.msra.mxu0 %v2779
  %2902 = vmatprep.subr.mxu0 0.0
  %2903 = vmatpush1.msra.mxu0 %v2780
  %2904 = vmatprep.subr.mxu0 0.0
  %2905 = vmatpush1.msra.mxu0 %v2781
  %2906 = vmatprep.subr.mxu0 0.0
  %2907 = vmatpush1.msra.mxu0 %v2782
  %2908 = vmatprep.subr.mxu0 0.0
  %2909 = vmatpush1.msra.mxu0 %v2783
  %2910 = vmatprep.subr.mxu0 0.0
  %2911 = vmatpush1.msra.mxu0 %v2784
  %2912 = vmatprep.subr.mxu0 0.0
  %2913 = vmatpush1.msra.mxu0 %v2785
  %2914 = vmatprep.subr.mxu0 0.0
  %2915 = vmatpush1.msra.mxu0 %v2786
  %2916 = vmatprep.subr.mxu0 0.0
  %2917 = vmatpush1.msra.mxu0 %v2787
  %2918 = vmatprep.subr.mxu0 0.0
  %2919 = vmatpush1.msra.mxu0 %v2788
  %2920 = vmatprep.subr.mxu0 0.0
  %2921 = vmatpush1.msra.mxu0 %v2789
  %2922 = vmatprep.subr.mxu0 0.0
  %2923 = vmatpush1.msra.mxu0 %v2790
  %2924 = vmatprep.subr.mxu0 0.0
  %2925 = vmatpush1.msra.mxu0 %v2791
  %2926 = vmatprep.subr.mxu0 0.0
  %2927 = vmatpush1.msra.mxu0 %v2792
  %2928 = vmatprep.mubr.f32.mxu0 %v2740
  %2929 = vmatmul.mubr.f32.gmra.mrb[0].mxu0 %v2677
  %v2930 = vpop.f32.mrb[0].mxu0
  %v2931 = vadd.f32 %v2800, %v2930
  %v2932 = vpop.f32.mrb[0].mxu0
  %2933 = vmatprep.mubr.f32.mxu0 %v2741
  %2934 = vmatmul.mubr.f32.gmra.mrb[0].mxu0 %v2678
  %v2935 = vpop.f32.mrb[0].mxu0
  %v2936 = vadd.f32 %v2800, %v2935
  %v2937 = vpop.f32.mrb[0].mxu0
  %2938 = vmatprep.mubr.f32.mxu0 %v2742
  %2939 = vmatmul.mubr.f32.gmra.mrb[0].mxu0 %v2679
  %v2940 = vpop.f32.mrb[0].mxu0
  %v2941 = vadd.f32 %v2800, %v2940
  %v2942 = vpop.f32.mrb[0].mxu0
  %2943 = vmatprep.mubr.f32.mxu0 %v2743
  %2944 = vmatmul.mubr.f32.gmra.mrb[0].mxu0 %v2680
  %v2945 = vpop.f32.mrb[0].mxu0
  %v2946 = vadd.f32 %v2800, %v2945
  %v2947 = vpop.f32.mrb[0].mxu0
  %2948 = vmatprep.mubr.f32.mxu0 %v2744
  %2949 = vmatmul.mubr.f32.gmra.mrb[0].mxu0 %v2681
  %v2950 = vpop.f32.mrb[0].mxu0
  %v2951 = vadd.f32 %v2800, %v2950
  %v2952 = vpop.f32.mrb[0].mxu0
  %2953 = vmatprep.mubr.f32.mxu0 %v2745
  %2954 = vmatmul.mubr.f32.gmra.mrb[0].mxu0 %v2682
  %v2955 = vpop.f32.mrb[0].mxu0
  %v2956 = vadd.f32 %v2800, %v2955
  %v2957 = vpop.f32.mrb[0].mxu0
  %2958 = vmatprep.mubr.f32.mxu0 %v2746
  %2959 = vmatmul.mubr.f32.gmra.mrb[0].mxu0 %v2683
  %v2960 = vpop.f32.mrb[0].mxu0
  %v2961 = vadd.f32 %v2800, %v2960
  %v2962 = vpop.f32.mrb[0].mxu0
  %2963 = vmatprep.mubr.f32.mxu0 %v2747
  %2964 = vmatmul.mubr.f32.gmra.mrb[0].mxu0 %v2684
  %v2965 = vpop.f32.mrb[0].mxu0
  %v2966 = vadd.f32 %v2800, %v2965
  %v2967 = vpop.f32.mrb[0].mxu0
  %2968 = vmatprep.mubr.f32.mxu0 %v2748
  %2969 = vmatmul.mubr.f32.gmra.mrb[0].mxu0 %v2685
  %v2970 = vpop.f32.mrb[0].mxu0
  %v2971 = vadd.f32 %v2800, %v2970
  %v2972 = vpop.f32.mrb[0].mxu0
  %2973 = vmatprep.mubr.f32.mxu0 %v2749
  %2974 = vmatmul.mubr.f32.gmra.mrb[0].mxu0 %v2686
  %v2975 = vpop.f32.mrb[0].mxu0
  %v2976 = vadd.f32 %v2800, %v2975
  %v2977 = vpop.f32.mrb[0].mxu0
  %2978 = vmatprep.mubr.f32.mxu0 %v2750
  %2979 = vmatmul.mubr.f32.gmra.mrb[0].mxu0 %v2687
  %v2980 = vpop.f32.mrb[0].mxu0
  %v2981 = vadd.f32 %v2800, %v2980
  %v2982 = vpop.f32.mrb[0].mxu0
  %2983 = vmatprep.mubr.f32.mxu0 %v2751
  %2984 = vmatmul.mubr.f32.gmra.mrb[0].mxu0 %v2688
  %v2985 = vpop.f32.mrb[0].mxu0
  %v2986 = vadd.f32 %v2800, %v2985
  %v2987 = vpop.f32.mrb[0].mxu0
  %2988 = vmatprep.mubr.f32.mxu0 %v2752
  %2989 = vmatmul.mubr.f32.gmra.mrb[0].mxu0 %v2689
  %v2990 = vpop.f32.mrb[0].mxu0
  %v2991 = vadd.f32 %v2800, %v2990
  %v2992 = vpop.f32.mrb[0].mxu0
  %2993 = vmatprep.mubr.f32.mxu0 %v2753
  %2994 = vmatmul.mubr.f32.gmra.mrb[0].mxu0 %v2690
  %v2995 = vpop.f32.mrb[0].mxu0
  %v2996 = vadd.f32 %v2800, %v2995
  %v2997 = vpop.f32.mrb[0].mxu0
  %2998 = vmatprep.mubr.f32.mxu0 %v2754
  %2999 = vmatmul.mubr.f32.gmra.mrb[0].mxu0 %v2691
  %v3000 = vpop.f32.mrb[0].mxu0
  %v3001 = vadd.f32 %v2800, %v3000
  %v3002 = vpop.f32.mrb[0].mxu0
  %3003 = vmatprep.mubr.f32.mxu0 %v2755
  %3004 = vmatmul.mubr.f32.gmra.mrb[0].mxu0 %v2692
  %v3005 = vpop.f32.mrb[0].mxu0
  %v3006 = vadd.f32 %v2800, %v3005
  %v3007 = vpop.f32.mrb[0].mxu0
  %3008 = vmatprep.mubr.f32.mxu0 %v2756
  %3009 = vmatmul.mubr.f32.gmra.mrb[0].mxu0 %v2693
  %v3010 = vpop.f32.mrb[0].mxu0
  %v3011 = vadd.f32 %v2800, %v3010
  %v3012 = vpop.f32.mrb[0].mxu0
  %3013 = vmatprep.mubr.f32.mxu0 %v2757
  %3014 = vmatmul.mubr.f32.gmra.mrb[0].mxu0 %v2694
  %v3015 = vpop.f32.mrb[0].mxu0
  %v3016 = vadd.f32 %v2800, %v3015
  %v3017 = vpop.f32.mrb[0].mxu0
  %3018 = vmatprep.mubr.f32.mxu0 %v2758
  %3019 = vmatmul.mubr.f32.gmra.mrb[0].mxu0 %v2695
  %v3020 = vpop.f32.mrb[0].mxu0
  %v3021 = vadd.f32 %v2800, %v3020
  %v3022 = vpop.f32.mrb[0].mxu0
  %3023 = vmatprep.mubr.f32.mxu0 %v2759
  %3024 = vmatmul.mubr.f32.gmra.mrb[0].mxu0 %v2696
  %v3025 = vpop.f32.mrb[0].mxu0
  %v3026 = vadd.f32 %v2800, %v3025
  %v3027 = vpop.f32.mrb[0].mxu0
  %3028 = vmatprep.mubr.f32.mxu0 %v2760
  %3029 = vmatmul.mubr.f32.gmra.mrb[0].mxu0 %v2697
  %v3030 = vpop.f32.mrb[0].mxu0
  %v3031 = vadd.f32 %v2800, %v3030
  %v3032 = vpop.f32.mrb[0].mxu0
  %3033 = vdwg.mxu0
  %3034 = vmatprep.subr.mxu0 0.0
  %3035 = vmatpush1.msra.mxu0 %v2793
  %3036 = vmatprep.subr.mxu0 0.0
  %3037 = vmatpush1.msra.mxu0 %v2794
  %3038 = vmatprep.subr.mxu0 0.0
  %3039 = vmatpush1.msra.mxu0 %v2795
  %3040 = vmatprep.subr.mxu0 0.0
  %3041 = vmatpush1.msra.mxu0 %v2796
  %3042 = vmatprep.subr.mxu0 0.0
  %3043 = vmatpush1.msra.mxu0 0.0
  %3044 = vmatprep.subr.mxu0 0.0
  %3045 = vmatpush1.msra.mxu0 0.0
  %3046 = vmatprep.subr.mxu0 0.0
  %3047 = vmatpush1.msra.mxu0 0.0
  %3048 = vmatprep.subr.mxu0 0.0
  %3049 = vmatpush1.msra.mxu0 0.0
  %3050 = vmatprep.subr.mxu0 0.0
  %3051 = vmatpush1.msra.mxu0 0.0
  %3052 = vmatprep.subr.mxu0 0.0
  %3053 = vmatpush1.msra.mxu0 0.0
  %3054 = vmatprep.subr.mxu0 0.0
  %3055 = vmatpush1.msra.mxu0 0.0
  %3056 = vmatprep.subr.mxu0 0.0
  %3057 = vmatpush1.msra.mxu0 0.0
  %3058 = vmatprep.subr.mxu0 0.0
  %3059 = vmatpush1.msra.mxu0 0.0
  %3060 = vmatprep.subr.mxu0 0.0
  %3061 = vmatpush1.msra.mxu0 0.0
  %3062 = vmatprep.subr.mxu0 0.0
  %3063 = vmatpush1.msra.mxu0 0.0
  %3064 = vmatprep.subr.mxu0 0.0
  %3065 = vmatpush1.msra.mxu0 0.0
  %3066 = vmatprep.subr.mxu0 0.0
  %3067 = vmatpush1.msra.mxu0 0.0
  %3068 = vmatprep.subr.mxu0 0.0
  %3069 = vmatpush1.msra.mxu0 0.0
  %3070 = vmatprep.subr.mxu0 0.0
  %3071 = vmatpush1.msra.mxu0 0.0
  %3072 = vmatprep.subr.mxu0 0.0
  %3073 = vmatpush1.msra.mxu0 0.0
  %3074 = vmatprep.subr.mxu0 0.0
  %3075 = vmatpush1.msra.mxu0 0.0
  %3076 = vmatprep.subr.mxu0 0.0
  %3077 = vmatpush1.msra.mxu0 0.0
  %3078 = vmatprep.subr.mxu0 0.0
  %3079 = vmatpush1.msra.mxu0 0.0
  %3080 = vmatprep.subr.mxu0 0.0
  %3081 = vmatpush1.msra.mxu0 0.0
  %3082 = vmatprep.subr.mxu0 0.0
  %3083 = vmatpush1.msra.mxu0 0.0
  %3084 = vmatprep.subr.mxu0 0.0
  %3085 = vmatpush1.msra.mxu0 0.0
  %3086 = vmatprep.subr.mxu0 0.0
  %3087 = vmatpush1.msra.mxu0 0.0
  %3088 = vmatprep.subr.mxu0 0.0
  %3089 = vmatpush1.msra.mxu0 0.0
  %3090 = vmatprep.subr.mxu0 0.0
  %3091 = vmatpush1.msra.mxu0 0.0
  %3092 = vmatprep.subr.mxu0 0.0
  %3093 = vmatpush1.msra.mxu0 0.0
  %3094 = vmatprep.subr.mxu0 0.0
  %3095 = vmatpush1.msra.mxu0 0.0
  %3096 = vmatprep.subr.mxu0 0.0
  %3097 = vmatpush1.msra.mxu0 0.0
  %3098 = vmatprep.mubr.f32.mxu0 0.0
  %3099 = vmatmul.mubr.f32.gmra.mrb[0].mxu0 %v2802
  %v3100 = vpop.f32.mrb[0].mxu0
  %v3101 = vadd.f32 %v2931, %v3100
  %v3102 = vpop.f32.mrb[0].mxu0
  %3103 = vmatprep.mubr.f32.mxu0 0.0
  %3104 = vmatmul.mubr.f32.gmra.mrb[0].mxu0 %v2805
  %v3105 = vpop.f32.mrb[0].mxu0
  %v3106 = vadd.f32 %v2936, %v3105
  %v3107 = vpop.f32.mrb[0].mxu0
  %3108 = vmatprep.mubr.f32.mxu0 0.0
  %3109 = vmatmul.mubr.f32.gmra.mrb[0].mxu0 %v2808
  %v3110 = vpop.f32.mrb[0].mxu0
  %v3111 = vadd.f32 %v2941, %v3110
  %v3112 = vpop.f32.mrb[0].mxu0
  %3113 = vmatprep.mubr.f32.mxu0 0.0
  %3114 = vmatmul.mubr.f32.gmra.mrb[0].mxu0 %v2811
  %v3115 = vpop.f32.mrb[0].mxu0
  %v3116 = vadd.f32 %v2946, %v3115
  %v3117 = vpop.f32.mrb[0].mxu0
  %3118 = vmatprep.mubr.f32.mxu0 0.0
  %3119 = vmatmul.mubr.f32.gmra.mrb[0].mxu0 %v2814
  %v3120 = vpop.f32.mrb[0].mxu0
  %v3121 = vadd.f32 %v2951, %v3120
  %v3122 = vpop.f32.mrb[0].mxu0
  %3123 = vmatprep.mubr.f32.mxu0 0.0
  %3124 = vmatmul.mubr.f32.gmra.mrb[0].mxu0 %v2817
  %v3125 = vpop.f32.mrb[0].mxu0
  %v3126 = vadd.f32 %v2956, %v3125
  %v3127 = vpop.f32.mrb[0].mxu0
  %3128 = vmatprep.mubr.f32.mxu0 0.0
  %3129 = vmatmul.mubr.f32.gmra.mrb[0].mxu0 %v2820
  %v3130 = vpop.f32.mrb[0].mxu0
  %v3131 = vadd.f32 %v2961, %v3130
  %v3132 = vpop.f32.mrb[0].mxu0
  %3133 = vmatprep.mubr.f32.mxu0 0.0
  %3134 = vmatmul.mubr.f32.gmra.mrb[0].mxu0 %v2823
  %v3135 = vpop.f32.mrb[0].mxu0
  %v3136 = vadd.f32 %v2966, %v3135
  %v3137 = vpop.f32.mrb[0].mxu0
  %3138 = vmatprep.mubr.f32.mxu0 0.0
  %3139 = vmatmul.mubr.f32.gmra.mrb[0].mxu0 %v2826
  %v3140 = vpop.f32.mrb[0].mxu0
  %v3141 = vadd.f32 %v2971, %v3140
  %v3142 = vpop.f32.mrb[0].mxu0
  %3143 = vmatprep.mubr.f32.mxu0 0.0
  %3144 = vmatmul.mubr.f32.gmra.mrb[0].mxu0 %v2829
  %v3145 = vpop.f32.mrb[0].mxu0
  %v3146 = vadd.f32 %v2976, %v3145
  %v3147 = vpop.f32.mrb[0].mxu0
  %3148 = vmatprep.mubr.f32.mxu0 0.0
  %3149 = vmatmul.mubr.f32.gmra.mrb[0].mxu0 %v2832
  %v3150 = vpop.f32.mrb[0].mxu0
  %v3151 = vadd.f32 %v2981, %v3150
  %v3152 = vpop.f32.mrb[0].mxu0
  %3153 = vmatprep.mubr.f32.mxu0 0.0
  %3154 = vmatmul.mubr.f32.gmra.mrb[0].mxu0 %v2835
  %v3155 = vpop.f32.mrb[0].mxu0
  %v3156 = vadd.f32 %v2986, %v3155
  %v3157 = vpop.f32.mrb[0].mxu0
  %3158 = vmatprep.mubr.f32.mxu0 0.0
  %3159 = vmatmul.mubr.f32.gmra.mrb[0].mxu0 %v2838
  %v3160 = vpop.f32.mrb[0].mxu0
  %v3161 = vadd.f32 %v2991, %v3160
  %v3162 = vpop.f32.mrb[0].mxu0
  %3163 = vmatprep.mubr.f32.mxu0 0.0
  %3164 = vmatmul.mubr.f32.gmra.mrb[0].mxu0 %v2841
  %v3165 = vpop.f32.mrb[0].mxu0
  %v3166 = vadd.f32 %v2996, %v3165
  %v3167 = vpop.f32.mrb[0].mxu0
  %3168 = vmatprep.mubr.f32.mxu0 0.0
  %3169 = vmatmul.mubr.f32.gmra.mrb[0].mxu0 %v2844
  %v3170 = vpop.f32.mrb[0].mxu0
  %v3171 = vadd.f32 %v3001, %v3170
  %v3172 = vpop.f32.mrb[0].mxu0
  %3173 = vmatprep.mubr.f32.mxu0 0.0
  %3174 = vmatmul.mubr.f32.gmra.mrb[0].mxu0 %v2847
  %v3175 = vpop.f32.mrb[0].mxu0
  %v3176 = vadd.f32 %v3006, %v3175
  %v3177 = vpop.f32.mrb[0].mxu0
  %3178 = vmatprep.mubr.f32.mxu0 0.0
  %3179 = vmatmul.mubr.f32.gmra.mrb[0].mxu0 %v2850
  %v3180 = vpop.f32.mrb[0].mxu0
  %v3181 = vadd.f32 %v3011, %v3180
  %v3182 = vpop.f32.mrb[0].mxu0
  %3183 = vmatprep.mubr.f32.mxu0 0.0
  %3184 = vmatmul.mubr.f32.gmra.mrb[0].mxu0 %v2853
  %v3185 = vpop.f32.mrb[0].mxu0
  %v3186 = vadd.f32 %v3016, %v3185
  %v3187 = vpop.f32.mrb[0].mxu0
  %3188 = vmatprep.mubr.f32.mxu0 0.0
  %3189 = vmatmul.mubr.f32.gmra.mrb[0].mxu0 %v2856
  %v3190 = vpop.f32.mrb[0].mxu0
  %v3191 = vadd.f32 %v3021, %v3190
  %v3192 = vpop.f32.mrb[0].mxu0
  %3193 = vmatprep.mubr.f32.mxu0 0.0
  %3194 = vmatmul.mubr.f32.gmra.mrb[0].mxu0 %v2859
  %v3195 = vpop.f32.mrb[0].mxu0
  %v3196 = vadd.f32 %v3026, %v3195
  %v3197 = vpop.f32.mrb[0].mxu0
  %3198 = vmatprep.mubr.f32.mxu0 0.0
  %3199 = vmatmul.mubr.f32.gmra.mrb[0].mxu0 %v2862
  %v3200 = vpop.f32.mrb[0].mxu0
  %v3201 = vadd.f32 %v3031, %v3200
  %v3202 = vpop.f32.mrb[0].mxu0
  %3203 = vdwg.mxu0
  %vm3204 = vcmp.gt.f32.partialorder %v3101, 0.0
  %vm3205 = vcmp.gt.f32.partialorder %v3106, 0.0
  %vm3206 = vcmp.gt.f32.partialorder %v3111, 0.0
  %vm3207 = vcmp.gt.f32.partialorder %v3116, 0.0
  %vm3208 = vcmp.gt.f32.partialorder %v3121, 0.0
  %vm3209 = vcmp.gt.f32.partialorder %v3126, 0.0
  %vm3210 = vcmp.gt.f32.partialorder %v3131, 0.0
  %vm3211 = vcmp.gt.f32.partialorder %v3136, 0.0
  %vm3212 = vcmp.gt.f32.partialorder %v3141, 0.0
  %vm3213 = vcmp.gt.f32.partialorder %v3146, 0.0
  %vm3214 = vcmp.gt.f32.partialorder %v3151, 0.0
  %vm3215 = vcmp.gt.f32.partialorder %v3156, 0.0
  %vm3216 = vcmp.gt.f32.partialorder %v3161, 0.0
  %vm3217 = vcmp.gt.f32.partialorder %v3166, 0.0
  %vm3218 = vcmp.gt.f32.partialorder %v3171, 0.0
  %vm3219 = vcmp.gt.f32.partialorder %v3176, 0.0
  %vm3220 = vcmp.gt.f32.partialorder %v3181, 0.0
  %vm3221 = vcmp.gt.f32.partialorder %v3186, 0.0
  %vm3222 = vcmp.gt.f32.partialorder %v3191, 0.0
  %vm3223 = vcmp.gt.f32.partialorder %v3196, 0.0
  %vm3224 = vcmp.gt.f32.partialorder %v3201, 0.0
  %v3225 = vmul.f32 %v3101, 0.01
  %v3226 = vmul.f32 %v3106, 0.01
  %v3227 = vmul.f32 %v3111, 0.01
  %v3228 = vmul.f32 %v3116, 0.01
  %v3229 = vmul.f32 %v3121, 0.01
  %v3230 = vmul.f32 %v3126, 0.01
  %v3231 = vmul.f32 %v3131, 0.01
  %v3232 = vmul.f32 %v3136, 0.01
  %v3233 = vmul.f32 %v3141, 0.01
  %v3234 = vmul.f32 %v3146, 0.01
  %v3235 = vmul.f32 %v3151, 0.01
  %v3236 = vmul.f32 %v3156, 0.01
  %v3237 = vmul.f32 %v3161, 0.01
  %v3238 = vmul.f32 %v3166, 0.01
  %v3239 = vmul.f32 %v3171, 0.01
  %v3240 = vmul.f32 %v3176, 0.01
  %v3241 = vmul.f32 %v3181, 0.01
  %v3242 = vmul.f32 %v3186, 0.01
  %v3243 = vmul.f32 %v3191, 0.01
  %v3244 = vmul.f32 %v3196, 0.01
  %v3245 = vmul.f32 %v3201, 0.01
  %v3246 = vsel %vm3204, %v3101, %v3225
  %v3247 = vsel %vm3205, %v3106, %v3226
  %v3248 = vsel %vm3206, %v3111, %v3227
  %v3249 = vsel %vm3207, %v3116, %v3228
  %v3250 = vsel %vm3208, %v3121, %v3229
  %v3251 = vsel %vm3209, %v3126, %v3230
  %v3252 = vsel %vm3210, %v3131, %v3231
  %v3253 = vsel %vm3211, %v3136, %v3232
  %v3254 = vsel %vm3212, %v3141, %v3233
  %v3255 = vsel %vm3213, %v3146, %v3234
  %v3256 = vsel %vm3214, %v3151, %v3235
  %v3257 = vsel %vm3215, %v3156, %v3236
  %v3258 = vsel %vm3216, %v3161, %v3237
  %v3259 = vsel %vm3217, %v3166, %v3238
  %v3260 = vsel %vm3218, %v3171, %v3239
  %v3261 = vsel %vm3219, %v3176, %v3240
  %v3262 = vsel %vm3220, %v3181, %v3241
  %v3263 = vsel %vm3221, %v3186, %v3242
  %v3264 = vsel %vm3222, %v3191, %v3243
  %v3265 = vsel %vm3223, %v3196, %v3244
  %v3266 = vsel %vm3224, %v3201, %v3245
  %3288 = vrot.lane.b32.xlu0 %v1750, 32
  %v3289 = vpop.permute.xlu0 %3288
  %3290 = vrot.lane.b32.xlu0 %v1751, 32
  %v3291 = vpop.permute.xlu0 %3290
  %3292 = vrot.lane.b32.xlu0 %v1752, 32
  %v3293 = vpop.permute.xlu0 %3292
  %3294 = vrot.lane.b32.xlu0 %v1753, 32
  %v3295 = vpop.permute.xlu0 %3294
  %3296 = vrot.lane.b32.xlu0 %v1754, 32
  %v3297 = vpop.permute.xlu0 %3296
  %3298 = vrot.lane.b32.xlu0 %v1755, 32
  %v3299 = vpop.permute.xlu0 %3298
  %3300 = vrot.lane.b32.xlu0 %v1756, 32
  %v3301 = vpop.permute.xlu0 %3300
  %3302 = vrot.lane.b32.xlu0 %v1757, 32
  %v3303 = vpop.permute.xlu0 %3302
  %3304 = vrot.lane.b32.xlu0 %v1758, 32
  %v3305 = vpop.permute.xlu0 %3304
  %3306 = vrot.lane.b32.xlu0 %v1759, 32
  %v3307 = vpop.permute.xlu0 %3306
  %3308 = vrot.lane.b32.xlu0 %v1760, 32
  %v3309 = vpop.permute.xlu0 %3308
  %3310 = vrot.lane.b32.xlu0 %v1761, 32
  %v3311 = vpop.permute.xlu0 %3310
  %3312 = vrot.lane.b32.xlu0 %v1762, 32
  %v3313 = vpop.permute.xlu0 %3312
  %3314 = vrot.lane.b32.xlu0 %v1763, 32
  %v3315 = vpop.permute.xlu0 %3314
  %3316 = vrot.lane.b32.xlu0 %v1764, 32
  %v3317 = vpop.permute.xlu0 %3316
  %3318 = vrot.lane.b32.xlu0 %v1765, 32
  %v3319 = vpop.permute.xlu0 %3318
  %3320 = vrot.lane.b32.xlu0 %v1766, 32
  %v3321 = vpop.permute.xlu0 %3320
  %3322 = vrot.lane.b32.xlu0 %v1767, 32
  %v3323 = vpop.permute.xlu0 %3322
  %3324 = vrot.lane.b32.xlu0 %v1768, 32
  %v3325 = vpop.permute.xlu0 %3324
  %3326 = vrot.lane.b32.xlu0 %v1769, 32
  %v3327 = vpop.permute.xlu0 %3326
  %3328 = vrot.lane.b32.xlu0 %v1770, 32
  %v3329 = vpop.permute.xlu0 %3328
  %v3351 = vsel %vm2632, %v3246, %v3289
  %v3352 = vsel %vm2632, %v3247, %v3291
  %v3353 = vsel %vm2632, %v3248, %v3293
  %v3354 = vsel %vm2632, %v3249, %v3295
  %v3355 = vsel %vm2632, %v3250, %v3297
  %v3356 = vsel %vm2632, %v3251, %v3299
  %v3357 = vsel %vm2632, %v3252, %v3301
  %v3358 = vsel %vm2632, %v3253, %v3303
  %v3359 = vsel %vm2632, %v3254, %v3305
  %v3360 = vsel %vm2632, %v3255, %v3307
  %v3361 = vsel %vm2632, %v3256, %v3309
  %v3362 = vsel %vm2632, %v3257, %v3311
  %v3363 = vsel %vm2632, %v3258, %v3313
  %v3364 = vsel %vm2632, %v3259, %v3315
  %v3365 = vsel %vm2632, %v3260, %v3317
  %v3366 = vsel %vm2632, %v3261, %v3319
  %v3367 = vsel %vm2632, %v3262, %v3321
  %v3368 = vsel %vm2632, %v3263, %v3323
  %v3369 = vsel %vm2632, %v3264, %v3325
  %v3370 = vsel %vm2632, %v3265, %v3327
  %v3371 = vsel %vm2632, %v3266, %v3329
  %v3372 = vld [vmem:[%s4] sm:$0xff]
  %v3373 = vld [vmem:[%s4 + $0x8] sm:$0xff]
  %v3374 = vld [vmem:[%s4 + $0x10] sm:$0xff]
  %v3375 = vld [vmem:[%s4 + $0x18] sm:$0xff]
  %v3376 = vld [vmem:[%s4 + $0x20] sm:$0xff]
  %v3377 = vld [vmem:[%s4 + $0x28] sm:$0xff]
  %v3378 = vld [vmem:[%s4 + $0x30] sm:$0xff]
  %v3379 = vld [vmem:[%s4 + $0x38] sm:$0xff]
  %v3380 = vld [vmem:[%s4 + $0x40] sm:$0xff]
  %v3381 = vld [vmem:[%s4 + $0x48] sm:$0xff]
  %v3382 = vld [vmem:[%s4 + $0x50] sm:$0xff]
  %v3383 = vld [vmem:[%s4 + $0x58] sm:$0xff]
  %v3384 = vld [vmem:[%s4 + $0x60] sm:$0xff]
  %v3385 = vld [vmem:[%s4 + $0x68] sm:$0xff]
  %v3386 = vld [vmem:[%s4 + $0x70] sm:$0xff]
  %v3387 = vld [vmem:[%s4 + $0x78] sm:$0xff]
  %v3388 = vld [vmem:[%s4 + $0x80] sm:$0xff]
  %v3389 = vld [vmem:[%s4 + $0x88] sm:$0xff]
  %v3390 = vld [vmem:[%s4 + $0x90] sm:$0xff]
  %v3391 = vld [vmem:[%s4 + $0x98] sm:$0xff]
  %v3392 = vld [vmem:[%s4 + $0xa0] sm:$0xff]
  %v3393 = vld [vmem:[%s4 + $0xa8] sm:$0xff]
  %v3394 = vld [vmem:[%s4 + $0xb0] sm:$0xff]
  %v3395 = vld [vmem:[%s4 + $0xb8] sm:$0xff]
  %v3396 = vld [vmem:[%s4 + $0xc0] sm:$0xff]
  %v3397 = vld [vmem:[%s4 + $0xc8] sm:$0xff]
  %v3398 = vld [vmem:[%s4 + $0xd0] sm:$0xff]
  %v3399 = vld [vmem:[%s4 + $0xd8] sm:$0xff]
  %v3400 = vld [vmem:[%s4 + $0xe0] sm:$0xff]
  %v3401 = vld [vmem:[%s4 + $0xe8] sm:$0xff]
  %v3402 = vld [vmem:[%s4 + $0xf0] sm:$0xff]
  %v3403 = vld [vmem:[%s4 + $0xf8] sm:$0xff]
  %v3404 = vld [vmem:[%s4 + $0x100] sm:$0xff]
  %v3405 = vld [vmem:[%s4 + $0x108] sm:$0xff]
  %v3406 = vld [vmem:[%s4 + $0x110] sm:$0xff]
  %v3407 = vld [vmem:[%s4 + $0x118] sm:$0xff]
  %v3408 = vld [vmem:[%s4 + $0x120] sm:$0xff]
  %v3409 = vld [vmem:[%s4 + $0x128] sm:$0xff]
  %v3410 = vld [vmem:[%s4 + $0x130] sm:$0xff]
  %v3411 = vld [vmem:[%s4 + $0x138] sm:$0xff]
  %v3412 = vld [vmem:[%s4 + $0x140] sm:$0xff]
  %v3413 = vld [vmem:[%s4 + $0x148] sm:$0xff]
  %v3414 = vld [vmem:[%s4 + $0x150] sm:$0xff]
  %v3415 = vld [vmem:[%s4 + $0x158] sm:$0xff]
  %v3416 = vld [vmem:[%s4 + $0x160] sm:$0xff]
  %v3417 = vld [vmem:[%s4 + $0x168] sm:$0xff]
  %v3418 = vld [vmem:[%s4 + $0x170] sm:$0xff]
  %v3419 = vld [vmem:[%s4 + $0x178] sm:$0xff]
  %v3420 = vld [vmem:[%s4 + $0x180] sm:$0xff]
  %v3421 = vld [vmem:[%s4 + $0x188] sm:$0xff]
  %v3422 = vld [vmem:[%s4 + $0x190] sm:$0xff]
  %v3423 = vld [vmem:[%s4 + $0x198] sm:$0xff]
  %v3424 = vld [vmem:[%s4 + $0x1a0] sm:$0xff]
  %v3425 = vld [vmem:[%s4 + $0x1a8] sm:$0xff]
  %vm3426 = vcmask 326656
  %v3428 = vsel %vm3426, %v3373, 0
  %v3431 = vsel %vm3426, %v3375, 0
  %v3434 = vsel %vm3426, %v3377, 0
  %v3437 = vsel %vm3426, %v3379, 0
  %v3440 = vsel %vm3426, %v3381, 0
  %v3443 = vsel %vm3426, %v3383, 0
  %v3446 = vsel %vm3426, %v3385, 0
  %v3449 = vsel %vm3426, %v3387, 0
  %v3452 = vsel %vm3426, %v3389, 0
  %v3455 = vsel %vm3426, %v3391, 0
  %v3458 = vsel %vm3426, %v3393, 0
  %v3461 = vsel %vm3426, %v3395, 0
  %v3464 = vsel %vm3426, %v3397, 0
  %v3467 = vsel %vm3426, %v3399, 0
  %v3470 = vsel %vm3426, %v3401, 0
  %v3473 = vsel %vm3426, %v3403, 0
  %v3476 = vsel %vm3426, %v3405, 0
  %v3479 = vsel %vm3426, %v3407, 0
  %v3482 = vsel %vm3426, %v3409, 0
  %v3485 = vsel %vm3426, %v3411, 0
  %v3488 = vsel %vm3426, %v3413, 0
  %v3491 = vsel %vm3426, %v3415, 0
  %v3494 = vsel %vm3426, %v3417, 0
  %v3497 = vsel %vm3426, %v3419, 0
  %v3500 = vsel %vm3426, %v3421, 0
  %v3503 = vsel %vm3426, %v3423, 0
  %v3506 = vsel %vm3426, %v3425, 0
  %3508 = vmatprep.subr.mxu0 0.0
  %3509 = vmatpush1.msra.mxu0 %v3351
  %3510 = vmatprep.subr.mxu0 0.0
  %3511 = vmatpush1.msra.mxu0 %v3352
  %3512 = vmatprep.subr.mxu0 0.0
  %3513 = vmatpush1.msra.mxu0 %v3353
  %3514 = vmatprep.subr.mxu0 0.0
  %3515 = vmatpush1.msra.mxu0 %v3354
  %3516 = vmatprep.subr.mxu0 0.0
  %3517 = vmatpush1.msra.mxu0 %v3355
  %3518 = vmatprep.subr.mxu0 0.0
  %3519 = vmatpush1.msra.mxu0 %v3356
  %3520 = vmatprep.subr.mxu0 0.0
  %3521 = vmatpush1.msra.mxu0 %v3357
  %3522 = vmatprep.subr.mxu0 0.0
  %3523 = vmatpush1.msra.mxu0 %v3358
  %3524 = vmatprep.subr.mxu0 0.0
  %3525 = vmatpush1.msra.mxu0 %v3359
  %3526 = vmatprep.subr.mxu0 0.0
  %3527 = vmatpush1.msra.mxu0 %v3360
  %3528 = vmatprep.subr.mxu0 0.0
  %3529 = vmatpush1.msra.mxu0 %v3361
  %3530 = vmatprep.subr.mxu0 0.0
  %3531 = vmatpush1.msra.mxu0 %v3362
  %3532 = vmatprep.subr.mxu0 0.0
  %3533 = vmatpush1.msra.mxu0 %v3363
  %3534 = vmatprep.subr.mxu0 0.0
  %3535 = vmatpush1.msra.mxu0 %v3364
  %3536 = vmatprep.subr.mxu0 0.0
  %3537 = vmatpush1.msra.mxu0 %v3365
  %3538 = vmatprep.subr.mxu0 0.0
  %3539 = vmatpush1.msra.mxu0 %v3366
  %3540 = vmatprep.subr.mxu0 0.0
  %3541 = vmatpush1.msra.mxu0 %v3367
  %3542 = vmatprep.subr.mxu0 0.0
  %3543 = vmatpush1.msra.mxu0 %v3368
  %3544 = vmatprep.subr.mxu0 0.0
  %3545 = vmatpush1.msra.mxu0 %v3369
  %3546 = vmatprep.subr.mxu0 0.0
  %3547 = vmatpush1.msra.mxu0 %v3370
  %3548 = vmatprep.subr.mxu0 0.0
  %3549 = vmatpush1.msra.mxu0 %v3371
  %3550 = vmatprep.subr.mxu0 0.0
  %3551 = vmatpush1.msra.mxu0 0.0
  %3552 = vmatprep.subr.mxu0 0.0
  %3553 = vmatpush1.msra.mxu0 0.0
  %3554 = vmatprep.subr.mxu0 0.0
  %3555 = vmatpush1.msra.mxu0 0.0
  %3556 = vmatprep.subr.mxu0 0.0
  %3557 = vmatpush1.msra.mxu0 0.0
  %3558 = vmatprep.subr.mxu0 0.0
  %3559 = vmatpush1.msra.mxu0 0.0
  %3560 = vmatprep.subr.mxu0 0.0
  %3561 = vmatpush1.msra.mxu0 0.0
  %3562 = vmatprep.subr.mxu0 0.0
  %3563 = vmatpush1.msra.mxu0 0.0
  %3564 = vmatprep.subr.mxu0 0.0
  %3565 = vmatpush1.msra.mxu0 0.0
  %3566 = vmatprep.subr.mxu0 0.0
  %3567 = vmatpush1.msra.mxu0 0.0
  %3568 = vmatprep.subr.mxu0 0.0
  %3569 = vmatpush1.msra.mxu0 0.0
  %3570 = vmatprep.subr.mxu0 0.0
  %3571 = vmatpush1.msra.mxu0 0.0
  %3572 = vmatprep.mubr.f32.mxu0 %v3428
  %3573 = vmatmul.mubr.f32.gmra.mrb[0].mxu0 %v3372
  %v3574 = vpop.f32.mrb[0].mxu0
  %v3575 = vadd.f32 0.0, %v3574
  %v3576 = vpop.f32.mrb[0].mxu0
  %3577 = vmatprep.mubr.f32.mxu0 %v3431
  %3578 = vmatmul.mubr.f32.gmra.mrb[0].mxu0 %v3374
  %v3579 = vpop.f32.mrb[0].mxu0
  %v3580 = vadd.f32 0.0, %v3579
  %v3581 = vpop.f32.mrb[0].mxu0
  %3582 = vmatprep.mubr.f32.mxu0 %v3434
  %3583 = vmatmul.mubr.f32.gmra.mrb[0].mxu0 %v3376
  %v3584 = vpop.f32.mrb[0].mxu0
  %v3585 = vadd.f32 0.0, %v3584
  %v3586 = vpop.f32.mrb[0].mxu0
  %3587 = vmatprep.mubr.f32.mxu0 %v3437
  %3588 = vmatmul.mubr.f32.gmra.mrb[0].mxu0 %v3378
  %v3589 = vpop.f32.mrb[0].mxu0
  %v3590 = vadd.f32 0.0, %v3589
  %v3591 = vpop.f32.mrb[0].mxu0
  %3592 = vmatprep.mubr.f32.mxu0 %v3440
  %3593 = vmatmul.mubr.f32.gmra.mrb[0].mxu0 %v3380
  %v3594 = vpop.f32.mrb[0].mxu0
  %v3595 = vadd.f32 0.0, %v3594
  %v3596 = vpop.f32.mrb[0].mxu0
  %3597 = vmatprep.mubr.f32.mxu0 %v3443
  %3598 = vmatmul.mubr.f32.gmra.mrb[0].mxu0 %v3382
  %v3599 = vpop.f32.mrb[0].mxu0
  %v3600 = vadd.f32 0.0, %v3599
  %v3601 = vpop.f32.mrb[0].mxu0
  %3602 = vmatprep.mubr.f32.mxu0 %v3446
  %3603 = vmatmul.mubr.f32.gmra.mrb[0].mxu0 %v3384
  %v3604 = vpop.f32.mrb[0].mxu0
  %v3605 = vadd.f32 0.0, %v3604
  %v3606 = vpop.f32.mrb[0].mxu0
  %3607 = vmatprep.mubr.f32.mxu0 %v3449
  %3608 = vmatmul.mubr.f32.gmra.mrb[0].mxu0 %v3386
  %v3609 = vpop.f32.mrb[0].mxu0
  %v3610 = vadd.f32 0.0, %v3609
  %v3611 = vpop.f32.mrb[0].mxu0
  %3612 = vmatprep.mubr.f32.mxu0 %v3452
  %3613 = vmatmul.mubr.f32.gmra.mrb[0].mxu0 %v3388
  %v3614 = vpop.f32.mrb[0].mxu0
  %v3615 = vadd.f32 0.0, %v3614
  %v3616 = vpop.f32.mrb[0].mxu0
  %3617 = vmatprep.mubr.f32.mxu0 %v3455
  %3618 = vmatmul.mubr.f32.gmra.mrb[0].mxu0 %v3390
  %v3619 = vpop.f32.mrb[0].mxu0
  %v3620 = vadd.f32 0.0, %v3619
  %v3621 = vpop.f32.mrb[0].mxu0
  %3622 = vmatprep.mubr.f32.mxu0 %v3458
  %3623 = vmatmul.mubr.f32.gmra.mrb[0].mxu0 %v3392
  %v3624 = vpop.f32.mrb[0].mxu0
  %v3625 = vadd.f32 0.0, %v3624
  %v3626 = vpop.f32.mrb[0].mxu0
  %3627 = vmatprep.mubr.f32.mxu0 %v3461
  %3628 = vmatmul.mubr.f32.gmra.mrb[0].mxu0 %v3394
  %v3629 = vpop.f32.mrb[0].mxu0
  %v3630 = vadd.f32 0.0, %v3629
  %v3631 = vpop.f32.mrb[0].mxu0
  %3632 = vmatprep.mubr.f32.mxu0 %v3464
  %3633 = vmatmul.mubr.f32.gmra.mrb[0].mxu0 %v3396
  %v3634 = vpop.f32.mrb[0].mxu0
  %v3635 = vadd.f32 0.0, %v3634
  %v3636 = vpop.f32.mrb[0].mxu0
  %3637 = vmatprep.mubr.f32.mxu0 %v3467
  %3638 = vmatmul.mubr.f32.gmra.mrb[0].mxu0 %v3398
  %v3639 = vpop.f32.mrb[0].mxu0
  %v3640 = vadd.f32 0.0, %v3639
  %v3641 = vpop.f32.mrb[0].mxu0
  %3642 = vmatprep.mubr.f32.mxu0 %v3470
  %3643 = vmatmul.mubr.f32.gmra.mrb[0].mxu0 %v3400
  %v3644 = vpop.f32.mrb[0].mxu0
  %v3645 = vadd.f32 0.0, %v3644
  %v3646 = vpop.f32.mrb[0].mxu0
  %3647 = vmatprep.mubr.f32.mxu0 %v3473
  %3648 = vmatmul.mubr.f32.gmra.mrb[0].mxu0 %v3402
  %v3649 = vpop.f32.mrb[0].mxu0
  %v3650 = vadd.f32 0.0, %v3649
  %v3651 = vpop.f32.mrb[0].mxu0
  %3652 = vmatprep.mubr.f32.mxu0 %v3476
  %3653 = vmatmul.mubr.f32.gmra.mrb[0].mxu0 %v3404
  %v3654 = vpop.f32.mrb[0].mxu0
  %v3655 = vadd.f32 0.0, %v3654
  %v3656 = vpop.f32.mrb[0].mxu0
  %3657 = vmatprep.mubr.f32.mxu0 %v3479
  %3658 = vmatmul.mubr.f32.gmra.mrb[0].mxu0 %v3406
  %v3659 = vpop.f32.mrb[0].mxu0
  %v3660 = vadd.f32 0.0, %v3659
  %v3661 = vpop.f32.mrb[0].mxu0
  %3662 = vmatprep.mubr.f32.mxu0 %v3482
  %3663 = vmatmul.mubr.f32.gmra.mrb[0].mxu0 %v3408
  %v3664 = vpop.f32.mrb[0].mxu0
  %v3665 = vadd.f32 0.0, %v3664
  %v3666 = vpop.f32.mrb[0].mxu0
  %3667 = vmatprep.mubr.f32.mxu0 %v3485
  %3668 = vmatmul.mubr.f32.gmra.mrb[0].mxu0 %v3410
  %v3669 = vpop.f32.mrb[0].mxu0
  %v3670 = vadd.f32 0.0, %v3669
  %v3671 = vpop.f32.mrb[0].mxu0
  %3672 = vmatprep.mubr.f32.mxu0 %v3488
  %3673 = vmatmul.mubr.f32.gmra.mrb[0].mxu0 %v3412
  %v3674 = vpop.f32.mrb[0].mxu0
  %v3675 = vadd.f32 0.0, %v3674
  %v3676 = vpop.f32.mrb[0].mxu0
  %3677 = vmatprep.mubr.f32.mxu0 %v3491
  %3678 = vmatmul.mubr.f32.gmra.mrb[0].mxu0 %v3414
  %v3679 = vpop.f32.mrb[0].mxu0
  %v3680 = vadd.f32 0.0, %v3679
  %v3681 = vpop.f32.mrb[0].mxu0
  %3682 = vmatprep.mubr.f32.mxu0 %v3494
  %3683 = vmatmul.mubr.f32.gmra.mrb[0].mxu0 %v3416
  %v3684 = vpop.f32.mrb[0].mxu0
  %v3685 = vadd.f32 0.0, %v3684
  %v3686 = vpop.f32.mrb[0].mxu0
  %3687 = vmatprep.mubr.f32.mxu0 %v3497
  %3688 = vmatmul.mubr.f32.gmra.mrb[0].mxu0 %v3418
  %v3689 = vpop.f32.mrb[0].mxu0
  %v3690 = vadd.f32 0.0, %v3689
  %v3691 = vpop.f32.mrb[0].mxu0
  %3692 = vmatprep.mubr.f32.mxu0 %v3500
  %3693 = vmatmul.mubr.f32.gmra.mrb[0].mxu0 %v3420
  %v3694 = vpop.f32.mrb[0].mxu0
  %v3695 = vadd.f32 0.0, %v3694
  %v3696 = vpop.f32.mrb[0].mxu0
  %3697 = vmatprep.mubr.f32.mxu0 %v3503
  %3698 = vmatmul.mubr.f32.gmra.mrb[0].mxu0 %v3422
  %v3699 = vpop.f32.mrb[0].mxu0
  %v3700 = vadd.f32 0.0, %v3699
  %v3701 = vpop.f32.mrb[0].mxu0
  %3702 = vmatprep.mubr.f32.mxu0 %v3506
  %3703 = vmatmul.mubr.f32.gmra.mrb[0].mxu0 %v3424
  %v3704 = vpop.f32.mrb[0].mxu0
  %v3705 = vadd.f32 0.0, %v3704
  %v3706 = vpop.f32.mrb[0].mxu0
  %3707 = vdwg.mxu0
  %3708 = vst.msk [vmem:[#allocation2] sm:$0xff] %vm2654, %v3575
  %3709 = vst.msk [vmem:[#allocation2 + $0x8] sm:$0xff] %vm2654, %v3580
  %3710 = vst.msk [vmem:[#allocation2 + $0x10] sm:$0xff] %vm2654, %v3585
  %3711 = vst.msk [vmem:[#allocation2 + $0x18] sm:$0xff] %vm2654, %v3590
  %3712 = vst.msk [vmem:[#allocation2 + $0x20] sm:$0xff] %vm2654, %v3595
  %3713 = vst.msk [vmem:[#allocation2 + $0x28] sm:$0xff] %vm2654, %v3600
  %3714 = vst.msk [vmem:[#allocation2 + $0x30] sm:$0xff] %vm2654, %v3605
  %3715 = vst.msk [vmem:[#allocation2 + $0x38] sm:$0xff] %vm2654, %v3610
  %3716 = vst.msk [vmem:[#allocation2 + $0x40] sm:$0xff] %vm2654, %v3615
  %3717 = vst.msk [vmem:[#allocation2 + $0x48] sm:$0xff] %vm2654, %v3620
  %3718 = vst.msk [vmem:[#allocation2 + $0x50] sm:$0xff] %vm2654, %v3625
  %3719 = vst.msk [vmem:[#allocation2 + $0x58] sm:$0xff] %vm2654, %v3630
  %3720 = vst.msk [vmem:[#allocation2 + $0x60] sm:$0xff] %vm2654, %v3635
  %3721 = vst.msk [vmem:[#allocation2 + $0x68] sm:$0xff] %vm2654, %v3640
  %3722 = vst.msk [vmem:[#allocation2 + $0x70] sm:$0xff] %vm2654, %v3645
  %3723 = vst.msk [vmem:[#allocation2 + $0x78] sm:$0xff] %vm2654, %v3650
  %3724 = vst.msk [vmem:[#allocation2 + $0x80] sm:$0xff] %vm2654, %v3655
  %3725 = vst.msk [vmem:[#allocation2 + $0x88] sm:$0xff] %vm2654, %v3660
  %3726 = vst.msk [vmem:[#allocation2 + $0x90] sm:$0xff] %vm2654, %v3665
  %3727 = vst.msk [vmem:[#allocation2 + $0x98] sm:$0xff] %vm2654, %v3670
  %3728 = vst.msk [vmem:[#allocation2 + $0xa0] sm:$0xff] %vm2654, %v3675
  %3729 = vst.msk [vmem:[#allocation2 + $0xa8] sm:$0xff] %vm2654, %v3680
  %3730 = vst.msk [vmem:[#allocation2 + $0xb0] sm:$0xff] %vm2654, %v3685
  %3731 = vst.msk [vmem:[#allocation2 + $0xb8] sm:$0xff] %vm2654, %v3690
  %3732 = vst.msk [vmem:[#allocation2 + $0xc0] sm:$0xff] %vm2654, %v3695
  %3733 = vst.msk [vmem:[#allocation2 + $0xc8] sm:$0xff] %vm2654, %v3700
  %3734 = vst.msk [vmem:[#allocation2 + $0xd0] sm:$0xff] %vm2654, %v3705
  %v3735 = vld [vmem:[#allocation2] sm:$0xff]
  %v3736 = vld [vmem:[#allocation2 + $0x8] sm:$0xff]
  %v3737 = vld [vmem:[#allocation2 + $0x10] sm:$0xff]
  %v3738 = vld [vmem:[%s6 + $0x120] sm:$0xff]
  %v3739 = vld [vmem:[%s6 + $0x128] sm:$0xff]
  %v3740 = vld [vmem:[%s6 + $0x130] sm:$0xff]
  %v3741 = vld [vmem:[%s6 + $0x138] sm:$0xff]
  %v3742 = vld [vmem:[%s6 + $0x140] sm:$0xff]
  %v3743 = vld [vmem:[%s6 + $0x148] sm:$0xff]
  %v3744 = vld [vmem:[%s6 + $0x150] sm:$0xff]
  %v3745 = vld [vmem:[%s6 + $0x158] sm:$0xff]
  %v3746 = vld [vmem:[#allocation2 + $0x18] sm:$0xff]
  %v3747 = vld [vmem:[#allocation2 + $0x20] sm:$0xff]
  %v3748 = vld [vmem:[#allocation2 + $0x28] sm:$0xff]
  %v3749 = vld [vmem:[%s6 + $0x160] sm:$0xff]
  %v3750 = vld [vmem:[%s6 + $0x168] sm:$0xff]
  %v3751 = vld [vmem:[%s6 + $0x170] sm:$0xff]
  %v3752 = vld [vmem:[%s6 + $0x178] sm:$0xff]
  %v3753 = vld [vmem:[%s6 + $0x180] sm:$0xff]
  %v3754 = vld [vmem:[%s6 + $0x188] sm:$0xff]
  %v3755 = vld [vmem:[%s6 + $0x190] sm:$0xff]
  %v3756 = vld [vmem:[%s6 + $0x198] sm:$0xff]
  %v3758 = vsel %vm2654, %v3746, 0
  %v3761 = vsel %vm2654, %v3747, 0
  %v3764 = vsel %vm2654, %v3748, 0
  %3766 = vmatprep.subr.mxu0 0.0
  %3767 = vmatpush1.msra.mxu0 %v3749
  %3768 = vmatprep.subr.mxu0 0.0
  %3769 = vmatpush1.msra.mxu0 %v3750
  %3770 = vmatprep.subr.mxu0 0.0
  %3771 = vmatpush1.msra.mxu0 %v3751
  %3772 = vmatprep.subr.mxu0 0.0
  %3773 = vmatpush1.msra.mxu0 %v3752
  %3774 = vmatprep.subr.mxu0 0.0
  %3775 = vmatpush1.msra.mxu0 %v3753
  %3776 = vmatprep.subr.mxu0 0.0
  %3777 = vmatpush1.msra.mxu0 %v3754
  %3778 = vmatprep.subr.mxu0 0.0
  %3779 = vmatpush1.msra.mxu0 %v3755
  %3780 = vmatprep.subr.mxu0 0.0
  %3781 = vmatpush1.msra.mxu0 %v3756
  %3782 = vmatprep.subr.mxu0 0.0
  %3783 = vmatpush1.msra.mxu0 0.0
  %3784 = vmatprep.subr.mxu0 0.0
  %3785 = vmatpush1.msra.mxu0 0.0
  %3786 = vmatprep.subr.mxu0 0.0
  %3787 = vmatpush1.msra.mxu0 0.0
  %3788 = vmatprep.subr.mxu0 0.0
  %3789 = vmatpush1.msra.mxu0 0.0
  %3790 = vmatprep.subr.mxu0 0.0
  %3791 = vmatpush1.msra.mxu0 0.0
  %3792 = vmatprep.subr.mxu0 0.0
  %3793 = vmatpush1.msra.mxu0 0.0
  %3794 = vmatprep.subr.mxu0 0.0
  %3795 = vmatpush1.msra.mxu0 0.0
  %3796 = vmatprep.subr.mxu0 0.0
  %3797 = vmatpush1.msra.mxu0 0.0
  %3798 = vmatprep.subr.mxu0 0.0
  %3799 = vmatpush1.msra.mxu0 0.0
  %3800 = vmatprep.subr.mxu0 0.0
  %3801 = vmatpush1.msra.mxu0 0.0
  %3802 = vmatprep.subr.mxu0 0.0
  %3803 = vmatpush1.msra.mxu0 0.0
  %3804 = vmatprep.subr.mxu0 0.0
  %3805 = vmatpush1.msra.mxu0 0.0
  %3806 = vmatprep.subr.mxu0 0.0
  %3807 = vmatpush1.msra.mxu0 0.0
  %3808 = vmatprep.subr.mxu0 0.0
  %3809 = vmatpush1.msra.mxu0 0.0
  %3810 = vmatprep.subr.mxu0 0.0
  %3811 = vmatpush1.msra.mxu0 0.0
  %3812 = vmatprep.subr.mxu0 0.0
  %3813 = vmatpush1.msra.mxu0 0.0
  %3814 = vmatprep.subr.mxu0 0.0
  %3815 = vmatpush1.msra.mxu0 0.0
  %3816 = vmatprep.subr.mxu0 0.0
  %3817 = vmatpush1.msra.mxu0 0.0
  %3818 = vmatprep.subr.mxu0 0.0
  %3819 = vmatpush1.msra.mxu0 0.0
  %3820 = vmatprep.subr.mxu0 0.0
  %3821 = vmatpush1.msra.mxu0 0.0
  %3822 = vmatprep.subr.mxu0 0.0
  %3823 = vmatpush1.msra.mxu0 0.0
  %3824 = vmatprep.subr.mxu0 0.0
  %3825 = vmatpush1.msra.mxu0 0.0
  %3826 = vmatprep.subr.mxu0 0.0
  %3827 = vmatpush1.msra.mxu0 0.0
  %3828 = vmatprep.subr.mxu0 0.0
  %3829 = vmatpush1.msra.mxu0 0.0
  %3830 = vmatprep.mubr.f32.mxu0 0.0
  %3831 = vmatmul.mubr.f32.gmra.mrb[0].mxu0 %v3758
  %v3832 = vpop.f32.mrb[0].mxu0
  %v3833 = vadd.f32 0.0, %v3832
  %v3834 = vpop.f32.mrb[0].mxu0
  %3835 = vmatprep.mubr.f32.mxu0 0.0
  %3836 = vmatmul.mubr.f32.gmra.mrb[0].mxu0 %v3761
  %v3837 = vpop.f32.mrb[0].mxu0
  %v3838 = vadd.f32 0.0, %v3837
  %v3839 = vpop.f32.mrb[0].mxu0
  %3840 = vmatprep.mubr.f32.mxu0 0.0
  %3841 = vmatmul.mubr.f32.gmra.mrb[0].mxu0 %v3764
  %v3842 = vpop.f32.mrb[0].mxu0
  %v3843 = vadd.f32 0.0, %v3842
  %v3844 = vpop.f32.mrb[0].mxu0
  %3845 = vdwg.mxu0
  %v3847 = vsel %vm2654, %v3735, 0
  %v3850 = vsel %vm2654, %v3736, 0
  %v3853 = vsel %vm2654, %v3737, 0
  %3855 = vmatprep.subr.mxu0 0.0
  %3856 = vmatpush1.msra.mxu0 %v3738
  %3857 = vmatprep.subr.mxu0 0.0
  %3858 = vmatpush1.msra.mxu0 %v3739
  %3859 = vmatprep.subr.mxu0 0.0
  %3860 = vmatpush1.msra.mxu0 %v3740
  %3861 = vmatprep.subr.mxu0 0.0
  %3862 = vmatpush1.msra.mxu0 %v3741
  %3863 = vmatprep.subr.mxu0 0.0
  %3864 = vmatpush1.msra.mxu0 %v3742
  %3865 = vmatprep.subr.mxu0 0.0
  %3866 = vmatpush1.msra.mxu0 %v3743
  %3867 = vmatprep.subr.mxu0 0.0
  %3868 = vmatpush1.msra.mxu0 %v3744
  %3869 = vmatprep.subr.mxu0 0.0
  %3870 = vmatpush1.msra.mxu0 %v3745
  %3871 = vmatprep.subr.mxu0 0.0
  %3872 = vmatpush1.msra.mxu0 0.0
  %3873 = vmatprep.subr.mxu0 0.0
  %3874 = vmatpush1.msra.mxu0 0.0
  %3875 = vmatprep.subr.mxu0 0.0
  %3876 = vmatpush1.msra.mxu0 0.0
  %3877 = vmatprep.subr.mxu0 0.0
  %3878 = vmatpush1.msra.mxu0 0.0
  %3879 = vmatprep.subr.mxu0 0.0
  %3880 = vmatpush1.msra.mxu0 0.0
  %3881 = vmatprep.subr.mxu0 0.0
  %3882 = vmatpush1.msra.mxu0 0.0
  %3883 = vmatprep.subr.mxu0 0.0
  %3884 = vmatpush1.msra.mxu0 0.0
  %3885 = vmatprep.subr.mxu0 0.0
  %3886 = vmatpush1.msra.mxu0 0.0
  %3887 = vmatprep.subr.mxu0 0.0
  %3888 = vmatpush1.msra.mxu0 0.0
  %3889 = vmatprep.subr.mxu0 0.0
  %3890 = vmatpush1.msra.mxu0 0.0
  %3891 = vmatprep.subr.mxu0 0.0
  %3892 = vmatpush1.msra.mxu0 0.0
  %3893 = vmatprep.subr.mxu0 0.0
  %3894 = vmatpush1.msra.mxu0 0.0
  %3895 = vmatprep.subr.mxu0 0.0
  %3896 = vmatpush1.msra.mxu0 0.0
  %3897 = vmatprep.subr.mxu0 0.0
  %3898 = vmatpush1.msra.mxu0 0.0
  %3899 = vmatprep.subr.mxu0 0.0
  %3900 = vmatpush1.msra.mxu0 0.0
  %3901 = vmatprep.subr.mxu0 0.0
  %3902 = vmatpush1.msra.mxu0 0.0
  %3903 = vmatprep.subr.mxu0 0.0
  %3904 = vmatpush1.msra.mxu0 0.0
  %3905 = vmatprep.subr.mxu0 0.0
  %3906 = vmatpush1.msra.mxu0 0.0
  %3907 = vmatprep.subr.mxu0 0.0
  %3908 = vmatpush1.msra.mxu0 0.0
  %3909 = vmatprep.subr.mxu0 0.0
  %3910 = vmatpush1.msra.mxu0 0.0
  %3911 = vmatprep.subr.mxu0 0.0
  %3912 = vmatpush1.msra.mxu0 0.0
  %3913 = vmatprep.subr.mxu0 0.0
  %3914 = vmatpush1.msra.mxu0 0.0
  %3915 = vmatprep.subr.mxu0 0.0
  %3916 = vmatpush1.msra.mxu0 0.0
  %3917 = vmatprep.subr.mxu0 0.0
  %3918 = vmatpush1.msra.mxu0 0.0
  %3919 = vmatprep.mubr.f32.mxu0 0.0
  %3920 = vmatmul.mubr.f32.gmra.mrb[0].mxu0 %v3847
  %v3921 = vpop.f32.mrb[0].mxu0
  %v3922 = vadd.f32 %v3833, %v3921
  %v3923 = vpop.f32.mrb[0].mxu0
  %3924 = vmatprep.mubr.f32.mxu0 0.0
  %3925 = vmatmul.mubr.f32.gmra.mrb[0].mxu0 %v3850
  %v3926 = vpop.f32.mrb[0].mxu0
  %v3927 = vadd.f32 %v3838, %v3926
  %v3928 = vpop.f32.mrb[0].mxu0
  %3929 = vmatprep.mubr.f32.mxu0 0.0
  %3930 = vmatmul.mubr.f32.gmra.mrb[0].mxu0 %v3853
  %v3931 = vpop.f32.mrb[0].mxu0
  %v3932 = vadd.f32 %v3843, %v3931
  %v3933 = vpop.f32.mrb[0].mxu0
  %3934 = vdwg.mxu0
  %v3935 = vld [vmem:[#allocation2 + $0x30] sm:$0xff]
  %v3936 = vld [vmem:[#allocation2 + $0x38] sm:$0xff]
  %v3937 = vld [vmem:[#allocation2 + $0x40] sm:$0xff]
  %v3938 = vld [vmem:[%s6 + $0x1a0] sm:$0xff]
  %v3939 = vld [vmem:[%s6 + $0x1a8] sm:$0xff]
  %v3940 = vld [vmem:[%s6 + $0x1b0] sm:$0xff]
  %v3941 = vld [vmem:[%s6 + $0x1b8] sm:$0xff]
  %v3942 = vld [vmem:[%s6 + $0x1c0] sm:$0xff]
  %v3943 = vld [vmem:[%s6 + $0x1c8] sm:$0xff]
  %v3944 = vld [vmem:[%s6 + $0x1d0] sm:$0xff]
  %v3945 = vld [vmem:[%s6 + $0x1d8] sm:$0xff]
  %v3947 = vsel %vm2654, %v3935, 0
  %v3950 = vsel %vm2654, %v3936, 0
  %v3953 = vsel %vm2654, %v3937, 0
  %3955 = vmatprep.subr.mxu0 0.0
  %3956 = vmatpush1.msra.mxu0 %v3938
  %3957 = vmatprep.subr.mxu0 0.0
  %3958 = vmatpush1.msra.mxu0 %v3939
  %3959 = vmatprep.subr.mxu0 0.0
  %3960 = vmatpush1.msra.mxu0 %v3940
  %3961 = vmatprep.subr.mxu0 0.0
  %3962 = vmatpush1.msra.mxu0 %v3941
  %3963 = vmatprep.subr.mxu0 0.0
  %3964 = vmatpush1.msra.mxu0 %v3942
  %3965 = vmatprep.subr.mxu0 0.0
  %3966 = vmatpush1.msra.mxu0 %v3943
  %3967 = vmatprep.subr.mxu0 0.0
  %3968 = vmatpush1.msra.mxu0 %v3944
  %3969 = vmatprep.subr.mxu0 0.0
  %3970 = vmatpush1.msra.mxu0 %v3945
  %3971 = vmatprep.subr.mxu0 0.0
  %3972 = vmatpush1.msra.mxu0 0.0
  %3973 = vmatprep.subr.mxu0 0.0
  %3974 = vmatpush1.msra.mxu0 0.0
  %3975 = vmatprep.subr.mxu0 0.0
  %3976 = vmatpush1.msra.mxu0 0.0
  %3977 = vmatprep.subr.mxu0 0.0
  %3978 = vmatpush1.msra.mxu0 0.0
  %3979 = vmatprep.subr.mxu0 0.0
  %3980 = vmatpush1.msra.mxu0 0.0
  %3981 = vmatprep.subr.mxu0 0.0
  %3982 = vmatpush1.msra.mxu0 0.0
  %3983 = vmatprep.subr.mxu0 0.0
  %3984 = vmatpush1.msra.mxu0 0.0
  %3985 = vmatprep.subr.mxu0 0.0
  %3986 = vmatpush1.msra.mxu0 0.0
  %3987 = vmatprep.subr.mxu0 0.0
  %3988 = vmatpush1.msra.mxu0 0.0
  %3989 = vmatprep.subr.mxu0 0.0
  %3990 = vmatpush1.msra.mxu0 0.0
  %3991 = vmatprep.subr.mxu0 0.0
  %3992 = vmatpush1.msra.mxu0 0.0
  %3993 = vmatprep.subr.mxu0 0.0
  %3994 = vmatpush1.msra.mxu0 0.0
  %3995 = vmatprep.subr.mxu0 0.0
  %3996 = vmatpush1.msra.mxu0 0.0
  %3997 = vmatprep.subr.mxu0 0.0
  %3998 = vmatpush1.msra.mxu0 0.0
  %3999 = vmatprep.subr.mxu0 0.0
  %4000 = vmatpush1.msra.mxu0 0.0
  %4001 = vmatprep.subr.mxu0 0.0
  %4002 = vmatpush1.msra.mxu0 0.0
  %4003 = vmatprep.subr.mxu0 0.0
  %4004 = vmatpush1.msra.mxu0 0.0
  %4005 = vmatprep.subr.mxu0 0.0
  %4006 = vmatpush1.msra.mxu0 0.0
  %4007 = vmatprep.subr.mxu0 0.0
  %4008 = vmatpush1.msra.mxu0 0.0
  %4009 = vmatprep.subr.mxu0 0.0
  %4010 = vmatpush1.msra.mxu0 0.0
  %4011 = vmatprep.subr.mxu0 0.0
  %4012 = vmatpush1.msra.mxu0 0.0
  %4013 = vmatprep.subr.mxu0 0.0
  %4014 = vmatpush1.msra.mxu0 0.0
  %4015 = vmatprep.subr.mxu0 0.0
  %4016 = vmatpush1.msra.mxu0 0.0
  %4017 = vmatprep.subr.mxu0 0.0
  %4018 = vmatpush1.msra.mxu0 0.0
  %4019 = vmatprep.mubr.f32.mxu0 0.0
  %4020 = vmatmul.mubr.f32.gmra.mrb[0].mxu0 %v3947
  %v4021 = vpop.f32.mrb[0].mxu0
  %v4022 = vadd.f32 0.0, %v4021
  %v4023 = vpop.f32.mrb[0].mxu0
  %4024 = vmatprep.mubr.f32.mxu0 0.0
  %4025 = vmatmul.mubr.f32.gmra.mrb[0].mxu0 %v3950
  %v4026 = vpop.f32.mrb[0].mxu0
  %v4027 = vadd.f32 0.0, %v4026
  %v4028 = vpop.f32.mrb[0].mxu0
  %4029 = vmatprep.mubr.f32.mxu0 0.0
  %4030 = vmatmul.mubr.f32.gmra.mrb[0].mxu0 %v3953
  %v4031 = vpop.f32.mrb[0].mxu0
  %v4032 = vadd.f32 0.0, %v4031
  %v4033 = vpop.f32.mrb[0].mxu0
  %4034 = vdwg.mxu0
  %v4035 = vadd.f32 %v3922, %v4022
  %v4036 = vadd.f32 %v3927, %v4027
  %v4037 = vadd.f32 %v3932, %v4032
  %v4038 = vld [vmem:[#allocation2 + $0x48] sm:$0xff]
  %v4039 = vld [vmem:[#allocation2 + $0x50] sm:$0xff]
  %v4040 = vld [vmem:[#allocation2 + $0x58] sm:$0xff]
  %v4041 = vld [vmem:[%s6 + $0x1e0] sm:$0xff]
  %v4042 = vld [vmem:[%s6 + $0x1e8] sm:$0xff]
  %v4043 = vld [vmem:[%s6 + $0x1f0] sm:$0xff]
  %v4044 = vld [vmem:[%s6 + $0x1f8] sm:$0xff]
  %v4045 = vld [vmem:[%s6 + $0x200] sm:$0xff]
  %v4046 = vld [vmem:[%s6 + $0x208] sm:$0xff]
  %v4047 = vld [vmem:[%s6 + $0x210] sm:$0xff]
  %v4048 = vld [vmem:[%s6 + $0x218] sm:$0xff]
  %v4050 = vsel %vm2654, %v4038, 0
  %v4053 = vsel %vm2654, %v4039, 0
  %v4056 = vsel %vm2654, %v4040, 0
  %4058 = vmatprep.subr.mxu0 0.0
  %4059 = vmatpush1.msra.mxu0 %v4041
  %4060 = vmatprep.subr.mxu0 0.0
  %4061 = vmatpush1.msra.mxu0 %v4042
  %4062 = vmatprep.subr.mxu0 0.0
  %4063 = vmatpush1.msra.mxu0 %v4043
  %4064 = vmatprep.subr.mxu0 0.0
  %4065 = vmatpush1.msra.mxu0 %v4044
  %4066 = vmatprep.subr.mxu0 0.0
  %4067 = vmatpush1.msra.mxu0 %v4045
  %4068 = vmatprep.subr.mxu0 0.0
  %4069 = vmatpush1.msra.mxu0 %v4046
  %4070 = vmatprep.subr.mxu0 0.0
  %4071 = vmatpush1.msra.mxu0 %v4047
  %4072 = vmatprep.subr.mxu0 0.0
  %4073 = vmatpush1.msra.mxu0 %v4048
  %4074 = vmatprep.subr.mxu0 0.0
  %4075 = vmatpush1.msra.mxu0 0.0
  %4076 = vmatprep.subr.mxu0 0.0
  %4077 = vmatpush1.msra.mxu0 0.0
  %4078 = vmatprep.subr.mxu0 0.0
  %4079 = vmatpush1.msra.mxu0 0.0
  %4080 = vmatprep.subr.mxu0 0.0
  %4081 = vmatpush1.msra.mxu0 0.0
  %4082 = vmatprep.subr.mxu0 0.0
  %4083 = vmatpush1.msra.mxu0 0.0
  %4084 = vmatprep.subr.mxu0 0.0
  %4085 = vmatpush1.msra.mxu0 0.0
  %4086 = vmatprep.subr.mxu0 0.0
  %4087 = vmatpush1.msra.mxu0 0.0
  %4088 = vmatprep.subr.mxu0 0.0
  %4089 = vmatpush1.msra.mxu0 0.0
  %4090 = vmatprep.subr.mxu0 0.0
  %4091 = vmatpush1.msra.mxu0 0.0
  %4092 = vmatprep.subr.mxu0 0.0
  %4093 = vmatpush1.msra.mxu0 0.0
  %4094 = vmatprep.subr.mxu0 0.0
  %4095 = vmatpush1.msra.mxu0 0.0
  %4096 = vmatprep.subr.mxu0 0.0
  %4097 = vmatpush1.msra.mxu0 0.0
  %4098 = vmatprep.subr.mxu0 0.0
  %4099 = vmatpush1.msra.mxu0 0.0
  %4100 = vmatprep.subr.mxu0 0.0
  %4101 = vmatpush1.msra.mxu0 0.0
  %4102 = vmatprep.subr.mxu0 0.0
  %4103 = vmatpush1.msra.mxu0 0.0
  %4104 = vmatprep.subr.mxu0 0.0
  %4105 = vmatpush1.msra.mxu0 0.0
  %4106 = vmatprep.subr.mxu0 0.0
  %4107 = vmatpush1.msra.mxu0 0.0
  %4108 = vmatprep.subr.mxu0 0.0
  %4109 = vmatpush1.msra.mxu0 0.0
  %4110 = vmatprep.subr.mxu0 0.0
  %4111 = vmatpush1.msra.mxu0 0.0
  %4112 = vmatprep.subr.mxu0 0.0
  %4113 = vmatpush1.msra.mxu0 0.0
  %4114 = vmatprep.subr.mxu0 0.0
  %4115 = vmatpush1.msra.mxu0 0.0
  %4116 = vmatprep.subr.mxu0 0.0
  %4117 = vmatpush1.msra.mxu0 0.0
  %4118 = vmatprep.subr.mxu0 0.0
  %4119 = vmatpush1.msra.mxu0 0.0
  %4120 = vmatprep.subr.mxu0 0.0
  %4121 = vmatpush1.msra.mxu0 0.0
  %4122 = vmatprep.mubr.f32.mxu0 0.0
  %4123 = vmatmul.mubr.f32.gmra.mrb[0].mxu0 %v4050
  %v4124 = vpop.f32.mrb[0].mxu0
  %v4125 = vadd.f32 0.0, %v4124
  %v4126 = vpop.f32.mrb[0].mxu0
  %4127 = vmatprep.mubr.f32.mxu0 0.0
  %4128 = vmatmul.mubr.f32.gmra.mrb[0].mxu0 %v4053
  %v4129 = vpop.f32.mrb[0].mxu0
  %v4130 = vadd.f32 0.0, %v4129
  %v4131 = vpop.f32.mrb[0].mxu0
  %4132 = vmatprep.mubr.f32.mxu0 0.0
  %4133 = vmatmul.mubr.f32.gmra.mrb[0].mxu0 %v4056
  %v4134 = vpop.f32.mrb[0].mxu0
  %v4135 = vadd.f32 0.0, %v4134
  %v4136 = vpop.f32.mrb[0].mxu0
  %4137 = vdwg.mxu0
  %v4138 = vadd.f32 %v4035, %v4125
  %v4139 = vadd.f32 %v4036, %v4130
  %v4140 = vadd.f32 %v4037, %v4135
  %v4141 = vld [vmem:[#allocation2 + $0x60] sm:$0xff]
  %v4142 = vld [vmem:[#allocation2 + $0x68] sm:$0xff]
  %v4143 = vld [vmem:[#allocation2 + $0x70] sm:$0xff]
  %v4144 = vld [vmem:[%s6 + $0x220] sm:$0xff]
  %v4145 = vld [vmem:[%s6 + $0x228] sm:$0xff]
  %v4146 = vld [vmem:[%s6 + $0x230] sm:$0xff]
  %v4147 = vld [vmem:[%s6 + $0x238] sm:$0xff]
  %v4148 = vld [vmem:[%s6 + $0x240] sm:$0xff]
  %v4149 = vld [vmem:[%s6 + $0x248] sm:$0xff]
  %v4150 = vld [vmem:[%s6 + $0x250] sm:$0xff]
  %v4151 = vld [vmem:[%s6 + $0x258] sm:$0xff]
  %v4153 = vsel %vm2654, %v4141, 0
  %v4156 = vsel %vm2654, %v4142, 0
  %v4159 = vsel %vm2654, %v4143, 0
  %4161 = vmatprep.subr.mxu0 0.0
  %4162 = vmatpush1.msra.mxu0 %v4144
  %4163 = vmatprep.subr.mxu0 0.0
  %4164 = vmatpush1.msra.mxu0 %v4145
  %4165 = vmatprep.subr.mxu0 0.0
  %4166 = vmatpush1.msra.mxu0 %v4146
  %4167 = vmatprep.subr.mxu0 0.0
  %4168 = vmatpush1.msra.mxu0 %v4147
  %4169 = vmatprep.subr.mxu0 0.0
  %4170 = vmatpush1.msra.mxu0 %v4148
  %4171 = vmatprep.subr.mxu0 0.0
  %4172 = vmatpush1.msra.mxu0 %v4149
  %4173 = vmatprep.subr.mxu0 0.0
  %4174 = vmatpush1.msra.mxu0 %v4150
  %4175 = vmatprep.subr.mxu0 0.0
  %4176 = vmatpush1.msra.mxu0 %v4151
  %4177 = vmatprep.subr.mxu0 0.0
  %4178 = vmatpush1.msra.mxu0 0.0
  %4179 = vmatprep.subr.mxu0 0.0
  %4180 = vmatpush1.msra.mxu0 0.0
  %4181 = vmatprep.subr.mxu0 0.0
  %4182 = vmatpush1.msra.mxu0 0.0
  %4183 = vmatprep.subr.mxu0 0.0
  %4184 = vmatpush1.msra.mxu0 0.0
  %4185 = vmatprep.subr.mxu0 0.0
  %4186 = vmatpush1.msra.mxu0 0.0
  %4187 = vmatprep.subr.mxu0 0.0
  %4188 = vmatpush1.msra.mxu0 0.0
  %4189 = vmatprep.subr.mxu0 0.0
  %4190 = vmatpush1.msra.mxu0 0.0
  %4191 = vmatprep.subr.mxu0 0.0
  %4192 = vmatpush1.msra.mxu0 0.0
  %4193 = vmatprep.subr.mxu0 0.0
  %4194 = vmatpush1.msra.mxu0 0.0
  %4195 = vmatprep.subr.mxu0 0.0
  %4196 = vmatpush1.msra.mxu0 0.0
  %4197 = vmatprep.subr.mxu0 0.0
  %4198 = vmatpush1.msra.mxu0 0.0
  %4199 = vmatprep.subr.mxu0 0.0
  %4200 = vmatpush1.msra.mxu0 0.0
  %4201 = vmatprep.subr.mxu0 0.0
  %4202 = vmatpush1.msra.mxu0 0.0
  %4203 = vmatprep.subr.mxu0 0.0
  %4204 = vmatpush1.msra.mxu0 0.0
  %4205 = vmatprep.subr.mxu0 0.0
  %4206 = vmatpush1.msra.mxu0 0.0
  %4207 = vmatprep.subr.mxu0 0.0
  %4208 = vmatpush1.msra.mxu0 0.0
  %4209 = vmatprep.subr.mxu0 0.0
  %4210 = vmatpush1.msra.mxu0 0.0
  %4211 = vmatprep.subr.mxu0 0.0
  %4212 = vmatpush1.msra.mxu0 0.0
  %4213 = vmatprep.subr.mxu0 0.0
  %4214 = vmatpush1.msra.mxu0 0.0
  %4215 = vmatprep.subr.mxu0 0.0
  %4216 = vmatpush1.msra.mxu0 0.0
  %4217 = vmatprep.subr.mxu0 0.0
  %4218 = vmatpush1.msra.mxu0 0.0
  %4219 = vmatprep.subr.mxu0 0.0
  %4220 = vmatpush1.msra.mxu0 0.0
  %4221 = vmatprep.subr.mxu0 0.0
  %4222 = vmatpush1.msra.mxu0 0.0
  %4223 = vmatprep.subr.mxu0 0.0
  %4224 = vmatpush1.msra.mxu0 0.0
  %4225 = vmatprep.mubr.f32.mxu0 0.0
  %4226 = vmatmul.mubr.f32.gmra.mrb[0].mxu0 %v4153
  %v4227 = vpop.f32.mrb[0].mxu0
  %v4228 = vadd.f32 0.0, %v4227
  %v4229 = vpop.f32.mrb[0].mxu0
  %4230 = vmatprep.mubr.f32.mxu0 0.0
  %4231 = vmatmul.mubr.f32.gmra.mrb[0].mxu0 %v4156
  %v4232 = vpop.f32.mrb[0].mxu0
  %v4233 = vadd.f32 0.0, %v4232
  %v4234 = vpop.f32.mrb[0].mxu0
  %4235 = vmatprep.mubr.f32.mxu0 0.0
  %4236 = vmatmul.mubr.f32.gmra.mrb[0].mxu0 %v4159
  %v4237 = vpop.f32.mrb[0].mxu0
  %v4238 = vadd.f32 0.0, %v4237
  %v4239 = vpop.f32.mrb[0].mxu0
  %4240 = vdwg.mxu0
  %v4241 = vadd.f32 %v4138, %v4228
  %v4242 = vadd.f32 %v4139, %v4233
  %v4243 = vadd.f32 %v4140, %v4238
  %v4244 = vld [vmem:[#allocation2 + $0x78] sm:$0xff]
  %v4245 = vld [vmem:[#allocation2 + $0x80] sm:$0xff]
  %v4246 = vld [vmem:[#allocation2 + $0x88] sm:$0xff]
  %v4247 = vld [vmem:[%s6 + $0x260] sm:$0xff]
  %v4248 = vld [vmem:[%s6 + $0x268] sm:$0xff]
  %v4249 = vld [vmem:[%s6 + $0x270] sm:$0xff]
  %v4250 = vld [vmem:[%s6 + $0x278] sm:$0xff]
  %v4251 = vld [vmem:[%s6 + $0x280] sm:$0xff]
  %v4252 = vld [vmem:[%s6 + $0x288] sm:$0xff]
  %v4253 = vld [vmem:[%s6 + $0x290] sm:$0xff]
  %v4254 = vld [vmem:[%s6 + $0x298] sm:$0xff]
  %v4256 = vsel %vm2654, %v4244, 0
  %v4259 = vsel %vm2654, %v4245, 0
  %v4262 = vsel %vm2654, %v4246, 0
  %4264 = vmatprep.subr.mxu0 0.0
  %4265 = vmatpush1.msra.mxu0 %v4247
  %4266 = vmatprep.subr.mxu0 0.0
  %4267 = vmatpush1.msra.mxu0 %v4248
  %4268 = vmatprep.subr.mxu0 0.0
  %4269 = vmatpush1.msra.mxu0 %v4249
  %4270 = vmatprep.subr.mxu0 0.0
  %4271 = vmatpush1.msra.mxu0 %v4250
  %4272 = vmatprep.subr.mxu0 0.0
  %4273 = vmatpush1.msra.mxu0 %v4251
  %4274 = vmatprep.subr.mxu0 0.0
  %4275 = vmatpush1.msra.mxu0 %v4252
  %4276 = vmatprep.subr.mxu0 0.0
  %4277 = vmatpush1.msra.mxu0 %v4253
  %4278 = vmatprep.subr.mxu0 0.0
  %4279 = vmatpush1.msra.mxu0 %v4254
  %4280 = vmatprep.subr.mxu0 0.0
  %4281 = vmatpush1.msra.mxu0 0.0
  %4282 = vmatprep.subr.mxu0 0.0
  %4283 = vmatpush1.msra.mxu0 0.0
  %4284 = vmatprep.subr.mxu0 0.0
  %4285 = vmatpush1.msra.mxu0 0.0
  %4286 = vmatprep.subr.mxu0 0.0
  %4287 = vmatpush1.msra.mxu0 0.0
  %4288 = vmatprep.subr.mxu0 0.0
  %4289 = vmatpush1.msra.mxu0 0.0
  %4290 = vmatprep.subr.mxu0 0.0
  %4291 = vmatpush1.msra.mxu0 0.0
  %4292 = vmatprep.subr.mxu0 0.0
  %4293 = vmatpush1.msra.mxu0 0.0
  %4294 = vmatprep.subr.mxu0 0.0
  %4295 = vmatpush1.msra.mxu0 0.0
  %4296 = vmatprep.subr.mxu0 0.0
  %4297 = vmatpush1.msra.mxu0 0.0
  %4298 = vmatprep.subr.mxu0 0.0
  %4299 = vmatpush1.msra.mxu0 0.0
  %4300 = vmatprep.subr.mxu0 0.0
  %4301 = vmatpush1.msra.mxu0 0.0
  %4302 = vmatprep.subr.mxu0 0.0
  %4303 = vmatpush1.msra.mxu0 0.0
  %4304 = vmatprep.subr.mxu0 0.0
  %4305 = vmatpush1.msra.mxu0 0.0
  %4306 = vmatprep.subr.mxu0 0.0
  %4307 = vmatpush1.msra.mxu0 0.0
  %4308 = vmatprep.subr.mxu0 0.0
  %4309 = vmatpush1.msra.mxu0 0.0
  %4310 = vmatprep.subr.mxu0 0.0
  %4311 = vmatpush1.msra.mxu0 0.0
  %4312 = vmatprep.subr.mxu0 0.0
  %4313 = vmatpush1.msra.mxu0 0.0
  %4314 = vmatprep.subr.mxu0 0.0
  %4315 = vmatpush1.msra.mxu0 0.0
  %4316 = vmatprep.subr.mxu0 0.0
  %4317 = vmatpush1.msra.mxu0 0.0
  %4318 = vmatprep.subr.mxu0 0.0
  %4319 = vmatpush1.msra.mxu0 0.0
  %4320 = vmatprep.subr.mxu0 0.0
  %4321 = vmatpush1.msra.mxu0 0.0
  %4322 = vmatprep.subr.mxu0 0.0
  %4323 = vmatpush1.msra.mxu0 0.0
  %4324 = vmatprep.subr.mxu0 0.0
  %4325 = vmatpush1.msra.mxu0 0.0
  %4326 = vmatprep.subr.mxu0 0.0
  %4327 = vmatpush1.msra.mxu0 0.0
  %4328 = vmatprep.mubr.f32.mxu0 0.0
  %4329 = vmatmul.mubr.f32.gmra.mrb[0].mxu0 %v4256
  %v4330 = vpop.f32.mrb[0].mxu0
  %v4331 = vadd.f32 0.0, %v4330
  %v4332 = vpop.f32.mrb[0].mxu0
  %4333 = vmatprep.mubr.f32.mxu0 0.0
  %4334 = vmatmul.mubr.f32.gmra.mrb[0].mxu0 %v4259
  %v4335 = vpop.f32.mrb[0].mxu0
  %v4336 = vadd.f32 0.0, %v4335
  %v4337 = vpop.f32.mrb[0].mxu0
  %4338 = vmatprep.mubr.f32.mxu0 0.0
  %4339 = vmatmul.mubr.f32.gmra.mrb[0].mxu0 %v4262
  %v4340 = vpop.f32.mrb[0].mxu0
  %v4341 = vadd.f32 0.0, %v4340
  %v4342 = vpop.f32.mrb[0].mxu0
  %4343 = vdwg.mxu0
  %v4344 = vadd.f32 %v4241, %v4331
  %v4345 = vadd.f32 %v4242, %v4336
  %v4346 = vadd.f32 %v4243, %v4341
  %v4347 = vld [vmem:[#allocation2 + $0x90] sm:$0xff]
  %v4348 = vld [vmem:[#allocation2 + $0x98] sm:$0xff]
  %v4349 = vld [vmem:[#allocation2 + $0xa0] sm:$0xff]
  %v4350 = vld [vmem:[%s6 + $0x2a0] sm:$0xff]
  %v4351 = vld [vmem:[%s6 + $0x2a8] sm:$0xff]
  %v4352 = vld [vmem:[%s6 + $0x2b0] sm:$0xff]
  %v4353 = vld [vmem:[%s6 + $0x2b8] sm:$0xff]
  %v4354 = vld [vmem:[%s6 + $0x2c0] sm:$0xff]
  %v4355 = vld [vmem:[%s6 + $0x2c8] sm:$0xff]
  %v4356 = vld [vmem:[%s6 + $0x2d0] sm:$0xff]
  %v4357 = vld [vmem:[%s6 + $0x2d8] sm:$0xff]
  %v4359 = vsel %vm2654, %v4347, 0
  %v4362 = vsel %vm2654, %v4348, 0
  %v4365 = vsel %vm2654, %v4349, 0
  %4367 = vmatprep.subr.mxu0 0.0
  %4368 = vmatpush1.msra.mxu0 %v4350
  %4369 = vmatprep.subr.mxu0 0.0
  %4370 = vmatpush1.msra.mxu0 %v4351
  %4371 = vmatprep.subr.mxu0 0.0
  %4372 = vmatpush1.msra.mxu0 %v4352
  %4373 = vmatprep.subr.mxu0 0.0
  %4374 = vmatpush1.msra.mxu0 %v4353
  %4375 = vmatprep.subr.mxu0 0.0
  %4376 = vmatpush1.msra.mxu0 %v4354
  %4377 = vmatprep.subr.mxu0 0.0
  %4378 = vmatpush1.msra.mxu0 %v4355
  %4379 = vmatprep.subr.mxu0 0.0
  %4380 = vmatpush1.msra.mxu0 %v4356
  %4381 = vmatprep.subr.mxu0 0.0
  %4382 = vmatpush1.msra.mxu0 %v4357
  %4383 = vmatprep.subr.mxu0 0.0
  %4384 = vmatpush1.msra.mxu0 0.0
  %4385 = vmatprep.subr.mxu0 0.0
  %4386 = vmatpush1.msra.mxu0 0.0
  %4387 = vmatprep.subr.mxu0 0.0
  %4388 = vmatpush1.msra.mxu0 0.0
  %4389 = vmatprep.subr.mxu0 0.0
  %4390 = vmatpush1.msra.mxu0 0.0
  %4391 = vmatprep.subr.mxu0 0.0
  %4392 = vmatpush1.msra.mxu0 0.0
  %4393 = vmatprep.subr.mxu0 0.0
  %4394 = vmatpush1.msra.mxu0 0.0
  %4395 = vmatprep.subr.mxu0 0.0
  %4396 = vmatpush1.msra.mxu0 0.0
  %4397 = vmatprep.subr.mxu0 0.0
  %4398 = vmatpush1.msra.mxu0 0.0
  %4399 = vmatprep.subr.mxu0 0.0
  %4400 = vmatpush1.msra.mxu0 0.0
  %4401 = vmatprep.subr.mxu0 0.0
  %4402 = vmatpush1.msra.mxu0 0.0
  %4403 = vmatprep.subr.mxu0 0.0
  %4404 = vmatpush1.msra.mxu0 0.0
  %4405 = vmatprep.subr.mxu0 0.0
  %4406 = vmatpush1.msra.mxu0 0.0
  %4407 = vmatprep.subr.mxu0 0.0
  %4408 = vmatpush1.msra.mxu0 0.0
  %4409 = vmatprep.subr.mxu0 0.0
  %4410 = vmatpush1.msra.mxu0 0.0
  %4411 = vmatprep.subr.mxu0 0.0
  %4412 = vmatpush1.msra.mxu0 0.0
  %4413 = vmatprep.subr.mxu0 0.0
  %4414 = vmatpush1.msra.mxu0 0.0
  %4415 = vmatprep.subr.mxu0 0.0
  %4416 = vmatpush1.msra.mxu0 0.0
  %4417 = vmatprep.subr.mxu0 0.0
  %4418 = vmatpush1.msra.mxu0 0.0
  %4419 = vmatprep.subr.mxu0 0.0
  %4420 = vmatpush1.msra.mxu0 0.0
  %4421 = vmatprep.subr.mxu0 0.0
  %4422 = vmatpush1.msra.mxu0 0.0
  %4423 = vmatprep.subr.mxu0 0.0
  %4424 = vmatpush1.msra.mxu0 0.0
  %4425 = vmatprep.subr.mxu0 0.0
  %4426 = vmatpush1.msra.mxu0 0.0
  %4427 = vmatprep.subr.mxu0 0.0
  %4428 = vmatpush1.msra.mxu0 0.0
  %4429 = vmatprep.subr.mxu0 0.0
  %4430 = vmatpush1.msra.mxu0 0.0
  %4431 = vmatprep.mubr.f32.mxu0 0.0
  %4432 = vmatmul.mubr.f32.gmra.mrb[0].mxu0 %v4359
  %v4433 = vpop.f32.mrb[0].mxu0
  %v4434 = vadd.f32 0.0, %v4433
  %v4435 = vpop.f32.mrb[0].mxu0
  %4436 = vmatprep.mubr.f32.mxu0 0.0
  %4437 = vmatmul.mubr.f32.gmra.mrb[0].mxu0 %v4362
  %v4438 = vpop.f32.mrb[0].mxu0
  %v4439 = vadd.f32 0.0, %v4438
  %v4440 = vpop.f32.mrb[0].mxu0
  %4441 = vmatprep.mubr.f32.mxu0 0.0
  %4442 = vmatmul.mubr.f32.gmra.mrb[0].mxu0 %v4365
  %v4443 = vpop.f32.mrb[0].mxu0
  %v4444 = vadd.f32 0.0, %v4443
  %v4445 = vpop.f32.mrb[0].mxu0
  %4446 = vdwg.mxu0
  %v4447 = vadd.f32 %v4344, %v4434
  %v4448 = vadd.f32 %v4345, %v4439
  %v4449 = vadd.f32 %v4346, %v4444
  %v4450 = vld [vmem:[#allocation2 + $0xa8] sm:$0xff]
  %v4451 = vld [vmem:[#allocation2 + $0xb0] sm:$0xff]
  %v4452 = vld [vmem:[#allocation2 + $0xb8] sm:$0xff]
  %v4453 = vld [vmem:[%s6 + $0x2e0] sm:$0xff]
  %v4454 = vld [vmem:[%s6 + $0x2e8] sm:$0xff]
  %v4455 = vld [vmem:[%s6 + $0x2f0] sm:$0xff]
  %v4456 = vld [vmem:[%s6 + $0x2f8] sm:$0xff]
  %v4457 = vld [vmem:[%s6 + $0x300] sm:$0xff]
  %v4458 = vld [vmem:[%s6 + $0x308] sm:$0xff]
  %v4459 = vld [vmem:[%s6 + $0x310] sm:$0xff]
  %v4460 = vld [vmem:[%s6 + $0x318] sm:$0xff]
  %v4462 = vsel %vm2654, %v4450, 0
  %v4465 = vsel %vm2654, %v4451, 0
  %v4468 = vsel %vm2654, %v4452, 0
  %4470 = vmatprep.subr.mxu0 0.0
  %4471 = vmatpush1.msra.mxu0 %v4453
  %4472 = vmatprep.subr.mxu0 0.0
  %4473 = vmatpush1.msra.mxu0 %v4454
  %4474 = vmatprep.subr.mxu0 0.0
  %4475 = vmatpush1.msra.mxu0 %v4455
  %4476 = vmatprep.subr.mxu0 0.0
  %4477 = vmatpush1.msra.mxu0 %v4456
  %4478 = vmatprep.subr.mxu0 0.0
  %4479 = vmatpush1.msra.mxu0 %v4457
  %4480 = vmatprep.subr.mxu0 0.0
  %4481 = vmatpush1.msra.mxu0 %v4458
  %4482 = vmatprep.subr.mxu0 0.0
  %4483 = vmatpush1.msra.mxu0 %v4459
  %4484 = vmatprep.subr.mxu0 0.0
  %4485 = vmatpush1.msra.mxu0 %v4460
  %4486 = vmatprep.subr.mxu0 0.0
  %4487 = vmatpush1.msra.mxu0 0.0
  %4488 = vmatprep.subr.mxu0 0.0
  %4489 = vmatpush1.msra.mxu0 0.0
  %4490 = vmatprep.subr.mxu0 0.0
  %4491 = vmatpush1.msra.mxu0 0.0
  %4492 = vmatprep.subr.mxu0 0.0
  %4493 = vmatpush1.msra.mxu0 0.0
  %4494 = vmatprep.subr.mxu0 0.0
  %4495 = vmatpush1.msra.mxu0 0.0
  %4496 = vmatprep.subr.mxu0 0.0
  %4497 = vmatpush1.msra.mxu0 0.0
  %4498 = vmatprep.subr.mxu0 0.0
  %4499 = vmatpush1.msra.mxu0 0.0
  %4500 = vmatprep.subr.mxu0 0.0
  %4501 = vmatpush1.msra.mxu0 0.0
  %4502 = vmatprep.subr.mxu0 0.0
  %4503 = vmatpush1.msra.mxu0 0.0
  %4504 = vmatprep.subr.mxu0 0.0
  %4505 = vmatpush1.msra.mxu0 0.0
  %4506 = vmatprep.subr.mxu0 0.0
  %4507 = vmatpush1.msra.mxu0 0.0
  %4508 = vmatprep.subr.mxu0 0.0
  %4509 = vmatpush1.msra.mxu0 0.0
  %4510 = vmatprep.subr.mxu0 0.0
  %4511 = vmatpush1.msra.mxu0 0.0
  %4512 = vmatprep.subr.mxu0 0.0
  %4513 = vmatpush1.msra.mxu0 0.0
  %4514 = vmatprep.subr.mxu0 0.0
  %4515 = vmatpush1.msra.mxu0 0.0
  %4516 = vmatprep.subr.mxu0 0.0
  %4517 = vmatpush1.msra.mxu0 0.0
  %4518 = vmatprep.subr.mxu0 0.0
  %4519 = vmatpush1.msra.mxu0 0.0
  %4520 = vmatprep.subr.mxu0 0.0
  %4521 = vmatpush1.msra.mxu0 0.0
  %4522 = vmatprep.subr.mxu0 0.0
  %4523 = vmatpush1.msra.mxu0 0.0
  %4524 = vmatprep.subr.mxu0 0.0
  %4525 = vmatpush1.msra.mxu0 0.0
  %4526 = vmatprep.subr.mxu0 0.0
  %4527 = vmatpush1.msra.mxu0 0.0
  %4528 = vmatprep.subr.mxu0 0.0
  %4529 = vmatpush1.msra.mxu0 0.0
  %4530 = vmatprep.subr.mxu0 0.0
  %4531 = vmatpush1.msra.mxu0 0.0
  %4532 = vmatprep.subr.mxu0 0.0
  %4533 = vmatpush1.msra.mxu0 0.0
  %4534 = vmatprep.mubr.f32.mxu0 0.0
  %4535 = vmatmul.mubr.f32.gmra.mrb[0].mxu0 %v4462
  %v4536 = vpop.f32.mrb[0].mxu0
  %v4537 = vadd.f32 0.0, %v4536
  %v4538 = vpop.f32.mrb[0].mxu0
  %4539 = vmatprep.mubr.f32.mxu0 0.0
  %4540 = vmatmul.mubr.f32.gmra.mrb[0].mxu0 %v4465
  %v4541 = vpop.f32.mrb[0].mxu0
  %v4542 = vadd.f32 0.0, %v4541
  %v4543 = vpop.f32.mrb[0].mxu0
  %4544 = vmatprep.mubr.f32.mxu0 0.0
  %4545 = vmatmul.mubr.f32.gmra.mrb[0].mxu0 %v4468
  %v4546 = vpop.f32.mrb[0].mxu0
  %v4547 = vadd.f32 0.0, %v4546
  %v4548 = vpop.f32.mrb[0].mxu0
  %4549 = vdwg.mxu0
  %v4550 = vadd.f32 %v4447, %v4537
  %v4551 = vadd.f32 %v4448, %v4542
  %v4552 = vadd.f32 %v4449, %v4547
  %v4553 = vld [vmem:[#allocation2 + $0xc0] sm:$0xff]
  %v4554 = vld [vmem:[#allocation2 + $0xc8] sm:$0xff]
  %v4555 = vld [vmem:[#allocation2 + $0xd0] sm:$0xff]
  %v4556 = vld [vmem:[%s6 + $0x320] sm:$0xff]
  %v4557 = vld [vmem:[%s6 + $0x328] sm:$0xff]
  %v4558 = vld [vmem:[%s6 + $0x330] sm:$0xff]
  %v4559 = vld [vmem:[%s6 + $0x338] sm:$0xff]
  %v4560 = vld [vmem:[%s6 + $0x340] sm:$0xff]
  %v4561 = vld [vmem:[%s6 + $0x348] sm:$0xff]
  %v4562 = vld [vmem:[%s6 + $0x350] sm:$0xff]
  %v4563 = vld [vmem:[%s6 + $0x358] sm:$0xff]
  %v4565 = vsel %vm2654, %v4553, 0
  %v4568 = vsel %vm2654, %v4554, 0
  %v4571 = vsel %vm2654, %v4555, 0
  %4573 = vmatprep.subr.mxu0 0.0
  %4574 = vmatpush1.msra.mxu0 %v4556
  %4575 = vmatprep.subr.mxu0 0.0
  %4576 = vmatpush1.msra.mxu0 %v4557
  %4577 = vmatprep.subr.mxu0 0.0
  %4578 = vmatpush1.msra.mxu0 %v4558
  %4579 = vmatprep.subr.mxu0 0.0
  %4580 = vmatpush1.msra.mxu0 %v4559
  %4581 = vmatprep.subr.mxu0 0.0
  %4582 = vmatpush1.msra.mxu0 %v4560
  %4583 = vmatprep.subr.mxu0 0.0
  %4584 = vmatpush1.msra.mxu0 %v4561
  %4585 = vmatprep.subr.mxu0 0.0
  %4586 = vmatpush1.msra.mxu0 %v4562
  %4587 = vmatprep.subr.mxu0 0.0
  %4588 = vmatpush1.msra.mxu0 %v4563
  %4589 = vmatprep.subr.mxu0 0.0
  %4590 = vmatpush1.msra.mxu0 0.0
  %4591 = vmatprep.subr.mxu0 0.0
  %4592 = vmatpush1.msra.mxu0 0.0
  %4593 = vmatprep.subr.mxu0 0.0
  %4594 = vmatpush1.msra.mxu0 0.0
  %4595 = vmatprep.subr.mxu0 0.0
  %4596 = vmatpush1.msra.mxu0 0.0
  %4597 = vmatprep.subr.mxu0 0.0
  %4598 = vmatpush1.msra.mxu0 0.0
  %4599 = vmatprep.subr.mxu0 0.0
  %4600 = vmatpush1.msra.mxu0 0.0
  %4601 = vmatprep.subr.mxu0 0.0
  %4602 = vmatpush1.msra.mxu0 0.0
  %4603 = vmatprep.subr.mxu0 0.0
  %4604 = vmatpush1.msra.mxu0 0.0
  %4605 = vmatprep.subr.mxu0 0.0
  %4606 = vmatpush1.msra.mxu0 0.0
  %4607 = vmatprep.subr.mxu0 0.0
  %4608 = vmatpush1.msra.mxu0 0.0
  %4609 = vmatprep.subr.mxu0 0.0
  %4610 = vmatpush1.msra.mxu0 0.0
  %4611 = vmatprep.subr.mxu0 0.0
  %4612 = vmatpush1.msra.mxu0 0.0
  %4613 = vmatprep.subr.mxu0 0.0
  %4614 = vmatpush1.msra.mxu0 0.0
  %4615 = vmatprep.subr.mxu0 0.0
  %4616 = vmatpush1.msra.mxu0 0.0
  %4617 = vmatprep.subr.mxu0 0.0
  %4618 = vmatpush1.msra.mxu0 0.0
  %4619 = vmatprep.subr.mxu0 0.0
  %4620 = vmatpush1.msra.mxu0 0.0
  %4621 = vmatprep.subr.mxu0 0.0
  %4622 = vmatpush1.msra.mxu0 0.0
  %4623 = vmatprep.subr.mxu0 0.0
  %4624 = vmatpush1.msra.mxu0 0.0
  %4625 = vmatprep.subr.mxu0 0.0
  %4626 = vmatpush1.msra.mxu0 0.0
  %4627 = vmatprep.subr.mxu0 0.0
  %4628 = vmatpush1.msra.mxu0 0.0
  %4629 = vmatprep.subr.mxu0 0.0
  %4630 = vmatpush1.msra.mxu0 0.0
  %4631 = vmatprep.subr.mxu0 0.0
  %4632 = vmatpush1.msra.mxu0 0.0
  %4633 = vmatprep.subr.mxu0 0.0
  %4634 = vmatpush1.msra.mxu0 0.0
  %4635 = vmatprep.subr.mxu0 0.0
  %4636 = vmatpush1.msra.mxu0 0.0
  %4637 = vmatprep.mubr.f32.mxu0 0.0
  %4638 = vmatmul.mubr.f32.gmra.mrb[0].mxu0 %v4565
  %v4639 = vpop.f32.mrb[0].mxu0
  %v4640 = vadd.f32 0.0, %v4639
  %v4641 = vpop.f32.mrb[0].mxu0
  %4642 = vmatprep.mubr.f32.mxu0 0.0
  %4643 = vmatmul.mubr.f32.gmra.mrb[0].mxu0 %v4568
  %v4644 = vpop.f32.mrb[0].mxu0
  %v4645 = vadd.f32 0.0, %v4644
  %v4646 = vpop.f32.mrb[0].mxu0
  %4647 = vmatprep.mubr.f32.mxu0 0.0
  %4648 = vmatmul.mubr.f32.gmra.mrb[0].mxu0 %v4571
  %v4649 = vpop.f32.mrb[0].mxu0
  %v4650 = vadd.f32 0.0, %v4649
  %v4651 = vpop.f32.mrb[0].mxu0
  %4652 = vdwg.mxu0
  %v4653 = vadd.f32 %v4550, %v4640
  %v4654 = vadd.f32 %v4551, %v4645
  %v4655 = vadd.f32 %v4552, %v4650
  %v4656 = vlaneseq
  %v4657 = vshrl.u32 %v4656, 7
  %v4658 = vsub.s32 2, %v4657
  %v4659 = vrot.slane %v38, %v4658
  %v4660 = vadd.f32 %v4653, %v4659
  %v4661 = vadd.f32 %v4654, %v4659
  %v4662 = vadd.f32 %v4655, %v4659
  %v4663 = vlaneseq
  %v4664 = vshrl.u32 %v4663, 7
  %v4665 = vsub.s32 3, %v4664
  %v4666 = vrot.slane %v38, %v4665
  %v4667 = vadd.f32 %v4660, %v4666
  %v4668 = vadd.f32 %v4661, %v4666
  %v4669 = vadd.f32 %v4662, %v4666
  %v4670 = vld [vmem:[%s2] sm:$0xff]
  %v4671 = vld [vmem:[%s2 + $0x8] sm:$0xff]
  %v4672 = vld [vmem:[%s2 + $0x10] sm:$0xff]
  %v4673 = vrot.slane %v4667, 4
  %v4674 = vrot.slane %v4668, 4
  %v4675 = vrot.slane %v4669, 4
  %vm4676 = vcmp.lt.s32.totalorder %v214, 4
  %v4677 = vsel %vm4676, %v4674, %v4675
  %v4678 = vsel %vm4676, %v4673, %v4674
  %v4679 = vsel %vm4676, %v4675, %v4673
  %4681 = vset.pattern.permute.xlu0 0
  %4682 = vperm.xlu0 %4681, %v4670
  %v4683 = vpop.permute.xlu0 %4682
  %4686 = vset.pattern.permute.xlu0 0
  %4687 = vperm.xlu0 %4686, %v4671
  %v4688 = vpop.permute.xlu0 %4687
  %4691 = vset.pattern.permute.xlu0 0
  %4692 = vperm.xlu0 %4691, %v4672
  %v4693 = vpop.permute.xlu0 %4692
  %v4695 = vmul.f32 %v4679, %v4683
  %v4696 = vmul.f32 %v4678, %v4688
  %v4697 = vmul.f32 %v4677, %v4693
  %v4698 = vrot.slane %v4667, 5
  %v4699 = vrot.slane %v4668, 5
  %v4700 = vrot.slane %v4669, 5
  %vm4701 = vcmp.lt.s32.totalorder %v214, 3
  %v4702 = vsel %vm4701, %v4699, %v4700
  %v4703 = vsel %vm4701, %v4698, %v4699
  %v4704 = vsel %vm4701, %v4700, %v4698
  %4705 = vset.pattern.permute.xlu0 1
  %4706 = vperm.xlu0 %4705, %v4670
  %v4707 = vpop.permute.xlu0 %4706
  %4709 = vset.pattern.permute.xlu0 1
  %4710 = vperm.xlu0 %4709, %v4671
  %v4711 = vpop.permute.xlu0 %4710
  %4713 = vset.pattern.permute.xlu0 1
  %4714 = vperm.xlu0 %4713, %v4672
  %v4715 = vpop.permute.xlu0 %4714
  %v4717 = vmul.f32 %v4704, %v4707
  %v4718 = vmul.f32 %v4703, %v4711
  %v4719 = vmul.f32 %v4702, %v4715
  %v4720 = vrot.slane %v4667, 6
  %v4721 = vrot.slane %v4668, 6
  %v4722 = vrot.slane %v4669, 6
  %v4723 = vsel %vm215, %v4721, %v4722
  %v4724 = vsel %vm215, %v4720, %v4721
  %v4725 = vsel %vm215, %v4722, %v4720
  %4726 = vset.pattern.permute.xlu0 2
  %4727 = vperm.xlu0 %4726, %v4670
  %v4728 = vpop.permute.xlu0 %4727
  %4730 = vset.pattern.permute.xlu0 2
  %4731 = vperm.xlu0 %4730, %v4671
  %v4732 = vpop.permute.xlu0 %4731
  %4734 = vset.pattern.permute.xlu0 2
  %4735 = vperm.xlu0 %4734, %v4672
  %v4736 = vpop.permute.xlu0 %4735
  %v4738 = vmul.f32 %v4725, %v4728
  %v4739 = vmul.f32 %v4724, %v4732
  %v4740 = vmul.f32 %v4723, %v4736
  %v4741 = vrot.slane %v4667, 7
  %v4742 = vrot.slane %v4668, 7
  %v4743 = vrot.slane %v4669, 7
  %v4744 = vsel %vm430, %v4742, %v4743
  %v4745 = vsel %vm430, %v4741, %v4742
  %v4746 = vsel %vm430, %v4743, %v4741
  %4747 = vset.pattern.permute.xlu0 3
  %4748 = vperm.xlu0 %4747, %v4670
  %v4749 = vpop.permute.xlu0 %4748
  %4751 = vset.pattern.permute.xlu0 3
  %4752 = vperm.xlu0 %4751, %v4671
  %v4753 = vpop.permute.xlu0 %4752
  %4755 = vset.pattern.permute.xlu0 3
  %4756 = vperm.xlu0 %4755, %v4672
  %v4757 = vpop.permute.xlu0 %4756
  %v4759 = vmul.f32 %v4746, %v4749
  %v4760 = vmul.f32 %v4745, %v4753
  %v4761 = vmul.f32 %v4744, %v4757
  %4762 = vset.pattern.permute.xlu0 4
  %4763 = vperm.xlu0 %4762, %v4670
  %v4764 = vpop.permute.xlu0 %4763
  %4766 = vset.pattern.permute.xlu0 4
  %4767 = vperm.xlu0 %4766, %v4671
  %v4768 = vpop.permute.xlu0 %4767
  %4770 = vset.pattern.permute.xlu0 4
  %4771 = vperm.xlu0 %4770, %v4672
  %v4772 = vpop.permute.xlu0 %4771
  %v4774 = vmul.f32 %v4667, %v4764
  %v4775 = vmul.f32 %v4668, %v4768
  %v4776 = vmul.f32 %v4669, %v4772
  %v4777 = vrot.slane %v4667, 1
  %v4778 = vrot.slane %v4668, 1
  %v4779 = vrot.slane %v4669, 1
  %v4780 = vsel %vm1077, %v4778, %v4779
  %v4781 = vsel %vm1077, %v4777, %v4778
  %v4782 = vsel %vm1077, %v4779, %v4777
  %4783 = vset.pattern.permute.xlu0 5
  %4784 = vperm.xlu0 %4783, %v4670
  %v4785 = vpop.permute.xlu0 %4784
  %4787 = vset.pattern.permute.xlu0 5
  %4788 = vperm.xlu0 %4787, %v4671
  %v4789 = vpop.permute.xlu0 %4788
  %4791 = vset.pattern.permute.xlu0 5
  %4792 = vperm.xlu0 %4791, %v4672
  %v4793 = vpop.permute.xlu0 %4792
  %v4795 = vmul.f32 %v4781, %v4785
  %v4796 = vmul.f32 %v4780, %v4789
  %v4797 = vmul.f32 %v4782, %v4793
  %v4798 = vrot.slane %v4667, 2
  %v4799 = vrot.slane %v4668, 2
  %v4800 = vrot.slane %v4669, 2
  %v4801 = vsel %vm1573, %v4799, %v4800
  %v4802 = vsel %vm1573, %v4798, %v4799
  %v4803 = vsel %vm1573, %v4800, %v4798
  %4804 = vset.pattern.permute.xlu0 6
  %4805 = vperm.xlu0 %4804, %v4670
  %v4806 = vpop.permute.xlu0 %4805
  %4808 = vset.pattern.permute.xlu0 6
  %4809 = vperm.xlu0 %4808, %v4671
  %v4810 = vpop.permute.xlu0 %4809
  %4812 = vset.pattern.permute.xlu0 6
  %4813 = vperm.xlu0 %4812, %v4672
  %v4814 = vpop.permute.xlu0 %4813
  %v4816 = vmul.f32 %v4802, %v4806
  %v4817 = vmul.f32 %v4801, %v4810
  %v4818 = vmul.f32 %v4803, %v4814
  %v4819 = vrot.slane %v4667, 3
  %v4820 = vrot.slane %v4668, 3
  %v4821 = vrot.slane %v4669, 3
  %vm4822 = vcmp.lt.s32.totalorder %v214, 5
  %v4823 = vsel %vm4822, %v4820, %v4821
  %v4824 = vsel %vm4822, %v4819, %v4820
  %v4825 = vsel %vm4822, %v4821, %v4819
  %4826 = vset.pattern.permute.xlu0 7
  %4827 = vperm.xlu0 %4826, %v4670
  %v4828 = vpop.permute.xlu0 %4827
  %4830 = vset.pattern.permute.xlu0 7
  %4831 = vperm.xlu0 %4830, %v4671
  %v4832 = vpop.permute.xlu0 %4831
  %4834 = vset.pattern.permute.xlu0 7
  %4835 = vperm.xlu0 %4834, %v4672
  %v4836 = vpop.permute.xlu0 %4835
  %v4838 = vmul.f32 %v4824, %v4828
  %v4839 = vmul.f32 %v4823, %v4832
  %v4840 = vmul.f32 %v4825, %v4836
  %4841 = vset.pattern.permute.xlu0 8
  %4842 = vperm.xlu0 %4841, %v4670
  %v4843 = vpop.permute.xlu0 %4842
  %4845 = vset.pattern.permute.xlu0 8
  %4846 = vperm.xlu0 %4845, %v4671
  %v4847 = vpop.permute.xlu0 %4846
  %4849 = vset.pattern.permute.xlu0 8
  %4850 = vperm.xlu0 %4849, %v4672
  %v4851 = vpop.permute.xlu0 %4850
  %v4853 = vmul.f32 %v4678, %v4843
  %v4854 = vmul.f32 %v4677, %v4847
  %v4855 = vmul.f32 %v4679, %v4851
  %4859 = vrot.lane.b32.xlu0 %v4717, 32
  %v4860 = vpop.permute.xlu0 %4859
  %4861 = vrot.lane.b32.xlu0 %v4718, 32
  %v4862 = vpop.permute.xlu0 %4861
  %4863 = vrot.lane.b32.xlu0 %v4719, 32
  %v4864 = vpop.permute.xlu0 %4863
  %4871 = vrot.lane.b32.xlu0 %v4738, 64
  %v4872 = vpop.permute.xlu0 %4871
  %4873 = vrot.lane.b32.xlu0 %v4739, 64
  %v4874 = vpop.permute.xlu0 %4873
  %4875 = vrot.lane.b32.xlu0 %v4740, 64
  %v4876 = vpop.permute.xlu0 %4875
  %4883 = vrot.lane.b32.xlu0 %v4759, 96
  %v4884 = vpop.permute.xlu0 %4883
  %4885 = vrot.lane.b32.xlu0 %v4760, 96
  %v4886 = vpop.permute.xlu0 %4885
  %4887 = vrot.lane.b32.xlu0 %v4761, 96
  %v4888 = vpop.permute.xlu0 %4887
  %4895 = vrot.lane.b32.xlu0 %v4795, 32
  %v4896 = vpop.permute.xlu0 %4895
  %4897 = vrot.lane.b32.xlu0 %v4796, 32
  %v4898 = vpop.permute.xlu0 %4897
  %4899 = vrot.lane.b32.xlu0 %v4797, 32
  %v4900 = vpop.permute.xlu0 %4899
  %4907 = vrot.lane.b32.xlu0 %v4816, 64
  %v4908 = vpop.permute.xlu0 %4907
  %4909 = vrot.lane.b32.xlu0 %v4817, 64
  %v4910 = vpop.permute.xlu0 %4909
  %4911 = vrot.lane.b32.xlu0 %v4818, 64
  %v4912 = vpop.permute.xlu0 %4911
  %4919 = vrot.lane.b32.xlu0 %v4838, 96
  %v4920 = vpop.permute.xlu0 %4919
  %4921 = vrot.lane.b32.xlu0 %v4839, 96
  %v4922 = vpop.permute.xlu0 %4921
  %4923 = vrot.lane.b32.xlu0 %v4840, 96
  %v4924 = vpop.permute.xlu0 %4923
  %v4928 = vsel %vm2632, %v4695, %v4860
  %v4929 = vsel %vm2632, %v4696, %v4862
  %v4930 = vsel %vm2632, %v4697, %v4864
  %v4931 = vsel %vm2654, %v4928, %v4872
  %v4932 = vsel %vm2654, %v4929, %v4874
  %v4933 = vsel %vm2654, %v4930, %v4876
  %v4934 = vsel %vm2676, %v4931, %v4884
  %v4935 = vsel %vm2676, %v4932, %v4886
  %v4936 = vsel %vm2676, %v4933, %v4888
  %v4937 = vsel %vm2632, %v4774, %v4896
  %v4938 = vsel %vm2632, %v4775, %v4898
  %v4939 = vsel %vm2632, %v4776, %v4900
  %v4940 = vsel %vm2654, %v4937, %v4908
  %v4941 = vsel %vm2654, %v4938, %v4910
  %v4942 = vsel %vm2654, %v4939, %v4912
  %v4943 = vsel %vm2676, %v4940, %v4920
  %v4944 = vsel %vm2676, %v4941, %v4922
  %v4945 = vsel %vm2676, %v4942, %v4924
  %v4946 = vld [vmem:[%s6 + $0x360] sm:$0xff]
  %v4947 = vld [vmem:[%s6 + $0x368] sm:$0xff]
  %v4948 = vld [vmem:[%s6 + $0x370] sm:$0xff]
  %v4949 = vld [vmem:[%s6 + $0x378] sm:$0xff]
  %v4950 = vld [vmem:[%s6 + $0x380] sm:$0xff]
  %v4951 = vld [vmem:[%s6 + $0x388] sm:$0xff]
  %v4952 = vld [vmem:[%s6 + $0x390] sm:$0xff]
  %v4953 = vld [vmem:[%s6 + $0x398] sm:$0xff]
  %v4954 = vld [vmem:[%s6 + $0x3a0] sm:$0xff]
  %v4955 = vld [vmem:[%s6 + $0x3a8] sm:$0xff]
  %v4956 = vld [vmem:[%s6 + $0x3b0] sm:$0xff]
  %v4957 = vld [vmem:[%s6 + $0x3b8] sm:$0xff]
  %v4958 = vld [vmem:[%s6 + $0x3c0] sm:$0xff]
  %v4959 = vld [vmem:[%s6 + $0x3c8] sm:$0xff]
  %v4960 = vld [vmem:[%s6 + $0x3d0] sm:$0xff]
  %v4961 = vld [vmem:[%s6 + $0x3d8] sm:$0xff]
  %v4962 = vld [vmem:[%s6 + $0x3e0] sm:$0xff]
  %v4963 = vld [vmem:[%s6 + $0x3e8] sm:$0xff]
  %v4964 = vld [vmem:[%s6 + $0x3f0] sm:$0xff]
  %v4965 = vld [vmem:[%s6 + $0x3f8] sm:$0xff]
  %v4966 = vld [vmem:[%s6 + $0x400] sm:$0xff]
  %v4967 = vld [vmem:[%s6 + $0x408] sm:$0xff]
  %v4968 = vld [vmem:[%s6 + $0x410] sm:$0xff]
  %v4969 = vld [vmem:[%s6 + $0x418] sm:$0xff]
  %v4970 = vld [vmem:[%s6 + $0x420] sm:$0xff]
  %v4971 = vld [vmem:[%s6 + $0x428] sm:$0xff]
  %v4972 = vld [vmem:[%s6 + $0x430] sm:$0xff]
  %v4973 = vld [vmem:[%s6 + $0x438] sm:$0xff]
  %v4974 = vld [vmem:[%s6 + $0x440] sm:$0xff]
  %v4975 = vld [vmem:[%s6 + $0x448] sm:$0xff]
  %v4976 = vld [vmem:[%s6 + $0x450] sm:$0xff]
  %v4977 = vld [vmem:[%s6 + $0x458] sm:$0xff]
  %v4978 = vld [vmem:[%s6 + $0x460] sm:$0xff]
  %v4979 = vld [vmem:[%s6 + $0x468] sm:$0xff]
  %v4980 = vld [vmem:[%s6 + $0x470] sm:$0xff]
  %v4981 = vld [vmem:[%s6 + $0x478] sm:$0xff]
  %v4982 = vlaneseq
  %v4983 = vshrl.u32 %v4982, 7
  %v4984 = vsub.s32 4, %v4983
  %v4985 = vrot.slane %v38, %v4984
  %v4987 = vsel %vm2632, %v4853, 0
  %v4990 = vsel %vm2632, %v4854, 0
  %v4993 = vsel %vm2632, %v4855, 0
  %4995 = vmatprep.subr.mxu0 0.0
  %4996 = vmatpush1.msra.mxu0 %v4946
  %4997 = vmatprep.subr.mxu0 0.0
  %4998 = vmatpush1.msra.mxu0 %v4947
  %4999 = vmatprep.subr.mxu0 0.0
  %5000 = vmatpush1.msra.mxu0 %v4948
  %5001 = vmatprep.subr.mxu0 0.0
  %5002 = vmatpush1.msra.mxu0 %v4949
  %5003 = vmatprep.subr.mxu0 0.0
  %5004 = vmatpush1.msra.mxu0 %v4950
  %5005 = vmatprep.subr.mxu0 0.0
  %5006 = vmatpush1.msra.mxu0 %v4951
  %5007 = vmatprep.subr.mxu0 0.0
  %5008 = vmatpush1.msra.mxu0 %v4952
  %5009 = vmatprep.subr.mxu0 0.0
  %5010 = vmatpush1.msra.mxu0 %v4953
  %5011 = vmatprep.subr.mxu0 0.0
  %5012 = vmatpush1.msra.mxu0 %v4954
  %5013 = vmatprep.subr.mxu0 0.0
  %5014 = vmatpush1.msra.mxu0 %v4955
  %5015 = vmatprep.subr.mxu0 0.0
  %5016 = vmatpush1.msra.mxu0 %v4956
  %5017 = vmatprep.subr.mxu0 0.0
  %5018 = vmatpush1.msra.mxu0 %v4957
  %5019 = vmatprep.subr.mxu0 0.0
  %5020 = vmatpush1.msra.mxu0 %v4958
  %5021 = vmatprep.subr.mxu0 0.0
  %5022 = vmatpush1.msra.mxu0 %v4959
  %5023 = vmatprep.subr.mxu0 0.0
  %5024 = vmatpush1.msra.mxu0 %v4960
  %5025 = vmatprep.subr.mxu0 0.0
  %5026 = vmatpush1.msra.mxu0 %v4961
  %5027 = vmatprep.subr.mxu0 0.0
  %5028 = vmatpush1.msra.mxu0 %v4962
  %5029 = vmatprep.subr.mxu0 0.0
  %5030 = vmatpush1.msra.mxu0 %v4963
  %5031 = vmatprep.subr.mxu0 0.0
  %5032 = vmatpush1.msra.mxu0 %v4964
  %5033 = vmatprep.subr.mxu0 0.0
  %5034 = vmatpush1.msra.mxu0 %v4965
  %5035 = vmatprep.subr.mxu0 0.0
  %5036 = vmatpush1.msra.mxu0 %v4966
  %5037 = vmatprep.subr.mxu0 0.0
  %5038 = vmatpush1.msra.mxu0 %v4967
  %5039 = vmatprep.subr.mxu0 0.0
  %5040 = vmatpush1.msra.mxu0 %v4968
  %5041 = vmatprep.subr.mxu0 0.0
  %5042 = vmatpush1.msra.mxu0 %v4969
  %5043 = vmatprep.subr.mxu0 0.0
  %5044 = vmatpush1.msra.mxu0 %v4970
  %5045 = vmatprep.subr.mxu0 0.0
  %5046 = vmatpush1.msra.mxu0 %v4971
  %5047 = vmatprep.subr.mxu0 0.0
  %5048 = vmatpush1.msra.mxu0 %v4972
  %5049 = vmatprep.subr.mxu0 0.0
  %5050 = vmatpush1.msra.mxu0 %v4973
  %5051 = vmatprep.subr.mxu0 0.0
  %5052 = vmatpush1.msra.mxu0 %v4974
  %5053 = vmatprep.subr.mxu0 0.0
  %5054 = vmatpush1.msra.mxu0 %v4975
  %5055 = vmatprep.subr.mxu0 0.0
  %5056 = vmatpush1.msra.mxu0 %v4976
  %5057 = vmatprep.subr.mxu0 0.0
  %5058 = vmatpush1.msra.mxu0 %v4977
  %5059 = vmatprep.mubr.f32.mxu0 %v4943
  %5060 = vmatmul.mubr.f32.gmra.mrb[0].mxu0 %v4934
  %v5061 = vpop.f32.mrb[0].mxu0
  %v5062 = vadd.f32 %v4985, %v5061
  %v5063 = vpop.f32.mrb[0].mxu0
  %5064 = vmatprep.mubr.f32.mxu0 %v4944
  %5065 = vmatmul.mubr.f32.gmra.mrb[0].mxu0 %v4935
  %v5066 = vpop.f32.mrb[0].mxu0
  %v5067 = vadd.f32 %v4985, %v5066
  %v5068 = vpop.f32.mrb[0].mxu0
  %5069 = vmatprep.mubr.f32.mxu0 %v4945
  %5070 = vmatmul.mubr.f32.gmra.mrb[0].mxu0 %v4936
  %v5071 = vpop.f32.mrb[0].mxu0
  %v5072 = vadd.f32 %v4985, %v5071
  %v5073 = vpop.f32.mrb[0].mxu0
  %5074 = vdwg.mxu0
  %5075 = vmatprep.subr.mxu0 0.0
  %5076 = vmatpush1.msra.mxu0 %v4978
  %5077 = vmatprep.subr.mxu0 0.0
  %5078 = vmatpush1.msra.mxu0 %v4979
  %5079 = vmatprep.subr.mxu0 0.0
  %5080 = vmatpush1.msra.mxu0 %v4980
  %5081 = vmatprep.subr.mxu0 0.0
  %5082 = vmatpush1.msra.mxu0 %v4981
  %5083 = vmatprep.subr.mxu0 0.0
  %5084 = vmatpush1.msra.mxu0 0.0
  %5085 = vmatprep.subr.mxu0 0.0
  %5086 = vmatpush1.msra.mxu0 0.0
  %5087 = vmatprep.subr.mxu0 0.0
  %5088 = vmatpush1.msra.mxu0 0.0
  %5089 = vmatprep.subr.mxu0 0.0
  %5090 = vmatpush1.msra.mxu0 0.0
  %5091 = vmatprep.subr.mxu0 0.0
  %5092 = vmatpush1.msra.mxu0 0.0
  %5093 = vmatprep.subr.mxu0 0.0
  %5094 = vmatpush1.msra.mxu0 0.0
  %5095 = vmatprep.subr.mxu0 0.0
  %5096 = vmatpush1.msra.mxu0 0.0
  %5097 = vmatprep.subr.mxu0 0.0
  %5098 = vmatpush1.msra.mxu0 0.0
  %5099 = vmatprep.subr.mxu0 0.0
  %5100 = vmatpush1.msra.mxu0 0.0
  %5101 = vmatprep.subr.mxu0 0.0
  %5102 = vmatpush1.msra.mxu0 0.0
  %5103 = vmatprep.subr.mxu0 0.0
  %5104 = vmatpush1.msra.mxu0 0.0
  %5105 = vmatprep.subr.mxu0 0.0
  %5106 = vmatpush1.msra.mxu0 0.0
  %5107 = vmatprep.subr.mxu0 0.0
  %5108 = vmatpush1.msra.mxu0 0.0
  %5109 = vmatprep.subr.mxu0 0.0
  %5110 = vmatpush1.msra.mxu0 0.0
  %5111 = vmatprep.subr.mxu0 0.0
  %5112 = vmatpush1.msra.mxu0 0.0
  %5113 = vmatprep.subr.mxu0 0.0
  %5114 = vmatpush1.msra.mxu0 0.0
  %5115 = vmatprep.subr.mxu0 0.0
  %5116 = vmatpush1.msra.mxu0 0.0
  %5117 = vmatprep.subr.mxu0 0.0
  %5118 = vmatpush1.msra.mxu0 0.0
  %5119 = vmatprep.subr.mxu0 0.0
  %5120 = vmatpush1.msra.mxu0 0.0
  %5121 = vmatprep.subr.mxu0 0.0
  %5122 = vmatpush1.msra.mxu0 0.0
  %5123 = vmatprep.subr.mxu0 0.0
  %5124 = vmatpush1.msra.mxu0 0.0
  %5125 = vmatprep.subr.mxu0 0.0
  %5126 = vmatpush1.msra.mxu0 0.0
  %5127 = vmatprep.subr.mxu0 0.0
  %5128 = vmatpush1.msra.mxu0 0.0
  %5129 = vmatprep.subr.mxu0 0.0
  %5130 = vmatpush1.msra.mxu0 0.0
  %5131 = vmatprep.subr.mxu0 0.0
  %5132 = vmatpush1.msra.mxu0 0.0
  %5133 = vmatprep.subr.mxu0 0.0
  %5134 = vmatpush1.msra.mxu0 0.0
  %5135 = vmatprep.subr.mxu0 0.0
  %5136 = vmatpush1.msra.mxu0 0.0
  %5137 = vmatprep.subr.mxu0 0.0
  %5138 = vmatpush1.msra.mxu0 0.0
  %5139 = vmatprep.mubr.f32.mxu0 0.0
  %5140 = vmatmul.mubr.f32.gmra.mrb[0].mxu0 %v4987
  %v5141 = vpop.f32.mrb[0].mxu0
  %v5142 = vadd.f32 %v5062, %v5141
  %v5143 = vpop.f32.mrb[0].mxu0
  %5144 = vmatprep.mubr.f32.mxu0 0.0
  %5145 = vmatmul.mubr.f32.gmra.mrb[0].mxu0 %v4990
  %v5146 = vpop.f32.mrb[0].mxu0
  %v5147 = vadd.f32 %v5067, %v5146
  %v5148 = vpop.f32.mrb[0].mxu0
  %5149 = vmatprep.mubr.f32.mxu0 0.0
  %5150 = vmatmul.mubr.f32.gmra.mrb[0].mxu0 %v4993
  %v5151 = vpop.f32.mrb[0].mxu0
  %v5152 = vadd.f32 %v5072, %v5151
  %v5153 = vpop.f32.mrb[0].mxu0
  %5154 = vdwg.mxu0
  %vm5155 = vcmp.gt.f32.partialorder %v5142, 0.0
  %vm5156 = vcmp.gt.f32.partialorder %v5147, 0.0
  %vm5157 = vcmp.gt.f32.partialorder %v5152, 0.0
  %v5158 = vmul.f32 %v5142, 0.01
  %v5159 = vmul.f32 %v5147, 0.01
  %v5160 = vmul.f32 %v5152, 0.01
  %v5161 = vsel %vm5155, %v5142, %v5158
  %v5162 = vsel %vm5156, %v5147, %v5159
  %v5163 = vsel %vm5157, %v5152, %v5160
  %5167 = vrot.lane.b32.xlu0 %v4667, 32
  %v5168 = vpop.permute.xlu0 %5167
  %5169 = vrot.lane.b32.xlu0 %v4668, 32
  %v5170 = vpop.permute.xlu0 %5169
  %5171 = vrot.lane.b32.xlu0 %v4669, 32
  %v5172 = vpop.permute.xlu0 %5171
  %v5176 = vsel %vm2632, %v5161, %v5168
  %v5177 = vsel %vm2632, %v5162, %v5170
  %v5178 = vsel %vm2632, %v5163, %v5172
  %v5179 = vld [vmem:[%s5] sm:$0xff]
  %v5180 = vld [vmem:[%s5 + $0x8] sm:$0xff]
  %v5181 = vld [vmem:[%s5 + $0x10] sm:$0xff]
  %v5182 = vld [vmem:[%s5 + $0x18] sm:$0xff]
  %v5183 = vld [vmem:[%s5 + $0x20] sm:$0xff]
  %v5184 = vld [vmem:[%s5 + $0x28] sm:$0xff]
  %v5185 = vld [vmem:[%s5 + $0x30] sm:$0xff]
  %v5186 = vld [vmem:[%s5 + $0x38] sm:$0xff]
  %v5187 = vld [vmem:[%s5 + $0x40] sm:$0xff]
  %vm5188 = vcmask 195584
  %v5190 = vsel %vm5188, %v5179, 0
  %v5193 = vsel %vm5188, %v5180, 0
  %v5196 = vsel %vm5188, %v5181, 0
  %v5199 = vsel %vm5188, %v5182, 0
  %v5202 = vsel %vm5188, %v5183, 0
  %v5205 = vsel %vm5188, %v5184, 0
  %v5208 = vsel %vm5188, %v5185, 0
  %v5211 = vsel %vm5188, %v5186, 0
  %v5214 = vsel %vm5188, %v5187, 0
  %5216 = vmatprep.subr.mxu0 0.0
  %5217 = vmatpush1.msra.mxu0 %v5176
  %5218 = vmatprep.subr.mxu0 0.0
  %5219 = vmatpush1.msra.mxu0 %v5177
  %5220 = vmatprep.subr.mxu0 0.0
  %5221 = vmatpush1.msra.mxu0 %v5178
  %5222 = vmatprep.subr.mxu0 0.0
  %5223 = vmatpush1.msra.mxu0 0.0
  %5224 = vmatprep.subr.mxu0 0.0
  %5225 = vmatpush1.msra.mxu0 0.0
  %5226 = vmatprep.subr.mxu0 0.0
  %5227 = vmatpush1.msra.mxu0 0.0
  %5228 = vmatprep.subr.mxu0 0.0
  %5229 = vmatpush1.msra.mxu0 0.0
  %5230 = vmatprep.subr.mxu0 0.0
  %5231 = vmatpush1.msra.mxu0 0.0
  %5232 = vmatprep.subr.mxu0 0.0
  %5233 = vmatpush1.msra.mxu0 0.0
  %5234 = vmatprep.subr.mxu0 0.0
  %5235 = vmatpush1.msra.mxu0 0.0
  %5236 = vmatprep.subr.mxu0 0.0
  %5237 = vmatpush1.msra.mxu0 0.0
  %5238 = vmatprep.subr.mxu0 0.0
  %5239 = vmatpush1.msra.mxu0 0.0
  %5240 = vmatprep.subr.mxu0 0.0
  %5241 = vmatpush1.msra.mxu0 0.0
  %5242 = vmatprep.subr.mxu0 0.0
  %5243 = vmatpush1.msra.mxu0 0.0
  %5244 = vmatprep.subr.mxu0 0.0
  %5245 = vmatpush1.msra.mxu0 0.0
  %5246 = vmatprep.subr.mxu0 0.0
  %5247 = vmatpush1.msra.mxu0 0.0
  %5248 = vmatprep.subr.mxu0 0.0
  %5249 = vmatpush1.msra.mxu0 0.0
  %5250 = vmatprep.subr.mxu0 0.0
  %5251 = vmatpush1.msra.mxu0 0.0
  %5252 = vmatprep.subr.mxu0 0.0
  %5253 = vmatpush1.msra.mxu0 0.0
  %5254 = vmatprep.subr.mxu0 0.0
  %5255 = vmatpush1.msra.mxu0 0.0
  %5256 = vmatprep.subr.mxu0 0.0
  %5257 = vmatpush1.msra.mxu0 0.0
  %5258 = vmatprep.subr.mxu0 0.0
  %5259 = vmatpush1.msra.mxu0 0.0
  %5260 = vmatprep.subr.mxu0 0.0
  %5261 = vmatpush1.msra.mxu0 0.0
  %5262 = vmatprep.subr.mxu0 0.0
  %5263 = vmatpush1.msra.mxu0 0.0
  %5264 = vmatprep.subr.mxu0 0.0
  %5265 = vmatpush1.msra.mxu0 0.0
  %5266 = vmatprep.subr.mxu0 0.0
  %5267 = vmatpush1.msra.mxu0 0.0
  %5268 = vmatprep.subr.mxu0 0.0
  %5269 = vmatpush1.msra.mxu0 0.0
  %5270 = vmatprep.subr.mxu0 0.0
  %5271 = vmatpush1.msra.mxu0 0.0
  %5272 = vmatprep.subr.mxu0 0.0
  %5273 = vmatpush1.msra.mxu0 0.0
  %5274 = vmatprep.subr.mxu0 0.0
  %5275 = vmatpush1.msra.mxu0 0.0
  %5276 = vmatprep.subr.mxu0 0.0
  %5277 = vmatpush1.msra.mxu0 0.0
  %5278 = vmatprep.subr.mxu0 0.0
  %5279 = vmatpush1.msra.mxu0 0.0
  %5280 = vmatprep.mubr.f32.mxu0 0.0
  %5281 = vmatmul.mubr.f32.gmra.mrb[0].mxu0 %v5190
  %v5282 = vpop.f32.mrb[0].mxu0
  %v5283 = vadd.f32 0.0, %v5282
  %v5284 = vpop.f32.mrb[0].mxu0
  %5285 = vmatprep.mubr.f32.mxu0 0.0
  %5286 = vmatmul.mubr.f32.gmra.mrb[0].mxu0 %v5193
  %v5287 = vpop.f32.mrb[0].mxu0
  %v5288 = vadd.f32 0.0, %v5287
  %v5289 = vpop.f32.mrb[0].mxu0
  %5290 = vmatprep.mubr.f32.mxu0 0.0
  %5291 = vmatmul.mubr.f32.gmra.mrb[0].mxu0 %v5196
  %v5292 = vpop.f32.mrb[0].mxu0
  %v5293 = vadd.f32 0.0, %v5292
  %v5294 = vpop.f32.mrb[0].mxu0
  %5295 = vmatprep.mubr.f32.mxu0 0.0
  %5296 = vmatmul.mubr.f32.gmra.mrb[0].mxu0 %v5199
  %v5297 = vpop.f32.mrb[0].mxu0
  %v5298 = vadd.f32 0.0, %v5297
  %v5299 = vpop.f32.mrb[0].mxu0
  %5300 = vmatprep.mubr.f32.mxu0 0.0
  %5301 = vmatmul.mubr.f32.gmra.mrb[0].mxu0 %v5202
  %v5302 = vpop.f32.mrb[0].mxu0
  %v5303 = vadd.f32 0.0, %v5302
  %v5304 = vpop.f32.mrb[0].mxu0
  %5305 = vmatprep.mubr.f32.mxu0 0.0
  %5306 = vmatmul.mubr.f32.gmra.mrb[0].mxu0 %v5205
  %v5307 = vpop.f32.mrb[0].mxu0
  %v5308 = vadd.f32 0.0, %v5307
  %v5309 = vpop.f32.mrb[0].mxu0
  %5310 = vmatprep.mubr.f32.mxu0 0.0
  %5311 = vmatmul.mubr.f32.gmra.mrb[0].mxu0 %v5208
  %v5312 = vpop.f32.mrb[0].mxu0
  %v5313 = vadd.f32 0.0, %v5312
  %v5314 = vpop.f32.mrb[0].mxu0
  %5315 = vmatprep.mubr.f32.mxu0 0.0
  %5316 = vmatmul.mubr.f32.gmra.mrb[0].mxu0 %v5211
  %v5317 = vpop.f32.mrb[0].mxu0
  %v5318 = vadd.f32 0.0, %v5317
  %v5319 = vpop.f32.mrb[0].mxu0
  %5320 = vmatprep.mubr.f32.mxu0 0.0
  %5321 = vmatmul.mubr.f32.gmra.mrb[0].mxu0 %v5214
  %v5322 = vpop.f32.mrb[0].mxu0
  %v5323 = vadd.f32 0.0, %v5322
  %v5324 = vpop.f32.mrb[0].mxu0
  %5325 = vdwg.mxu0
  %5326 = vst.msk [vmem:[#allocation2] sm:$0xff] %vm2654, %v5283
  %5327 = vst.msk [vmem:[#allocation2 + $0x8] sm:$0xff] %vm2654, %v5288
  %5328 = vst.msk [vmem:[#allocation2 + $0x10] sm:$0xff] %vm2654, %v5293
  %5329 = vst.msk [vmem:[#allocation2 + $0x18] sm:$0xff] %vm2654, %v5298
  %5330 = vst.msk [vmem:[#allocation2 + $0x20] sm:$0xff] %vm2654, %v5303
  %5331 = vst.msk [vmem:[#allocation2 + $0x28] sm:$0xff] %vm2654, %v5308
  %5332 = vst.msk [vmem:[#allocation2 + $0x30] sm:$0xff] %vm2654, %v5313
  %5333 = vst.msk [vmem:[#allocation2 + $0x38] sm:$0xff] %vm2654, %v5318
  %5334 = vst.msk [vmem:[#allocation2 + $0x40] sm:$0xff] %vm2654, %v5323
  %v5335 = vld [vmem:[#allocation2] sm:$0xff]
  %v5336 = vld [vmem:[%s6 + $0x480] sm:$0xff]
  %v5337 = vld [vmem:[%s6 + $0x488] sm:$0xff]
  %v5338 = vld [vmem:[%s6 + $0x490] sm:$0xff]
  %v5339 = vld [vmem:[%s6 + $0x498] sm:$0xff]
  %v5340 = vld [vmem:[%s6 + $0x4a0] sm:$0xff]
  %v5341 = vld [vmem:[%s6 + $0x4a8] sm:$0xff]
  %v5342 = vld [vmem:[%s6 + $0x4b0] sm:$0xff]
  %v5343 = vld [vmem:[%s6 + $0x4b8] sm:$0xff]
  %v5344 = vld [vmem:[#allocation2 + $0x8] sm:$0xff]
  %v5345 = vld [vmem:[%s6 + $0x4c0] sm:$0xff]
  %v5346 = vld [vmem:[%s6 + $0x4c8] sm:$0xff]
  %v5347 = vld [vmem:[%s6 + $0x4d0] sm:$0xff]
  %v5348 = vld [vmem:[%s6 + $0x4d8] sm:$0xff]
  %v5349 = vld [vmem:[%s6 + $0x4e0] sm:$0xff]
  %v5350 = vld [vmem:[%s6 + $0x4e8] sm:$0xff]
  %v5351 = vld [vmem:[%s6 + $0x4f0] sm:$0xff]
  %v5352 = vld [vmem:[%s6 + $0x4f8] sm:$0xff]
  %v5354 = vsel %vm2654, %v5344, 0
  %5356 = vmatprep.subr.mxu0 0.0
  %5357 = vmatpush1.msra.mxu0 %v5345
  %5358 = vmatprep.subr.mxu0 0.0
  %5359 = vmatpush1.msra.mxu0 %v5346
  %5360 = vmatprep.subr.mxu0 0.0
  %5361 = vmatpush1.msra.mxu0 %v5347
  %5362 = vmatprep.subr.mxu0 0.0
  %5363 = vmatpush1.msra.mxu0 %v5348
  %5364 = vmatprep.subr.mxu0 0.0
  %5365 = vmatpush1.msra.mxu0 %v5349
  %5366 = vmatprep.subr.mxu0 0.0
  %5367 = vmatpush1.msra.mxu0 %v5350
  %5368 = vmatprep.subr.mxu0 0.0
  %5369 = vmatpush1.msra.mxu0 %v5351
  %5370 = vmatprep.subr.mxu0 0.0
  %5371 = vmatpush1.msra.mxu0 %v5352
  %5372 = vmatprep.subr.mxu0 0.0
  %5373 = vmatpush1.msra.mxu0 0.0
  %5374 = vmatprep.subr.mxu0 0.0
  %5375 = vmatpush1.msra.mxu0 0.0
  %5376 = vmatprep.subr.mxu0 0.0
  %5377 = vmatpush1.msra.mxu0 0.0
  %5378 = vmatprep.subr.mxu0 0.0
  %5379 = vmatpush1.msra.mxu0 0.0
  %5380 = vmatprep.subr.mxu0 0.0
  %5381 = vmatpush1.msra.mxu0 0.0
  %5382 = vmatprep.subr.mxu0 0.0
  %5383 = vmatpush1.msra.mxu0 0.0
  %5384 = vmatprep.subr.mxu0 0.0
  %5385 = vmatpush1.msra.mxu0 0.0
  %5386 = vmatprep.subr.mxu0 0.0
  %5387 = vmatpush1.msra.mxu0 0.0
  %5388 = vmatprep.subr.mxu0 0.0
  %5389 = vmatpush1.msra.mxu0 0.0
  %5390 = vmatprep.subr.mxu0 0.0
  %5391 = vmatpush1.msra.mxu0 0.0
  %5392 = vmatprep.subr.mxu0 0.0
  %5393 = vmatpush1.msra.mxu0 0.0
  %5394 = vmatprep.subr.mxu0 0.0
  %5395 = vmatpush1.msra.mxu0 0.0
  %5396 = vmatprep.subr.mxu0 0.0
  %5397 = vmatpush1.msra.mxu0 0.0
  %5398 = vmatprep.subr.mxu0 0.0
  %5399 = vmatpush1.msra.mxu0 0.0
  %5400 = vmatprep.subr.mxu0 0.0
  %5401 = vmatpush1.msra.mxu0 0.0
  %5402 = vmatprep.subr.mxu0 0.0
  %5403 = vmatpush1.msra.mxu0 0.0
  %5404 = vmatprep.subr.mxu0 0.0
  %5405 = vmatpush1.msra.mxu0 0.0
  %5406 = vmatprep.subr.mxu0 0.0
  %5407 = vmatpush1.msra.mxu0 0.0
  %5408 = vmatprep.subr.mxu0 0.0
  %5409 = vmatpush1.msra.mxu0 0.0
  %5410 = vmatprep.subr.mxu0 0.0
  %5411 = vmatpush1.msra.mxu0 0.0
  %5412 = vmatprep.subr.mxu0 0.0
  %5413 = vmatpush1.msra.mxu0 0.0
  %5414 = vmatprep.subr.mxu0 0.0
  %5415 = vmatpush1.msra.mxu0 0.0
  %5416 = vmatprep.subr.mxu0 0.0
  %5417 = vmatpush1.msra.mxu0 0.0
  %5418 = vmatprep.subr.mxu0 0.0
  %5419 = vmatpush1.msra.mxu0 0.0
  %5420 = vmatprep.mubr.f32.mxu0 0.0
  %5421 = vmatmul.mubr.f32.gmra.mrb[0].mxu0 %v5354
  %v5422 = vpop.f32.mrb[0].mxu0
  %v5423 = vadd.f32 0.0, %v5422
  %v5424 = vpop.f32.mrb[0].mxu0
  %5425 = vdwg.mxu0
  %v5427 = vsel %vm2654, %v5335, 0
  %5429 = vmatprep.subr.mxu0 0.0
  %5430 = vmatpush1.msra.mxu0 %v5336
  %5431 = vmatprep.subr.mxu0 0.0
  %5432 = vmatpush1.msra.mxu0 %v5337
  %5433 = vmatprep.subr.mxu0 0.0
  %5434 = vmatpush1.msra.mxu0 %v5338
  %5435 = vmatprep.subr.mxu0 0.0
  %5436 = vmatpush1.msra.mxu0 %v5339
  %5437 = vmatprep.subr.mxu0 0.0
  %5438 = vmatpush1.msra.mxu0 %v5340
  %5439 = vmatprep.subr.mxu0 0.0
  %5440 = vmatpush1.msra.mxu0 %v5341
  %5441 = vmatprep.subr.mxu0 0.0
  %5442 = vmatpush1.msra.mxu0 %v5342
  %5443 = vmatprep.subr.mxu0 0.0
  %5444 = vmatpush1.msra.mxu0 %v5343
  %5445 = vmatprep.subr.mxu0 0.0
  %5446 = vmatpush1.msra.mxu0 0.0
  %5447 = vmatprep.subr.mxu0 0.0
  %5448 = vmatpush1.msra.mxu0 0.0
  %5449 = vmatprep.subr.mxu0 0.0
  %5450 = vmatpush1.msra.mxu0 0.0
  %5451 = vmatprep.subr.mxu0 0.0
  %5452 = vmatpush1.msra.mxu0 0.0
  %5453 = vmatprep.subr.mxu0 0.0
  %5454 = vmatpush1.msra.mxu0 0.0
  %5455 = vmatprep.subr.mxu0 0.0
  %5456 = vmatpush1.msra.mxu0 0.0
  %5457 = vmatprep.subr.mxu0 0.0
  %5458 = vmatpush1.msra.mxu0 0.0
  %5459 = vmatprep.subr.mxu0 0.0
  %5460 = vmatpush1.msra.mxu0 0.0
  %5461 = vmatprep.subr.mxu0 0.0
  %5462 = vmatpush1.msra.mxu0 0.0
  %5463 = vmatprep.subr.mxu0 0.0
  %5464 = vmatpush1.msra.mxu0 0.0
  %5465 = vmatprep.subr.mxu0 0.0
  %5466 = vmatpush1.msra.mxu0 0.0
  %5467 = vmatprep.subr.mxu0 0.0
  %5468 = vmatpush1.msra.mxu0 0.0
  %5469 = vmatprep.subr.mxu0 0.0
  %5470 = vmatpush1.msra.mxu0 0.0
  %5471 = vmatprep.subr.mxu0 0.0
  %5472 = vmatpush1.msra.mxu0 0.0
  %5473 = vmatprep.subr.mxu0 0.0
  %5474 = vmatpush1.msra.mxu0 0.0
  %5475 = vmatprep.subr.mxu0 0.0
  %5476 = vmatpush1.msra.mxu0 0.0
  %5477 = vmatprep.subr.mxu0 0.0
  %5478 = vmatpush1.msra.mxu0 0.0
  %5479 = vmatprep.subr.mxu0 0.0
  %5480 = vmatpush1.msra.mxu0 0.0
  %5481 = vmatprep.subr.mxu0 0.0
  %5482 = vmatpush1.msra.mxu0 0.0
  %5483 = vmatprep.subr.mxu0 0.0
  %5484 = vmatpush1.msra.mxu0 0.0
  %5485 = vmatprep.subr.mxu0 0.0
  %5486 = vmatpush1.msra.mxu0 0.0
  %5487 = vmatprep.subr.mxu0 0.0
  %5488 = vmatpush1.msra.mxu0 0.0
  %5489 = vmatprep.subr.mxu0 0.0
  %5490 = vmatpush1.msra.mxu0 0.0
  %5491 = vmatprep.subr.mxu0 0.0
  %5492 = vmatpush1.msra.mxu0 0.0
  %5493 = vmatprep.mubr.f32.mxu0 0.0
  %5494 = vmatmul.mubr.f32.gmra.mrb[0].mxu0 %v5427
  %v5495 = vpop.f32.mrb[0].mxu0
  %v5496 = vadd.f32 %v5423, %v5495
  %v5497 = vpop.f32.mrb[0].mxu0
  %5498 = vdwg.mxu0
  %v5499 = vld [vmem:[#allocation2 + $0x10] sm:$0xff]
  %v5500 = vld [vmem:[%s6 + $0x500] sm:$0xff]
  %v5501 = vld [vmem:[%s6 + $0x508] sm:$0xff]
  %v5502 = vld [vmem:[%s6 + $0x510] sm:$0xff]
  %v5503 = vld [vmem:[%s6 + $0x518] sm:$0xff]
  %v5504 = vld [vmem:[%s6 + $0x520] sm:$0xff]
  %v5505 = vld [vmem:[%s6 + $0x528] sm:$0xff]
  %v5506 = vld [vmem:[%s6 + $0x530] sm:$0xff]
  %v5507 = vld [vmem:[%s6 + $0x538] sm:$0xff]
  %v5509 = vsel %vm2654, %v5499, 0
  %5511 = vmatprep.subr.mxu0 0.0
  %5512 = vmatpush1.msra.mxu0 %v5500
  %5513 = vmatprep.subr.mxu0 0.0
  %5514 = vmatpush1.msra.mxu0 %v5501
  %5515 = vmatprep.subr.mxu0 0.0
  %5516 = vmatpush1.msra.mxu0 %v5502
  %5517 = vmatprep.subr.mxu0 0.0
  %5518 = vmatpush1.msra.mxu0 %v5503
  %5519 = vmatprep.subr.mxu0 0.0
  %5520 = vmatpush1.msra.mxu0 %v5504
  %5521 = vmatprep.subr.mxu0 0.0
  %5522 = vmatpush1.msra.mxu0 %v5505
  %5523 = vmatprep.subr.mxu0 0.0
  %5524 = vmatpush1.msra.mxu0 %v5506
  %5525 = vmatprep.subr.mxu0 0.0
  %5526 = vmatpush1.msra.mxu0 %v5507
  %5527 = vmatprep.subr.mxu0 0.0
  %5528 = vmatpush1.msra.mxu0 0.0
  %5529 = vmatprep.subr.mxu0 0.0
  %5530 = vmatpush1.msra.mxu0 0.0
  %5531 = vmatprep.subr.mxu0 0.0
  %5532 = vmatpush1.msra.mxu0 0.0
  %5533 = vmatprep.subr.mxu0 0.0
  %5534 = vmatpush1.msra.mxu0 0.0
  %5535 = vmatprep.subr.mxu0 0.0
  %5536 = vmatpush1.msra.mxu0 0.0
  %5537 = vmatprep.subr.mxu0 0.0
  %5538 = vmatpush1.msra.mxu0 0.0
  %5539 = vmatprep.subr.mxu0 0.0
  %5540 = vmatpush1.msra.mxu0 0.0
  %5541 = vmatprep.subr.mxu0 0.0
  %5542 = vmatpush1.msra.mxu0 0.0
  %5543 = vmatprep.subr.mxu0 0.0
  %5544 = vmatpush1.msra.mxu0 0.0
  %5545 = vmatprep.subr.mxu0 0.0
  %5546 = vmatpush1.msra.mxu0 0.0
  %5547 = vmatprep.subr.mxu0 0.0
  %5548 = vmatpush1.msra.mxu0 0.0
  %5549 = vmatprep.subr.mxu0 0.0
  %5550 = vmatpush1.msra.mxu0 0.0
  %5551 = vmatprep.subr.mxu0 0.0
  %5552 = vmatpush1.msra.mxu0 0.0
  %5553 = vmatprep.subr.mxu0 0.0
  %5554 = vmatpush1.msra.mxu0 0.0
  %5555 = vmatprep.subr.mxu0 0.0
  %5556 = vmatpush1.msra.mxu0 0.0
  %5557 = vmatprep.subr.mxu0 0.0
  %5558 = vmatpush1.msra.mxu0 0.0
  %5559 = vmatprep.subr.mxu0 0.0
  %5560 = vmatpush1.msra.mxu0 0.0
  %5561 = vmatprep.subr.mxu0 0.0
  %5562 = vmatpush1.msra.mxu0 0.0
  %5563 = vmatprep.subr.mxu0 0.0
  %5564 = vmatpush1.msra.mxu0 0.0
  %5565 = vmatprep.subr.mxu0 0.0
  %5566 = vmatpush1.msra.mxu0 0.0
  %5567 = vmatprep.subr.mxu0 0.0
  %5568 = vmatpush1.msra.mxu0 0.0
  %5569 = vmatprep.subr.mxu0 0.0
  %5570 = vmatpush1.msra.mxu0 0.0
  %5571 = vmatprep.subr.mxu0 0.0
  %5572 = vmatpush1.msra.mxu0 0.0
  %5573 = vmatprep.subr.mxu0 0.0
  %5574 = vmatpush1.msra.mxu0 0.0
  %5575 = vmatprep.mubr.f32.mxu0 0.0
  %5576 = vmatmul.mubr.f32.gmra.mrb[0].mxu0 %v5509
  %v5577 = vpop.f32.mrb[0].mxu0
  %v5578 = vadd.f32 0.0, %v5577
  %v5579 = vpop.f32.mrb[0].mxu0
  %5580 = vdwg.mxu0
  %v5581 = vadd.f32 %v5496, %v5578
  %v5582 = vld [vmem:[#allocation2 + $0x18] sm:$0xff]
  %v5583 = vld [vmem:[%s6 + $0x540] sm:$0xff]
  %v5584 = vld [vmem:[%s6 + $0x548] sm:$0xff]
  %v5585 = vld [vmem:[%s6 + $0x550] sm:$0xff]
  %v5586 = vld [vmem:[%s6 + $0x558] sm:$0xff]
  %v5587 = vld [vmem:[%s6 + $0x560] sm:$0xff]
  %v5588 = vld [vmem:[%s6 + $0x568] sm:$0xff]
  %v5589 = vld [vmem:[%s6 + $0x570] sm:$0xff]
  %v5590 = vld [vmem:[%s6 + $0x578] sm:$0xff]
  %v5592 = vsel %vm2654, %v5582, 0
  %5594 = vmatprep.subr.mxu0 0.0
  %5595 = vmatpush1.msra.mxu0 %v5583
  %5596 = vmatprep.subr.mxu0 0.0
  %5597 = vmatpush1.msra.mxu0 %v5584
  %5598 = vmatprep.subr.mxu0 0.0
  %5599 = vmatpush1.msra.mxu0 %v5585
  %5600 = vmatprep.subr.mxu0 0.0
  %5601 = vmatpush1.msra.mxu0 %v5586
  %5602 = vmatprep.subr.mxu0 0.0
  %5603 = vmatpush1.msra.mxu0 %v5587
  %5604 = vmatprep.subr.mxu0 0.0
  %5605 = vmatpush1.msra.mxu0 %v5588
  %5606 = vmatprep.subr.mxu0 0.0
  %5607 = vmatpush1.msra.mxu0 %v5589
  %5608 = vmatprep.subr.mxu0 0.0
  %5609 = vmatpush1.msra.mxu0 %v5590
  %5610 = vmatprep.subr.mxu0 0.0
  %5611 = vmatpush1.msra.mxu0 0.0
  %5612 = vmatprep.subr.mxu0 0.0
  %5613 = vmatpush1.msra.mxu0 0.0
  %5614 = vmatprep.subr.mxu0 0.0
  %5615 = vmatpush1.msra.mxu0 0.0
  %5616 = vmatprep.subr.mxu0 0.0
  %5617 = vmatpush1.msra.mxu0 0.0
  %5618 = vmatprep.subr.mxu0 0.0
  %5619 = vmatpush1.msra.mxu0 0.0
  %5620 = vmatprep.subr.mxu0 0.0
  %5621 = vmatpush1.msra.mxu0 0.0
  %5622 = vmatprep.subr.mxu0 0.0
  %5623 = vmatpush1.msra.mxu0 0.0
  %5624 = vmatprep.subr.mxu0 0.0
  %5625 = vmatpush1.msra.mxu0 0.0
  %5626 = vmatprep.subr.mxu0 0.0
  %5627 = vmatpush1.msra.mxu0 0.0
  %5628 = vmatprep.subr.mxu0 0.0
  %5629 = vmatpush1.msra.mxu0 0.0
  %5630 = vmatprep.subr.mxu0 0.0
  %5631 = vmatpush1.msra.mxu0 0.0
  %5632 = vmatprep.subr.mxu0 0.0
  %5633 = vmatpush1.msra.mxu0 0.0
  %5634 = vmatprep.subr.mxu0 0.0
  %5635 = vmatpush1.msra.mxu0 0.0
  %5636 = vmatprep.subr.mxu0 0.0
  %5637 = vmatpush1.msra.mxu0 0.0
  %5638 = vmatprep.subr.mxu0 0.0
  %5639 = vmatpush1.msra.mxu0 0.0
  %5640 = vmatprep.subr.mxu0 0.0
  %5641 = vmatpush1.msra.mxu0 0.0
  %5642 = vmatprep.subr.mxu0 0.0
  %5643 = vmatpush1.msra.mxu0 0.0
  %5644 = vmatprep.subr.mxu0 0.0
  %5645 = vmatpush1.msra.mxu0 0.0
  %5646 = vmatprep.subr.mxu0 0.0
  %5647 = vmatpush1.msra.mxu0 0.0
  %5648 = vmatprep.subr.mxu0 0.0
  %5649 = vmatpush1.msra.mxu0 0.0
  %5650 = vmatprep.subr.mxu0 0.0
  %5651 = vmatpush1.msra.mxu0 0.0
  %5652 = vmatprep.subr.mxu0 0.0
  %5653 = vmatpush1.msra.mxu0 0.0
  %5654 = vmatprep.subr.mxu0 0.0
  %5655 = vmatpush1.msra.mxu0 0.0
  %5656 = vmatprep.subr.mxu0 0.0
  %5657 = vmatpush1.msra.mxu0 0.0
  %5658 = vmatprep.mubr.f32.mxu0 0.0
  %5659 = vmatmul.mubr.f32.gmra.mrb[0].mxu0 %v5592
  %v5660 = vpop.f32.mrb[0].mxu0
  %v5661 = vadd.f32 0.0, %v5660
  %v5662 = vpop.f32.mrb[0].mxu0
  %5663 = vdwg.mxu0
  %v5664 = vadd.f32 %v5581, %v5661
  %v5665 = vld [vmem:[#allocation2 + $0x20] sm:$0xff]
  %v5666 = vld [vmem:[%s6 + $0x580] sm:$0xff]
  %v5667 = vld [vmem:[%s6 + $0x588] sm:$0xff]
  %v5668 = vld [vmem:[%s6 + $0x590] sm:$0xff]
  %v5669 = vld [vmem:[%s6 + $0x598] sm:$0xff]
  %v5670 = vld [vmem:[%s6 + $0x5a0] sm:$0xff]
  %v5671 = vld [vmem:[%s6 + $0x5a8] sm:$0xff]
  %v5672 = vld [vmem:[%s6 + $0x5b0] sm:$0xff]
  %v5673 = vld [vmem:[%s6 + $0x5b8] sm:$0xff]
  %v5675 = vsel %vm2654, %v5665, 0
  %5677 = vmatprep.subr.mxu0 0.0
  %5678 = vmatpush1.msra.mxu0 %v5666
  %5679 = vmatprep.subr.mxu0 0.0
  %5680 = vmatpush1.msra.mxu0 %v5667
  %5681 = vmatprep.subr.mxu0 0.0
  %5682 = vmatpush1.msra.mxu0 %v5668
  %5683 = vmatprep.subr.mxu0 0.0
  %5684 = vmatpush1.msra.mxu0 %v5669
  %5685 = vmatprep.subr.mxu0 0.0
  %5686 = vmatpush1.msra.mxu0 %v5670
  %5687 = vmatprep.subr.mxu0 0.0
  %5688 = vmatpush1.msra.mxu0 %v5671
  %5689 = vmatprep.subr.mxu0 0.0
  %5690 = vmatpush1.msra.mxu0 %v5672
  %5691 = vmatprep.subr.mxu0 0.0
  %5692 = vmatpush1.msra.mxu0 %v5673
  %5693 = vmatprep.subr.mxu0 0.0
  %5694 = vmatpush1.msra.mxu0 0.0
  %5695 = vmatprep.subr.mxu0 0.0
  %5696 = vmatpush1.msra.mxu0 0.0
  %5697 = vmatprep.subr.mxu0 0.0
  %5698 = vmatpush1.msra.mxu0 0.0
  %5699 = vmatprep.subr.mxu0 0.0
  %5700 = vmatpush1.msra.mxu0 0.0
  %5701 = vmatprep.subr.mxu0 0.0
  %5702 = vmatpush1.msra.mxu0 0.0
  %5703 = vmatprep.subr.mxu0 0.0
  %5704 = vmatpush1.msra.mxu0 0.0
  %5705 = vmatprep.subr.mxu0 0.0
  %5706 = vmatpush1.msra.mxu0 0.0
  %5707 = vmatprep.subr.mxu0 0.0
  %5708 = vmatpush1.msra.mxu0 0.0
  %5709 = vmatprep.subr.mxu0 0.0
  %5710 = vmatpush1.msra.mxu0 0.0
  %5711 = vmatprep.subr.mxu0 0.0
  %5712 = vmatpush1.msra.mxu0 0.0
  %5713 = vmatprep.subr.mxu0 0.0
  %5714 = vmatpush1.msra.mxu0 0.0
  %5715 = vmatprep.subr.mxu0 0.0
  %5716 = vmatpush1.msra.mxu0 0.0
  %5717 = vmatprep.subr.mxu0 0.0
  %5718 = vmatpush1.msra.mxu0 0.0
  %5719 = vmatprep.subr.mxu0 0.0
  %5720 = vmatpush1.msra.mxu0 0.0
  %5721 = vmatprep.subr.mxu0 0.0
  %5722 = vmatpush1.msra.mxu0 0.0
  %5723 = vmatprep.subr.mxu0 0.0
  %5724 = vmatpush1.msra.mxu0 0.0
  %5725 = vmatprep.subr.mxu0 0.0
  %5726 = vmatpush1.msra.mxu0 0.0
  %5727 = vmatprep.subr.mxu0 0.0
  %5728 = vmatpush1.msra.mxu0 0.0
  %5729 = vmatprep.subr.mxu0 0.0
  %5730 = vmatpush1.msra.mxu0 0.0
  %5731 = vmatprep.subr.mxu0 0.0
  %5732 = vmatpush1.msra.mxu0 0.0
  %5733 = vmatprep.subr.mxu0 0.0
  %5734 = vmatpush1.msra.mxu0 0.0
  %5735 = vmatprep.subr.mxu0 0.0
  %5736 = vmatpush1.msra.mxu0 0.0
  %5737 = vmatprep.subr.mxu0 0.0
  %5738 = vmatpush1.msra.mxu0 0.0
  %5739 = vmatprep.subr.mxu0 0.0
  %5740 = vmatpush1.msra.mxu0 0.0
  %5741 = vmatprep.mubr.f32.mxu0 0.0
  %5742 = vmatmul.mubr.f32.gmra.mrb[0].mxu0 %v5675
  %v5743 = vpop.f32.mrb[0].mxu0
  %v5744 = vadd.f32 0.0, %v5743
  %v5745 = vpop.f32.mrb[0].mxu0
  %5746 = vdwg.mxu0
  %v5747 = vadd.f32 %v5664, %v5744
  %v5748 = vld [vmem:[#allocation2 + $0x28] sm:$0xff]
  %v5749 = vld [vmem:[%s6 + $0x5c0] sm:$0xff]
  %v5750 = vld [vmem:[%s6 + $0x5c8] sm:$0xff]
  %v5751 = vld [vmem:[%s6 + $0x5d0] sm:$0xff]
  %v5752 = vld [vmem:[%s6 + $0x5d8] sm:$0xff]
  %v5753 = vld [vmem:[%s6 + $0x5e0] sm:$0xff]
  %v5754 = vld [vmem:[%s6 + $0x5e8] sm:$0xff]
  %v5755 = vld [vmem:[%s6 + $0x5f0] sm:$0xff]
  %v5756 = vld [vmem:[%s6 + $0x5f8] sm:$0xff]
  %v5758 = vsel %vm2654, %v5748, 0
  %5760 = vmatprep.subr.mxu0 0.0
  %5761 = vmatpush1.msra.mxu0 %v5749
  %5762 = vmatprep.subr.mxu0 0.0
  %5763 = vmatpush1.msra.mxu0 %v5750
  %5764 = vmatprep.subr.mxu0 0.0
  %5765 = vmatpush1.msra.mxu0 %v5751
  %5766 = vmatprep.subr.mxu0 0.0
  %5767 = vmatpush1.msra.mxu0 %v5752
  %5768 = vmatprep.subr.mxu0 0.0
  %5769 = vmatpush1.msra.mxu0 %v5753
  %5770 = vmatprep.subr.mxu0 0.0
  %5771 = vmatpush1.msra.mxu0 %v5754
  %5772 = vmatprep.subr.mxu0 0.0
  %5773 = vmatpush1.msra.mxu0 %v5755
  %5774 = vmatprep.subr.mxu0 0.0
  %5775 = vmatpush1.msra.mxu0 %v5756
  %5776 = vmatprep.subr.mxu0 0.0
  %5777 = vmatpush1.msra.mxu0 0.0
  %5778 = vmatprep.subr.mxu0 0.0
  %5779 = vmatpush1.msra.mxu0 0.0
  %5780 = vmatprep.subr.mxu0 0.0
  %5781 = vmatpush1.msra.mxu0 0.0
  %5782 = vmatprep.subr.mxu0 0.0
  %5783 = vmatpush1.msra.mxu0 0.0
  %5784 = vmatprep.subr.mxu0 0.0
  %5785 = vmatpush1.msra.mxu0 0.0
  %5786 = vmatprep.subr.mxu0 0.0
  %5787 = vmatpush1.msra.mxu0 0.0
  %5788 = vmatprep.subr.mxu0 0.0
  %5789 = vmatpush1.msra.mxu0 0.0
  %5790 = vmatprep.subr.mxu0 0.0
  %5791 = vmatpush1.msra.mxu0 0.0
  %5792 = vmatprep.subr.mxu0 0.0
  %5793 = vmatpush1.msra.mxu0 0.0
  %5794 = vmatprep.subr.mxu0 0.0
  %5795 = vmatpush1.msra.mxu0 0.0
  %5796 = vmatprep.subr.mxu0 0.0
  %5797 = vmatpush1.msra.mxu0 0.0
  %5798 = vmatprep.subr.mxu0 0.0
  %5799 = vmatpush1.msra.mxu0 0.0
  %5800 = vmatprep.subr.mxu0 0.0
  %5801 = vmatpush1.msra.mxu0 0.0
  %5802 = vmatprep.subr.mxu0 0.0
  %5803 = vmatpush1.msra.mxu0 0.0
  %5804 = vmatprep.subr.mxu0 0.0
  %5805 = vmatpush1.msra.mxu0 0.0
  %5806 = vmatprep.subr.mxu0 0.0
  %5807 = vmatpush1.msra.mxu0 0.0
  %5808 = vmatprep.subr.mxu0 0.0
  %5809 = vmatpush1.msra.mxu0 0.0
  %5810 = vmatprep.subr.mxu0 0.0
  %5811 = vmatpush1.msra.mxu0 0.0
  %5812 = vmatprep.subr.mxu0 0.0
  %5813 = vmatpush1.msra.mxu0 0.0
  %5814 = vmatprep.subr.mxu0 0.0
  %5815 = vmatpush1.msra.mxu0 0.0
  %5816 = vmatprep.subr.mxu0 0.0
  %5817 = vmatpush1.msra.mxu0 0.0
  %5818 = vmatprep.subr.mxu0 0.0
  %5819 = vmatpush1.msra.mxu0 0.0
  %5820 = vmatprep.subr.mxu0 0.0
  %5821 = vmatpush1.msra.mxu0 0.0
  %5822 = vmatprep.subr.mxu0 0.0
  %5823 = vmatpush1.msra.mxu0 0.0
  %5824 = vmatprep.mubr.f32.mxu0 0.0
  %5825 = vmatmul.mubr.f32.gmra.mrb[0].mxu0 %v5758
  %v5826 = vpop.f32.mrb[0].mxu0
  %v5827 = vadd.f32 0.0, %v5826
  %v5828 = vpop.f32.mrb[0].mxu0
  %5829 = vdwg.mxu0
  %v5830 = vadd.f32 %v5747, %v5827
  %v5831 = vld [vmem:[#allocation2 + $0x30] sm:$0xff]
  %v5832 = vld [vmem:[%s6 + $0x600] sm:$0xff]
  %v5833 = vld [vmem:[%s6 + $0x608] sm:$0xff]
  %v5834 = vld [vmem:[%s6 + $0x610] sm:$0xff]
  %v5835 = vld [vmem:[%s6 + $0x618] sm:$0xff]
  %v5836 = vld [vmem:[%s6 + $0x620] sm:$0xff]
  %v5837 = vld [vmem:[%s6 + $0x628] sm:$0xff]
  %v5838 = vld [vmem:[%s6 + $0x630] sm:$0xff]
  %v5839 = vld [vmem:[%s6 + $0x638] sm:$0xff]
  %v5841 = vsel %vm2654, %v5831, 0
  %5843 = vmatprep.subr.mxu0 0.0
  %5844 = vmatpush1.msra.mxu0 %v5832
  %5845 = vmatprep.subr.mxu0 0.0
  %5846 = vmatpush1.msra.mxu0 %v5833
  %5847 = vmatprep.subr.mxu0 0.0
  %5848 = vmatpush1.msra.mxu0 %v5834
  %5849 = vmatprep.subr.mxu0 0.0
  %5850 = vmatpush1.msra.mxu0 %v5835
  %5851 = vmatprep.subr.mxu0 0.0
  %5852 = vmatpush1.msra.mxu0 %v5836
  %5853 = vmatprep.subr.mxu0 0.0
  %5854 = vmatpush1.msra.mxu0 %v5837
  %5855 = vmatprep.subr.mxu0 0.0
  %5856 = vmatpush1.msra.mxu0 %v5838
  %5857 = vmatprep.subr.mxu0 0.0
  %5858 = vmatpush1.msra.mxu0 %v5839
  %5859 = vmatprep.subr.mxu0 0.0
  %5860 = vmatpush1.msra.mxu0 0.0
  %5861 = vmatprep.subr.mxu0 0.0
  %5862 = vmatpush1.msra.mxu0 0.0
  %5863 = vmatprep.subr.mxu0 0.0
  %5864 = vmatpush1.msra.mxu0 0.0
  %5865 = vmatprep.subr.mxu0 0.0
  %5866 = vmatpush1.msra.mxu0 0.0
  %5867 = vmatprep.subr.mxu0 0.0
  %5868 = vmatpush1.msra.mxu0 0.0
  %5869 = vmatprep.subr.mxu0 0.0
  %5870 = vmatpush1.msra.mxu0 0.0
  %5871 = vmatprep.subr.mxu0 0.0
  %5872 = vmatpush1.msra.mxu0 0.0
  %5873 = vmatprep.subr.mxu0 0.0
  %5874 = vmatpush1.msra.mxu0 0.0
  %5875 = vmatprep.subr.mxu0 0.0
  %5876 = vmatpush1.msra.mxu0 0.0
  %5877 = vmatprep.subr.mxu0 0.0
  %5878 = vmatpush1.msra.mxu0 0.0
  %5879 = vmatprep.subr.mxu0 0.0
  %5880 = vmatpush1.msra.mxu0 0.0
  %5881 = vmatprep.subr.mxu0 0.0
  %5882 = vmatpush1.msra.mxu0 0.0
  %5883 = vmatprep.subr.mxu0 0.0
  %5884 = vmatpush1.msra.mxu0 0.0
  %5885 = vmatprep.subr.mxu0 0.0
  %5886 = vmatpush1.msra.mxu0 0.0
  %5887 = vmatprep.subr.mxu0 0.0
  %5888 = vmatpush1.msra.mxu0 0.0
  %5889 = vmatprep.subr.mxu0 0.0
  %5890 = vmatpush1.msra.mxu0 0.0
  %5891 = vmatprep.subr.mxu0 0.0
  %5892 = vmatpush1.msra.mxu0 0.0
  %5893 = vmatprep.subr.mxu0 0.0
  %5894 = vmatpush1.msra.mxu0 0.0
  %5895 = vmatprep.subr.mxu0 0.0
  %5896 = vmatpush1.msra.mxu0 0.0
  %5897 = vmatprep.subr.mxu0 0.0
  %5898 = vmatpush1.msra.mxu0 0.0
  %5899 = vmatprep.subr.mxu0 0.0
  %5900 = vmatpush1.msra.mxu0 0.0
  %5901 = vmatprep.subr.mxu0 0.0
  %5902 = vmatpush1.msra.mxu0 0.0
  %5903 = vmatprep.subr.mxu0 0.0
  %5904 = vmatpush1.msra.mxu0 0.0
  %5905 = vmatprep.subr.mxu0 0.0
  %5906 = vmatpush1.msra.mxu0 0.0
  %5907 = vmatprep.mubr.f32.mxu0 0.0
  %5908 = vmatmul.mubr.f32.gmra.mrb[0].mxu0 %v5841
  %v5909 = vpop.f32.mrb[0].mxu0
  %v5910 = vadd.f32 0.0, %v5909
  %v5911 = vpop.f32.mrb[0].mxu0
  %5912 = vdwg.mxu0
  %v5913 = vadd.f32 %v5830, %v5910
  %v5914 = vld [vmem:[#allocation2 + $0x38] sm:$0xff]
  %v5915 = vld [vmem:[%s6 + $0x640] sm:$0xff]
  %v5916 = vld [vmem:[%s6 + $0x648] sm:$0xff]
  %v5917 = vld [vmem:[%s6 + $0x650] sm:$0xff]
  %v5918 = vld [vmem:[%s6 + $0x658] sm:$0xff]
  %v5919 = vld [vmem:[%s6 + $0x660] sm:$0xff]
  %v5920 = vld [vmem:[%s6 + $0x668] sm:$0xff]
  %v5921 = vld [vmem:[%s6 + $0x670] sm:$0xff]
  %v5922 = vld [vmem:[%s6 + $0x678] sm:$0xff]
  %v5924 = vsel %vm2654, %v5914, 0
  %5926 = vmatprep.subr.mxu0 0.0
  %5927 = vmatpush1.msra.mxu0 %v5915
  %5928 = vmatprep.subr.mxu0 0.0
  %5929 = vmatpush1.msra.mxu0 %v5916
  %5930 = vmatprep.subr.mxu0 0.0
  %5931 = vmatpush1.msra.mxu0 %v5917
  %5932 = vmatprep.subr.mxu0 0.0
  %5933 = vmatpush1.msra.mxu0 %v5918
  %5934 = vmatprep.subr.mxu0 0.0
  %5935 = vmatpush1.msra.mxu0 %v5919
  %5936 = vmatprep.subr.mxu0 0.0
  %5937 = vmatpush1.msra.mxu0 %v5920
  %5938 = vmatprep.subr.mxu0 0.0
  %5939 = vmatpush1.msra.mxu0 %v5921
  %5940 = vmatprep.subr.mxu0 0.0
  %5941 = vmatpush1.msra.mxu0 %v5922
  %5942 = vmatprep.subr.mxu0 0.0
  %5943 = vmatpush1.msra.mxu0 0.0
  %5944 = vmatprep.subr.mxu0 0.0
  %5945 = vmatpush1.msra.mxu0 0.0
  %5946 = vmatprep.subr.mxu0 0.0
  %5947 = vmatpush1.msra.mxu0 0.0
  %5948 = vmatprep.subr.mxu0 0.0
  %5949 = vmatpush1.msra.mxu0 0.0
  %5950 = vmatprep.subr.mxu0 0.0
  %5951 = vmatpush1.msra.mxu0 0.0
  %5952 = vmatprep.subr.mxu0 0.0
  %5953 = vmatpush1.msra.mxu0 0.0
  %5954 = vmatprep.subr.mxu0 0.0
  %5955 = vmatpush1.msra.mxu0 0.0
  %5956 = vmatprep.subr.mxu0 0.0
  %5957 = vmatpush1.msra.mxu0 0.0
  %5958 = vmatprep.subr.mxu0 0.0
  %5959 = vmatpush1.msra.mxu0 0.0
  %5960 = vmatprep.subr.mxu0 0.0
  %5961 = vmatpush1.msra.mxu0 0.0
  %5962 = vmatprep.subr.mxu0 0.0
  %5963 = vmatpush1.msra.mxu0 0.0
  %5964 = vmatprep.subr.mxu0 0.0
  %5965 = vmatpush1.msra.mxu0 0.0
  %5966 = vmatprep.subr.mxu0 0.0
  %5967 = vmatpush1.msra.mxu0 0.0
  %5968 = vmatprep.subr.mxu0 0.0
  %5969 = vmatpush1.msra.mxu0 0.0
  %5970 = vmatprep.subr.mxu0 0.0
  %5971 = vmatpush1.msra.mxu0 0.0
  %5972 = vmatprep.subr.mxu0 0.0
  %5973 = vmatpush1.msra.mxu0 0.0
  %5974 = vmatprep.subr.mxu0 0.0
  %5975 = vmatpush1.msra.mxu0 0.0
  %5976 = vmatprep.subr.mxu0 0.0
  %5977 = vmatpush1.msra.mxu0 0.0
  %5978 = vmatprep.subr.mxu0 0.0
  %5979 = vmatpush1.msra.mxu0 0.0
  %5980 = vmatprep.subr.mxu0 0.0
  %5981 = vmatpush1.msra.mxu0 0.0
  %5982 = vmatprep.subr.mxu0 0.0
  %5983 = vmatpush1.msra.mxu0 0.0
  %5984 = vmatprep.subr.mxu0 0.0
  %5985 = vmatpush1.msra.mxu0 0.0
  %5986 = vmatprep.subr.mxu0 0.0
  %5987 = vmatpush1.msra.mxu0 0.0
  %5988 = vmatprep.subr.mxu0 0.0
  %5989 = vmatpush1.msra.mxu0 0.0
  %5990 = vmatprep.mubr.f32.mxu0 0.0
  %5991 = vmatmul.mubr.f32.gmra.mrb[0].mxu0 %v5924
  %v5992 = vpop.f32.mrb[0].mxu0
  %v5993 = vadd.f32 0.0, %v5992
  %v5994 = vpop.f32.mrb[0].mxu0
  %5995 = vdwg.mxu0
  %v5996 = vadd.f32 %v5913, %v5993
  %v5997 = vld [vmem:[#allocation2 + $0x40] sm:$0xff]
  %v5998 = vld [vmem:[%s6 + $0x680] sm:$0xff]
  %v5999 = vld [vmem:[%s6 + $0x688] sm:$0xff]
  %v6000 = vld [vmem:[%s6 + $0x690] sm:$0xff]
  %v6001 = vld [vmem:[%s6 + $0x698] sm:$0xff]
  %v6002 = vld [vmem:[%s6 + $0x6a0] sm:$0xff]
  %v6003 = vld [vmem:[%s6 + $0x6a8] sm:$0xff]
  %v6004 = vld [vmem:[%s6 + $0x6b0] sm:$0xff]
  %v6005 = vld [vmem:[%s6 + $0x6b8] sm:$0xff]
  %v6007 = vsel %vm2654, %v5997, 0
  %6009 = vmatprep.subr.mxu0 0.0
  %6010 = vmatpush1.msra.mxu0 %v5998
  %6011 = vmatprep.subr.mxu0 0.0
  %6012 = vmatpush1.msra.mxu0 %v5999
  %6013 = vmatprep.subr.mxu0 0.0
  %6014 = vmatpush1.msra.mxu0 %v6000
  %6015 = vmatprep.subr.mxu0 0.0
  %6016 = vmatpush1.msra.mxu0 %v6001
  %6017 = vmatprep.subr.mxu0 0.0
  %6018 = vmatpush1.msra.mxu0 %v6002
  %6019 = vmatprep.subr.mxu0 0.0
  %6020 = vmatpush1.msra.mxu0 %v6003
  %6021 = vmatprep.subr.mxu0 0.0
  %6022 = vmatpush1.msra.mxu0 %v6004
  %6023 = vmatprep.subr.mxu0 0.0
  %6024 = vmatpush1.msra.mxu0 %v6005
  %6025 = vmatprep.subr.mxu0 0.0
  %6026 = vmatpush1.msra.mxu0 0.0
  %6027 = vmatprep.subr.mxu0 0.0
  %6028 = vmatpush1.msra.mxu0 0.0
  %6029 = vmatprep.subr.mxu0 0.0
  %6030 = vmatpush1.msra.mxu0 0.0
  %6031 = vmatprep.subr.mxu0 0.0
  %6032 = vmatpush1.msra.mxu0 0.0
  %6033 = vmatprep.subr.mxu0 0.0
  %6034 = vmatpush1.msra.mxu0 0.0
  %6035 = vmatprep.subr.mxu0 0.0
  %6036 = vmatpush1.msra.mxu0 0.0
  %6037 = vmatprep.subr.mxu0 0.0
  %6038 = vmatpush1.msra.mxu0 0.0
  %6039 = vmatprep.subr.mxu0 0.0
  %6040 = vmatpush1.msra.mxu0 0.0
  %6041 = vmatprep.subr.mxu0 0.0
  %6042 = vmatpush1.msra.mxu0 0.0
  %6043 = vmatprep.subr.mxu0 0.0
  %6044 = vmatpush1.msra.mxu0 0.0
  %6045 = vmatprep.subr.mxu0 0.0
  %6046 = vmatpush1.msra.mxu0 0.0
  %6047 = vmatprep.subr.mxu0 0.0
  %6048 = vmatpush1.msra.mxu0 0.0
  %6049 = vmatprep.subr.mxu0 0.0
  %6050 = vmatpush1.msra.mxu0 0.0
  %6051 = vmatprep.subr.mxu0 0.0
  %6052 = vmatpush1.msra.mxu0 0.0
  %6053 = vmatprep.subr.mxu0 0.0
  %6054 = vmatpush1.msra.mxu0 0.0
  %6055 = vmatprep.subr.mxu0 0.0
  %6056 = vmatpush1.msra.mxu0 0.0
  %6057 = vmatprep.subr.mxu0 0.0
  %6058 = vmatpush1.msra.mxu0 0.0
  %6059 = vmatprep.subr.mxu0 0.0
  %6060 = vmatpush1.msra.mxu0 0.0
  %6061 = vmatprep.subr.mxu0 0.0
  %6062 = vmatpush1.msra.mxu0 0.0
  %6063 = vmatprep.subr.mxu0 0.0
  %6064 = vmatpush1.msra.mxu0 0.0
  %6065 = vmatprep.subr.mxu0 0.0
  %6066 = vmatpush1.msra.mxu0 0.0
  %6067 = vmatprep.subr.mxu0 0.0
  %6068 = vmatpush1.msra.mxu0 0.0
  %6069 = vmatprep.subr.mxu0 0.0
  %6070 = vmatpush1.msra.mxu0 0.0
  %6071 = vmatprep.subr.mxu0 0.0
  %6072 = vmatpush1.msra.mxu0 0.0
  %6073 = vmatprep.mubr.f32.mxu0 0.0
  %6074 = vmatmul.mubr.f32.gmra.mrb[0].mxu0 %v6007
  %v6075 = vpop.f32.mrb[0].mxu0
  %v6076 = vadd.f32 0.0, %v6075
  %v6077 = vpop.f32.mrb[0].mxu0
  %6078 = vdwg.mxu0
  %v6079 = vadd.f32 %v5996, %v6076
  %v6080 = vlaneseq
  %v6081 = vshrl.u32 %v6080, 7
  %v6082 = vsub.s32 5, %v6081
  %v6083 = vrot.slane %v38, %v6082
  %v6084 = vadd.f32 %v6079, %v6083
  %v6085 = vlaneseq
  %v6086 = vshrl.u32 %v6085, 7
  %v6087 = vsub.s32 6, %v6086
  %v6088 = vrot.slane %v38, %v6087
  %v6089 = vadd.f32 %v6084, %v6088
  %v6090 = vld [vmem:[%s7] sm:$0xff]
  %v6091 = vld [vmem:[%s7 + $0x8] sm:$0xff]
  %v6092 = vld [vmem:[%s7 + $0x10] sm:$0xff]
  %v6093 = vld [vmem:[%s7 + $0x18] sm:$0xff]
  %v6095 = vsel %vm2632, %v6089, 0
  %6097 = vmatprep.subr.mxu0 0.0
  %6098 = vmatpush1.msra.mxu0 %v6090
  %6099 = vmatprep.subr.mxu0 0.0
  %6100 = vmatpush1.msra.mxu0 %v6091
  %6101 = vmatprep.subr.mxu0 0.0
  %6102 = vmatpush1.msra.mxu0 %v6092
  %6103 = vmatprep.subr.mxu0 0.0
  %6104 = vmatpush1.msra.mxu0 %v6093
  %6105 = vmatprep.subr.mxu0 0.0
  %6106 = vmatpush1.msra.mxu0 0.0
  %6107 = vmatprep.subr.mxu0 0.0
  %6108 = vmatpush1.msra.mxu0 0.0
  %6109 = vmatprep.subr.mxu0 0.0
  %6110 = vmatpush1.msra.mxu0 0.0
  %6111 = vmatprep.subr.mxu0 0.0
  %6112 = vmatpush1.msra.mxu0 0.0
  %6113 = vmatprep.subr.mxu0 0.0
  %6114 = vmatpush1.msra.mxu0 0.0
  %6115 = vmatprep.subr.mxu0 0.0
  %6116 = vmatpush1.msra.mxu0 0.0
  %6117 = vmatprep.subr.mxu0 0.0
  %6118 = vmatpush1.msra.mxu0 0.0
  %6119 = vmatprep.subr.mxu0 0.0
  %6120 = vmatpush1.msra.mxu0 0.0
  %6121 = vmatprep.subr.mxu0 0.0
  %6122 = vmatpush1.msra.mxu0 0.0
  %6123 = vmatprep.subr.mxu0 0.0
  %6124 = vmatpush1.msra.mxu0 0.0
  %6125 = vmatprep.subr.mxu0 0.0
  %6126 = vmatpush1.msra.mxu0 0.0
  %6127 = vmatprep.subr.mxu0 0.0
  %6128 = vmatpush1.msra.mxu0 0.0
  %6129 = vmatprep.subr.mxu0 0.0
  %6130 = vmatpush1.msra.mxu0 0.0
  %6131 = vmatprep.subr.mxu0 0.0
  %6132 = vmatpush1.msra.mxu0 0.0
  %6133 = vmatprep.subr.mxu0 0.0
  %6134 = vmatpush1.msra.mxu0 0.0
  %6135 = vmatprep.subr.mxu0 0.0
  %6136 = vmatpush1.msra.mxu0 0.0
  %6137 = vmatprep.subr.mxu0 0.0
  %6138 = vmatpush1.msra.mxu0 0.0
  %6139 = vmatprep.subr.mxu0 0.0
  %6140 = vmatpush1.msra.mxu0 0.0
  %6141 = vmatprep.subr.mxu0 0.0
  %6142 = vmatpush1.msra.mxu0 0.0
  %6143 = vmatprep.subr.mxu0 0.0
  %6144 = vmatpush1.msra.mxu0 0.0
  %6145 = vmatprep.subr.mxu0 0.0
  %6146 = vmatpush1.msra.mxu0 0.0
  %6147 = vmatprep.subr.mxu0 0.0
  %6148 = vmatpush1.msra.mxu0 0.0
  %6149 = vmatprep.subr.mxu0 0.0
  %6150 = vmatpush1.msra.mxu0 0.0
  %6151 = vmatprep.subr.mxu0 0.0
  %6152 = vmatpush1.msra.mxu0 0.0
  %6153 = vmatprep.subr.mxu0 0.0
  %6154 = vmatpush1.msra.mxu0 0.0
  %6155 = vmatprep.subr.mxu0 0.0
  %6156 = vmatpush1.msra.mxu0 0.0
  %6157 = vmatprep.subr.mxu0 0.0
  %6158 = vmatpush1.msra.mxu0 0.0
  %6159 = vmatprep.subr.mxu0 0.0
  %6160 = vmatpush1.msra.mxu0 0.0
  %6161 = vmatprep.mubr.f32.mxu0 0.0
  %6162 = vmatmul.mubr.f32.gmra.mrb[0].mxu0 %v6095
  %v6163 = vpop.f32.mrb[0].mxu0
  %v6164 = vadd.f32 0.0, %v6163
  %v6165 = vpop.f32.mrb[0].mxu0
  %6166 = vdwg.mxu0
  %v6167 = vlaneseq
  %v6168 = vshrl.u32 %v6167, 7
  %v6169 = vsub.s32 7, %v6168
  %v6170 = vrot.slane %v38, %v6169
  %v6171 = vadd.f32 %v6164, %v6170
  %vm6172 = vcmp.gt.f32.partialorder %v6171, 0.0
  %v6173 = vmul.f32 %v6171, 0.01
  %v6174 = vsel %vm6172, %v6171, %v6173
  %v6175 = vlaneseq
  %v6176 = vshrl.u32 %v6175, 7
  %v6177 = vsub.s32 1, %v6176
  %v6178 = vrot.slane %v39, %v6177
  %6180 = vrot.lane.b32.xlu0 %v6178, 32
  %v6181 = vpop.permute.xlu0 %6180
  %v6183 = vadd.f32 %v6164, %v6181
  %v6184 = vld [vmem:[%s7 + $0x20] sm:$0xff]
  %v6185 = vld [vmem:[%s7 + $0x28] sm:$0xff]
  %v6186 = vld [vmem:[%s7 + $0x30] sm:$0xff]
  %v6187 = vld [vmem:[%s7 + $0x38] sm:$0xff]
  %v6188 = vlaneseq
  %v6189 = vshrl.u32 %v6188, 7
  %v6190 = vsub.s32 0, %v6189
  %v6191 = vrot.slane %v39, %v6190
  %v6193 = vsel %vm2632, %v6174, 0
  %6195 = vmatprep.subr.mxu0 0.0
  %6196 = vmatpush1.msra.mxu0 %v6184
  %6197 = vmatprep.subr.mxu0 0.0
  %6198 = vmatpush1.msra.mxu0 %v6185
  %6199 = vmatprep.subr.mxu0 0.0
  %6200 = vmatpush1.msra.mxu0 %v6186
  %6201 = vmatprep.subr.mxu0 0.0
  %6202 = vmatpush1.msra.mxu0 %v6187
  %6203 = vmatprep.subr.mxu0 0.0
  %6204 = vmatpush1.msra.mxu0 0.0
  %6205 = vmatprep.subr.mxu0 0.0
  %6206 = vmatpush1.msra.mxu0 0.0
  %6207 = vmatprep.subr.mxu0 0.0
  %6208 = vmatpush1.msra.mxu0 0.0
  %6209 = vmatprep.subr.mxu0 0.0
  %6210 = vmatpush1.msra.mxu0 0.0
  %6211 = vmatprep.subr.mxu0 0.0
  %6212 = vmatpush1.msra.mxu0 0.0
  %6213 = vmatprep.subr.mxu0 0.0
  %6214 = vmatpush1.msra.mxu0 0.0
  %6215 = vmatprep.subr.mxu0 0.0
  %6216 = vmatpush1.msra.mxu0 0.0
  %6217 = vmatprep.subr.mxu0 0.0
  %6218 = vmatpush1.msra.mxu0 0.0
  %6219 = vmatprep.subr.mxu0 0.0
  %6220 = vmatpush1.msra.mxu0 0.0
  %6221 = vmatprep.subr.mxu0 0.0
  %6222 = vmatpush1.msra.mxu0 0.0
  %6223 = vmatprep.subr.mxu0 0.0
  %6224 = vmatpush1.msra.mxu0 0.0
  %6225 = vmatprep.subr.mxu0 0.0
  %6226 = vmatpush1.msra.mxu0 0.0
  %6227 = vmatprep.subr.mxu0 0.0
  %6228 = vmatpush1.msra.mxu0 0.0
  %6229 = vmatprep.subr.mxu0 0.0
  %6230 = vmatpush1.msra.mxu0 0.0
  %6231 = vmatprep.subr.mxu0 0.0
  %6232 = vmatpush1.msra.mxu0 0.0
  %6233 = vmatprep.subr.mxu0 0.0
  %6234 = vmatpush1.msra.mxu0 0.0
  %6235 = vmatprep.subr.mxu0 0.0
  %6236 = vmatpush1.msra.mxu0 0.0
  %6237 = vmatprep.subr.mxu0 0.0
  %6238 = vmatpush1.msra.mxu0 0.0
  %6239 = vmatprep.subr.mxu0 0.0
  %6240 = vmatpush1.msra.mxu0 0.0
  %6241 = vmatprep.subr.mxu0 0.0
  %6242 = vmatpush1.msra.mxu0 0.0
  %6243 = vmatprep.subr.mxu0 0.0
  %6244 = vmatpush1.msra.mxu0 0.0
  %6245 = vmatprep.subr.mxu0 0.0
  %6246 = vmatpush1.msra.mxu0 0.0
  %6247 = vmatprep.subr.mxu0 0.0
  %6248 = vmatpush1.msra.mxu0 0.0
  %6249 = vmatprep.subr.mxu0 0.0
  %6250 = vmatpush1.msra.mxu0 0.0
  %6251 = vmatprep.subr.mxu0 0.0
  %6252 = vmatpush1.msra.mxu0 0.0
  %6253 = vmatprep.subr.mxu0 0.0
  %6254 = vmatpush1.msra.mxu0 0.0
  %6255 = vmatprep.subr.mxu0 0.0
  %6256 = vmatpush1.msra.mxu0 0.0
  %6257 = vmatprep.subr.mxu0 0.0
  %6258 = vmatpush1.msra.mxu0 0.0
  %6259 = vmatprep.mubr.f32.mxu0 0.0
  %6260 = vmatmul.mubr.f32.gmra.mrb[0].mxu0 %v6193
  %v6261 = vpop.f32.mrb[0].mxu0
  %v6262 = vadd.f32 %v6191, %v6261
  %v6263 = vpop.f32.mrb[0].mxu0
  %6264 = vdwg.mxu0
  %6266 = vrot.lane.b32.xlu0 %v6183, 96
  %v6267 = vpop.permute.xlu0 %6266
  %v6269 = vadd.f32 %v6262, %v6267
  %v6270 = vld [vmem:[%s7 + $0x40] sm:$0xff]
  %v6271 = vld [vmem:[%s7 + $0x48] sm:$0xff]
  %v6272 = vld [vmem:[%s7 + $0x50] sm:$0xff]
  %v6273 = vld [vmem:[%s7 + $0x58] sm:$0xff]
  %v6275 = vsel %vm2632, %v6269, 0
  %6277 = vmatprep.subr.mxu0 0.0
  %6278 = vmatpush1.msra.mxu0 %v6270
  %6279 = vmatprep.subr.mxu0 0.0
  %6280 = vmatpush1.msra.mxu0 %v6271
  %6281 = vmatprep.subr.mxu0 0.0
  %6282 = vmatpush1.msra.mxu0 %v6272
  %6283 = vmatprep.subr.mxu0 0.0
  %6284 = vmatpush1.msra.mxu0 %v6273
  %6285 = vmatprep.subr.mxu0 0.0
  %6286 = vmatpush1.msra.mxu0 0.0
  %6287 = vmatprep.subr.mxu0 0.0
  %6288 = vmatpush1.msra.mxu0 0.0
  %6289 = vmatprep.subr.mxu0 0.0
  %6290 = vmatpush1.msra.mxu0 0.0
  %6291 = vmatprep.subr.mxu0 0.0
  %6292 = vmatpush1.msra.mxu0 0.0
  %6293 = vmatprep.subr.mxu0 0.0
  %6294 = vmatpush1.msra.mxu0 0.0
  %6295 = vmatprep.subr.mxu0 0.0
  %6296 = vmatpush1.msra.mxu0 0.0
  %6297 = vmatprep.subr.mxu0 0.0
  %6298 = vmatpush1.msra.mxu0 0.0
  %6299 = vmatprep.subr.mxu0 0.0
  %6300 = vmatpush1.msra.mxu0 0.0
  %6301 = vmatprep.subr.mxu0 0.0
  %6302 = vmatpush1.msra.mxu0 0.0
  %6303 = vmatprep.subr.mxu0 0.0
  %6304 = vmatpush1.msra.mxu0 0.0
  %6305 = vmatprep.subr.mxu0 0.0
  %6306 = vmatpush1.msra.mxu0 0.0
  %6307 = vmatprep.subr.mxu0 0.0
  %6308 = vmatpush1.msra.mxu0 0.0
  %6309 = vmatprep.subr.mxu0 0.0
  %6310 = vmatpush1.msra.mxu0 0.0
  %6311 = vmatprep.subr.mxu0 0.0
  %6312 = vmatpush1.msra.mxu0 0.0
  %6313 = vmatprep.subr.mxu0 0.0
  %6314 = vmatpush1.msra.mxu0 0.0
  %6315 = vmatprep.subr.mxu0 0.0
  %6316 = vmatpush1.msra.mxu0 0.0
  %6317 = vmatprep.subr.mxu0 0.0
  %6318 = vmatpush1.msra.mxu0 0.0
  %6319 = vmatprep.subr.mxu0 0.0
  %6320 = vmatpush1.msra.mxu0 0.0
  %6321 = vmatprep.subr.mxu0 0.0
  %6322 = vmatpush1.msra.mxu0 0.0
  %6323 = vmatprep.subr.mxu0 0.0
  %6324 = vmatpush1.msra.mxu0 0.0
  %6325 = vmatprep.subr.mxu0 0.0
  %6326 = vmatpush1.msra.mxu0 0.0
  %6327 = vmatprep.subr.mxu0 0.0
  %6328 = vmatpush1.msra.mxu0 0.0
  %6329 = vmatprep.subr.mxu0 0.0
  %6330 = vmatpush1.msra.mxu0 0.0
  %6331 = vmatprep.subr.mxu0 0.0
  %6332 = vmatpush1.msra.mxu0 0.0
  %6333 = vmatprep.subr.mxu0 0.0
  %6334 = vmatpush1.msra.mxu0 0.0
  %6335 = vmatprep.subr.mxu0 0.0
  %6336 = vmatpush1.msra.mxu0 0.0
  %6337 = vmatprep.subr.mxu0 0.0
  %6338 = vmatpush1.msra.mxu0 0.0
  %6339 = vmatprep.subr.mxu0 0.0
  %6340 = vmatpush1.msra.mxu0 0.0
  %6341 = vmatprep.mubr.f32.mxu0 0.0
  %6342 = vmatmul.mubr.f32.gmra.mrb[0].mxu0 %v6275
  %v6343 = vpop.f32.mrb[0].mxu0
  %v6344 = vadd.f32 0.0, %v6343
  %v6345 = vpop.f32.mrb[0].mxu0
  %6346 = vdwg.mxu0
  %v6347 = vlaneseq
  %v6348 = vshrl.u32 %v6347, 7
  %v6349 = vsub.s32 2, %v6348
  %v6350 = vrot.slane %v39, %v6349
  %v6351 = vadd.f32 %v6344, %v6350
  %vm6352 = vcmp.gt.f32.partialorder %v6351, 0.0
  %v6353 = vmul.f32 %v6351, 0.01
  %v6354 = vsel %vm6352, %v6351, %v6353
  %v6355 = vlaneseq
  %v6356 = vshrl.u32 %v6355, 7
  %v6357 = vsub.s32 4, %v6356
  %v6358 = vrot.slane %v39, %v6357
  %6360 = vrot.lane.b32.xlu0 %v6358, 32
  %v6361 = vpop.permute.xlu0 %6360
  %v6363 = vadd.f32 %v6344, %v6361
  %v6364 = vld [vmem:[%s7 + $0x60] sm:$0xff]
  %v6365 = vld [vmem:[%s7 + $0x68] sm:$0xff]
  %v6366 = vld [vmem:[%s7 + $0x70] sm:$0xff]
  %v6367 = vld [vmem:[%s7 + $0x78] sm:$0xff]
  %v6368 = vlaneseq
  %v6369 = vshrl.u32 %v6368, 7
  %v6370 = vsub.s32 3, %v6369
  %v6371 = vrot.slane %v39, %v6370
  %v6373 = vsel %vm2632, %v6354, 0
  %6375 = vmatprep.subr.mxu0 0.0
  %6376 = vmatpush1.msra.mxu0 %v6364
  %6377 = vmatprep.subr.mxu0 0.0
  %6378 = vmatpush1.msra.mxu0 %v6365
  %6379 = vmatprep.subr.mxu0 0.0
  %6380 = vmatpush1.msra.mxu0 %v6366
  %6381 = vmatprep.subr.mxu0 0.0
  %6382 = vmatpush1.msra.mxu0 %v6367
  %6383 = vmatprep.subr.mxu0 0.0
  %6384 = vmatpush1.msra.mxu0 0.0
  %6385 = vmatprep.subr.mxu0 0.0
  %6386 = vmatpush1.msra.mxu0 0.0
  %6387 = vmatprep.subr.mxu0 0.0
  %6388 = vmatpush1.msra.mxu0 0.0
  %6389 = vmatprep.subr.mxu0 0.0
  %6390 = vmatpush1.msra.mxu0 0.0
  %6391 = vmatprep.subr.mxu0 0.0
  %6392 = vmatpush1.msra.mxu0 0.0
  %6393 = vmatprep.subr.mxu0 0.0
  %6394 = vmatpush1.msra.mxu0 0.0
  %6395 = vmatprep.subr.mxu0 0.0
  %6396 = vmatpush1.msra.mxu0 0.0
  %6397 = vmatprep.subr.mxu0 0.0
  %6398 = vmatpush1.msra.mxu0 0.0
  %6399 = vmatprep.subr.mxu0 0.0
  %6400 = vmatpush1.msra.mxu0 0.0
  %6401 = vmatprep.subr.mxu0 0.0
  %6402 = vmatpush1.msra.mxu0 0.0
  %6403 = vmatprep.subr.mxu0 0.0
  %6404 = vmatpush1.msra.mxu0 0.0
  %6405 = vmatprep.subr.mxu0 0.0
  %6406 = vmatpush1.msra.mxu0 0.0
  %6407 = vmatprep.subr.mxu0 0.0
  %6408 = vmatpush1.msra.mxu0 0.0
  %6409 = vmatprep.subr.mxu0 0.0
  %6410 = vmatpush1.msra.mxu0 0.0
  %6411 = vmatprep.subr.mxu0 0.0
  %6412 = vmatpush1.msra.mxu0 0.0
  %6413 = vmatprep.subr.mxu0 0.0
  %6414 = vmatpush1.msra.mxu0 0.0
  %6415 = vmatprep.subr.mxu0 0.0
  %6416 = vmatpush1.msra.mxu0 0.0
  %6417 = vmatprep.subr.mxu0 0.0
  %6418 = vmatpush1.msra.mxu0 0.0
  %6419 = vmatprep.subr.mxu0 0.0
  %6420 = vmatpush1.msra.mxu0 0.0
  %6421 = vmatprep.subr.mxu0 0.0
  %6422 = vmatpush1.msra.mxu0 0.0
  %6423 = vmatprep.subr.mxu0 0.0
  %6424 = vmatpush1.msra.mxu0 0.0
  %6425 = vmatprep.subr.mxu0 0.0
  %6426 = vmatpush1.msra.mxu0 0.0
  %6427 = vmatprep.subr.mxu0 0.0
  %6428 = vmatpush1.msra.mxu0 0.0
  %6429 = vmatprep.subr.mxu0 0.0
  %6430 = vmatpush1.msra.mxu0 0.0
  %6431 = vmatprep.subr.mxu0 0.0
  %6432 = vmatpush1.msra.mxu0 0.0
  %6433 = vmatprep.subr.mxu0 0.0
  %6434 = vmatpush1.msra.mxu0 0.0
  %6435 = vmatprep.subr.mxu0 0.0
  %6436 = vmatpush1.msra.mxu0 0.0
  %6437 = vmatprep.subr.mxu0 0.0
  %6438 = vmatpush1.msra.mxu0 0.0
  %6439 = vmatprep.mubr.f32.mxu0 0.0
  %6440 = vmatmul.mubr.f32.gmra.mrb[0].mxu0 %v6373
  %v6441 = vpop.f32.mrb[0].mxu0
  %v6442 = vadd.f32 %v6371, %v6441
  %v6443 = vpop.f32.mrb[0].mxu0
  %6444 = vdwg.mxu0
  %6446 = vrot.lane.b32.xlu0 %v6363, 96
  %v6447 = vpop.permute.xlu0 %6446
  %v6449 = vadd.f32 %v6442, %v6447
  %v6450 = vld [vmem:[%s7 + $0x80] sm:$0xff]
  %v6451 = vld [vmem:[%s7 + $0x88] sm:$0xff]
  %v6452 = vld [vmem:[%s7 + $0x90] sm:$0xff]
  %v6453 = vld [vmem:[%s7 + $0x98] sm:$0xff]
  %v6455 = vsel %vm2632, %v6449, 0
  %6457 = vmatprep.subr.mxu0 0.0
  %6458 = vmatpush1.msra.mxu0 %v6450
  %6459 = vmatprep.subr.mxu0 0.0
  %6460 = vmatpush1.msra.mxu0 %v6451
  %6461 = vmatprep.subr.mxu0 0.0
  %6462 = vmatpush1.msra.mxu0 %v6452
  %6463 = vmatprep.subr.mxu0 0.0
  %6464 = vmatpush1.msra.mxu0 %v6453
  %6465 = vmatprep.subr.mxu0 0.0
  %6466 = vmatpush1.msra.mxu0 0.0
  %6467 = vmatprep.subr.mxu0 0.0
  %6468 = vmatpush1.msra.mxu0 0.0
  %6469 = vmatprep.subr.mxu0 0.0
  %6470 = vmatpush1.msra.mxu0 0.0
  %6471 = vmatprep.subr.mxu0 0.0
  %6472 = vmatpush1.msra.mxu0 0.0
  %6473 = vmatprep.subr.mxu0 0.0
  %6474 = vmatpush1.msra.mxu0 0.0
  %6475 = vmatprep.subr.mxu0 0.0
  %6476 = vmatpush1.msra.mxu0 0.0
  %6477 = vmatprep.subr.mxu0 0.0
  %6478 = vmatpush1.msra.mxu0 0.0
  %6479 = vmatprep.subr.mxu0 0.0
  %6480 = vmatpush1.msra.mxu0 0.0
  %6481 = vmatprep.subr.mxu0 0.0
  %6482 = vmatpush1.msra.mxu0 0.0
  %6483 = vmatprep.subr.mxu0 0.0
  %6484 = vmatpush1.msra.mxu0 0.0
  %6485 = vmatprep.subr.mxu0 0.0
  %6486 = vmatpush1.msra.mxu0 0.0
  %6487 = vmatprep.subr.mxu0 0.0
  %6488 = vmatpush1.msra.mxu0 0.0
  %6489 = vmatprep.subr.mxu0 0.0
  %6490 = vmatpush1.msra.mxu0 0.0
  %6491 = vmatprep.subr.mxu0 0.0
  %6492 = vmatpush1.msra.mxu0 0.0
  %6493 = vmatprep.subr.mxu0 0.0
  %6494 = vmatpush1.msra.mxu0 0.0
  %6495 = vmatprep.subr.mxu0 0.0
  %6496 = vmatpush1.msra.mxu0 0.0
  %6497 = vmatprep.subr.mxu0 0.0
  %6498 = vmatpush1.msra.mxu0 0.0
  %6499 = vmatprep.subr.mxu0 0.0
  %6500 = vmatpush1.msra.mxu0 0.0
  %6501 = vmatprep.subr.mxu0 0.0
  %6502 = vmatpush1.msra.mxu0 0.0
  %6503 = vmatprep.subr.mxu0 0.0
  %6504 = vmatpush1.msra.mxu0 0.0
  %6505 = vmatprep.subr.mxu0 0.0
  %6506 = vmatpush1.msra.mxu0 0.0
  %6507 = vmatprep.subr.mxu0 0.0
  %6508 = vmatpush1.msra.mxu0 0.0
  %6509 = vmatprep.subr.mxu0 0.0
  %6510 = vmatpush1.msra.mxu0 0.0
  %6511 = vmatprep.subr.mxu0 0.0
  %6512 = vmatpush1.msra.mxu0 0.0
  %6513 = vmatprep.subr.mxu0 0.0
  %6514 = vmatpush1.msra.mxu0 0.0
  %6515 = vmatprep.subr.mxu0 0.0
  %6516 = vmatpush1.msra.mxu0 0.0
  %6517 = vmatprep.subr.mxu0 0.0
  %6518 = vmatpush1.msra.mxu0 0.0
  %6519 = vmatprep.subr.mxu0 0.0
  %6520 = vmatpush1.msra.mxu0 0.0
  %6521 = vmatprep.mubr.f32.mxu0 0.0
  %6522 = vmatmul.mubr.f32.gmra.mrb[0].mxu0 %v6455
  %v6523 = vpop.f32.mrb[0].mxu0
  %v6524 = vadd.f32 0.0, %v6523
  %v6525 = vpop.f32.mrb[0].mxu0
  %6526 = vdwg.mxu0
  %v6527 = vlaneseq
  %v6528 = vshrl.u32 %v6527, 7
  %v6529 = vsub.s32 5, %v6528
  %v6530 = vrot.slane %v39, %v6529
  %v6531 = vadd.f32 %v6524, %v6530
  %vm6532 = vcmp.gt.f32.partialorder %v6531, 0.0
  %v6533 = vmul.f32 %v6531, 0.01
  %v6534 = vsel %vm6532, %v6531, %v6533
  %v6535 = vlaneseq
  %v6536 = vshrl.u32 %v6535, 7
  %v6537 = vsub.s32 7, %v6536
  %v6538 = vrot.slane %v39, %v6537
  %6540 = vrot.lane.b32.xlu0 %v6538, 32
  %v6541 = vpop.permute.xlu0 %6540
  %v6543 = vadd.f32 %v6524, %v6541
  %v6544 = vld [vmem:[%s7 + $0xa0] sm:$0xff]
  %v6545 = vld [vmem:[%s7 + $0xa8] sm:$0xff]
  %v6546 = vld [vmem:[%s7 + $0xb0] sm:$0xff]
  %v6547 = vld [vmem:[%s7 + $0xb8] sm:$0xff]
  %v6548 = vlaneseq
  %v6549 = vshrl.u32 %v6548, 7
  %v6550 = vsub.s32 6, %v6549
  %v6551 = vrot.slane %v39, %v6550
  %v6553 = vsel %vm2632, %v6534, 0
  %6555 = vmatprep.subr.mxu0 0.0
  %6556 = vmatpush1.msra.mxu0 %v6544
  %6557 = vmatprep.subr.mxu0 0.0
  %6558 = vmatpush1.msra.mxu0 %v6545
  %6559 = vmatprep.subr.mxu0 0.0
  %6560 = vmatpush1.msra.mxu0 %v6546
  %6561 = vmatprep.subr.mxu0 0.0
  %6562 = vmatpush1.msra.mxu0 %v6547
  %6563 = vmatprep.subr.mxu0 0.0
  %6564 = vmatpush1.msra.mxu0 0.0
  %6565 = vmatprep.subr.mxu0 0.0
  %6566 = vmatpush1.msra.mxu0 0.0
  %6567 = vmatprep.subr.mxu0 0.0
  %6568 = vmatpush1.msra.mxu0 0.0
  %6569 = vmatprep.subr.mxu0 0.0
  %6570 = vmatpush1.msra.mxu0 0.0
  %6571 = vmatprep.subr.mxu0 0.0
  %6572 = vmatpush1.msra.mxu0 0.0
  %6573 = vmatprep.subr.mxu0 0.0
  %6574 = vmatpush1.msra.mxu0 0.0
  %6575 = vmatprep.subr.mxu0 0.0
  %6576 = vmatpush1.msra.mxu0 0.0
  %6577 = vmatprep.subr.mxu0 0.0
  %6578 = vmatpush1.msra.mxu0 0.0
  %6579 = vmatprep.subr.mxu0 0.0
  %6580 = vmatpush1.msra.mxu0 0.0
  %6581 = vmatprep.subr.mxu0 0.0
  %6582 = vmatpush1.msra.mxu0 0.0
  %6583 = vmatprep.subr.mxu0 0.0
  %6584 = vmatpush1.msra.mxu0 0.0
  %6585 = vmatprep.subr.mxu0 0.0
  %6586 = vmatpush1.msra.mxu0 0.0
  %6587 = vmatprep.subr.mxu0 0.0
  %6588 = vmatpush1.msra.mxu0 0.0
  %6589 = vmatprep.subr.mxu0 0.0
  %6590 = vmatpush1.msra.mxu0 0.0
  %6591 = vmatprep.subr.mxu0 0.0
  %6592 = vmatpush1.msra.mxu0 0.0
  %6593 = vmatprep.subr.mxu0 0.0
  %6594 = vmatpush1.msra.mxu0 0.0
  %6595 = vmatprep.subr.mxu0 0.0
  %6596 = vmatpush1.msra.mxu0 0.0
  %6597 = vmatprep.subr.mxu0 0.0
  %6598 = vmatpush1.msra.mxu0 0.0
  %6599 = vmatprep.subr.mxu0 0.0
  %6600 = vmatpush1.msra.mxu0 0.0
  %6601 = vmatprep.subr.mxu0 0.0
  %6602 = vmatpush1.msra.mxu0 0.0
  %6603 = vmatprep.subr.mxu0 0.0
  %6604 = vmatpush1.msra.mxu0 0.0
  %6605 = vmatprep.subr.mxu0 0.0
  %6606 = vmatpush1.msra.mxu0 0.0
  %6607 = vmatprep.subr.mxu0 0.0
  %6608 = vmatpush1.msra.mxu0 0.0
  %6609 = vmatprep.subr.mxu0 0.0
  %6610 = vmatpush1.msra.mxu0 0.0
  %6611 = vmatprep.subr.mxu0 0.0
  %6612 = vmatpush1.msra.mxu0 0.0
  %6613 = vmatprep.subr.mxu0 0.0
  %6614 = vmatpush1.msra.mxu0 0.0
  %6615 = vmatprep.subr.mxu0 0.0
  %6616 = vmatpush1.msra.mxu0 0.0
  %6617 = vmatprep.subr.mxu0 0.0
  %6618 = vmatpush1.msra.mxu0 0.0
  %6619 = vmatprep.mubr.f32.mxu0 0.0
  %6620 = vmatmul.mubr.f32.gmra.mrb[0].mxu0 %v6553
  %v6621 = vpop.f32.mrb[0].mxu0
  %v6622 = vadd.f32 %v6551, %v6621
  %v6623 = vpop.f32.mrb[0].mxu0
  %6624 = vdwg.mxu0
  %6626 = vrot.lane.b32.xlu0 %v6543, 96
  %v6627 = vpop.permute.xlu0 %6626
  %v6629 = vadd.f32 %v6622, %v6627
  %v6630 = vld [vmem:[%s7 + $0xc0] sm:$0xff]
  %v6631 = vld [vmem:[%s7 + $0xc8] sm:$0xff]
  %v6632 = vld [vmem:[%s7 + $0xd0] sm:$0xff]
  %v6633 = vld [vmem:[%s7 + $0xd8] sm:$0xff]
  %v6635 = vsel %vm2632, %v6629, 0
  %6637 = vmatprep.subr.mxu0 0.0
  %6638 = vmatpush1.msra.mxu0 %v6630
  %6639 = vmatprep.subr.mxu0 0.0
  %6640 = vmatpush1.msra.mxu0 %v6631
  %6641 = vmatprep.subr.mxu0 0.0
  %6642 = vmatpush1.msra.mxu0 %v6632
  %6643 = vmatprep.subr.mxu0 0.0
  %6644 = vmatpush1.msra.mxu0 %v6633
  %6645 = vmatprep.subr.mxu0 0.0
  %6646 = vmatpush1.msra.mxu0 0.0
  %6647 = vmatprep.subr.mxu0 0.0
  %6648 = vmatpush1.msra.mxu0 0.0
  %6649 = vmatprep.subr.mxu0 0.0
  %6650 = vmatpush1.msra.mxu0 0.0
  %6651 = vmatprep.subr.mxu0 0.0
  %6652 = vmatpush1.msra.mxu0 0.0
  %6653 = vmatprep.subr.mxu0 0.0
  %6654 = vmatpush1.msra.mxu0 0.0
  %6655 = vmatprep.subr.mxu0 0.0
  %6656 = vmatpush1.msra.mxu0 0.0
  %6657 = vmatprep.subr.mxu0 0.0
  %6658 = vmatpush1.msra.mxu0 0.0
  %6659 = vmatprep.subr.mxu0 0.0
  %6660 = vmatpush1.msra.mxu0 0.0
  %6661 = vmatprep.subr.mxu0 0.0
  %6662 = vmatpush1.msra.mxu0 0.0
  %6663 = vmatprep.subr.mxu0 0.0
  %6664 = vmatpush1.msra.mxu0 0.0
  %6665 = vmatprep.subr.mxu0 0.0
  %6666 = vmatpush1.msra.mxu0 0.0
  %6667 = vmatprep.subr.mxu0 0.0
  %6668 = vmatpush1.msra.mxu0 0.0
  %6669 = vmatprep.subr.mxu0 0.0
  %6670 = vmatpush1.msra.mxu0 0.0
  %6671 = vmatprep.subr.mxu0 0.0
  %6672 = vmatpush1.msra.mxu0 0.0
  %6673 = vmatprep.subr.mxu0 0.0
  %6674 = vmatpush1.msra.mxu0 0.0
  %6675 = vmatprep.subr.mxu0 0.0
  %6676 = vmatpush1.msra.mxu0 0.0
  %6677 = vmatprep.subr.mxu0 0.0
  %6678 = vmatpush1.msra.mxu0 0.0
  %6679 = vmatprep.subr.mxu0 0.0
  %6680 = vmatpush1.msra.mxu0 0.0
  %6681 = vmatprep.subr.mxu0 0.0
  %6682 = vmatpush1.msra.mxu0 0.0
  %6683 = vmatprep.subr.mxu0 0.0
  %6684 = vmatpush1.msra.mxu0 0.0
  %6685 = vmatprep.subr.mxu0 0.0
  %6686 = vmatpush1.msra.mxu0 0.0
  %6687 = vmatprep.subr.mxu0 0.0
  %6688 = vmatpush1.msra.mxu0 0.0
  %6689 = vmatprep.subr.mxu0 0.0
  %6690 = vmatpush1.msra.mxu0 0.0
  %6691 = vmatprep.subr.mxu0 0.0
  %6692 = vmatpush1.msra.mxu0 0.0
  %6693 = vmatprep.subr.mxu0 0.0
  %6694 = vmatpush1.msra.mxu0 0.0
  %6695 = vmatprep.subr.mxu0 0.0
  %6696 = vmatpush1.msra.mxu0 0.0
  %6697 = vmatprep.subr.mxu0 0.0
  %6698 = vmatpush1.msra.mxu0 0.0
  %6699 = vmatprep.subr.mxu0 0.0
  %6700 = vmatpush1.msra.mxu0 0.0
  %6701 = vmatprep.mubr.f32.mxu0 0.0
  %6702 = vmatmul.mubr.f32.gmra.mrb[0].mxu0 %v6635
  %v6703 = vpop.f32.mrb[0].mxu0
  %v6704 = vadd.f32 0.0, %v6703
  %v6705 = vpop.f32.mrb[0].mxu0
  %6706 = vdwg.mxu0
  %v6707 = vlaneseq
  %v6708 = vshrl.u32 %v6707, 7
  %v6709 = vsub.s32 0, %v6708
  %v6710 = vrot.slane %v40, %v6709
  %v6711 = vadd.f32 %v6704, %v6710
  %vm6712 = vcmp.gt.f32.partialorder %v6711, 0.0
  %v6713 = vmul.f32 %v6711, 0.01
  %v6714 = vsel %vm6712, %v6711, %v6713
  %v6715 = vlaneseq
  %v6716 = vshrl.u32 %v6715, 7
  %v6717 = vsub.s32 2, %v6716
  %v6718 = vrot.slane %v40, %v6717
  %6720 = vrot.lane.b32.xlu0 %v6718, 32
  %v6721 = vpop.permute.xlu0 %6720
  %v6723 = vadd.f32 %v6704, %v6721
  %v6724 = vld [vmem:[%s7 + $0xe0] sm:$0xff]
  %v6725 = vld [vmem:[%s7 + $0xe8] sm:$0xff]
  %v6726 = vld [vmem:[%s7 + $0xf0] sm:$0xff]
  %v6727 = vld [vmem:[%s7 + $0xf8] sm:$0xff]
  %v6728 = vlaneseq
  %v6729 = vshrl.u32 %v6728, 7
  %v6730 = vsub.s32 1, %v6729
  %v6731 = vrot.slane %v40, %v6730
  %v6733 = vsel %vm2632, %v6714, 0
  %6735 = vmatprep.subr.mxu0 0.0
  %6736 = vmatpush1.msra.mxu0 %v6724
  %6737 = vmatprep.subr.mxu0 0.0
  %6738 = vmatpush1.msra.mxu0 %v6725
  %6739 = vmatprep.subr.mxu0 0.0
  %6740 = vmatpush1.msra.mxu0 %v6726
  %6741 = vmatprep.subr.mxu0 0.0
  %6742 = vmatpush1.msra.mxu0 %v6727
  %6743 = vmatprep.subr.mxu0 0.0
  %6744 = vmatpush1.msra.mxu0 0.0
  %6745 = vmatprep.subr.mxu0 0.0
  %6746 = vmatpush1.msra.mxu0 0.0
  %6747 = vmatprep.subr.mxu0 0.0
  %6748 = vmatpush1.msra.mxu0 0.0
  %6749 = vmatprep.subr.mxu0 0.0
  %6750 = vmatpush1.msra.mxu0 0.0
  %6751 = vmatprep.subr.mxu0 0.0
  %6752 = vmatpush1.msra.mxu0 0.0
  %6753 = vmatprep.subr.mxu0 0.0
  %6754 = vmatpush1.msra.mxu0 0.0
  %6755 = vmatprep.subr.mxu0 0.0
  %6756 = vmatpush1.msra.mxu0 0.0
  %6757 = vmatprep.subr.mxu0 0.0
  %6758 = vmatpush1.msra.mxu0 0.0
  %6759 = vmatprep.subr.mxu0 0.0
  %6760 = vmatpush1.msra.mxu0 0.0
  %6761 = vmatprep.subr.mxu0 0.0
  %6762 = vmatpush1.msra.mxu0 0.0
  %6763 = vmatprep.subr.mxu0 0.0
  %6764 = vmatpush1.msra.mxu0 0.0
  %6765 = vmatprep.subr.mxu0 0.0
  %6766 = vmatpush1.msra.mxu0 0.0
  %6767 = vmatprep.subr.mxu0 0.0
  %6768 = vmatpush1.msra.mxu0 0.0
  %6769 = vmatprep.subr.mxu0 0.0
  %6770 = vmatpush1.msra.mxu0 0.0
  %6771 = vmatprep.subr.mxu0 0.0
  %6772 = vmatpush1.msra.mxu0 0.0
  %6773 = vmatprep.subr.mxu0 0.0
  %6774 = vmatpush1.msra.mxu0 0.0
  %6775 = vmatprep.subr.mxu0 0.0
  %6776 = vmatpush1.msra.mxu0 0.0
  %6777 = vmatprep.subr.mxu0 0.0
  %6778 = vmatpush1.msra.mxu0 0.0
  %6779 = vmatprep.subr.mxu0 0.0
  %6780 = vmatpush1.msra.mxu0 0.0
  %6781 = vmatprep.subr.mxu0 0.0
  %6782 = vmatpush1.msra.mxu0 0.0
  %6783 = vmatprep.subr.mxu0 0.0
  %6784 = vmatpush1.msra.mxu0 0.0
  %6785 = vmatprep.subr.mxu0 0.0
  %6786 = vmatpush1.msra.mxu0 0.0
  %6787 = vmatprep.subr.mxu0 0.0
  %6788 = vmatpush1.msra.mxu0 0.0
  %6789 = vmatprep.subr.mxu0 0.0
  %6790 = vmatpush1.msra.mxu0 0.0
  %6791 = vmatprep.subr.mxu0 0.0
  %6792 = vmatpush1.msra.mxu0 0.0
  %6793 = vmatprep.subr.mxu0 0.0
  %6794 = vmatpush1.msra.mxu0 0.0
  %6795 = vmatprep.subr.mxu0 0.0
  %6796 = vmatpush1.msra.mxu0 0.0
  %6797 = vmatprep.subr.mxu0 0.0
  %6798 = vmatpush1.msra.mxu0 0.0
  %6799 = vmatprep.mubr.f32.mxu0 0.0
  %6800 = vmatmul.mubr.f32.gmra.mrb[0].mxu0 %v6733
  %v6801 = vpop.f32.mrb[0].mxu0
  %v6802 = vadd.f32 %v6731, %v6801
  %v6803 = vpop.f32.mrb[0].mxu0
  %6804 = vdwg.mxu0
  %6806 = vrot.lane.b32.xlu0 %v6723, 96
  %v6807 = vpop.permute.xlu0 %6806
  %v6809 = vadd.f32 %v6802, %v6807
  %v6810 = vld [vmem:[%s7 + $0x100] sm:$0xff]
  %v6811 = vld [vmem:[%s7 + $0x108] sm:$0xff]
  %v6812 = vld [vmem:[%s7 + $0x110] sm:$0xff]
  %v6813 = vld [vmem:[%s7 + $0x118] sm:$0xff]
  %v6815 = vsel %vm2632, %v6809, 0
  %6817 = vmatprep.subr.mxu0 0.0
  %6818 = vmatpush1.msra.mxu0 %v6810
  %6819 = vmatprep.subr.mxu0 0.0
  %6820 = vmatpush1.msra.mxu0 %v6811
  %6821 = vmatprep.subr.mxu0 0.0
  %6822 = vmatpush1.msra.mxu0 %v6812
  %6823 = vmatprep.subr.mxu0 0.0
  %6824 = vmatpush1.msra.mxu0 %v6813
  %6825 = vmatprep.subr.mxu0 0.0
  %6826 = vmatpush1.msra.mxu0 0.0
  %6827 = vmatprep.subr.mxu0 0.0
  %6828 = vmatpush1.msra.mxu0 0.0
  %6829 = vmatprep.subr.mxu0 0.0
  %6830 = vmatpush1.msra.mxu0 0.0
  %6831 = vmatprep.subr.mxu0 0.0
  %6832 = vmatpush1.msra.mxu0 0.0
  %6833 = vmatprep.subr.mxu0 0.0
  %6834 = vmatpush1.msra.mxu0 0.0
  %6835 = vmatprep.subr.mxu0 0.0
  %6836 = vmatpush1.msra.mxu0 0.0
  %6837 = vmatprep.subr.mxu0 0.0
  %6838 = vmatpush1.msra.mxu0 0.0
  %6839 = vmatprep.subr.mxu0 0.0
  %6840 = vmatpush1.msra.mxu0 0.0
  %6841 = vmatprep.subr.mxu0 0.0
  %6842 = vmatpush1.msra.mxu0 0.0
  %6843 = vmatprep.subr.mxu0 0.0
  %6844 = vmatpush1.msra.mxu0 0.0
  %6845 = vmatprep.subr.mxu0 0.0
  %6846 = vmatpush1.msra.mxu0 0.0
  %6847 = vmatprep.subr.mxu0 0.0
  %6848 = vmatpush1.msra.mxu0 0.0
  %6849 = vmatprep.subr.mxu0 0.0
  %6850 = vmatpush1.msra.mxu0 0.0
  %6851 = vmatprep.subr.mxu0 0.0
  %6852 = vmatpush1.msra.mxu0 0.0
  %6853 = vmatprep.subr.mxu0 0.0
  %6854 = vmatpush1.msra.mxu0 0.0
  %6855 = vmatprep.subr.mxu0 0.0
  %6856 = vmatpush1.msra.mxu0 0.0
  %6857 = vmatprep.subr.mxu0 0.0
  %6858 = vmatpush1.msra.mxu0 0.0
  %6859 = vmatprep.subr.mxu0 0.0
  %6860 = vmatpush1.msra.mxu0 0.0
  %6861 = vmatprep.subr.mxu0 0.0
  %6862 = vmatpush1.msra.mxu0 0.0
  %6863 = vmatprep.subr.mxu0 0.0
  %6864 = vmatpush1.msra.mxu0 0.0
  %6865 = vmatprep.subr.mxu0 0.0
  %6866 = vmatpush1.msra.mxu0 0.0
  %6867 = vmatprep.subr.mxu0 0.0
  %6868 = vmatpush1.msra.mxu0 0.0
  %6869 = vmatprep.subr.mxu0 0.0
  %6870 = vmatpush1.msra.mxu0 0.0
  %6871 = vmatprep.subr.mxu0 0.0
  %6872 = vmatpush1.msra.mxu0 0.0
  %6873 = vmatprep.subr.mxu0 0.0
  %6874 = vmatpush1.msra.mxu0 0.0
  %6875 = vmatprep.subr.mxu0 0.0
  %6876 = vmatpush1.msra.mxu0 0.0
  %6877 = vmatprep.subr.mxu0 0.0
  %6878 = vmatpush1.msra.mxu0 0.0
  %6879 = vmatprep.subr.mxu0 0.0
  %6880 = vmatpush1.msra.mxu0 0.0
  %6881 = vmatprep.mubr.f32.mxu0 0.0
  %6882 = vmatmul.mubr.f32.gmra.mrb[0].mxu0 %v6815
  %v6883 = vpop.f32.mrb[0].mxu0
  %v6884 = vadd.f32 0.0, %v6883
  %v6885 = vpop.f32.mrb[0].mxu0
  %6886 = vdwg.mxu0
  %v6887 = vlaneseq
  %v6888 = vshrl.u32 %v6887, 7
  %v6889 = vsub.s32 3, %v6888
  %v6890 = vrot.slane %v40, %v6889
  %v6891 = vadd.f32 %v6884, %v6890
  %vm6892 = vcmp.gt.f32.partialorder %v6891, 0.0
  %v6893 = vmul.f32 %v6891, 0.01
  %v6894 = vsel %vm6892, %v6891, %v6893
  %v6895 = vlaneseq
  %v6896 = vshrl.u32 %v6895, 7
  %v6897 = vsub.s32 5, %v6896
  %v6898 = vrot.slane %v40, %v6897
  %6900 = vrot.lane.b32.xlu0 %v6898, 32
  %v6901 = vpop.permute.xlu0 %6900
  %v6903 = vadd.f32 %v6884, %v6901
  %v6904 = vld [vmem:[%s7 + $0x120] sm:$0xff]
  %v6905 = vld [vmem:[%s7 + $0x128] sm:$0xff]
  %v6906 = vld [vmem:[%s7 + $0x130] sm:$0xff]
  %v6907 = vld [vmem:[%s7 + $0x138] sm:$0xff]
  %v6908 = vlaneseq
  %v6909 = vshrl.u32 %v6908, 7
  %v6910 = vsub.s32 4, %v6909
  %v6911 = vrot.slane %v40, %v6910
  %v6913 = vsel %vm2632, %v6894, 0
  %6915 = vmatprep.subr.mxu0 0.0
  %6916 = vmatpush1.msra.mxu0 %v6904
  %6917 = vmatprep.subr.mxu0 0.0
  %6918 = vmatpush1.msra.mxu0 %v6905
  %6919 = vmatprep.subr.mxu0 0.0
  %6920 = vmatpush1.msra.mxu0 %v6906
  %6921 = vmatprep.subr.mxu0 0.0
  %6922 = vmatpush1.msra.mxu0 %v6907
  %6923 = vmatprep.subr.mxu0 0.0
  %6924 = vmatpush1.msra.mxu0 0.0
  %6925 = vmatprep.subr.mxu0 0.0
  %6926 = vmatpush1.msra.mxu0 0.0
  %6927 = vmatprep.subr.mxu0 0.0
  %6928 = vmatpush1.msra.mxu0 0.0
  %6929 = vmatprep.subr.mxu0 0.0
  %6930 = vmatpush1.msra.mxu0 0.0
  %6931 = vmatprep.subr.mxu0 0.0
  %6932 = vmatpush1.msra.mxu0 0.0
  %6933 = vmatprep.subr.mxu0 0.0
  %6934 = vmatpush1.msra.mxu0 0.0
  %6935 = vmatprep.subr.mxu0 0.0
  %6936 = vmatpush1.msra.mxu0 0.0
  %6937 = vmatprep.subr.mxu0 0.0
  %6938 = vmatpush1.msra.mxu0 0.0
  %6939 = vmatprep.subr.mxu0 0.0
  %6940 = vmatpush1.msra.mxu0 0.0
  %6941 = vmatprep.subr.mxu0 0.0
  %6942 = vmatpush1.msra.mxu0 0.0
  %6943 = vmatprep.subr.mxu0 0.0
  %6944 = vmatpush1.msra.mxu0 0.0
  %6945 = vmatprep.subr.mxu0 0.0
  %6946 = vmatpush1.msra.mxu0 0.0
  %6947 = vmatprep.subr.mxu0 0.0
  %6948 = vmatpush1.msra.mxu0 0.0
  %6949 = vmatprep.subr.mxu0 0.0
  %6950 = vmatpush1.msra.mxu0 0.0
  %6951 = vmatprep.subr.mxu0 0.0
  %6952 = vmatpush1.msra.mxu0 0.0
  %6953 = vmatprep.subr.mxu0 0.0
  %6954 = vmatpush1.msra.mxu0 0.0
  %6955 = vmatprep.subr.mxu0 0.0
  %6956 = vmatpush1.msra.mxu0 0.0
  %6957 = vmatprep.subr.mxu0 0.0
  %6958 = vmatpush1.msra.mxu0 0.0
  %6959 = vmatprep.subr.mxu0 0.0
  %6960 = vmatpush1.msra.mxu0 0.0
  %6961 = vmatprep.subr.mxu0 0.0
  %6962 = vmatpush1.msra.mxu0 0.0
  %6963 = vmatprep.subr.mxu0 0.0
  %6964 = vmatpush1.msra.mxu0 0.0
  %6965 = vmatprep.subr.mxu0 0.0
  %6966 = vmatpush1.msra.mxu0 0.0
  %6967 = vmatprep.subr.mxu0 0.0
  %6968 = vmatpush1.msra.mxu0 0.0
  %6969 = vmatprep.subr.mxu0 0.0
  %6970 = vmatpush1.msra.mxu0 0.0
  %6971 = vmatprep.subr.mxu0 0.0
  %6972 = vmatpush1.msra.mxu0 0.0
  %6973 = vmatprep.subr.mxu0 0.0
  %6974 = vmatpush1.msra.mxu0 0.0
  %6975 = vmatprep.subr.mxu0 0.0
  %6976 = vmatpush1.msra.mxu0 0.0
  %6977 = vmatprep.subr.mxu0 0.0
  %6978 = vmatpush1.msra.mxu0 0.0
  %6979 = vmatprep.mubr.f32.mxu0 0.0
  %6980 = vmatmul.mubr.f32.gmra.mrb[0].mxu0 %v6913
  %v6981 = vpop.f32.mrb[0].mxu0
  %v6982 = vadd.f32 %v6911, %v6981
  %v6983 = vpop.f32.mrb[0].mxu0
  %6984 = vdwg.mxu0
  %6986 = vrot.lane.b32.xlu0 %v6903, 96
  %v6987 = vpop.permute.xlu0 %6986
  %v6989 = vadd.f32 %v6982, %v6987
  %v6990 = vld [vmem:[%s7 + $0x140] sm:$0xff]
  %v6991 = vld [vmem:[%s7 + $0x148] sm:$0xff]
  %v6992 = vld [vmem:[%s7 + $0x150] sm:$0xff]
  %v6993 = vld [vmem:[%s7 + $0x158] sm:$0xff]
  %v6995 = vsel %vm2632, %v6989, 0
  %6997 = vmatprep.subr.mxu0 0.0
  %6998 = vmatpush1.msra.mxu0 %v6990
  %6999 = vmatprep.subr.mxu0 0.0
  %7000 = vmatpush1.msra.mxu0 %v6991
  %7001 = vmatprep.subr.mxu0 0.0
  %7002 = vmatpush1.msra.mxu0 %v6992
  %7003 = vmatprep.subr.mxu0 0.0
  %7004 = vmatpush1.msra.mxu0 %v6993
  %7005 = vmatprep.subr.mxu0 0.0
  %7006 = vmatpush1.msra.mxu0 0.0
  %7007 = vmatprep.subr.mxu0 0.0
  %7008 = vmatpush1.msra.mxu0 0.0
  %7009 = vmatprep.subr.mxu0 0.0
  %7010 = vmatpush1.msra.mxu0 0.0
  %7011 = vmatprep.subr.mxu0 0.0
  %7012 = vmatpush1.msra.mxu0 0.0
  %7013 = vmatprep.subr.mxu0 0.0
  %7014 = vmatpush1.msra.mxu0 0.0
  %7015 = vmatprep.subr.mxu0 0.0
  %7016 = vmatpush1.msra.mxu0 0.0
  %7017 = vmatprep.subr.mxu0 0.0
  %7018 = vmatpush1.msra.mxu0 0.0
  %7019 = vmatprep.subr.mxu0 0.0
  %7020 = vmatpush1.msra.mxu0 0.0
  %7021 = vmatprep.subr.mxu0 0.0
  %7022 = vmatpush1.msra.mxu0 0.0
  %7023 = vmatprep.subr.mxu0 0.0
  %7024 = vmatpush1.msra.mxu0 0.0
  %7025 = vmatprep.subr.mxu0 0.0
  %7026 = vmatpush1.msra.mxu0 0.0
  %7027 = vmatprep.subr.mxu0 0.0
  %7028 = vmatpush1.msra.mxu0 0.0
  %7029 = vmatprep.subr.mxu0 0.0
  %7030 = vmatpush1.msra.mxu0 0.0
  %7031 = vmatprep.subr.mxu0 0.0
  %7032 = vmatpush1.msra.mxu0 0.0
  %7033 = vmatprep.subr.mxu0 0.0
  %7034 = vmatpush1.msra.mxu0 0.0
  %7035 = vmatprep.subr.mxu0 0.0
  %7036 = vmatpush1.msra.mxu0 0.0
  %7037 = vmatprep.subr.mxu0 0.0
  %7038 = vmatpush1.msra.mxu0 0.0
  %7039 = vmatprep.subr.mxu0 0.0
  %7040 = vmatpush1.msra.mxu0 0.0
  %7041 = vmatprep.subr.mxu0 0.0
  %7042 = vmatpush1.msra.mxu0 0.0
  %7043 = vmatprep.subr.mxu0 0.0
  %7044 = vmatpush1.msra.mxu0 0.0
  %7045 = vmatprep.subr.mxu0 0.0
  %7046 = vmatpush1.msra.mxu0 0.0
  %7047 = vmatprep.subr.mxu0 0.0
  %7048 = vmatpush1.msra.mxu0 0.0
  %7049 = vmatprep.subr.mxu0 0.0
  %7050 = vmatpush1.msra.mxu0 0.0
  %7051 = vmatprep.subr.mxu0 0.0
  %7052 = vmatpush1.msra.mxu0 0.0
  %7053 = vmatprep.subr.mxu0 0.0
  %7054 = vmatpush1.msra.mxu0 0.0
  %7055 = vmatprep.subr.mxu0 0.0
  %7056 = vmatpush1.msra.mxu0 0.0
  %7057 = vmatprep.subr.mxu0 0.0
  %7058 = vmatpush1.msra.mxu0 0.0
  %7059 = vmatprep.subr.mxu0 0.0
  %7060 = vmatpush1.msra.mxu0 0.0
  %7061 = vmatprep.mubr.f32.mxu0 0.0
  %7062 = vmatmul.mubr.f32.gmra.mrb[0].mxu0 %v6995
  %v7063 = vpop.f32.mrb[0].mxu0
  %v7064 = vadd.f32 0.0, %v7063
  %v7065 = vpop.f32.mrb[0].mxu0
  %7066 = vdwg.mxu0
  %v7067 = vlaneseq
  %v7068 = vshrl.u32 %v7067, 7
  %v7069 = vsub.s32 6, %v7068
  %v7070 = vrot.slane %v40, %v7069
  %v7071 = vadd.f32 %v7064, %v7070
  %vm7072 = vcmp.gt.f32.partialorder %v7071, 0.0
  %v7073 = vmul.f32 %v7071, 0.01
  %v7074 = vsel %vm7072, %v7071, %v7073
  %v7075 = vlaneseq
  %v7076 = vshrl.u32 %v7075, 7
  %v7077 = vsub.s32 0, %v7076
  %v7078 = vrot.slane %v41, %v7077
  %7080 = vrot.lane.b32.xlu0 %v7078, 32
  %v7081 = vpop.permute.xlu0 %7080
  %v7083 = vadd.f32 %v7064, %v7081
  %v7084 = vld [vmem:[%s7 + $0x160] sm:$0xff]
  %v7085 = vld [vmem:[%s7 + $0x168] sm:$0xff]
  %v7086 = vld [vmem:[%s7 + $0x170] sm:$0xff]
  %v7087 = vld [vmem:[%s7 + $0x178] sm:$0xff]
  %v7088 = vlaneseq
  %v7089 = vshrl.u32 %v7088, 7
  %v7090 = vsub.s32 7, %v7089
  %v7091 = vrot.slane %v40, %v7090
  %v7093 = vsel %vm2632, %v7074, 0
  %7095 = vmatprep.subr.mxu0 0.0
  %7096 = vmatpush1.msra.mxu0 %v7084
  %7097 = vmatprep.subr.mxu0 0.0
  %7098 = vmatpush1.msra.mxu0 %v7085
  %7099 = vmatprep.subr.mxu0 0.0
  %7100 = vmatpush1.msra.mxu0 %v7086
  %7101 = vmatprep.subr.mxu0 0.0
  %7102 = vmatpush1.msra.mxu0 %v7087
  %7103 = vmatprep.subr.mxu0 0.0
  %7104 = vmatpush1.msra.mxu0 0.0
  %7105 = vmatprep.subr.mxu0 0.0
  %7106 = vmatpush1.msra.mxu0 0.0
  %7107 = vmatprep.subr.mxu0 0.0
  %7108 = vmatpush1.msra.mxu0 0.0
  %7109 = vmatprep.subr.mxu0 0.0
  %7110 = vmatpush1.msra.mxu0 0.0
  %7111 = vmatprep.subr.mxu0 0.0
  %7112 = vmatpush1.msra.mxu0 0.0
  %7113 = vmatprep.subr.mxu0 0.0
  %7114 = vmatpush1.msra.mxu0 0.0
  %7115 = vmatprep.subr.mxu0 0.0
  %7116 = vmatpush1.msra.mxu0 0.0
  %7117 = vmatprep.subr.mxu0 0.0
  %7118 = vmatpush1.msra.mxu0 0.0
  %7119 = vmatprep.subr.mxu0 0.0
  %7120 = vmatpush1.msra.mxu0 0.0
  %7121 = vmatprep.subr.mxu0 0.0
  %7122 = vmatpush1.msra.mxu0 0.0
  %7123 = vmatprep.subr.mxu0 0.0
  %7124 = vmatpush1.msra.mxu0 0.0
  %7125 = vmatprep.subr.mxu0 0.0
  %7126 = vmatpush1.msra.mxu0 0.0
  %7127 = vmatprep.subr.mxu0 0.0
  %7128 = vmatpush1.msra.mxu0 0.0
  %7129 = vmatprep.subr.mxu0 0.0
  %7130 = vmatpush1.msra.mxu0 0.0
  %7131 = vmatprep.subr.mxu0 0.0
  %7132 = vmatpush1.msra.mxu0 0.0
  %7133 = vmatprep.subr.mxu0 0.0
  %7134 = vmatpush1.msra.mxu0 0.0
  %7135 = vmatprep.subr.mxu0 0.0
  %7136 = vmatpush1.msra.mxu0 0.0
  %7137 = vmatprep.subr.mxu0 0.0
  %7138 = vmatpush1.msra.mxu0 0.0
  %7139 = vmatprep.subr.mxu0 0.0
  %7140 = vmatpush1.msra.mxu0 0.0
  %7141 = vmatprep.subr.mxu0 0.0
  %7142 = vmatpush1.msra.mxu0 0.0
  %7143 = vmatprep.subr.mxu0 0.0
  %7144 = vmatpush1.msra.mxu0 0.0
  %7145 = vmatprep.subr.mxu0 0.0
  %7146 = vmatpush1.msra.mxu0 0.0
  %7147 = vmatprep.subr.mxu0 0.0
  %7148 = vmatpush1.msra.mxu0 0.0
  %7149 = vmatprep.subr.mxu0 0.0
  %7150 = vmatpush1.msra.mxu0 0.0
  %7151 = vmatprep.subr.mxu0 0.0
  %7152 = vmatpush1.msra.mxu0 0.0
  %7153 = vmatprep.subr.mxu0 0.0
  %7154 = vmatpush1.msra.mxu0 0.0
  %7155 = vmatprep.subr.mxu0 0.0
  %7156 = vmatpush1.msra.mxu0 0.0
  %7157 = vmatprep.subr.mxu0 0.0
  %7158 = vmatpush1.msra.mxu0 0.0
  %7159 = vmatprep.mubr.f32.mxu0 0.0
  %7160 = vmatmul.mubr.f32.gmra.mrb[0].mxu0 %v7093
  %v7161 = vpop.f32.mrb[0].mxu0
  %v7162 = vadd.f32 %v7091, %v7161
  %v7163 = vpop.f32.mrb[0].mxu0
  %7164 = vdwg.mxu0
  %7166 = vrot.lane.b32.xlu0 %v7083, 96
  %v7167 = vpop.permute.xlu0 %7166
  %v7169 = vadd.f32 %v7162, %v7167
  %v7170 = vld [vmem:[%s7 + $0x180] sm:$0xff]
  %v7171 = vld [vmem:[%s7 + $0x188] sm:$0xff]
  %v7172 = vld [vmem:[%s7 + $0x190] sm:$0xff]
  %v7173 = vld [vmem:[%s7 + $0x198] sm:$0xff]
  %v7175 = vsel %vm2632, %v7169, 0
  %7177 = vmatprep.subr.mxu0 0.0
  %7178 = vmatpush1.msra.mxu0 %v7170
  %7179 = vmatprep.subr.mxu0 0.0
  %7180 = vmatpush1.msra.mxu0 %v7171
  %7181 = vmatprep.subr.mxu0 0.0
  %7182 = vmatpush1.msra.mxu0 %v7172
  %7183 = vmatprep.subr.mxu0 0.0
  %7184 = vmatpush1.msra.mxu0 %v7173
  %7185 = vmatprep.subr.mxu0 0.0
  %7186 = vmatpush1.msra.mxu0 0.0
  %7187 = vmatprep.subr.mxu0 0.0
  %7188 = vmatpush1.msra.mxu0 0.0
  %7189 = vmatprep.subr.mxu0 0.0
  %7190 = vmatpush1.msra.mxu0 0.0
  %7191 = vmatprep.subr.mxu0 0.0
  %7192 = vmatpush1.msra.mxu0 0.0
  %7193 = vmatprep.subr.mxu0 0.0
  %7194 = vmatpush1.msra.mxu0 0.0
  %7195 = vmatprep.subr.mxu0 0.0
  %7196 = vmatpush1.msra.mxu0 0.0
  %7197 = vmatprep.subr.mxu0 0.0
  %7198 = vmatpush1.msra.mxu0 0.0
  %7199 = vmatprep.subr.mxu0 0.0
  %7200 = vmatpush1.msra.mxu0 0.0
  %7201 = vmatprep.subr.mxu0 0.0
  %7202 = vmatpush1.msra.mxu0 0.0
  %7203 = vmatprep.subr.mxu0 0.0
  %7204 = vmatpush1.msra.mxu0 0.0
  %7205 = vmatprep.subr.mxu0 0.0
  %7206 = vmatpush1.msra.mxu0 0.0
  %7207 = vmatprep.subr.mxu0 0.0
  %7208 = vmatpush1.msra.mxu0 0.0
  %7209 = vmatprep.subr.mxu0 0.0
  %7210 = vmatpush1.msra.mxu0 0.0
  %7211 = vmatprep.subr.mxu0 0.0
  %7212 = vmatpush1.msra.mxu0 0.0
  %7213 = vmatprep.subr.mxu0 0.0
  %7214 = vmatpush1.msra.mxu0 0.0
  %7215 = vmatprep.subr.mxu0 0.0
  %7216 = vmatpush1.msra.mxu0 0.0
  %7217 = vmatprep.subr.mxu0 0.0
  %7218 = vmatpush1.msra.mxu0 0.0
  %7219 = vmatprep.subr.mxu0 0.0
  %7220 = vmatpush1.msra.mxu0 0.0
  %7221 = vmatprep.subr.mxu0 0.0
  %7222 = vmatpush1.msra.mxu0 0.0
  %7223 = vmatprep.subr.mxu0 0.0
  %7224 = vmatpush1.msra.mxu0 0.0
  %7225 = vmatprep.subr.mxu0 0.0
  %7226 = vmatpush1.msra.mxu0 0.0
  %7227 = vmatprep.subr.mxu0 0.0
  %7228 = vmatpush1.msra.mxu0 0.0
  %7229 = vmatprep.subr.mxu0 0.0
  %7230 = vmatpush1.msra.mxu0 0.0
  %7231 = vmatprep.subr.mxu0 0.0
  %7232 = vmatpush1.msra.mxu0 0.0
  %7233 = vmatprep.subr.mxu0 0.0
  %7234 = vmatpush1.msra.mxu0 0.0
  %7235 = vmatprep.subr.mxu0 0.0
  %7236 = vmatpush1.msra.mxu0 0.0
  %7237 = vmatprep.subr.mxu0 0.0
  %7238 = vmatpush1.msra.mxu0 0.0
  %7239 = vmatprep.subr.mxu0 0.0
  %7240 = vmatpush1.msra.mxu0 0.0
  %7241 = vmatprep.mubr.f32.mxu0 0.0
  %7242 = vmatmul.mubr.f32.gmra.mrb[0].mxu0 %v7175
  %v7243 = vpop.f32.mrb[0].mxu0
  %v7244 = vadd.f32 0.0, %v7243
  %v7245 = vpop.f32.mrb[0].mxu0
  %7246 = vdwg.mxu0
  %v7247 = vlaneseq
  %v7248 = vshrl.u32 %v7247, 7
  %v7249 = vsub.s32 1, %v7248
  %v7250 = vrot.slane %v41, %v7249
  %v7251 = vadd.f32 %v7244, %v7250
  %vm7252 = vcmp.gt.f32.partialorder %v7251, 0.0
  %v7253 = vmul.f32 %v7251, 0.01
  %v7254 = vsel %vm7252, %v7251, %v7253
  %v7255 = vlaneseq
  %v7256 = vshrl.u32 %v7255, 7
  %v7257 = vsub.s32 3, %v7256
  %v7258 = vrot.slane %v41, %v7257
  %7260 = vrot.lane.b32.xlu0 %v7258, 32
  %v7261 = vpop.permute.xlu0 %7260
  %v7263 = vadd.f32 %v7244, %v7261
  %v7264 = vld [vmem:[%s7 + $0x1a0] sm:$0xff]
  %v7265 = vld [vmem:[%s7 + $0x1a8] sm:$0xff]
  %v7266 = vld [vmem:[%s7 + $0x1b0] sm:$0xff]
  %v7267 = vld [vmem:[%s7 + $0x1b8] sm:$0xff]
  %v7268 = vlaneseq
  %v7269 = vshrl.u32 %v7268, 7
  %v7270 = vsub.s32 2, %v7269
  %v7271 = vrot.slane %v41, %v7270
  %v7273 = vsel %vm2632, %v7254, 0
  %7275 = vmatprep.subr.mxu0 0.0
  %7276 = vmatpush1.msra.mxu0 %v7264
  %7277 = vmatprep.subr.mxu0 0.0
  %7278 = vmatpush1.msra.mxu0 %v7265
  %7279 = vmatprep.subr.mxu0 0.0
  %7280 = vmatpush1.msra.mxu0 %v7266
  %7281 = vmatprep.subr.mxu0 0.0
  %7282 = vmatpush1.msra.mxu0 %v7267
  %7283 = vmatprep.subr.mxu0 0.0
  %7284 = vmatpush1.msra.mxu0 0.0
  %7285 = vmatprep.subr.mxu0 0.0
  %7286 = vmatpush1.msra.mxu0 0.0
  %7287 = vmatprep.subr.mxu0 0.0
  %7288 = vmatpush1.msra.mxu0 0.0
  %7289 = vmatprep.subr.mxu0 0.0
  %7290 = vmatpush1.msra.mxu0 0.0
  %7291 = vmatprep.subr.mxu0 0.0
  %7292 = vmatpush1.msra.mxu0 0.0
  %7293 = vmatprep.subr.mxu0 0.0
  %7294 = vmatpush1.msra.mxu0 0.0
  %7295 = vmatprep.subr.mxu0 0.0
  %7296 = vmatpush1.msra.mxu0 0.0
  %7297 = vmatprep.subr.mxu0 0.0
  %7298 = vmatpush1.msra.mxu0 0.0
  %7299 = vmatprep.subr.mxu0 0.0
  %7300 = vmatpush1.msra.mxu0 0.0
  %7301 = vmatprep.subr.mxu0 0.0
  %7302 = vmatpush1.msra.mxu0 0.0
  %7303 = vmatprep.subr.mxu0 0.0
  %7304 = vmatpush1.msra.mxu0 0.0
  %7305 = vmatprep.subr.mxu0 0.0
  %7306 = vmatpush1.msra.mxu0 0.0
  %7307 = vmatprep.subr.mxu0 0.0
  %7308 = vmatpush1.msra.mxu0 0.0
  %7309 = vmatprep.subr.mxu0 0.0
  %7310 = vmatpush1.msra.mxu0 0.0
  %7311 = vmatprep.subr.mxu0 0.0
  %7312 = vmatpush1.msra.mxu0 0.0
  %7313 = vmatprep.subr.mxu0 0.0
  %7314 = vmatpush1.msra.mxu0 0.0
  %7315 = vmatprep.subr.mxu0 0.0
  %7316 = vmatpush1.msra.mxu0 0.0
  %7317 = vmatprep.subr.mxu0 0.0
  %7318 = vmatpush1.msra.mxu0 0.0
  %7319 = vmatprep.subr.mxu0 0.0
  %7320 = vmatpush1.msra.mxu0 0.0
  %7321 = vmatprep.subr.mxu0 0.0
  %7322 = vmatpush1.msra.mxu0 0.0
  %7323 = vmatprep.subr.mxu0 0.0
  %7324 = vmatpush1.msra.mxu0 0.0
  %7325 = vmatprep.subr.mxu0 0.0
  %7326 = vmatpush1.msra.mxu0 0.0
  %7327 = vmatprep.subr.mxu0 0.0
  %7328 = vmatpush1.msra.mxu0 0.0
  %7329 = vmatprep.subr.mxu0 0.0
  %7330 = vmatpush1.msra.mxu0 0.0
  %7331 = vmatprep.subr.mxu0 0.0
  %7332 = vmatpush1.msra.mxu0 0.0
  %7333 = vmatprep.subr.mxu0 0.0
  %7334 = vmatpush1.msra.mxu0 0.0
  %7335 = vmatprep.subr.mxu0 0.0
  %7336 = vmatpush1.msra.mxu0 0.0
  %7337 = vmatprep.subr.mxu0 0.0
  %7338 = vmatpush1.msra.mxu0 0.0
  %7339 = vmatprep.mubr.f32.mxu0 0.0
  %7340 = vmatmul.mubr.f32.gmra.mrb[0].mxu0 %v7273
  %v7341 = vpop.f32.mrb[0].mxu0
  %v7342 = vadd.f32 %v7271, %v7341
  %v7343 = vpop.f32.mrb[0].mxu0
  %7344 = vdwg.mxu0
  %7346 = vrot.lane.b32.xlu0 %v7263, 96
  %v7347 = vpop.permute.xlu0 %7346
  %v7349 = vadd.f32 %v7342, %v7347
  %v7350 = vlaneseq
  %v7351 = vshrl.u32 %v7350, 7
  %v7352 = vsub.s32 4, %v7351
  %v7353 = vrot.slane %v41, %v7352
  %v7354 = vmul.f32 %v7349, %v7353
  %v7355 = vlaneseq
  %v7356 = vshrl.u32 %v7355, 7
  %v7357 = vsub.s32 5, %v7356
  %v7358 = vrot.slane %v41, %v7357
  %v7359 = vadd.f32 %v7354, %v7358
  %vm7360 = vcmp.gt.f32.partialorder %v7359, 0.0
  %v7361 = vmul.f32 %v7359, 0.01
  %v7362 = vsel %vm7360, %v7359, %v7361
  %v7363 = vld [vmem:[%s9] sm:$0xff]
  %v7364 = vld [vmem:[%s9 + $0x8] sm:$0xff]
  %v7365 = vld [vmem:[%s9 + $0x10] sm:$0xff]
  %v7366 = vld [vmem:[%s9 + $0x18] sm:$0xff]
  %v7367 = vlaneseq
  %v7368 = vshrl.u32 %v7367, 7
  %v7369 = vsub.s32 0, %v7368
  %v7370 = vrot.slane %v42, %v7369
  %v7372 = vsel %vm2632, %v7362, 0
  %7374 = vmatprep.subr.mxu0 0.0
  %7375 = vmatpush1.msra.mxu0 %v7363
  %7376 = vmatprep.subr.mxu0 0.0
  %7377 = vmatpush1.msra.mxu0 %v7364
  %7378 = vmatprep.subr.mxu0 0.0
  %7379 = vmatpush1.msra.mxu0 %v7365
  %7380 = vmatprep.subr.mxu0 0.0
  %7381 = vmatpush1.msra.mxu0 %v7366
  %7382 = vmatprep.subr.mxu0 0.0
  %7383 = vmatpush1.msra.mxu0 0.0
  %7384 = vmatprep.subr.mxu0 0.0
  %7385 = vmatpush1.msra.mxu0 0.0
  %7386 = vmatprep.subr.mxu0 0.0
  %7387 = vmatpush1.msra.mxu0 0.0
  %7388 = vmatprep.subr.mxu0 0.0
  %7389 = vmatpush1.msra.mxu0 0.0
  %7390 = vmatprep.subr.mxu0 0.0
  %7391 = vmatpush1.msra.mxu0 0.0
  %7392 = vmatprep.subr.mxu0 0.0
  %7393 = vmatpush1.msra.mxu0 0.0
  %7394 = vmatprep.subr.mxu0 0.0
  %7395 = vmatpush1.msra.mxu0 0.0
  %7396 = vmatprep.subr.mxu0 0.0
  %7397 = vmatpush1.msra.mxu0 0.0
  %7398 = vmatprep.subr.mxu0 0.0
  %7399 = vmatpush1.msra.mxu0 0.0
  %7400 = vmatprep.subr.mxu0 0.0
  %7401 = vmatpush1.msra.mxu0 0.0
  %7402 = vmatprep.subr.mxu0 0.0
  %7403 = vmatpush1.msra.mxu0 0.0
  %7404 = vmatprep.subr.mxu0 0.0
  %7405 = vmatpush1.msra.mxu0 0.0
  %7406 = vmatprep.subr.mxu0 0.0
  %7407 = vmatpush1.msra.mxu0 0.0
  %7408 = vmatprep.subr.mxu0 0.0
  %7409 = vmatpush1.msra.mxu0 0.0
  %7410 = vmatprep.subr.mxu0 0.0
  %7411 = vmatpush1.msra.mxu0 0.0
  %7412 = vmatprep.subr.mxu0 0.0
  %7413 = vmatpush1.msra.mxu0 0.0
  %7414 = vmatprep.subr.mxu0 0.0
  %7415 = vmatpush1.msra.mxu0 0.0
  %7416 = vmatprep.subr.mxu0 0.0
  %7417 = vmatpush1.msra.mxu0 0.0
  %7418 = vmatprep.subr.mxu0 0.0
  %7419 = vmatpush1.msra.mxu0 0.0
  %7420 = vmatprep.subr.mxu0 0.0
  %7421 = vmatpush1.msra.mxu0 0.0
  %7422 = vmatprep.subr.mxu0 0.0
  %7423 = vmatpush1.msra.mxu0 0.0
  %7424 = vmatprep.subr.mxu0 0.0
  %7425 = vmatpush1.msra.mxu0 0.0
  %7426 = vmatprep.subr.mxu0 0.0
  %7427 = vmatpush1.msra.mxu0 0.0
  %7428 = vmatprep.subr.mxu0 0.0
  %7429 = vmatpush1.msra.mxu0 0.0
  %7430 = vmatprep.subr.mxu0 0.0
  %7431 = vmatpush1.msra.mxu0 0.0
  %7432 = vmatprep.subr.mxu0 0.0
  %7433 = vmatpush1.msra.mxu0 0.0
  %7434 = vmatprep.subr.mxu0 0.0
  %7435 = vmatpush1.msra.mxu0 0.0
  %7436 = vmatprep.subr.mxu0 0.0
  %7437 = vmatpush1.msra.mxu0 0.0
  %7438 = vmatprep.mubr.f32.mxu0 0.0
  %7439 = vmatmul.mubr.f32.gmra.mrb[0].mxu0 %v7372
  %v7440 = vpop.f32.mrb[0].mxu0
  %v7441 = vadd.f32 %v7370, %v7440
  %v7442 = vpop.f32.mrb[0].mxu0
  %7443 = vdwg.mxu0
  %vm7444 = vcmp.gt.f32.partialorder %v7441, 0.0
  %v7445 = vmul.f32 %v7441, 0.01
  %v7446 = vsel %vm7444, %v7441, %v7445
  %v7447 = vld [vmem:[%s9 + $0x20] sm:$0xff]
  %v7448 = vld [vmem:[%s9 + $0x28] sm:$0xff]
  %v7449 = vld [vmem:[%s9 + $0x30] sm:$0xff]
  %v7450 = vld [vmem:[%s9 + $0x38] sm:$0xff]
  %v7451 = vld [vmem:[%s9 + $0x40] sm:$0xff]
  %v7452 = vld [vmem:[%s9 + $0x48] sm:$0xff]
  %v7453 = vld [vmem:[%s9 + $0x50] sm:$0xff]
  %v7454 = vld [vmem:[%s9 + $0x58] sm:$0xff]
  %v7455 = vld [vmem:[%s9 + $0x60] sm:$0xff]
  %v7456 = vld [vmem:[%s9 + $0x68] sm:$0xff]
  %v7457 = vld [vmem:[%s9 + $0x70] sm:$0xff]
  %v7458 = vld [vmem:[%s9 + $0x78] sm:$0xff]
  %v7459 = vld [vmem:[%s9 + $0x80] sm:$0xff]
  %v7460 = vld [vmem:[%s9 + $0x88] sm:$0xff]
  %v7461 = vld [vmem:[%s9 + $0x90] sm:$0xff]
  %v7462 = vld [vmem:[%s9 + $0x98] sm:$0xff]
  %v7463 = vlaneseq
  %v7464 = vshrl.u32 %v7463, 7
  %v7465 = vsub.s32 1, %v7464
  %v7466 = vrot.slane %v42, %v7465
  %7467 = vmatprep.subr.mxu0 0.0
  %7468 = vmatpush1.msra.mxu0 %v7447
  %7469 = vmatprep.subr.mxu0 0.0
  %7470 = vmatpush1.msra.mxu0 %v7448
  %7471 = vmatprep.subr.mxu0 0.0
  %7472 = vmatpush1.msra.mxu0 %v7449
  %7473 = vmatprep.subr.mxu0 0.0
  %7474 = vmatpush1.msra.mxu0 %v7450
  %7475 = vmatprep.subr.mxu0 0.0
  %7476 = vmatpush1.msra.mxu0 %v7451
  %7477 = vmatprep.subr.mxu0 0.0
  %7478 = vmatpush1.msra.mxu0 %v7452
  %7479 = vmatprep.subr.mxu0 0.0
  %7480 = vmatpush1.msra.mxu0 %v7453
  %7481 = vmatprep.subr.mxu0 0.0
  %7482 = vmatpush1.msra.mxu0 %v7454
  %7483 = vmatprep.subr.mxu0 0.0
  %7484 = vmatpush1.msra.mxu0 %v7455
  %7485 = vmatprep.subr.mxu0 0.0
  %7486 = vmatpush1.msra.mxu0 %v7456
  %7487 = vmatprep.subr.mxu0 0.0
  %7488 = vmatpush1.msra.mxu0 %v7457
  %7489 = vmatprep.subr.mxu0 0.0
  %7490 = vmatpush1.msra.mxu0 %v7458
  %7491 = vmatprep.subr.mxu0 0.0
  %7492 = vmatpush1.msra.mxu0 %v7459
  %7493 = vmatprep.subr.mxu0 0.0
  %7494 = vmatpush1.msra.mxu0 %v7460
  %7495 = vmatprep.subr.mxu0 0.0
  %7496 = vmatpush1.msra.mxu0 %v7461
  %7497 = vmatprep.subr.mxu0 0.0
  %7498 = vmatpush1.msra.mxu0 %v7462
  %7499 = vmatprep.subr.mxu0 0.0
  %7500 = vmatpush1.msra.mxu0 0.0
  %7501 = vmatprep.subr.mxu0 0.0
  %7502 = vmatpush1.msra.mxu0 0.0
  %7503 = vmatprep.subr.mxu0 0.0
  %7504 = vmatpush1.msra.mxu0 0.0
  %7505 = vmatprep.subr.mxu0 0.0
  %7506 = vmatpush1.msra.mxu0 0.0
  %7507 = vmatprep.subr.mxu0 0.0
  %7508 = vmatpush1.msra.mxu0 0.0
  %7509 = vmatprep.subr.mxu0 0.0
  %7510 = vmatpush1.msra.mxu0 0.0
  %7511 = vmatprep.subr.mxu0 0.0
  %7512 = vmatpush1.msra.mxu0 0.0
  %7513 = vmatprep.subr.mxu0 0.0
  %7514 = vmatpush1.msra.mxu0 0.0
  %7515 = vmatprep.subr.mxu0 0.0
  %7516 = vmatpush1.msra.mxu0 0.0
  %7517 = vmatprep.subr.mxu0 0.0
  %7518 = vmatpush1.msra.mxu0 0.0
  %7519 = vmatprep.subr.mxu0 0.0
  %7520 = vmatpush1.msra.mxu0 0.0
  %7521 = vmatprep.subr.mxu0 0.0
  %7522 = vmatpush1.msra.mxu0 0.0
  %7523 = vmatprep.subr.mxu0 0.0
  %7524 = vmatpush1.msra.mxu0 0.0
  %7525 = vmatprep.subr.mxu0 0.0
  %7526 = vmatpush1.msra.mxu0 0.0
  %7527 = vmatprep.subr.mxu0 0.0
  %7528 = vmatpush1.msra.mxu0 0.0
  %7529 = vmatprep.subr.mxu0 0.0
  %7530 = vmatpush1.msra.mxu0 0.0
  %7531 = vmatprep.mubr.f32.mxu0 0.0
  %7532 = vmatmul.mubr.f32.gmra.mrb[0].mxu0 %v7446
  %v7533 = vpop.f32.mrb[0].mxu0
  %v7534 = vadd.f32 %v7466, %v7533
  %v7535 = vpop.f32.mrb[0].mxu0
  %7536 = vdwg.mxu0
  %vm7537 = vcmp.gt.f32.partialorder %v7534, 0.0
  %v7538 = vmul.f32 %v7534, 0.01
  %v7539 = vsel %vm7537, %v7534, %v7538
  %v7540 = vld [vmem:[%s9 + $0xa0] sm:$0xff]
  %v7541 = vld [vmem:[%s9 + $0xa8] sm:$0xff]
  %v7542 = vld [vmem:[%s9 + $0xb0] sm:$0xff]
  %v7543 = vld [vmem:[%s9 + $0xb8] sm:$0xff]
  %v7544 = vld [vmem:[%s9 + $0xc0] sm:$0xff]
  %v7545 = vld [vmem:[%s9 + $0xc8] sm:$0xff]
  %v7546 = vld [vmem:[%s9 + $0xd0] sm:$0xff]
  %v7547 = vld [vmem:[%s9 + $0xd8] sm:$0xff]
  %v7548 = vld [vmem:[%s9 + $0xe0] sm:$0xff]
  %v7549 = vld [vmem:[%s9 + $0xe8] sm:$0xff]
  %v7550 = vld [vmem:[%s9 + $0xf0] sm:$0xff]
  %v7551 = vld [vmem:[%s9 + $0xf8] sm:$0xff]
  %v7552 = vld [vmem:[%s9 + $0x100] sm:$0xff]
  %v7553 = vld [vmem:[%s9 + $0x108] sm:$0xff]
  %v7554 = vld [vmem:[%s9 + $0x110] sm:$0xff]
  %v7555 = vld [vmem:[%s9 + $0x118] sm:$0xff]
  %v7556 = vlaneseq
  %v7557 = vshrl.u32 %v7556, 7
  %v7558 = vsub.s32 2, %v7557
  %v7559 = vrot.slane %v42, %v7558
  %7560 = vmatprep.subr.mxu0 0.0
  %7561 = vmatpush1.msra.mxu0 %v7540
  %7562 = vmatprep.subr.mxu0 0.0
  %7563 = vmatpush1.msra.mxu0 %v7541
  %7564 = vmatprep.subr.mxu0 0.0
  %7565 = vmatpush1.msra.mxu0 %v7542
  %7566 = vmatprep.subr.mxu0 0.0
  %7567 = vmatpush1.msra.mxu0 %v7543
  %7568 = vmatprep.subr.mxu0 0.0
  %7569 = vmatpush1.msra.mxu0 %v7544
  %7570 = vmatprep.subr.mxu0 0.0
  %7571 = vmatpush1.msra.mxu0 %v7545
  %7572 = vmatprep.subr.mxu0 0.0
  %7573 = vmatpush1.msra.mxu0 %v7546
  %7574 = vmatprep.subr.mxu0 0.0
  %7575 = vmatpush1.msra.mxu0 %v7547
  %7576 = vmatprep.subr.mxu0 0.0
  %7577 = vmatpush1.msra.mxu0 %v7548
  %7578 = vmatprep.subr.mxu0 0.0
  %7579 = vmatpush1.msra.mxu0 %v7549
  %7580 = vmatprep.subr.mxu0 0.0
  %7581 = vmatpush1.msra.mxu0 %v7550
  %7582 = vmatprep.subr.mxu0 0.0
  %7583 = vmatpush1.msra.mxu0 %v7551
  %7584 = vmatprep.subr.mxu0 0.0
  %7585 = vmatpush1.msra.mxu0 %v7552
  %7586 = vmatprep.subr.mxu0 0.0
  %7587 = vmatpush1.msra.mxu0 %v7553
  %7588 = vmatprep.subr.mxu0 0.0
  %7589 = vmatpush1.msra.mxu0 %v7554
  %7590 = vmatprep.subr.mxu0 0.0
  %7591 = vmatpush1.msra.mxu0 %v7555
  %7592 = vmatprep.subr.mxu0 0.0
  %7593 = vmatpush1.msra.mxu0 0.0
  %7594 = vmatprep.subr.mxu0 0.0
  %7595 = vmatpush1.msra.mxu0 0.0
  %7596 = vmatprep.subr.mxu0 0.0
  %7597 = vmatpush1.msra.mxu0 0.0
  %7598 = vmatprep.subr.mxu0 0.0
  %7599 = vmatpush1.msra.mxu0 0.0
  %7600 = vmatprep.subr.mxu0 0.0
  %7601 = vmatpush1.msra.mxu0 0.0
  %7602 = vmatprep.subr.mxu0 0.0
  %7603 = vmatpush1.msra.mxu0 0.0
  %7604 = vmatprep.subr.mxu0 0.0
  %7605 = vmatpush1.msra.mxu0 0.0
  %7606 = vmatprep.subr.mxu0 0.0
  %7607 = vmatpush1.msra.mxu0 0.0
  %7608 = vmatprep.subr.mxu0 0.0
  %7609 = vmatpush1.msra.mxu0 0.0
  %7610 = vmatprep.subr.mxu0 0.0
  %7611 = vmatpush1.msra.mxu0 0.0
  %7612 = vmatprep.subr.mxu0 0.0
  %7613 = vmatpush1.msra.mxu0 0.0
  %7614 = vmatprep.subr.mxu0 0.0
  %7615 = vmatpush1.msra.mxu0 0.0
  %7616 = vmatprep.subr.mxu0 0.0
  %7617 = vmatpush1.msra.mxu0 0.0
  %7618 = vmatprep.subr.mxu0 0.0
  %7619 = vmatpush1.msra.mxu0 0.0
  %7620 = vmatprep.subr.mxu0 0.0
  %7621 = vmatpush1.msra.mxu0 0.0
  %7622 = vmatprep.subr.mxu0 0.0
  %7623 = vmatpush1.msra.mxu0 0.0
  %7624 = vmatprep.mubr.f32.mxu0 0.0
  %7625 = vmatmul.mubr.f32.gmra.mrb[0].mxu0 %v7539
  %v7626 = vpop.f32.mrb[0].mxu0
  %v7627 = vadd.f32 %v7559, %v7626
  %v7628 = vpop.f32.mrb[0].mxu0
  %7629 = vdwg.mxu0
  %7630 = vst [vmem:[%s11] sm:$0xff] %v7627
  // Predicated region
  $region46: #{model_forward.1} parent=0 // pred_check
    _
  $region47: #{model_forward.1} parent=0 // pred_check_branch
    %7632 = sbr.rel (0) target = $region49
  $region48: #{model_forward.1} parent=0 // pred_region
    _
  $region49: #{model_forward.1} parent=0 // pred_fallthru
    _
  // Predicated region
  $region50: #{model_forward.1} parent=0 // pred_check
    _
  $region51: #{model_forward.1} parent=0 // pred_check_branch
    %7634 = sbr.rel (0) target = $region53
  $region52: #{model_forward.1} parent=0 // pred_region
    _
  $region53: #{model_forward.1} parent=0 // pred_fallthru
    _

</llo_original>
